<compile_context>
chip_gen: v5e
topology: v5e:2x2
jax: 0.10.0
libtpu: 0.0.40
codegen_flags: <defaults>
</compile_context>

<pallas_src>
import functools

import jax
import jax.numpy as jnp
from jax import lax
from jax.experimental import pallas as pl
from jax.experimental.pallas import tpu as pltpu

LANE = 128
SUBLANE = 8
CHUNK = 8                      # timesteps per grid step in the recurrence kernels (8-32)
# Explicit scoped-VMEM budget: safe on v5e/v6e (128 MiB physical) and v7x (64 MiB physical).
VMEM_LIMIT = 32 * 1024 * 1024


def _round_up(n, m):
    return (n + m - 1) // m * m


def _pick_tile(n, target, unit):
    """Largest multiple of `unit` that divides `n` and is <= `target` (or n itself if small)."""
    if n <= target:
        return n
    d = (target // unit) * unit
    while d > unit:
        if n % d == 0:
            return d
        d -= unit
    return unit


# ----------------------------------------------------------------------------
# Kernel 1: bulk matmul + bias (out = x @ w + b), 2-D tiled over rows and cols.
# Used for the hoisted input-to-hidden pre-gates (bf16 out) and the fc logits
# head (f32 out).  x / w are bf16; accumulation and bias add in f32.
# ----------------------------------------------------------------------------
def _matmul_bias_kernel(x_ref, w_ref, b_ref, o_ref):
    acc = jnp.dot(x_ref[...], w_ref[...], preferred_element_type=jnp.float32)
    o_ref[...] = (acc + b_ref[...]).astype(o_ref.dtype)


def matmul_bias(x, w, b, *, out_dtype=jnp.float32, row_tile=256, col_tile=512):
    R, K = x.shape
    Kw, C = w.shape
    assert K == Kw
    rt = _pick_tile(R, row_tile, SUBLANE)
    ct = _pick_tile(C, col_tile, LANE)
    return pl.pallas_call(
        _matmul_bias_kernel,
        out_shape=jax.ShapeDtypeStruct((R, C), out_dtype),
        grid=(R // rt, C // ct),
        in_specs=[
            pl.BlockSpec((rt, K), lambda i, j: (i, 0)),
            pl.BlockSpec((K, ct), lambda i, j: (0, j)),
            pl.BlockSpec((1, ct), lambda i, j: (0, j)),
        ],
        out_specs=pl.BlockSpec((rt, ct), lambda i, j: (i, j)),
        compiler_params=pltpu.CompilerParams(
            dimension_semantics=("parallel", "parallel"),
            vmem_limit_bytes=VMEM_LIMIT),
    )(x, w, b)


# ----------------------------------------------------------------------------
# LSTM cell elementwise math (all f32; only the h@W_hh matmul is bf16).
# Gate slices land on 128-lane boundaries (Hp is a lane multiple).
# ----------------------------------------------------------------------------
def _lstm_cell(gates, c_prev, H):
    i = jax.nn.sigmoid(gates[:, 0 * H:1 * H])
    f = jax.nn.sigmoid(gates[:, 1 * H:2 * H])
    g = jnp.tanh(gates[:, 2 * H:3 * H])
    o = jax.nn.sigmoid(gates[:, 3 * H:4 * H])
    c_new = f * c_prev + i * g
    h_new = o * jnp.tanh(c_new)
    return h_new, c_new


# ----------------------------------------------------------------------------
# Kernel 2: encoder recurrence, CHUNK timesteps per grid step.
# pre_ref already holds x_t @ W_ih + b (bf16); per step only h @ W_hh + gates.
# Trailing padded steps (time padded to a CHUNK multiple) are masked so the
# final h/c handed to the decoder is exact.
# ----------------------------------------------------------------------------
def _encoder_recurrence_kernel(pre_ref, whh_ref, h_out_ref, c_out_ref,
                               h_sc, c_sc, *, chunk, t_valid):
    ci = pl.program_id(0)
    H = h_sc.shape[-1]
    needs_mask = (t_valid % chunk) != 0

    @pl.when(ci == 0)
    def _init():
        h_sc[...] = jnp.zeros_like(h_sc)
        c_sc[...] = jnp.zeros_like(c_sc)

    def step(i, carry):
        h_prev = h_sc[...]
        c_prev = c_sc[...]
        gates = pre_ref[i].astype(jnp.float32) + jnp.dot(
            h_prev.astype(jnp.bfloat16), whh_ref[...],
            preferred_element_type=jnp.float32)
        h_new, c_new = _lstm_cell(gates, c_prev, H)
        if needs_mask:
            valid = (ci * chunk + i) < t_valid
            h_new = jnp.where(valid, h_new, h_prev)
            c_new = jnp.where(valid, c_new, c_prev)
        h_sc[...] = h_new
        c_sc[...] = c_new
        return carry

    lax.fori_loop(0, chunk, step, 0, unroll=True)

    @pl.when(ci == pl.num_programs(0) - 1)
    def _finalize():
        h_out_ref[...] = h_sc[...]
        c_out_ref[...] = c_sc[...]


def encoder_recurrence(pre_gates, whh, *, chunk, t_valid):
    Tp, Bp, G = pre_gates.shape
    Hp = G // 4
    assert Tp % chunk == 0
    kernel = functools.partial(_encoder_recurrence_kernel, chunk=chunk, t_valid=t_valid)
    return pl.pallas_call(
        kernel,
        out_shape=(jax.ShapeDtypeStruct((Bp, Hp), jnp.float32),
                   jax.ShapeDtypeStruct((Bp, Hp), jnp.float32)),
        grid=(Tp // chunk,),
        in_specs=[
            pl.BlockSpec((chunk, Bp, G), lambda c: (c, 0, 0)),
            pl.BlockSpec((Hp, G), lambda c: (0, 0)),   # W_hh resident in VMEM
        ],
        out_specs=(pl.BlockSpec((Bp, Hp), lambda c: (0, 0)),
                   pl.BlockSpec((Bp, Hp), lambda c: (0, 0))),
        scratch_shapes=[pltpu.VMEM((Bp, Hp), jnp.float32),
                        pltpu.VMEM((Bp, Hp), jnp.float32)],
        compiler_params=pltpu.CompilerParams(
            dimension_semantics=("arbitrary",),
            vmem_limit_bytes=VMEM_LIMIT),
    )(pre_gates, whh)


# ----------------------------------------------------------------------------
# Kernel 3: decoder recurrence (teacher-forced), CHUNK timesteps per grid step.
# Emits every h_t in bf16 (feeds the bf16 fc matmul directly); padded trailing
# steps are emitted but sliced off by the wrapper, so no masking is needed.
# ----------------------------------------------------------------------------
def _decoder_recurrence_kernel(pre_ref, whh_ref, h0_ref, c0_ref, h_all_ref,
                               h_sc, c_sc, *, chunk):
    ci = pl.program_id(0)
    H = h_sc.shape[-1]

    @pl.when(ci == 0)
    def _init():
        h_sc[...] = h0_ref[...]
        c_sc[...] = c0_ref[...]

    def step(i, carry):
        gates = pre_ref[i].astype(jnp.float32) + jnp.dot(
            h_sc[...].astype(jnp.bfloat16), whh_ref[...],
            preferred_element_type=jnp.float32)
        h_new, c_new = _lstm_cell(gates, c_sc[...], H)
        h_sc[...] = h_new
        c_sc[...] = c_new
        h_all_ref[i] = h_new.astype(jnp.bfloat16)   # in-kernel bf16 writeback
        return carry

    lax.fori_loop(0, chunk, step, 0, unroll=True)


def decoder_recurrence(pre_gates, whh, h0, c0, *, chunk):
    Tp, Bp, G = pre_gates.shape
    Hp = G // 4
    assert Tp % chunk == 0
    kernel = functools.partial(_decoder_recurrence_kernel, chunk=chunk)
    return pl.pallas_call(
        kernel,
        out_shape=jax.ShapeDtypeStruct((Tp, Bp, Hp), jnp.bfloat16),
        grid=(Tp // chunk,),
        in_specs=[
            pl.BlockSpec((chunk, Bp, G), lambda c: (c, 0, 0)),
            pl.BlockSpec((Hp, G), lambda c: (0, 0)),   # W_hh resident in VMEM
            pl.BlockSpec((Bp, Hp), lambda c: (0, 0)),
            pl.BlockSpec((Bp, Hp), lambda c: (0, 0)),
        ],
        out_specs=pl.BlockSpec((chunk, Bp, Hp), lambda c: (c, 0, 0)),
        scratch_shapes=[pltpu.VMEM((Bp, Hp), jnp.float32),
                        pltpu.VMEM((Bp, Hp), jnp.float32)],
        compiler_params=pltpu.CompilerParams(
            dimension_semantics=("arbitrary",),
            vmem_limit_bytes=VMEM_LIMIT),
    )(pre_gates, whh, h0, c0)


# ----------------------------------------------------------------------------
# Full EncodeToDecode.forward
# ----------------------------------------------------------------------------
def encode_to_decode_forward(source, target, p, *, vocab, chunk=CHUNK):
    """source: (src_len, B) int32; target: (trg_len, B) int32.
    Returns outputs: (trg_len, B, vocab) f32 with outputs[0] == 0 (as in the
    PyTorch reference)."""
    src_len, B = source.shape
    trg_len = target.shape[0]
    Hp, G = p["enc_whh"].shape            # G == 4 * Hp
    Bp = _round_up(B, SUBLANE)
    Te = _round_up(src_len, chunk)        # padded encoder steps (masked in-kernel)
    Td = _round_up(trg_len - 1, chunk)    # padded decoder steps (sliced off below)

    src = jnp.pad(source, ((0, Te - src_len), (0, Bp - B)))
    trg = jnp.pad(target[:-1], ((0, Td - (trg_len - 1)), (0, Bp - B)))

    # ---- encoder: gather embeddings + one big bf16 pre-gate matmul, then recurrence
    x_src = jnp.take(p["enc_emb"], src.reshape(-1), axis=0)          # (Te*Bp, Ep) bf16
    pre_src = matmul_bias(x_src, p["enc_wih"], p["enc_b"],
                          out_dtype=jnp.bfloat16).reshape(Te, Bp, G)
    h, c = encoder_recurrence(pre_src, p["enc_whh"], chunk=chunk, t_valid=src_len)

    # ---- decoder: teacher-forced on target[:-1] ----
    x_trg = jnp.take(p["dec_emb"], trg.reshape(-1), axis=0)
    pre_trg = matmul_bias(x_trg, p["dec_wih"], p["dec_b"],
                          out_dtype=jnp.bfloat16).reshape(Td, Bp, G)
    h_all = decoder_recurrence(pre_trg, p["dec_whh"], h, c, chunk=chunk)  # (Td,Bp,Hp) bf16

    # ---- fc head: one lane-dense 2-D-tiled matmul over all decoder steps ----
    logits = matmul_bias(h_all.reshape(Td * Bp, Hp), p["fc_w"], p["fc_b"],
                         out_dtype=jnp.float32)
    logits = logits.reshape(Td, Bp, -1)[:trg_len - 1, :B, :vocab]

    # outputs[0] stays zero, exactly like torch.zeros(...) in the reference.
    return jnp.concatenate(
        [jnp.zeros((1, B, vocab), jnp.float32), logits], axis=0)


# ----------------------------------------------------------------------------
# Parameter init (raw, PyTorch-like layout) + padding/casting for the kernels.
# ----------------------------------------------------------------------------
def init_params(key, vocab, emb_dim, hidden):
    ks = jax.random.split(key, 10)
    s = 0.1
    return {
        "enc_emb": s * jax.random.normal(ks[0], (vocab, emb_dim), jnp.float32),
        "enc_wih": s * jax.random.normal(ks[1], (emb_dim, 4 * hidden), jnp.float32),
        "enc_whh": s * jax.random.normal(ks[2], (hidden, 4 * hidden), jnp.float32),
        "enc_b":   s * jax.random.normal(ks[3], (1, 4 * hidden), jnp.float32),
        "dec_emb": s * jax.random.normal(ks[4], (vocab, emb_dim), jnp.float32),
        "dec_wih": s * jax.random.normal(ks[5], (emb_dim, 4 * hidden), jnp.float32),
        "dec_whh": s * jax.random.normal(ks[6], (hidden, 4 * hidden), jnp.float32),
        "dec_b":   s * jax.random.normal(ks[7], (1, 4 * hidden), jnp.float32),
        "fc_w":    s * jax.random.normal(ks[8], (hidden, vocab), jnp.float32),
        "fc_b":    s * jax.random.normal(ks[9], (1, vocab), jnp.float32),
    }


def prepare_params(raw, *, vocab, emb_dim, hidden):
    """Pad hidden -> lane multiple per gate, vocab and emb_dim -> lane multiples,
    and cast matmul operands to bf16 (biases stay f32).  Zero padding keeps the
    padded hidden channels identically zero through the recurrence, so results
    for the real channels are unchanged."""
    Hp = _round_up(hidden, LANE)
    Vp = _round_up(vocab, LANE)
    Ep = _round_up(emb_dim, LANE)

    def pad_gate_cols(w):                       # (..., 4H) -> (..., 4Hp), per-gate
        lead = w.shape[:-1]
        w = w.reshape(lead + (4, hidden))
        pads = [(0, 0)] * len(lead) + [(0, 0), (0, Hp - hidden)]
        return jnp.pad(w, pads).reshape(lead + (4 * Hp,))

    def pad_axis(w, axis, new):
        pads = [(0, 0)] * w.ndim
        pads[axis] = (0, new - w.shape[axis])
        return jnp.pad(w, pads)

    return {
        "enc_emb": pad_axis(raw["enc_emb"], 1, Ep).astype(jnp.bfloat16),
        "enc_wih": pad_axis(pad_gate_cols(raw["enc_wih"]), 0, Ep).astype(jnp.bfloat16),
        "enc_whh": pad_axis(pad_gate_cols(raw["enc_whh"]), 0, Hp).astype(jnp.bfloat16),
        "enc_b":   pad_gate_cols(raw["enc_b"]).astype(jnp.float32),
        "dec_emb": pad_axis(raw["dec_emb"], 1, Ep).astype(jnp.bfloat16),
        "dec_wih": pad_axis(pad_gate_cols(raw["dec_wih"]), 0, Ep).astype(jnp.bfloat16),
        "dec_whh": pad_axis(pad_gate_cols(raw["dec_whh"]), 0, Hp).astype(jnp.bfloat16),
        "dec_b":   pad_gate_cols(raw["dec_b"]).astype(jnp.float32),
        "fc_w":    pad_axis(pad_axis(raw["fc_w"], 0, Hp), 1, Vp).astype(jnp.bfloat16),
        "fc_b":    pad_axis(raw["fc_b"], 1, Vp).astype(jnp.float32),
    }


# ----------------------------------------------------------------------------
# Pure-JAX f32 reference (for correctness check against the Pallas path).
# ----------------------------------------------------------------------------
def _lstm_ref(x_seq, wih, whh, b, h0, c0):
    H = h0.shape[-1]

    def step(carry, x_t):
        h, c = carry
        gates = x_t @ wih + h @ whh + b
        i = jax.nn.sigmoid(gates[:, 0 * H:1 * H])
        f = jax.nn.sigmoid(gates[:, 1 * H:2 * H])
        g = jnp.tanh(gates[:, 2 * H:3 * H])
        o = jax.nn.sigmoid(gates[:, 3 * H:4 * H])
        c = f * c + i * g
        h = o * jnp.tanh(c)
        return (h, c), h

    (h, c), hs = lax.scan(step, (h0, c0), x_seq)
    return h, c, hs


def encode_to_decode_reference(source, target, raw, *, vocab, hidden):
    B = source.shape[1]
    zeros = jnp.zeros((B, hidden), jnp.float32)
    h, c, _ = _lstm_ref(raw["enc_emb"][source], raw["enc_wih"], raw["enc_whh"],
                        raw["enc_b"][0], zeros, zeros)
    _, _, hs = _lstm_ref(raw["dec_emb"][target[:-1]], raw["dec_wih"], raw["dec_whh"],
                         raw["dec_b"][0], h, c)
    logits = hs @ raw["fc_w"] + raw["fc_b"][0]
    return jnp.concatenate([jnp.zeros((1, B, vocab), jnp.float32), logits], axis=0)


if __name__ == "__main__":
    VOCAB = 16      # input_size == target_vocab_size
    EMB = 16
    HIDDEN = 32
    BATCH = 4
    SRC_LEN = 8
    TRG_LEN = 8

    key = jax.random.PRNGKey(0)
    kp, ks, kt = jax.random.split(key, 3)
    raw = init_params(kp, VOCAB, EMB, HIDDEN)
    params = prepare_params(raw, vocab=VOCAB, emb_dim=EMB, hidden=HIDDEN)

    source = jax.random.randint(ks, (SRC_LEN, BATCH), 0, VOCAB, dtype=jnp.int32)
    target = jax.random.randint(kt, (TRG_LEN, BATCH), 0, VOCAB, dtype=jnp.int32)

    fwd = jax.jit(functools.partial(encode_to_decode_forward, vocab=VOCAB))
    outputs = fwd(source, target, params)
    jax.block_until_ready(outputs)

    assert outputs.shape == (TRG_LEN, BATCH, VOCAB), outputs.shape
    assert bool(jnp.all(outputs[0] == 0.0))
    assert bool(jnp.all(jnp.isfinite(outputs)))

    ref = encode_to_decode_reference(source, target, raw, vocab=VOCAB, hidden=HIDDEN)
    max_err = float(jnp.max(jnp.abs(outputs - ref)))
    assert max_err < 5e-2, f"max abs error vs f32 reference: {max_err}"

    print("KERNEL_OK")
</pallas_src>

<mosaic_0001>
module attributes {stable_mosaic.version = 11 : i64} {
  func.func @_matmul_bias_kernel(%arg0: i32, %arg1: i32, %arg2: memref<64x128xbf16, #tpu.memory_space<vmem>>, %arg3: memref<128x128xbf16, #tpu.memory_space<vmem>>, %arg4: memref<1x128xf32, #tpu.memory_space<vmem>>, %arg5: memref<64x128xf32, #tpu.memory_space<vmem>>) attributes {dimension_semantics = [#tpu.dimension_semantics<parallel>, #tpu.dimension_semantics<parallel>], iteration_bounds = array<i64: 1, 1>, scalar_prefetch = 0 : i64, scratch_operands = 0 : i64, tpu.core_type = #tpu.core_type<tc>, window_params = [{transform_indices = @transform_0, window_bounds = array<i64: 64, 128>}, {transform_indices = @transform_1, window_bounds = array<i64: 128, 128>}, {transform_indices = @transform_2, window_bounds = array<i64: 1, 128>}, {transform_indices = @transform_3, window_bounds = array<i64: 64, 128>}]} {
    %c0 = arith.constant 0 : index
    %c0_0 = arith.constant 0 : index
    %0 = vector.load %arg2[%c0, %c0_0] : memref<64x128xbf16, #tpu.memory_space<vmem>>, vector<64x128xbf16>
    %c0_1 = arith.constant 0 : index
    %c0_2 = arith.constant 0 : index
    %1 = vector.load %arg3[%c0_1, %c0_2] : memref<128x128xbf16, #tpu.memory_space<vmem>>, vector<128x128xbf16>
    %cst = arith.constant dense<0.000000e+00> : vector<64x128xf32>
    %2 = tpu.matmul %0, %1, %cst {dimension_numbers = #tpu.dot_dimension_numbers<[1], [0], [0], [1], [0, 0, 1, 1], [], []>} : vector<64x128xbf16>, vector<128x128xbf16>, vector<64x128xf32> -> vector<64x128xf32>
    %c0_3 = arith.constant 0 : index
    %c0_4 = arith.constant 0 : index
    %3 = vector.load %arg4[%c0_3, %c0_4] : memref<1x128xf32, #tpu.memory_space<vmem>>, vector<1x128xf32>
    %4 = vector.broadcast %3 : vector<1x128xf32> to vector<64x128xf32>
    %5 = arith.addf %2, %4 : vector<64x128xf32>
    %c0_5 = arith.constant 0 : index
    %c0_6 = arith.constant 0 : index
    %6 = vector.load %arg5[%c0_5, %c0_6] : memref<64x128xf32, #tpu.memory_space<vmem>>, vector<64x128xf32>
    tpu.vector_store %arg5[%c0_5, %c0_6], %5 {strides = array<i32>} : memref<64x128xf32, #tpu.memory_space<vmem>>, vector<64x128xf32>,
    return
  }
  func.func @transform_0(%arg0: i32, %arg1: i32) -> (i32, i32) {
    %c0_i32 = arith.constant 0 : i32
    %c0_i32_0 = arith.constant 0 : i32
    return %arg0, %c0_i32 : i32, i32
  }
  func.func @transform_1(%arg0: i32, %arg1: i32) -> (i32, i32) {
    %c0_i32 = arith.constant 0 : i32
    %c0_i32_0 = arith.constant 0 : i32
    return %c0_i32, %arg1 : i32, i32
  }
  func.func @transform_2(%arg0: i32, %arg1: i32) -> (i32, i32) {
    %c0_i32 = arith.constant 0 : i32
    %c0_i32_0 = arith.constant 0 : i32
    return %c0_i32, %arg1 : i32, i32
  }
  func.func @transform_3(%arg0: i32, %arg1: i32) -> (i32, i32) {
    %c0_i32 = arith.constant 0 : i32
    return %arg0, %arg1 : i32, i32
  }
}

module attributes {stable_mosaic.version = 11 : i64} {
  func.func @_matmul_bias_kernel(%arg0: i32, %arg1: i32, %arg2: memref<64x128xbf16, #tpu.memory_space<vmem>>, %arg3: memref<128x512xbf16, #tpu.memory_space<vmem>>, %arg4: memref<1x512xf32, #tpu.memory_space<vmem>>, %arg5: memref<64x512xbf16, #tpu.memory_space<vmem>>) attributes {dimension_semantics = [#tpu.dimension_semantics<parallel>, #tpu.dimension_semantics<parallel>], iteration_bounds = array<i64: 1, 1>, scalar_prefetch = 0 : i64, scratch_operands = 0 : i64, tpu.core_type = #tpu.core_type<tc>, window_params = [{transform_indices = @transform_0, window_bounds = array<i64: 64, 128>}, {transform_indices = @transform_1, window_bounds = array<i64: 128, 512>}, {transform_indices = @transform_2, window_bounds = array<i64: 1, 512>}, {transform_indices = @transform_3, window_bounds = array<i64: 64, 512>}]} {
    %c0 = arith.constant 0 : index
    %c0_0 = arith.constant 0 : index
    %0 = vector.load %arg2[%c0, %c0_0] : memref<64x128xbf16, #tpu.memory_space<vmem>>, vector<64x128xbf16>
    %c0_1 = arith.constant 0 : index
    %c0_2 = arith.constant 0 : index
    %1 = vector.load %arg3[%c0_1, %c0_2] : memref<128x512xbf16, #tpu.memory_space<vmem>>, vector<128x512xbf16>
    %cst = arith.constant dense<0.000000e+00> : vector<64x512xf32>
    %2 = tpu.matmul %0, %1, %cst {dimension_numbers = #tpu.dot_dimension_numbers<[1], [0], [0], [1], [0, 0, 1, 1], [], []>} : vector<64x128xbf16>, vector<128x512xbf16>, vector<64x512xf32> -> vector<64x512xf32>
    %c0_3 = arith.constant 0 : index
    %c0_4 = arith.constant 0 : index
    %3 = vector.load %arg4[%c0_3, %c0_4] : memref<1x512xf32, #tpu.memory_space<vmem>>, vector<1x512xf32>
    %4 = vector.broadcast %3 : vector<1x512xf32> to vector<64x512xf32>
    %5 = arith.addf %2, %4 : vector<64x512xf32>
    %6 = arith.truncf %5 : vector<64x512xf32> to vector<64x512xbf16>
    %c0_5 = arith.constant 0 : index
    %c0_6 = arith.constant 0 : index
    %7 = vector.load %arg5[%c0_5, %c0_6] : memref<64x512xbf16, #tpu.memory_space<vmem>>, vector<64x512xbf16>
    tpu.vector_store %arg5[%c0_5, %c0_6], %6 {strides = array<i32>} : memref<64x512xbf16, #tpu.memory_space<vmem>>, vector<64x512xbf16>,
    return
  }
  func.func @transform_0(%arg0: i32, %arg1: i32) -> (i32, i32) {
    %c0_i32 = arith.constant 0 : i32
    %c0_i32_0 = arith.constant 0 : i32
    return %arg0, %c0_i32 : i32, i32
  }
  func.func @transform_1(%arg0: i32, %arg1: i32) -> (i32, i32) {
    %c0_i32 = arith.constant 0 : i32
    %c0_i32_0 = arith.constant 0 : i32
    return %c0_i32, %arg1 : i32, i32
  }
  func.func @transform_2(%arg0: i32, %arg1: i32) -> (i32, i32) {
    %c0_i32 = arith.constant 0 : i32
    %c0_i32_0 = arith.constant 0 : i32
    return %c0_i32, %arg1 : i32, i32
  }
  func.func @transform_3(%arg0: i32, %arg1: i32) -> (i32, i32) {
    %c0_i32 = arith.constant 0 : i32
    return %arg0, %arg1 : i32, i32
  }
}

module attributes {stable_mosaic.version = 11 : i64} {
  func.func @_encoder_recurrence_kernel(%arg0: i32, %arg1: memref<8x8x512xbf16, #tpu.memory_space<vmem>>, %arg2: memref<128x512xbf16, #tpu.memory_space<vmem>>, %arg3: memref<8x128xf32, #tpu.memory_space<vmem>>, %arg4: memref<8x128xf32, #tpu.memory_space<vmem>>, %arg5: memref<8x128xf32, #tpu.memory_space<vmem>>, %arg6: memref<8x128xf32, #tpu.memory_space<vmem>>) attributes {dimension_semantics = [#tpu.dimension_semantics<arbitrary>], iteration_bounds = array<i64: 1>, scalar_prefetch = 0 : i64, scratch_operands = 2 : i64, tpu.core_type = #tpu.core_type<tc>, window_params = [{transform_indices = @transform_0, window_bounds = array<i64: 8, 8, 512>}, {pipeline_mode = #tpu.pipeline_mode<synchronous>, transform_indices = @transform_1, window_bounds = array<i64: 128, 512>}, {pipeline_mode = #tpu.pipeline_mode<synchronous>, transform_indices = @transform_2, window_bounds = array<i64: 8, 128>}, {pipeline_mode = #tpu.pipeline_mode<synchronous>, transform_indices = @transform_3, window_bounds = array<i64: 8, 128>}]} {
    %c0_i32 = arith.constant 0 : i32
    %0 = arith.cmpi eq, %arg0, %c0_i32 : i32
    %1 = arith.extui %0 : i1 to i32
    %c0_i32_0 = arith.constant 0 : i32
    %2 = arith.cmpi ne, %1, %c0_i32_0 : i32
    scf.if %2 {
      %cst_130 = arith.constant 0.000000e+00 : f32
      %302 = vector.broadcast %cst_130 : f32 to vector<8x128xf32>
      %c0_131 = arith.constant 0 : index
      %c0_132 = arith.constant 0 : index
      %303 = vector.load %arg5[%c0_131, %c0_132] : memref<8x128xf32, #tpu.memory_space<vmem>>, vector<8x128xf32>
      tpu.vector_store %arg5[%c0_131, %c0_132], %302 {strides = array<i32>} : memref<8x128xf32, #tpu.memory_space<vmem>>, vector<8x128xf32>,
      %cst_133 = arith.constant 0.000000e+00 : f32
      %304 = vector.broadcast %cst_133 : f32 to vector<8x128xf32>
      %c0_134 = arith.constant 0 : index
      %c0_135 = arith.constant 0 : index
      %305 = vector.load %arg6[%c0_134, %c0_135] : memref<8x128xf32, #tpu.memory_space<vmem>>, vector<8x128xf32>
      tpu.vector_store %arg6[%c0_134, %c0_135], %304 {strides = array<i32>} : memref<8x128xf32, #tpu.memory_space<vmem>>, vector<8x128xf32>,
    } else {
    }
    %c0_i32_1 = arith.constant 0 : i32
    %c0 = arith.constant 0 : index
    %c0_2 = arith.constant 0 : index
    %3 = vector.load %arg5[%c0, %c0_2] : memref<8x128xf32, #tpu.memory_space<vmem>>, vector<8x128xf32>
    %c0_3 = arith.constant 0 : index
    %c0_4 = arith.constant 0 : index
    %4 = vector.load %arg6[%c0_3, %c0_4] : memref<8x128xf32, #tpu.memory_space<vmem>>, vector<8x128xf32>
    %5 = arith.index_cast %c0_i32_1 : i32 to index
    %c0_5 = arith.constant 0 : index
    %c0_6 = arith.constant 0 : index
    %6 = vector.load %arg1[%5, %c0_5, %c0_6] : memref<8x8x512xbf16, #tpu.memory_space<vmem>>, vector<1x8x512xbf16>
    %7 = vector.shape_cast %6 : vector<1x8x512xbf16> to vector<8x512xbf16>
    %8 = arith.extf %7 : vector<8x512xbf16> to vector<8x512xf32>
    %9 = arith.truncf %3 : vector<8x128xf32> to vector<8x128xbf16>
    %c0_7 = arith.constant 0 : index
    %c0_8 = arith.constant 0 : index
    %10 = vector.load %arg2[%c0_7, %c0_8] : memref<128x512xbf16, #tpu.memory_space<vmem>>, vector<128x512xbf16>
    %cst = arith.constant dense<0.000000e+00> : vector<8x512xf32>
    %11 = tpu.matmul %9, %10, %cst {dimension_numbers = #tpu.dot_dimension_numbers<[1], [0], [0], [1], [0, 0, 1, 1], [], []>} : vector<8x128xbf16>, vector<128x512xbf16>, vector<8x512xf32> -> vector<8x512xf32>
    %12 = arith.addf %8, %11 : vector<8x512xf32>
    %13 = vector.extract_strided_slice %12 {offsets = [0, 0], sizes = [8, 128], strides = [1, 1]} : vector<8x512xf32> to vector<8x128xf32>
    %14 = arith.negf %13 : vector<8x128xf32>
    %15 = math.exp %14 : vector<8x128xf32>
    %cst_9 = arith.constant 1.000000e+00 : f32
    %16 = vector.broadcast %cst_9 : f32 to vector<8x128xf32>
    %17 = arith.addf %16, %15 : vector<8x128xf32>
    %18 = arith.divf %16, %17 : vector<8x128xf32>
    %19 = vector.extract_strided_slice %12 {offsets = [0, 128], sizes = [8, 128], strides = [1, 1]} : vector<8x512xf32> to vector<8x128xf32>
    %20 = arith.negf %19 : vector<8x128xf32>
    %21 = math.exp %20 : vector<8x128xf32>
    %cst_10 = arith.constant 1.000000e+00 : f32
    %22 = vector.broadcast %cst_10 : f32 to vector<8x128xf32>
    %23 = arith.addf %22, %21 : vector<8x128xf32>
    %24 = arith.divf %22, %23 : vector<8x128xf32>
    %25 = vector.extract_strided_slice %12 {offsets = [0, 256], sizes = [8, 128], strides = [1, 1]} : vector<8x512xf32> to vector<8x128xf32>
    %26 = math.tanh %25 : vector<8x128xf32>
    %27 = vector.extract_strided_slice %12 {offsets = [0, 384], sizes = [8, 128], strides = [1, 1]} : vector<8x512xf32> to vector<8x128xf32>
    %28 = arith.negf %27 : vector<8x128xf32>
    %29 = math.exp %28 : vector<8x128xf32>
    %cst_11 = arith.constant 1.000000e+00 : f32
    %30 = vector.broadcast %cst_11 : f32 to vector<8x128xf32>
    %31 = arith.addf %30, %29 : vector<8x128xf32>
    %32 = arith.divf %30, %31 : vector<8x128xf32>
    %33 = arith.mulf %24, %4 : vector<8x128xf32>
    %34 = arith.mulf %18, %26 : vector<8x128xf32>
    %35 = arith.addf %33, %34 : vector<8x128xf32>
    %36 = math.tanh %35 : vector<8x128xf32>
    %37 = arith.mulf %32, %36 : vector<8x128xf32>
    %c0_12 = arith.constant 0 : index
    %c0_13 = arith.constant 0 : index
    %38 = vector.load %arg5[%c0_12, %c0_13] : memref<8x128xf32, #tpu.memory_space<vmem>>, vector<8x128xf32>
    tpu.vector_store %arg5[%c0_12, %c0_13], %37 {strides = array<i32>} : memref<8x128xf32, #tpu.memory_space<vmem>>, vector<8x128xf32>,
    %c0_14 = arith.constant 0 : index
    %c0_15 = arith.constant 0 : index
    %39 = vector.load %arg6[%c0_14, %c0_15] : memref<8x128xf32, #tpu.memory_space<vmem>>, vector<8x128xf32>
    tpu.vector_store %arg6[%c0_14, %c0_15], %35 {strides = array<i32>} : memref<8x128xf32, #tpu.memory_space<vmem>>, vector<8x128xf32>,
    %c1_i32 = arith.constant 1 : i32
    %c0_16 = arith.constant 0 : index
    %c0_17 = arith.constant 0 : index
    %40 = vector.load %arg5[%c0_16, %c0_17] : memref<8x128xf32, #tpu.memory_space<vmem>>, vector<8x128xf32>
    %c0_18 = arith.constant 0 : index
    %c0_19 = arith.constant 0 : index
    %41 = vector.load %arg6[%c0_18, %c0_19] : memref<8x128xf32, #tpu.memory_space<vmem>>, vector<8x128xf32>
    %42 = arith.index_cast %c1_i32 : i32 to index
    %c0_20 = arith.constant 0 : index
    %c0_21 = arith.constant 0 : index
    %43 = vector.load %arg1[%42, %c0_20, %c0_21] : memref<8x8x512xbf16, #tpu.memory_space<vmem>>, vector<1x8x512xbf16>
    %44 = vector.shape_cast %43 : vector<1x8x512xbf16> to vector<8x512xbf16>
    %45 = arith.extf %44 : vector<8x512xbf16> to vector<8x512xf32>
    %46 = arith.truncf %40 : vector<8x128xf32> to vector<8x128xbf16>
    %c0_22 = arith.constant 0 : index
    %c0_23 = arith.constant 0 : index
    %47 = vector.load %arg2[%c0_22, %c0_23] : memref<128x512xbf16, #tpu.memory_space<vmem>>, vector<128x512xbf16>
    %cst_24 = arith.constant dense<0.000000e+00> : vector<8x512xf32>
    %48 = tpu.matmul %46, %47, %cst_24 {dimension_numbers = #tpu.dot_dimension_numbers<[1], [0], [0], [1], [0, 0, 1, 1], [], []>} : vector<8x128xbf16>, vector<128x512xbf16>, vector<8x512xf32> -> vector<8x512xf32>
    %49 = arith.addf %45, %48 : vector<8x512xf32>
    %50 = vector.extract_strided_slice %49 {offsets = [0, 0], sizes = [8, 128], strides = [1, 1]} : vector<8x512xf32> to vector<8x128xf32>
    %51 = arith.negf %50 : vector<8x128xf32>
    %52 = math.exp %51 : vector<8x128xf32>
    %cst_25 = arith.constant 1.000000e+00 : f32
    %53 = vector.broadcast %cst_25 : f32 to vector<8x128xf32>
    %54 = arith.addf %53, %52 : vector<8x128xf32>
    %55 = arith.divf %53, %54 : vector<8x128xf32>
    %56 = vector.extract_strided_slice %49 {offsets = [0, 128], sizes = [8, 128], strides = [1, 1]} : vector<8x512xf32> to vector<8x128xf32>
    %57 = arith.negf %56 : vector<8x128xf32>
    %58 = math.exp %57 : vector<8x128xf32>
    %cst_26 = arith.constant 1.000000e+00 : f32
    %59 = vector.broadcast %cst_26 : f32 to vector<8x128xf32>
    %60 = arith.addf %59, %58 : vector<8x128xf32>
    %61 = arith.divf %59, %60 : vector<8x128xf32>
    %62 = vector.extract_strided_slice %49 {offsets = [0, 256], sizes = [8, 128], strides = [1, 1]} : vector<8x512xf32> to vector<8x128xf32>
    %63 = math.tanh %62 : vector<8x128xf32>
    %64 = vector.extract_strided_slice %49 {offsets = [0, 384], sizes = [8, 128], strides = [1, 1]} : vector<8x512xf32> to vector<8x128xf32>
    %65 = arith.negf %64 : vector<8x128xf32>
    %66 = math.exp %65 : vector<8x128xf32>
    %cst_27 = arith.constant 1.000000e+00 : f32
    %67 = vector.broadcast %cst_27 : f32 to vector<8x128xf32>
    %68 = arith.addf %67, %66 : vector<8x128xf32>
    %69 = arith.divf %67, %68 : vector<8x128xf32>
    %70 = arith.mulf %61, %41 : vector<8x128xf32>
    %71 = arith.mulf %55, %63 : vector<8x128xf32>
    %72 = arith.addf %70, %71 : vector<8x128xf32>
    %73 = math.tanh %72 : vector<8x128xf32>
    %74 = arith.mulf %69, %73 : vector<8x128xf32>
    %c0_28 = arith.constant 0 : index
    %c0_29 = arith.constant 0 : index
    %75 = vector.load %arg5[%c0_28, %c0_29] : memref<8x128xf32, #tpu.memory_space<vmem>>, vector<8x128xf32>
    tpu.vector_store %arg5[%c0_28, %c0_29], %74 {strides = array<i32>} : memref<8x128xf32, #tpu.memory_space<vmem>>, vector<8x128xf32>,
    %c0_30 = arith.constant 0 : index
    %c0_31 = arith.constant 0 : index
    %76 = vector.load %arg6[%c0_30, %c0_31] : memref<8x128xf32, #tpu.memory_space<vmem>>, vector<8x128xf32>
    tpu.vector_store %arg6[%c0_30, %c0_31], %72 {strides = array<i32>} : memref<8x128xf32, #tpu.memory_space<vmem>>, vector<8x128xf32>,
    %c2_i32 = arith.constant 2 : i32
    %c0_32 = arith.constant 0 : index
    %c0_33 = arith.constant 0 : index
    %77 = vector.load %arg5[%c0_32, %c0_33] : memref<8x128xf32, #tpu.memory_space<vmem>>, vector<8x128xf32>
    %c0_34 = arith.constant 0 : index
    %c0_35 = arith.constant 0 : index
    %78 = vector.load %arg6[%c0_34, %c0_35] : memref<8x128xf32, #tpu.memory_space<vmem>>, vector<8x128xf32>
    %79 = arith.index_cast %c2_i32 : i32 to index
    %c0_36 = arith.constant 0 : index
    %c0_37 = arith.constant 0 : index
    %80 = vector.load %arg1[%79, %c0_36, %c0_37] : memref<8x8x512xbf16, #tpu.memory_space<vmem>>, vector<1x8x512xbf16>
    %81 = vector.shape_cast %80 : vector<1x8x512xbf16> to vector<8x512xbf16>
    %82 = arith.extf %81 : vector<8x512xbf16> to vector<8x512xf32>
    %83 = arith.truncf %77 : vector<8x128xf32> to vector<8x128xbf16>
    %c0_38 = arith.constant 0 : index
    %c0_39 = arith.constant 0 : index
    %84 = vector.load %arg2[%c0_38, %c0_39] : memref<128x512xbf16, #tpu.memory_space<vmem>>, vector<128x512xbf16>
    %cst_40 = arith.constant dense<0.000000e+00> : vector<8x512xf32>
    %85 = tpu.matmul %83, %84, %cst_40 {dimension_numbers = #tpu.dot_dimension_numbers<[1], [0], [0], [1], [0, 0, 1, 1], [], []>} : vector<8x128xbf16>, vector<128x512xbf16>, vector<8x512xf32> -> vector<8x512xf32>
    %86 = arith.addf %82, %85 : vector<8x512xf32>
    %87 = vector.extract_strided_slice %86 {offsets = [0, 0], sizes = [8, 128], strides = [1, 1]} : vector<8x512xf32> to vector<8x128xf32>
    %88 = arith.negf %87 : vector<8x128xf32>
    %89 = math.exp %88 : vector<8x128xf32>
    %cst_41 = arith.constant 1.000000e+00 : f32
    %90 = vector.broadcast %cst_41 : f32 to vector<8x128xf32>
    %91 = arith.addf %90, %89 : vector<8x128xf32>
    %92 = arith.divf %90, %91 : vector<8x128xf32>
    %93 = vector.extract_strided_slice %86 {offsets = [0, 128], sizes = [8, 128], strides = [1, 1]} : vector<8x512xf32> to vector<8x128xf32>
    %94 = arith.negf %93 : vector<8x128xf32>
    %95 = math.exp %94 : vector<8x128xf32>
    %cst_42 = arith.constant 1.000000e+00 : f32
    %96 = vector.broadcast %cst_42 : f32 to vector<8x128xf32>
    %97 = arith.addf %96, %95 : vector<8x128xf32>
    %98 = arith.divf %96, %97 : vector<8x128xf32>
    %99 = vector.extract_strided_slice %86 {offsets = [0, 256], sizes = [8, 128], strides = [1, 1]} : vector<8x512xf32> to vector<8x128xf32>
    %100 = math.tanh %99 : vector<8x128xf32>
    %101 = vector.extract_strided_slice %86 {offsets = [0, 384], sizes = [8, 128], strides = [1, 1]} : vector<8x512xf32> to vector<8x128xf32>
    %102 = arith.negf %101 : vector<8x128xf32>
    %103 = math.exp %102 : vector<8x128xf32>
    %cst_43 = arith.constant 1.000000e+00 : f32
    %104 = vector.broadcast %cst_43 : f32 to vector<8x128xf32>
    %105 = arith.addf %104, %103 : vector<8x128xf32>
    %106 = arith.divf %104, %105 : vector<8x128xf32>
    %107 = arith.mulf %98, %78 : vector<8x128xf32>
    %108 = arith.mulf %92, %100 : vector<8x128xf32>
    %109 = arith.addf %107, %108 : vector<8x128xf32>
    %110 = math.tanh %109 : vector<8x128xf32>
    %111 = arith.mulf %106, %110 : vector<8x128xf32>
    %c0_44 = arith.constant 0 : index
    %c0_45 = arith.constant 0 : index
    %112 = vector.load %arg5[%c0_44, %c0_45] : memref<8x128xf32, #tpu.memory_space<vmem>>, vector<8x128xf32>
    tpu.vector_store %arg5[%c0_44, %c0_45], %111 {strides = array<i32>} : memref<8x128xf32, #tpu.memory_space<vmem>>, vector<8x128xf32>,
    %c0_46 = arith.constant 0 : index
    %c0_47 = arith.constant 0 : index
    %113 = vector.load %arg6[%c0_46, %c0_47] : memref<8x128xf32, #tpu.memory_space<vmem>>, vector<8x128xf32>
    tpu.vector_store %arg6[%c0_46, %c0_47], %109 {strides = array<i32>} : memref<8x128xf32, #tpu.memory_space<vmem>>, vector<8x128xf32>,
    %c3_i32 = arith.constant 3 : i32
    %c0_48 = arith.constant 0 : index
    %c0_49 = arith.constant 0 : index
    %114 = vector.load %arg5[%c0_48, %c0_49] : memref<8x128xf32, #tpu.memory_space<vmem>>, vector<8x128xf32>
    %c0_50 = arith.constant 0 : index
    %c0_51 = arith.constant 0 : index
    %115 = vector.load %arg6[%c0_50, %c0_51] : memref<8x128xf32, #tpu.memory_space<vmem>>, vector<8x128xf32>
    %116 = arith.index_cast %c3_i32 : i32 to index
    %c0_52 = arith.constant 0 : index
    %c0_53 = arith.constant 0 : index
    %117 = vector.load %arg1[%116, %c0_52, %c0_53] : memref<8x8x512xbf16, #tpu.memory_space<vmem>>, vector<1x8x512xbf16>
    %118 = vector.shape_cast %117 : vector<1x8x512xbf16> to vector<8x512xbf16>
    %119 = arith.extf %118 : vector<8x512xbf16> to vector<8x512xf32>
    %120 = arith.truncf %114 : vector<8x128xf32> to vector<8x128xbf16>
    %c0_54 = arith.constant 0 : index
    %c0_55 = arith.constant 0 : index
    %121 = vector.load %arg2[%c0_54, %c0_55] : memref<128x512xbf16, #tpu.memory_space<vmem>>, vector<128x512xbf16>
    %cst_56 = arith.constant dense<0.000000e+00> : vector<8x512xf32>
    %122 = tpu.matmul %120, %121, %cst_56 {dimension_numbers = #tpu.dot_dimension_numbers<[1], [0], [0], [1], [0, 0, 1, 1], [], []>} : vector<8x128xbf16>, vector<128x512xbf16>, vector<8x512xf32> -> vector<8x512xf32>
    %123 = arith.addf %119, %122 : vector<8x512xf32>
    %124 = vector.extract_strided_slice %123 {offsets = [0, 0], sizes = [8, 128], strides = [1, 1]} : vector<8x512xf32> to vector<8x128xf32>
    %125 = arith.negf %124 : vector<8x128xf32>
    %126 = math.exp %125 : vector<8x128xf32>
    %cst_57 = arith.constant 1.000000e+00 : f32
    %127 = vector.broadcast %cst_57 : f32 to vector<8x128xf32>
    %128 = arith.addf %127, %126 : vector<8x128xf32>
    %129 = arith.divf %127, %128 : vector<8x128xf32>
    %130 = vector.extract_strided_slice %123 {offsets = [0, 128], sizes = [8, 128], strides = [1, 1]} : vector<8x512xf32> to vector<8x128xf32>
    %131 = arith.negf %130 : vector<8x128xf32>
    %132 = math.exp %131 : vector<8x128xf32>
    %cst_58 = arith.constant 1.000000e+00 : f32
    %133 = vector.broadcast %cst_58 : f32 to vector<8x128xf32>
    %134 = arith.addf %133, %132 : vector<8x128xf32>
    %135 = arith.divf %133, %134 : vector<8x128xf32>
    %136 = vector.extract_strided_slice %123 {offsets = [0, 256], sizes = [8, 128], strides = [1, 1]} : vector<8x512xf32> to vector<8x128xf32>
    %137 = math.tanh %136 : vector<8x128xf32>
    %138 = vector.extract_strided_slice %123 {offsets = [0, 384], sizes = [8, 128], strides = [1, 1]} : vector<8x512xf32> to vector<8x128xf32>
    %139 = arith.negf %138 : vector<8x128xf32>
    %140 = math.exp %139 : vector<8x128xf32>
    %cst_59 = arith.constant 1.000000e+00 : f32
    %141 = vector.broadcast %cst_59 : f32 to vector<8x128xf32>
    %142 = arith.addf %141, %140 : vector<8x128xf32>
    %143 = arith.divf %141, %142 : vector<8x128xf32>
    %144 = arith.mulf %135, %115 : vector<8x128xf32>
    %145 = arith.mulf %129, %137 : vector<8x128xf32>
    %146 = arith.addf %144, %145 : vector<8x128xf32>
    %147 = math.tanh %146 : vector<8x128xf32>
    %148 = arith.mulf %143, %147 : vector<8x128xf32>
    %c0_60 = arith.constant 0 : index
    %c0_61 = arith.constant 0 : index
    %149 = vector.load %arg5[%c0_60, %c0_61] : memref<8x128xf32, #tpu.memory_space<vmem>>, vector<8x128xf32>
    tpu.vector_store %arg5[%c0_60, %c0_61], %148 {strides = array<i32>} : memref<8x128xf32, #tpu.memory_space<vmem>>, vector<8x128xf32>,
    %c0_62 = arith.constant 0 : index
    %c0_63 = arith.constant 0 : index
    %150 = vector.load %arg6[%c0_62, %c0_63] : memref<8x128xf32, #tpu.memory_space<vmem>>, vector<8x128xf32>
    tpu.vector_store %arg6[%c0_62, %c0_63], %146 {strides = array<i32>} : memref<8x128xf32, #tpu.memory_space<vmem>>, vector<8x128xf32>,
    %c4_i32 = arith.constant 4 : i32
    %c0_64 = arith.constant 0 : index
    %c0_65 = arith.constant 0 : index
    %151 = vector.load %arg5[%c0_64, %c0_65] : memref<8x128xf32, #tpu.memory_space<vmem>>, vector<8x128xf32>
    %c0_66 = arith.constant 0 : index
    %c0_67 = arith.constant 0 : index
    %152 = vector.load %arg6[%c0_66, %c0_67] : memref<8x128xf32, #tpu.memory_space<vmem>>, vector<8x128xf32>
    %153 = arith.index_cast %c4_i32 : i32 to index
    %c0_68 = arith.constant 0 : index
    %c0_69 = arith.constant 0 : index
    %154 = vector.load %arg1[%153, %c0_68, %c0_69] : memref<8x8x512xbf16, #tpu.memory_space<vmem>>, vector<1x8x512xbf16>
    %155 = vector.shape_cast %154 : vector<1x8x512xbf16> to vector<8x512xbf16>
    %156 = arith.extf %155 : vector<8x512xbf16> to vector<8x512xf32>
    %157 = arith.truncf %151 : vector<8x128xf32> to vector<8x128xbf16>
    %c0_70 = arith.constant 0 : index
    %c0_71 = arith.constant 0 : index
    %158 = vector.load %arg2[%c0_70, %c0_71] : memref<128x512xbf16, #tpu.memory_space<vmem>>, vector<128x512xbf16>
    %cst_72 = arith.constant dense<0.000000e+00> : vector<8x512xf32>
    %159 = tpu.matmul %157, %158, %cst_72 {dimension_numbers = #tpu.dot_dimension_numbers<[1], [0], [0], [1], [0, 0, 1, 1], [], []>} : vector<8x128xbf16>, vector<128x512xbf16>, vector<8x512xf32> -> vector<8x512xf32>
    %160 = arith.addf %156, %159 : vector<8x512xf32>
    %161 = vector.extract_strided_slice %160 {offsets = [0, 0], sizes = [8, 128], strides = [1, 1]} : vector<8x512xf32> to vector<8x128xf32>
    %162 = arith.negf %161 : vector<8x128xf32>
    %163 = math.exp %162 : vector<8x128xf32>
    %cst_73 = arith.constant 1.000000e+00 : f32
    %164 = vector.broadcast %cst_73 : f32 to vector<8x128xf32>
    %165 = arith.addf %164, %163 : vector<8x128xf32>
    %166 = arith.divf %164, %165 : vector<8x128xf32>
    %167 = vector.extract_strided_slice %160 {offsets = [0, 128], sizes = [8, 128], strides = [1, 1]} : vector<8x512xf32> to vector<8x128xf32>
    %168 = arith.negf %167 : vector<8x128xf32>
    %169 = math.exp %168 : vector<8x128xf32>
    %cst_74 = arith.constant 1.000000e+00 : f32
    %170 = vector.broadcast %cst_74 : f32 to vector<8x128xf32>
    %171 = arith.addf %170, %169 : vector<8x128xf32>
    %172 = arith.divf %170, %171 : vector<8x128xf32>
    %173 = vector.extract_strided_slice %160 {offsets = [0, 256], sizes = [8, 128], strides = [1, 1]} : vector<8x512xf32> to vector<8x128xf32>
    %174 = math.tanh %173 : vector<8x128xf32>
    %175 = vector.extract_strided_slice %160 {offsets = [0, 384], sizes = [8, 128], strides = [1, 1]} : vector<8x512xf32> to vector<8x128xf32>
    %176 = arith.negf %175 : vector<8x128xf32>
    %177 = math.exp %176 : vector<8x128xf32>
    %cst_75 = arith.constant 1.000000e+00 : f32
    %178 = vector.broadcast %cst_75 : f32 to vector<8x128xf32>
    %179 = arith.addf %178, %177 : vector<8x128xf32>
    %180 = arith.divf %178, %179 : vector<8x128xf32>
    %181 = arith.mulf %172, %152 : vector<8x128xf32>
    %182 = arith.mulf %166, %174 : vector<8x128xf32>
    %183 = arith.addf %181, %182 : vector<8x128xf32>
    %184 = math.tanh %183 : vector<8x128xf32>
    %185 = arith.mulf %180, %184 : vector<8x128xf32>
    %c0_76 = arith.constant 0 : index
    %c0_77 = arith.constant 0 : index
    %186 = vector.load %arg5[%c0_76, %c0_77] : memref<8x128xf32, #tpu.memory_space<vmem>>, vector<8x128xf32>
    tpu.vector_store %arg5[%c0_76, %c0_77], %185 {strides = array<i32>} : memref<8x128xf32, #tpu.memory_space<vmem>>, vector<8x128xf32>,
    %c0_78 = arith.constant 0 : index
    %c0_79 = arith.constant 0 : index
    %187 = vector.load %arg6[%c0_78, %c0_79] : memref<8x128xf32, #tpu.memory_space<vmem>>, vector<8x128xf32>
    tpu.vector_store %arg6[%c0_78, %c0_79], %183 {strides = array<i32>} : memref<8x128xf32, #tpu.memory_space<vmem>>, vector<8x128xf32>,
    %c5_i32 = arith.constant 5 : i32
    %c0_80 = arith.constant 0 : index
    %c0_81 = arith.constant 0 : index
    %188 = vector.load %arg5[%c0_80, %c0_81] : memref<8x128xf32, #tpu.memory_space<vmem>>, vector<8x128xf32>
    %c0_82 = arith.constant 0 : index
    %c0_83 = arith.constant 0 : index
    %189 = vector.load %arg6[%c0_82, %c0_83] : memref<8x128xf32, #tpu.memory_space<vmem>>, vector<8x128xf32>
    %190 = arith.index_cast %c5_i32 : i32 to index
    %c0_84 = arith.constant 0 : index
    %c0_85 = arith.constant 0 : index
    %191 = vector.load %arg1[%190, %c0_84, %c0_85] : memref<8x8x512xbf16, #tpu.memory_space<vmem>>, vector<1x8x512xbf16>
    %192 = vector.shape_cast %191 : vector<1x8x512xbf16> to vector<8x512xbf16>
    %193 = arith.extf %192 : vector<8x512xbf16> to vector<8x512xf32>
    %194 = arith.truncf %188 : vector<8x128xf32> to vector<8x128xbf16>
    %c0_86 = arith.constant 0 : index
    %c0_87 = arith.constant 0 : index
    %195 = vector.load %arg2[%c0_86, %c0_87] : memref<128x512xbf16, #tpu.memory_space<vmem>>, vector<128x512xbf16>
    %cst_88 = arith.constant dense<0.000000e+00> : vector<8x512xf32>
    %196 = tpu.matmul %194, %195, %cst_88 {dimension_numbers = #tpu.dot_dimension_numbers<[1], [0], [0], [1], [0, 0, 1, 1], [], []>} : vector<8x128xbf16>, vector<128x512xbf16>, vector<8x512xf32> -> vector<8x512xf32>
    %197 = arith.addf %193, %196 : vector<8x512xf32>
    %198 = vector.extract_strided_slice %197 {offsets = [0, 0], sizes = [8, 128], strides = [1, 1]} : vector<8x512xf32> to vector<8x128xf32>
    %199 = arith.negf %198 : vector<8x128xf32>
    %200 = math.exp %199 : vector<8x128xf32>
    %cst_89 = arith.constant 1.000000e+00 : f32
    %201 = vector.broadcast %cst_89 : f32 to vector<8x128xf32>
    %202 = arith.addf %201, %200 : vector<8x128xf32>
    %203 = arith.divf %201, %202 : vector<8x128xf32>
    %204 = vector.extract_strided_slice %197 {offsets = [0, 128], sizes = [8, 128], strides = [1, 1]} : vector<8x512xf32> to vector<8x128xf32>
    %205 = arith.negf %204 : vector<8x128xf32>
    %206 = math.exp %205 : vector<8x128xf32>
    %cst_90 = arith.constant 1.000000e+00 : f32
    %207 = vector.broadcast %cst_90 : f32 to vector<8x128xf32>
    %208 = arith.addf %207, %206 : vector<8x128xf32>
    %209 = arith.divf %207, %208 : vector<8x128xf32>
    %210 = vector.extract_strided_slice %197 {offsets = [0, 256], sizes = [8, 128], strides = [1, 1]} : vector<8x512xf32> to vector<8x128xf32>
    %211 = math.tanh %210 : vector<8x128xf32>
    %212 = vector.extract_strided_slice %197 {offsets = [0, 384], sizes = [8, 128], strides = [1, 1]} : vector<8x512xf32> to vector<8x128xf32>
    %213 = arith.negf %212 : vector<8x128xf32>
    %214 = math.exp %213 : vector<8x128xf32>
    %cst_91 = arith.constant 1.000000e+00 : f32
    %215 = vector.broadcast %cst_91 : f32 to vector<8x128xf32>
    %216 = arith.addf %215, %214 : vector<8x128xf32>
    %217 = arith.divf %215, %216 : vector<8x128xf32>
    %218 = arith.mulf %209, %189 : vector<8x128xf32>
    %219 = arith.mulf %203, %211 : vector<8x128xf32>
    %220 = arith.addf %218, %219 : vector<8x128xf32>
    %221 = math.tanh %220 : vector<8x128xf32>
    %222 = arith.mulf %217, %221 : vector<8x128xf32>
    %c0_92 = arith.constant 0 : index
    %c0_93 = arith.constant 0 : index
    %223 = vector.load %arg5[%c0_92, %c0_93] : memref<8x128xf32, #tpu.memory_space<vmem>>, vector<8x128xf32>
    tpu.vector_store %arg5[%c0_92, %c0_93], %222 {strides = array<i32>} : memref<8x128xf32, #tpu.memory_space<vmem>>, vector<8x128xf32>,
    %c0_94 = arith.constant 0 : index
    %c0_95 = arith.constant 0 : index
    %224 = vector.load %arg6[%c0_94, %c0_95] : memref<8x128xf32, #tpu.memory_space<vmem>>, vector<8x128xf32>
    tpu.vector_store %arg6[%c0_94, %c0_95], %220 {strides = array<i32>} : memref<8x128xf32, #tpu.memory_space<vmem>>, vector<8x128xf32>,
    %c6_i32 = arith.constant 6 : i32
    %c0_96 = arith.constant 0 : index
    %c0_97 = arith.constant 0 : index
    %225 = vector.load %arg5[%c0_96, %c0_97] : memref<8x128xf32, #tpu.memory_space<vmem>>, vector<8x128xf32>
    %c0_98 = arith.constant 0 : index
    %c0_99 = arith.constant 0 : index
    %226 = vector.load %arg6[%c0_98, %c0_99] : memref<8x128xf32, #tpu.memory_space<vmem>>, vector<8x128xf32>
    %227 = arith.index_cast %c6_i32 : i32 to index
    %c0_100 = arith.constant 0 : index
    %c0_101 = arith.constant 0 : index
    %228 = vector.load %arg1[%227, %c0_100, %c0_101] : memref<8x8x512xbf16, #tpu.memory_space<vmem>>, vector<1x8x512xbf16>
    %229 = vector.shape_cast %228 : vector<1x8x512xbf16> to vector<8x512xbf16>
    %230 = arith.extf %229 : vector<8x512xbf16> to vector<8x512xf32>
    %231 = arith.truncf %225 : vector<8x128xf32> to vector<8x128xbf16>
    %c0_102 = arith.constant 0 : index
    %c0_103 = arith.constant 0 : index
    %232 = vector.load %arg2[%c0_102, %c0_103] : memref<128x512xbf16, #tpu.memory_space<vmem>>, vector<128x512xbf16>
    %cst_104 = arith.constant dense<0.000000e+00> : vector<8x512xf32>
    %233 = tpu.matmul %231, %232, %cst_104 {dimension_numbers = #tpu.dot_dimension_numbers<[1], [0], [0], [1], [0, 0, 1, 1], [], []>} : vector<8x128xbf16>, vector<128x512xbf16>, vector<8x512xf32> -> vector<8x512xf32>
    %234 = arith.addf %230, %233 : vector<8x512xf32>
    %235 = vector.extract_strided_slice %234 {offsets = [0, 0], sizes = [8, 128], strides = [1, 1]} : vector<8x512xf32> to vector<8x128xf32>
    %236 = arith.negf %235 : vector<8x128xf32>
    %237 = math.exp %236 : vector<8x128xf32>
    %cst_105 = arith.constant 1.000000e+00 : f32
    %238 = vector.broadcast %cst_105 : f32 to vector<8x128xf32>
    %239 = arith.addf %238, %237 : vector<8x128xf32>
    %240 = arith.divf %238, %239 : vector<8x128xf32>
    %241 = vector.extract_strided_slice %234 {offsets = [0, 128], sizes = [8, 128], strides = [1, 1]} : vector<8x512xf32> to vector<8x128xf32>
    %242 = arith.negf %241 : vector<8x128xf32>
    %243 = math.exp %242 : vector<8x128xf32>
    %cst_106 = arith.constant 1.000000e+00 : f32
    %244 = vector.broadcast %cst_106 : f32 to vector<8x128xf32>
    %245 = arith.addf %244, %243 : vector<8x128xf32>
    %246 = arith.divf %244, %245 : vector<8x128xf32>
    %247 = vector.extract_strided_slice %234 {offsets = [0, 256], sizes = [8, 128], strides = [1, 1]} : vector<8x512xf32> to vector<8x128xf32>
    %248 = math.tanh %247 : vector<8x128xf32>
    %249 = vector.extract_strided_slice %234 {offsets = [0, 384], sizes = [8, 128], strides = [1, 1]} : vector<8x512xf32> to vector<8x128xf32>
    %250 = arith.negf %249 : vector<8x128xf32>
    %251 = math.exp %250 : vector<8x128xf32>
    %cst_107 = arith.constant 1.000000e+00 : f32
    %252 = vector.broadcast %cst_107 : f32 to vector<8x128xf32>
    %253 = arith.addf %252, %251 : vector<8x128xf32>
    %254 = arith.divf %252, %253 : vector<8x128xf32>
    %255 = arith.mulf %246, %226 : vector<8x128xf32>
    %256 = arith.mulf %240, %248 : vector<8x128xf32>
    %257 = arith.addf %255, %256 : vector<8x128xf32>
    %258 = math.tanh %257 : vector<8x128xf32>
    %259 = arith.mulf %254, %258 : vector<8x128xf32>
    %c0_108 = arith.constant 0 : index
    %c0_109 = arith.constant 0 : index
    %260 = vector.load %arg5[%c0_108, %c0_109] : memref<8x128xf32, #tpu.memory_space<vmem>>, vector<8x128xf32>
    tpu.vector_store %arg5[%c0_108, %c0_109], %259 {strides = array<i32>} : memref<8x128xf32, #tpu.memory_space<vmem>>, vector<8x128xf32>,
    %c0_110 = arith.constant 0 : index
    %c0_111 = arith.constant 0 : index
    %261 = vector.load %arg6[%c0_110, %c0_111] : memref<8x128xf32, #tpu.memory_space<vmem>>, vector<8x128xf32>
    tpu.vector_store %arg6[%c0_110, %c0_111], %257 {strides = array<i32>} : memref<8x128xf32, #tpu.memory_space<vmem>>, vector<8x128xf32>,
    %c7_i32 = arith.constant 7 : i32
    %c0_112 = arith.constant 0 : index
    %c0_113 = arith.constant 0 : index
    %262 = vector.load %arg5[%c0_112, %c0_113] : memref<8x128xf32, #tpu.memory_space<vmem>>, vector<8x128xf32>
    %c0_114 = arith.constant 0 : index
    %c0_115 = arith.constant 0 : index
    %263 = vector.load %arg6[%c0_114, %c0_115] : memref<8x128xf32, #tpu.memory_space<vmem>>, vector<8x128xf32>
    %264 = arith.index_cast %c7_i32 : i32 to index
    %c0_116 = arith.constant 0 : index
    %c0_117 = arith.constant 0 : index
    %265 = vector.load %arg1[%264, %c0_116, %c0_117] : memref<8x8x512xbf16, #tpu.memory_space<vmem>>, vector<1x8x512xbf16>
    %266 = vector.shape_cast %265 : vector<1x8x512xbf16> to vector<8x512xbf16>
    %267 = arith.extf %266 : vector<8x512xbf16> to vector<8x512xf32>
    %268 = arith.truncf %262 : vector<8x128xf32> to vector<8x128xbf16>
    %c0_118 = arith.constant 0 : index
    %c0_119 = arith.constant 0 : index
    %269 = vector.load %arg2[%c0_118, %c0_119] : memref<128x512xbf16, #tpu.memory_space<vmem>>, vector<128x512xbf16>
    %cst_120 = arith.constant dense<0.000000e+00> : vector<8x512xf32>
    %270 = tpu.matmul %268, %269, %cst_120 {dimension_numbers = #tpu.dot_dimension_numbers<[1], [0], [0], [1], [0, 0, 1, 1], [], []>} : vector<8x128xbf16>, vector<128x512xbf16>, vector<8x512xf32> -> vector<8x512xf32>
    %271 = arith.addf %267, %270 : vector<8x512xf32>
    %272 = vector.extract_strided_slice %271 {offsets = [0, 0], sizes = [8, 128], strides = [1, 1]} : vector<8x512xf32> to vector<8x128xf32>
    %273 = arith.negf %272 : vector<8x128xf32>
    %274 = math.exp %273 : vector<8x128xf32>
    %cst_121 = arith.constant 1.000000e+00 : f32
    %275 = vector.broadcast %cst_121 : f32 to vector<8x128xf32>
    %276 = arith.addf %275, %274 : vector<8x128xf32>
    %277 = arith.divf %275, %276 : vector<8x128xf32>
    %278 = vector.extract_strided_slice %271 {offsets = [0, 128], sizes = [8, 128], strides = [1, 1]} : vector<8x512xf32> to vector<8x128xf32>
    %279 = arith.negf %278 : vector<8x128xf32>
    %280 = math.exp %279 : vector<8x128xf32>
    %cst_122 = arith.constant 1.000000e+00 : f32
    %281 = vector.broadcast %cst_122 : f32 to vector<8x128xf32>
    %282 = arith.addf %281, %280 : vector<8x128xf32>
    %283 = arith.divf %281, %282 : vector<8x128xf32>
    %284 = vector.extract_strided_slice %271 {offsets = [0, 256], sizes = [8, 128], strides = [1, 1]} : vector<8x512xf32> to vector<8x128xf32>
    %285 = math.tanh %284 : vector<8x128xf32>
    %286 = vector.extract_strided_slice %271 {offsets = [0, 384], sizes = [8, 128], strides = [1, 1]} : vector<8x512xf32> to vector<8x128xf32>
    %287 = arith.negf %286 : vector<8x128xf32>
    %288 = math.exp %287 : vector<8x128xf32>
    %cst_123 = arith.constant 1.000000e+00 : f32
    %289 = vector.broadcast %cst_123 : f32 to vector<8x128xf32>
    %290 = arith.addf %289, %288 : vector<8x128xf32>
    %291 = arith.divf %289, %290 : vector<8x128xf32>
    %292 = arith.mulf %283, %263 : vector<8x128xf32>
    %293 = arith.mulf %277, %285 : vector<8x128xf32>
    %294 = arith.addf %292, %293 : vector<8x128xf32>
    %295 = math.tanh %294 : vector<8x128xf32>
    %296 = arith.mulf %291, %295 : vector<8x128xf32>
    %c0_124 = arith.constant 0 : index
    %c0_125 = arith.constant 0 : index
    %297 = vector.load %arg5[%c0_124, %c0_125] : memref<8x128xf32, #tpu.memory_space<vmem>>, vector<8x128xf32>
    tpu.vector_store %arg5[%c0_124, %c0_125], %296 {strides = array<i32>} : memref<8x128xf32, #tpu.memory_space<vmem>>, vector<8x128xf32>,
    %c0_126 = arith.constant 0 : index
    %c0_127 = arith.constant 0 : index
    %298 = vector.load %arg6[%c0_126, %c0_127] : memref<8x128xf32, #tpu.memory_space<vmem>>, vector<8x128xf32>
    tpu.vector_store %arg6[%c0_126, %c0_127], %294 {strides = array<i32>} : memref<8x128xf32, #tpu.memory_space<vmem>>, vector<8x128xf32>,
    %c8_i32 = arith.constant 8 : i32
    %c0_i32_128 = arith.constant 0 : i32
    %299 = arith.cmpi eq, %arg0, %c0_i32_128 : i32
    %300 = arith.extui %299 : i1 to i32
    %c0_i32_129 = arith.constant 0 : i32
    %301 = arith.cmpi ne, %300, %c0_i32_129 : i32
    scf.if %301 {
      %c0_130 = arith.constant 0 : index
      %c0_131 = arith.constant 0 : index
      %302 = vector.load %arg5[%c0_130, %c0_131] : memref<8x128xf32, #tpu.memory_space<vmem>>, vector<8x128xf32>
      %c0_132 = arith.constant 0 : index
      %c0_133 = arith.constant 0 : index
      %303 = vector.load %arg3[%c0_132, %c0_133] : memref<8x128xf32, #tpu.memory_space<vmem>>, vector<8x128xf32>
      tpu.vector_store %arg3[%c0_132, %c0_133], %302 {strides = array<i32>} : memref<8x128xf32, #tpu.memory_space<vmem>>, vector<8x128xf32>,
      %c0_134 = arith.constant 0 : index
      %c0_135 = arith.constant 0 : index
      %304 = vector.load %arg6[%c0_134, %c0_135] : memref<8x128xf32, #tpu.memory_space<vmem>>, vector<8x128xf32>
      %c0_136 = arith.constant 0 : index
      %c0_137 = arith.constant 0 : index
      %305 = vector.load %arg4[%c0_136, %c0_137] : memref<8x128xf32, #tpu.memory_space<vmem>>, vector<8x128xf32>
      tpu.vector_store %arg4[%c0_136, %c0_137], %304 {strides = array<i32>} : memref<8x128xf32, #tpu.memory_space<vmem>>, vector<8x128xf32>,
    } else {
    }
    return
  }
  func.func @transform_0(%arg0: i32) -> (i32, i32, i32) {
    %c0_i32 = arith.constant 0 : i32
    %c0_i32_0 = arith.constant 0 : i32
    %c0_i32_1 = arith.constant 0 : i32
    return %arg0, %c0_i32, %c0_i32_0 : i32, i32, i32
  }
  func.func @transform_1(%arg0: i32) -> (i32, i32) {
    %c0_i32 = arith.constant 0 : i32
    %c0_i32_0 = arith.constant 0 : i32
    %c0_i32_1 = arith.constant 0 : i32
    return %c0_i32, %c0_i32_0 : i32, i32
  }
  func.func @transform_2(%arg0: i32) -> (i32, i32) {
    %c0_i32 = arith.constant 0 : i32
    %c0_i32_0 = arith.constant 0 : i32
    %c0_i32_1 = arith.constant 0 : i32
    return %c0_i32, %c0_i32_0 : i32, i32
  }
  func.func @transform_3(%arg0: i32) -> (i32, i32) {
    %c0_i32 = arith.constant 0 : i32
    %c0_i32_0 = arith.constant 0 : i32
    %c0_i32_1 = arith.constant 0 : i32
    return %c0_i32, %c0_i32_0 : i32, i32
  }
}

module attributes {stable_mosaic.version = 11 : i64} {
  func.func @_decoder_recurrence_kernel(%arg0: i32, %arg1: memref<8x8x512xbf16, #tpu.memory_space<vmem>>, %arg2: memref<128x512xbf16, #tpu.memory_space<vmem>>, %arg3: memref<8x128xf32, #tpu.memory_space<vmem>>, %arg4: memref<8x128xf32, #tpu.memory_space<vmem>>, %arg5: memref<8x8x128xbf16, #tpu.memory_space<vmem>>, %arg6: memref<8x128xf32, #tpu.memory_space<vmem>>, %arg7: memref<8x128xf32, #tpu.memory_space<vmem>>) attributes {dimension_semantics = [#tpu.dimension_semantics<arbitrary>], iteration_bounds = array<i64: 1>, scalar_prefetch = 0 : i64, scratch_operands = 2 : i64, tpu.core_type = #tpu.core_type<tc>, window_params = [{transform_indices = @transform_0, window_bounds = array<i64: 8, 8, 512>}, {pipeline_mode = #tpu.pipeline_mode<synchronous>, transform_indices = @transform_1, window_bounds = array<i64: 128, 512>}, {pipeline_mode = #tpu.pipeline_mode<synchronous>, transform_indices = @transform_2, window_bounds = array<i64: 8, 128>}, {pipeline_mode = #tpu.pipeline_mode<synchronous>, transform_indices = @transform_3, window_bounds = array<i64: 8, 128>}, {transform_indices = @transform_4, window_bounds = array<i64: 8, 8, 128>}]} {
    %c0_i32 = arith.constant 0 : i32
    %0 = arith.cmpi eq, %arg0, %c0_i32 : i32
    %1 = arith.extui %0 : i1 to i32
    %c0_i32_0 = arith.constant 0 : i32
    %2 = arith.cmpi ne, %1, %c0_i32_0 : i32
    scf.if %2 {
      %c0_144 = arith.constant 0 : index
      %c0_145 = arith.constant 0 : index
      %339 = vector.load %arg3[%c0_144, %c0_145] : memref<8x128xf32, #tpu.memory_space<vmem>>, vector<8x128xf32>
      %c0_146 = arith.constant 0 : index
      %c0_147 = arith.constant 0 : index
      %340 = vector.load %arg6[%c0_146, %c0_147] : memref<8x128xf32, #tpu.memory_space<vmem>>, vector<8x128xf32>
      tpu.vector_store %arg6[%c0_146, %c0_147], %339 {strides = array<i32>} : memref<8x128xf32, #tpu.memory_space<vmem>>, vector<8x128xf32>,
      %c0_148 = arith.constant 0 : index
      %c0_149 = arith.constant 0 : index
      %341 = vector.load %arg4[%c0_148, %c0_149] : memref<8x128xf32, #tpu.memory_space<vmem>>, vector<8x128xf32>
      %c0_150 = arith.constant 0 : index
      %c0_151 = arith.constant 0 : index
      %342 = vector.load %arg7[%c0_150, %c0_151] : memref<8x128xf32, #tpu.memory_space<vmem>>, vector<8x128xf32>
      tpu.vector_store %arg7[%c0_150, %c0_151], %341 {strides = array<i32>} : memref<8x128xf32, #tpu.memory_space<vmem>>, vector<8x128xf32>,
    } else {
    }
    %c0_i32_1 = arith.constant 0 : i32
    %3 = arith.index_cast %c0_i32_1 : i32 to index
    %c0 = arith.constant 0 : index
    %c0_2 = arith.constant 0 : index
    %4 = vector.load %arg1[%3, %c0, %c0_2] : memref<8x8x512xbf16, #tpu.memory_space<vmem>>, vector<1x8x512xbf16>
    %5 = vector.shape_cast %4 : vector<1x8x512xbf16> to vector<8x512xbf16>
    %6 = arith.extf %5 : vector<8x512xbf16> to vector<8x512xf32>
    %c0_3 = arith.constant 0 : index
    %c0_4 = arith.constant 0 : index
    %7 = vector.load %arg6[%c0_3, %c0_4] : memref<8x128xf32, #tpu.memory_space<vmem>>, vector<8x128xf32>
    %8 = arith.truncf %7 : vector<8x128xf32> to vector<8x128xbf16>
    %c0_5 = arith.constant 0 : index
    %c0_6 = arith.constant 0 : index
    %9 = vector.load %arg2[%c0_5, %c0_6] : memref<128x512xbf16, #tpu.memory_space<vmem>>, vector<128x512xbf16>
    %cst = arith.constant dense<0.000000e+00> : vector<8x512xf32>
    %10 = tpu.matmul %8, %9, %cst {dimension_numbers = #tpu.dot_dimension_numbers<[1], [0], [0], [1], [0, 0, 1, 1], [], []>} : vector<8x128xbf16>, vector<128x512xbf16>, vector<8x512xf32> -> vector<8x512xf32>
    %11 = arith.addf %6, %10 : vector<8x512xf32>
    %c0_7 = arith.constant 0 : index
    %c0_8 = arith.constant 0 : index
    %12 = vector.load %arg7[%c0_7, %c0_8] : memref<8x128xf32, #tpu.memory_space<vmem>>, vector<8x128xf32>
    %13 = vector.extract_strided_slice %11 {offsets = [0, 0], sizes = [8, 128], strides = [1, 1]} : vector<8x512xf32> to vector<8x128xf32>
    %14 = arith.negf %13 : vector<8x128xf32>
    %15 = math.exp %14 : vector<8x128xf32>
    %cst_9 = arith.constant 1.000000e+00 : f32
    %16 = vector.broadcast %cst_9 : f32 to vector<8x128xf32>
    %17 = arith.addf %16, %15 : vector<8x128xf32>
    %18 = arith.divf %16, %17 : vector<8x128xf32>
    %19 = vector.extract_strided_slice %11 {offsets = [0, 128], sizes = [8, 128], strides = [1, 1]} : vector<8x512xf32> to vector<8x128xf32>
    %20 = arith.negf %19 : vector<8x128xf32>
    %21 = math.exp %20 : vector<8x128xf32>
    %cst_10 = arith.constant 1.000000e+00 : f32
    %22 = vector.broadcast %cst_10 : f32 to vector<8x128xf32>
    %23 = arith.addf %22, %21 : vector<8x128xf32>
    %24 = arith.divf %22, %23 : vector<8x128xf32>
    %25 = vector.extract_strided_slice %11 {offsets = [0, 256], sizes = [8, 128], strides = [1, 1]} : vector<8x512xf32> to vector<8x128xf32>
    %26 = math.tanh %25 : vector<8x128xf32>
    %27 = vector.extract_strided_slice %11 {offsets = [0, 384], sizes = [8, 128], strides = [1, 1]} : vector<8x512xf32> to vector<8x128xf32>
    %28 = arith.negf %27 : vector<8x128xf32>
    %29 = math.exp %28 : vector<8x128xf32>
    %cst_11 = arith.constant 1.000000e+00 : f32
    %30 = vector.broadcast %cst_11 : f32 to vector<8x128xf32>
    %31 = arith.addf %30, %29 : vector<8x128xf32>
    %32 = arith.divf %30, %31 : vector<8x128xf32>
    %33 = arith.mulf %24, %12 : vector<8x128xf32>
    %34 = arith.mulf %18, %26 : vector<8x128xf32>
    %35 = arith.addf %33, %34 : vector<8x128xf32>
    %36 = math.tanh %35 : vector<8x128xf32>
    %37 = arith.mulf %32, %36 : vector<8x128xf32>
    %c0_12 = arith.constant 0 : index
    %c0_13 = arith.constant 0 : index
    %38 = vector.load %arg6[%c0_12, %c0_13] : memref<8x128xf32, #tpu.memory_space<vmem>>, vector<8x128xf32>
    tpu.vector_store %arg6[%c0_12, %c0_13], %37 {strides = array<i32>} : memref<8x128xf32, #tpu.memory_space<vmem>>, vector<8x128xf32>,
    %c0_14 = arith.constant 0 : index
    %c0_15 = arith.constant 0 : index
    %39 = vector.load %arg7[%c0_14, %c0_15] : memref<8x128xf32, #tpu.memory_space<vmem>>, vector<8x128xf32>
    tpu.vector_store %arg7[%c0_14, %c0_15], %35 {strides = array<i32>} : memref<8x128xf32, #tpu.memory_space<vmem>>, vector<8x128xf32>,
    %40 = arith.truncf %37 : vector<8x128xf32> to vector<8x128xbf16>
    %41 = arith.index_cast %c0_i32_1 : i32 to index
    %c0_16 = arith.constant 0 : index
    %c0_17 = arith.constant 0 : index
    %42 = vector.load %arg5[%41, %c0_16, %c0_17] : memref<8x8x128xbf16, #tpu.memory_space<vmem>>, vector<1x8x128xbf16>
    %43 = vector.shape_cast %42 : vector<1x8x128xbf16> to vector<8x128xbf16>
    %44 = vector.shape_cast %40 : vector<8x128xbf16> to vector<1x8x128xbf16>
    tpu.vector_store %arg5[%41, %c0_16, %c0_17], %44 {strides = array<i32>} : memref<8x8x128xbf16, #tpu.memory_space<vmem>>, vector<1x8x128xbf16>,
    %c1_i32 = arith.constant 1 : i32
    %45 = arith.index_cast %c1_i32 : i32 to index
    %c0_18 = arith.constant 0 : index
    %c0_19 = arith.constant 0 : index
    %46 = vector.load %arg1[%45, %c0_18, %c0_19] : memref<8x8x512xbf16, #tpu.memory_space<vmem>>, vector<1x8x512xbf16>
    %47 = vector.shape_cast %46 : vector<1x8x512xbf16> to vector<8x512xbf16>
    %48 = arith.extf %47 : vector<8x512xbf16> to vector<8x512xf32>
    %c0_20 = arith.constant 0 : index
    %c0_21 = arith.constant 0 : index
    %49 = vector.load %arg6[%c0_20, %c0_21] : memref<8x128xf32, #tpu.memory_space<vmem>>, vector<8x128xf32>
    %50 = arith.truncf %49 : vector<8x128xf32> to vector<8x128xbf16>
    %c0_22 = arith.constant 0 : index
    %c0_23 = arith.constant 0 : index
    %51 = vector.load %arg2[%c0_22, %c0_23] : memref<128x512xbf16, #tpu.memory_space<vmem>>, vector<128x512xbf16>
    %cst_24 = arith.constant dense<0.000000e+00> : vector<8x512xf32>
    %52 = tpu.matmul %50, %51, %cst_24 {dimension_numbers = #tpu.dot_dimension_numbers<[1], [0], [0], [1], [0, 0, 1, 1], [], []>} : vector<8x128xbf16>, vector<128x512xbf16>, vector<8x512xf32> -> vector<8x512xf32>
    %53 = arith.addf %48, %52 : vector<8x512xf32>
    %c0_25 = arith.constant 0 : index
    %c0_26 = arith.constant 0 : index
    %54 = vector.load %arg7[%c0_25, %c0_26] : memref<8x128xf32, #tpu.memory_space<vmem>>, vector<8x128xf32>
    %55 = vector.extract_strided_slice %53 {offsets = [0, 0], sizes = [8, 128], strides = [1, 1]} : vector<8x512xf32> to vector<8x128xf32>
    %56 = arith.negf %55 : vector<8x128xf32>
    %57 = math.exp %56 : vector<8x128xf32>
    %cst_27 = arith.constant 1.000000e+00 : f32
    %58 = vector.broadcast %cst_27 : f32 to vector<8x128xf32>
    %59 = arith.addf %58, %57 : vector<8x128xf32>
    %60 = arith.divf %58, %59 : vector<8x128xf32>
    %61 = vector.extract_strided_slice %53 {offsets = [0, 128], sizes = [8, 128], strides = [1, 1]} : vector<8x512xf32> to vector<8x128xf32>
    %62 = arith.negf %61 : vector<8x128xf32>
    %63 = math.exp %62 : vector<8x128xf32>
    %cst_28 = arith.constant 1.000000e+00 : f32
    %64 = vector.broadcast %cst_28 : f32 to vector<8x128xf32>
    %65 = arith.addf %64, %63 : vector<8x128xf32>
    %66 = arith.divf %64, %65 : vector<8x128xf32>
    %67 = vector.extract_strided_slice %53 {offsets = [0, 256], sizes = [8, 128], strides = [1, 1]} : vector<8x512xf32> to vector<8x128xf32>
    %68 = math.tanh %67 : vector<8x128xf32>
    %69 = vector.extract_strided_slice %53 {offsets = [0, 384], sizes = [8, 128], strides = [1, 1]} : vector<8x512xf32> to vector<8x128xf32>
    %70 = arith.negf %69 : vector<8x128xf32>
    %71 = math.exp %70 : vector<8x128xf32>
    %cst_29 = arith.constant 1.000000e+00 : f32
    %72 = vector.broadcast %cst_29 : f32 to vector<8x128xf32>
    %73 = arith.addf %72, %71 : vector<8x128xf32>
    %74 = arith.divf %72, %73 : vector<8x128xf32>
    %75 = arith.mulf %66, %54 : vector<8x128xf32>
    %76 = arith.mulf %60, %68 : vector<8x128xf32>
    %77 = arith.addf %75, %76 : vector<8x128xf32>
    %78 = math.tanh %77 : vector<8x128xf32>
    %79 = arith.mulf %74, %78 : vector<8x128xf32>
    %c0_30 = arith.constant 0 : index
    %c0_31 = arith.constant 0 : index
    %80 = vector.load %arg6[%c0_30, %c0_31] : memref<8x128xf32, #tpu.memory_space<vmem>>, vector<8x128xf32>
    tpu.vector_store %arg6[%c0_30, %c0_31], %79 {strides = array<i32>} : memref<8x128xf32, #tpu.memory_space<vmem>>, vector<8x128xf32>,
    %c0_32 = arith.constant 0 : index
    %c0_33 = arith.constant 0 : index
    %81 = vector.load %arg7[%c0_32, %c0_33] : memref<8x128xf32, #tpu.memory_space<vmem>>, vector<8x128xf32>
    tpu.vector_store %arg7[%c0_32, %c0_33], %77 {strides = array<i32>} : memref<8x128xf32, #tpu.memory_space<vmem>>, vector<8x128xf32>,
    %82 = arith.truncf %79 : vector<8x128xf32> to vector<8x128xbf16>
    %83 = arith.index_cast %c1_i32 : i32 to index
    %c0_34 = arith.constant 0 : index
    %c0_35 = arith.constant 0 : index
    %84 = vector.load %arg5[%83, %c0_34, %c0_35] : memref<8x8x128xbf16, #tpu.memory_space<vmem>>, vector<1x8x128xbf16>
    %85 = vector.shape_cast %84 : vector<1x8x128xbf16> to vector<8x128xbf16>
    %86 = vector.shape_cast %82 : vector<8x128xbf16> to vector<1x8x128xbf16>
    tpu.vector_store %arg5[%83, %c0_34, %c0_35], %86 {strides = array<i32>} : memref<8x8x128xbf16, #tpu.memory_space<vmem>>, vector<1x8x128xbf16>,
    %c2_i32 = arith.constant 2 : i32
    %87 = arith.index_cast %c2_i32 : i32 to index
    %c0_36 = arith.constant 0 : index
    %c0_37 = arith.constant 0 : index
    %88 = vector.load %arg1[%87, %c0_36, %c0_37] : memref<8x8x512xbf16, #tpu.memory_space<vmem>>, vector<1x8x512xbf16>
    %89 = vector.shape_cast %88 : vector<1x8x512xbf16> to vector<8x512xbf16>
    %90 = arith.extf %89 : vector<8x512xbf16> to vector<8x512xf32>
    %c0_38 = arith.constant 0 : index
    %c0_39 = arith.constant 0 : index
    %91 = vector.load %arg6[%c0_38, %c0_39] : memref<8x128xf32, #tpu.memory_space<vmem>>, vector<8x128xf32>
    %92 = arith.truncf %91 : vector<8x128xf32> to vector<8x128xbf16>
    %c0_40 = arith.constant 0 : index
    %c0_41 = arith.constant 0 : index
    %93 = vector.load %arg2[%c0_40, %c0_41] : memref<128x512xbf16, #tpu.memory_space<vmem>>, vector<128x512xbf16>
    %cst_42 = arith.constant dense<0.000000e+00> : vector<8x512xf32>
    %94 = tpu.matmul %92, %93, %cst_42 {dimension_numbers = #tpu.dot_dimension_numbers<[1], [0], [0], [1], [0, 0, 1, 1], [], []>} : vector<8x128xbf16>, vector<128x512xbf16>, vector<8x512xf32> -> vector<8x512xf32>
    %95 = arith.addf %90, %94 : vector<8x512xf32>
    %c0_43 = arith.constant 0 : index
    %c0_44 = arith.constant 0 : index
    %96 = vector.load %arg7[%c0_43, %c0_44] : memref<8x128xf32, #tpu.memory_space<vmem>>, vector<8x128xf32>
    %97 = vector.extract_strided_slice %95 {offsets = [0, 0], sizes = [8, 128], strides = [1, 1]} : vector<8x512xf32> to vector<8x128xf32>
    %98 = arith.negf %97 : vector<8x128xf32>
    %99 = math.exp %98 : vector<8x128xf32>
    %cst_45 = arith.constant 1.000000e+00 : f32
    %100 = vector.broadcast %cst_45 : f32 to vector<8x128xf32>
    %101 = arith.addf %100, %99 : vector<8x128xf32>
    %102 = arith.divf %100, %101 : vector<8x128xf32>
    %103 = vector.extract_strided_slice %95 {offsets = [0, 128], sizes = [8, 128], strides = [1, 1]} : vector<8x512xf32> to vector<8x128xf32>
    %104 = arith.negf %103 : vector<8x128xf32>
    %105 = math.exp %104 : vector<8x128xf32>
    %cst_46 = arith.constant 1.000000e+00 : f32
    %106 = vector.broadcast %cst_46 : f32 to vector<8x128xf32>
    %107 = arith.addf %106, %105 : vector<8x128xf32>
    %108 = arith.divf %106, %107 : vector<8x128xf32>
    %109 = vector.extract_strided_slice %95 {offsets = [0, 256], sizes = [8, 128], strides = [1, 1]} : vector<8x512xf32> to vector<8x128xf32>
    %110 = math.tanh %109 : vector<8x128xf32>
    %111 = vector.extract_strided_slice %95 {offsets = [0, 384], sizes = [8, 128], strides = [1, 1]} : vector<8x512xf32> to vector<8x128xf32>
    %112 = arith.negf %111 : vector<8x128xf32>
    %113 = math.exp %112 : vector<8x128xf32>
    %cst_47 = arith.constant 1.000000e+00 : f32
    %114 = vector.broadcast %cst_47 : f32 to vector<8x128xf32>
    %115 = arith.addf %114, %113 : vector<8x128xf32>
    %116 = arith.divf %114, %115 : vector<8x128xf32>
    %117 = arith.mulf %108, %96 : vector<8x128xf32>
    %118 = arith.mulf %102, %110 : vector<8x128xf32>
    %119 = arith.addf %117, %118 : vector<8x128xf32>
    %120 = math.tanh %119 : vector<8x128xf32>
    %121 = arith.mulf %116, %120 : vector<8x128xf32>
    %c0_48 = arith.constant 0 : index
    %c0_49 = arith.constant 0 : index
    %122 = vector.load %arg6[%c0_48, %c0_49] : memref<8x128xf32, #tpu.memory_space<vmem>>, vector<8x128xf32>
    tpu.vector_store %arg6[%c0_48, %c0_49], %121 {strides = array<i32>} : memref<8x128xf32, #tpu.memory_space<vmem>>, vector<8x128xf32>,
    %c0_50 = arith.constant 0 : index
    %c0_51 = arith.constant 0 : index
    %123 = vector.load %arg7[%c0_50, %c0_51] : memref<8x128xf32, #tpu.memory_space<vmem>>, vector<8x128xf32>
    tpu.vector_store %arg7[%c0_50, %c0_51], %119 {strides = array<i32>} : memref<8x128xf32, #tpu.memory_space<vmem>>, vector<8x128xf32>,
    %124 = arith.truncf %121 : vector<8x128xf32> to vector<8x128xbf16>
    %125 = arith.index_cast %c2_i32 : i32 to index
    %c0_52 = arith.constant 0 : index
    %c0_53 = arith.constant 0 : index
    %126 = vector.load %arg5[%125, %c0_52, %c0_53] : memref<8x8x128xbf16, #tpu.memory_space<vmem>>, vector<1x8x128xbf16>
    %127 = vector.shape_cast %126 : vector<1x8x128xbf16> to vector<8x128xbf16>
    %128 = vector.shape_cast %124 : vector<8x128xbf16> to vector<1x8x128xbf16>
    tpu.vector_store %arg5[%125, %c0_52, %c0_53], %128 {strides = array<i32>} : memref<8x8x128xbf16, #tpu.memory_space<vmem>>, vector<1x8x128xbf16>,
    %c3_i32 = arith.constant 3 : i32
    %129 = arith.index_cast %c3_i32 : i32 to index
    %c0_54 = arith.constant 0 : index
    %c0_55 = arith.constant 0 : index
    %130 = vector.load %arg1[%129, %c0_54, %c0_55] : memref<8x8x512xbf16, #tpu.memory_space<vmem>>, vector<1x8x512xbf16>
    %131 = vector.shape_cast %130 : vector<1x8x512xbf16> to vector<8x512xbf16>
    %132 = arith.extf %131 : vector<8x512xbf16> to vector<8x512xf32>
    %c0_56 = arith.constant 0 : index
    %c0_57 = arith.constant 0 : index
    %133 = vector.load %arg6[%c0_56, %c0_57] : memref<8x128xf32, #tpu.memory_space<vmem>>, vector<8x128xf32>
    %134 = arith.truncf %133 : vector<8x128xf32> to vector<8x128xbf16>
    %c0_58 = arith.constant 0 : index
    %c0_59 = arith.constant 0 : index
    %135 = vector.load %arg2[%c0_58, %c0_59] : memref<128x512xbf16, #tpu.memory_space<vmem>>, vector<128x512xbf16>
    %cst_60 = arith.constant dense<0.000000e+00> : vector<8x512xf32>
    %136 = tpu.matmul %134, %135, %cst_60 {dimension_numbers = #tpu.dot_dimension_numbers<[1], [0], [0], [1], [0, 0, 1, 1], [], []>} : vector<8x128xbf16>, vector<128x512xbf16>, vector<8x512xf32> -> vector<8x512xf32>
    %137 = arith.addf %132, %136 : vector<8x512xf32>
    %c0_61 = arith.constant 0 : index
    %c0_62 = arith.constant 0 : index
    %138 = vector.load %arg7[%c0_61, %c0_62] : memref<8x128xf32, #tpu.memory_space<vmem>>, vector<8x128xf32>
    %139 = vector.extract_strided_slice %137 {offsets = [0, 0], sizes = [8, 128], strides = [1, 1]} : vector<8x512xf32> to vector<8x128xf32>
    %140 = arith.negf %139 : vector<8x128xf32>
    %141 = math.exp %140 : vector<8x128xf32>
    %cst_63 = arith.constant 1.000000e+00 : f32
    %142 = vector.broadcast %cst_63 : f32 to vector<8x128xf32>
    %143 = arith.addf %142, %141 : vector<8x128xf32>
    %144 = arith.divf %142, %143 : vector<8x128xf32>
    %145 = vector.extract_strided_slice %137 {offsets = [0, 128], sizes = [8, 128], strides = [1, 1]} : vector<8x512xf32> to vector<8x128xf32>
    %146 = arith.negf %145 : vector<8x128xf32>
    %147 = math.exp %146 : vector<8x128xf32>
    %cst_64 = arith.constant 1.000000e+00 : f32
    %148 = vector.broadcast %cst_64 : f32 to vector<8x128xf32>
    %149 = arith.addf %148, %147 : vector<8x128xf32>
    %150 = arith.divf %148, %149 : vector<8x128xf32>
    %151 = vector.extract_strided_slice %137 {offsets = [0, 256], sizes = [8, 128], strides = [1, 1]} : vector<8x512xf32> to vector<8x128xf32>
    %152 = math.tanh %151 : vector<8x128xf32>
    %153 = vector.extract_strided_slice %137 {offsets = [0, 384], sizes = [8, 128], strides = [1, 1]} : vector<8x512xf32> to vector<8x128xf32>
    %154 = arith.negf %153 : vector<8x128xf32>
    %155 = math.exp %154 : vector<8x128xf32>
    %cst_65 = arith.constant 1.000000e+00 : f32
    %156 = vector.broadcast %cst_65 : f32 to vector<8x128xf32>
    %157 = arith.addf %156, %155 : vector<8x128xf32>
    %158 = arith.divf %156, %157 : vector<8x128xf32>
    %159 = arith.mulf %150, %138 : vector<8x128xf32>
    %160 = arith.mulf %144, %152 : vector<8x128xf32>
    %161 = arith.addf %159, %160 : vector<8x128xf32>
    %162 = math.tanh %161 : vector<8x128xf32>
    %163 = arith.mulf %158, %162 : vector<8x128xf32>
    %c0_66 = arith.constant 0 : index
    %c0_67 = arith.constant 0 : index
    %164 = vector.load %arg6[%c0_66, %c0_67] : memref<8x128xf32, #tpu.memory_space<vmem>>, vector<8x128xf32>
    tpu.vector_store %arg6[%c0_66, %c0_67], %163 {strides = array<i32>} : memref<8x128xf32, #tpu.memory_space<vmem>>, vector<8x128xf32>,
    %c0_68 = arith.constant 0 : index
    %c0_69 = arith.constant 0 : index
    %165 = vector.load %arg7[%c0_68, %c0_69] : memref<8x128xf32, #tpu.memory_space<vmem>>, vector<8x128xf32>
    tpu.vector_store %arg7[%c0_68, %c0_69], %161 {strides = array<i32>} : memref<8x128xf32, #tpu.memory_space<vmem>>, vector<8x128xf32>,
    %166 = arith.truncf %163 : vector<8x128xf32> to vector<8x128xbf16>
    %167 = arith.index_cast %c3_i32 : i32 to index
    %c0_70 = arith.constant 0 : index
    %c0_71 = arith.constant 0 : index
    %168 = vector.load %arg5[%167, %c0_70, %c0_71] : memref<8x8x128xbf16, #tpu.memory_space<vmem>>, vector<1x8x128xbf16>
    %169 = vector.shape_cast %168 : vector<1x8x128xbf16> to vector<8x128xbf16>
    %170 = vector.shape_cast %166 : vector<8x128xbf16> to vector<1x8x128xbf16>
    tpu.vector_store %arg5[%167, %c0_70, %c0_71], %170 {strides = array<i32>} : memref<8x8x128xbf16, #tpu.memory_space<vmem>>, vector<1x8x128xbf16>,
    %c4_i32 = arith.constant 4 : i32
    %171 = arith.index_cast %c4_i32 : i32 to index
    %c0_72 = arith.constant 0 : index
    %c0_73 = arith.constant 0 : index
    %172 = vector.load %arg1[%171, %c0_72, %c0_73] : memref<8x8x512xbf16, #tpu.memory_space<vmem>>, vector<1x8x512xbf16>
    %173 = vector.shape_cast %172 : vector<1x8x512xbf16> to vector<8x512xbf16>
    %174 = arith.extf %173 : vector<8x512xbf16> to vector<8x512xf32>
    %c0_74 = arith.constant 0 : index
    %c0_75 = arith.constant 0 : index
    %175 = vector.load %arg6[%c0_74, %c0_75] : memref<8x128xf32, #tpu.memory_space<vmem>>, vector<8x128xf32>
    %176 = arith.truncf %175 : vector<8x128xf32> to vector<8x128xbf16>
    %c0_76 = arith.constant 0 : index
    %c0_77 = arith.constant 0 : index
    %177 = vector.load %arg2[%c0_76, %c0_77] : memref<128x512xbf16, #tpu.memory_space<vmem>>, vector<128x512xbf16>
    %cst_78 = arith.constant dense<0.000000e+00> : vector<8x512xf32>
    %178 = tpu.matmul %176, %177, %cst_78 {dimension_numbers = #tpu.dot_dimension_numbers<[1], [0], [0], [1], [0, 0, 1, 1], [], []>} : vector<8x128xbf16>, vector<128x512xbf16>, vector<8x512xf32> -> vector<8x512xf32>
    %179 = arith.addf %174, %178 : vector<8x512xf32>
    %c0_79 = arith.constant 0 : index
    %c0_80 = arith.constant 0 : index
    %180 = vector.load %arg7[%c0_79, %c0_80] : memref<8x128xf32, #tpu.memory_space<vmem>>, vector<8x128xf32>
    %181 = vector.extract_strided_slice %179 {offsets = [0, 0], sizes = [8, 128], strides = [1, 1]} : vector<8x512xf32> to vector<8x128xf32>
    %182 = arith.negf %181 : vector<8x128xf32>
    %183 = math.exp %182 : vector<8x128xf32>
    %cst_81 = arith.constant 1.000000e+00 : f32
    %184 = vector.broadcast %cst_81 : f32 to vector<8x128xf32>
    %185 = arith.addf %184, %183 : vector<8x128xf32>
    %186 = arith.divf %184, %185 : vector<8x128xf32>
    %187 = vector.extract_strided_slice %179 {offsets = [0, 128], sizes = [8, 128], strides = [1, 1]} : vector<8x512xf32> to vector<8x128xf32>
    %188 = arith.negf %187 : vector<8x128xf32>
    %189 = math.exp %188 : vector<8x128xf32>
    %cst_82 = arith.constant 1.000000e+00 : f32
    %190 = vector.broadcast %cst_82 : f32 to vector<8x128xf32>
    %191 = arith.addf %190, %189 : vector<8x128xf32>
    %192 = arith.divf %190, %191 : vector<8x128xf32>
    %193 = vector.extract_strided_slice %179 {offsets = [0, 256], sizes = [8, 128], strides = [1, 1]} : vector<8x512xf32> to vector<8x128xf32>
    %194 = math.tanh %193 : vector<8x128xf32>
    %195 = vector.extract_strided_slice %179 {offsets = [0, 384], sizes = [8, 128], strides = [1, 1]} : vector<8x512xf32> to vector<8x128xf32>
    %196 = arith.negf %195 : vector<8x128xf32>
    %197 = math.exp %196 : vector<8x128xf32>
    %cst_83 = arith.constant 1.000000e+00 : f32
    %198 = vector.broadcast %cst_83 : f32 to vector<8x128xf32>
    %199 = arith.addf %198, %197 : vector<8x128xf32>
    %200 = arith.divf %198, %199 : vector<8x128xf32>
    %201 = arith.mulf %192, %180 : vector<8x128xf32>
    %202 = arith.mulf %186, %194 : vector<8x128xf32>
    %203 = arith.addf %201, %202 : vector<8x128xf32>
    %204 = math.tanh %203 : vector<8x128xf32>
    %205 = arith.mulf %200, %204 : vector<8x128xf32>
    %c0_84 = arith.constant 0 : index
    %c0_85 = arith.constant 0 : index
    %206 = vector.load %arg6[%c0_84, %c0_85] : memref<8x128xf32, #tpu.memory_space<vmem>>, vector<8x128xf32>
    tpu.vector_store %arg6[%c0_84, %c0_85], %205 {strides = array<i32>} : memref<8x128xf32, #tpu.memory_space<vmem>>, vector<8x128xf32>,
    %c0_86 = arith.constant 0 : index
    %c0_87 = arith.constant 0 : index
    %207 = vector.load %arg7[%c0_86, %c0_87] : memref<8x128xf32, #tpu.memory_space<vmem>>, vector<8x128xf32>
    tpu.vector_store %arg7[%c0_86, %c0_87], %203 {strides = array<i32>} : memref<8x128xf32, #tpu.memory_space<vmem>>, vector<8x128xf32>,
    %208 = arith.truncf %205 : vector<8x128xf32> to vector<8x128xbf16>
    %209 = arith.index_cast %c4_i32 : i32 to index
    %c0_88 = arith.constant 0 : index
    %c0_89 = arith.constant 0 : index
    %210 = vector.load %arg5[%209, %c0_88, %c0_89] : memref<8x8x128xbf16, #tpu.memory_space<vmem>>, vector<1x8x128xbf16>
    %211 = vector.shape_cast %210 : vector<1x8x128xbf16> to vector<8x128xbf16>
    %212 = vector.shape_cast %208 : vector<8x128xbf16> to vector<1x8x128xbf16>
    tpu.vector_store %arg5[%209, %c0_88, %c0_89], %212 {strides = array<i32>} : memref<8x8x128xbf16, #tpu.memory_space<vmem>>, vector<1x8x128xbf16>,
    %c5_i32 = arith.constant 5 : i32
    %213 = arith.index_cast %c5_i32 : i32 to index
    %c0_90 = arith.constant 0 : index
    %c0_91 = arith.constant 0 : index
    %214 = vector.load %arg1[%213, %c0_90, %c0_91] : memref<8x8x512xbf16, #tpu.memory_space<vmem>>, vector<1x8x512xbf16>
    %215 = vector.shape_cast %214 : vector<1x8x512xbf16> to vector<8x512xbf16>
    %216 = arith.extf %215 : vector<8x512xbf16> to vector<8x512xf32>
    %c0_92 = arith.constant 0 : index
    %c0_93 = arith.constant 0 : index
    %217 = vector.load %arg6[%c0_92, %c0_93] : memref<8x128xf32, #tpu.memory_space<vmem>>, vector<8x128xf32>
    %218 = arith.truncf %217 : vector<8x128xf32> to vector<8x128xbf16>
    %c0_94 = arith.constant 0 : index
    %c0_95 = arith.constant 0 : index
    %219 = vector.load %arg2[%c0_94, %c0_95] : memref<128x512xbf16, #tpu.memory_space<vmem>>, vector<128x512xbf16>
    %cst_96 = arith.constant dense<0.000000e+00> : vector<8x512xf32>
    %220 = tpu.matmul %218, %219, %cst_96 {dimension_numbers = #tpu.dot_dimension_numbers<[1], [0], [0], [1], [0, 0, 1, 1], [], []>} : vector<8x128xbf16>, vector<128x512xbf16>, vector<8x512xf32> -> vector<8x512xf32>
    %221 = arith.addf %216, %220 : vector<8x512xf32>
    %c0_97 = arith.constant 0 : index
    %c0_98 = arith.constant 0 : index
    %222 = vector.load %arg7[%c0_97, %c0_98] : memref<8x128xf32, #tpu.memory_space<vmem>>, vector<8x128xf32>
    %223 = vector.extract_strided_slice %221 {offsets = [0, 0], sizes = [8, 128], strides = [1, 1]} : vector<8x512xf32> to vector<8x128xf32>
    %224 = arith.negf %223 : vector<8x128xf32>
    %225 = math.exp %224 : vector<8x128xf32>
    %cst_99 = arith.constant 1.000000e+00 : f32
    %226 = vector.broadcast %cst_99 : f32 to vector<8x128xf32>
    %227 = arith.addf %226, %225 : vector<8x128xf32>
    %228 = arith.divf %226, %227 : vector<8x128xf32>
    %229 = vector.extract_strided_slice %221 {offsets = [0, 128], sizes = [8, 128], strides = [1, 1]} : vector<8x512xf32> to vector<8x128xf32>
    %230 = arith.negf %229 : vector<8x128xf32>
    %231 = math.exp %230 : vector<8x128xf32>
    %cst_100 = arith.constant 1.000000e+00 : f32
    %232 = vector.broadcast %cst_100 : f32 to vector<8x128xf32>
    %233 = arith.addf %232, %231 : vector<8x128xf32>
    %234 = arith.divf %232, %233 : vector<8x128xf32>
    %235 = vector.extract_strided_slice %221 {offsets = [0, 256], sizes = [8, 128], strides = [1, 1]} : vector<8x512xf32> to vector<8x128xf32>
    %236 = math.tanh %235 : vector<8x128xf32>
    %237 = vector.extract_strided_slice %221 {offsets = [0, 384], sizes = [8, 128], strides = [1, 1]} : vector<8x512xf32> to vector<8x128xf32>
    %238 = arith.negf %237 : vector<8x128xf32>
    %239 = math.exp %238 : vector<8x128xf32>
    %cst_101 = arith.constant 1.000000e+00 : f32
    %240 = vector.broadcast %cst_101 : f32 to vector<8x128xf32>
    %241 = arith.addf %240, %239 : vector<8x128xf32>
    %242 = arith.divf %240, %241 : vector<8x128xf32>
    %243 = arith.mulf %234, %222 : vector<8x128xf32>
    %244 = arith.mulf %228, %236 : vector<8x128xf32>
    %245 = arith.addf %243, %244 : vector<8x128xf32>
    %246 = math.tanh %245 : vector<8x128xf32>
    %247 = arith.mulf %242, %246 : vector<8x128xf32>
    %c0_102 = arith.constant 0 : index
    %c0_103 = arith.constant 0 : index
    %248 = vector.load %arg6[%c0_102, %c0_103] : memref<8x128xf32, #tpu.memory_space<vmem>>, vector<8x128xf32>
    tpu.vector_store %arg6[%c0_102, %c0_103], %247 {strides = array<i32>} : memref<8x128xf32, #tpu.memory_space<vmem>>, vector<8x128xf32>,
    %c0_104 = arith.constant 0 : index
    %c0_105 = arith.constant 0 : index
    %249 = vector.load %arg7[%c0_104, %c0_105] : memref<8x128xf32, #tpu.memory_space<vmem>>, vector<8x128xf32>
    tpu.vector_store %arg7[%c0_104, %c0_105], %245 {strides = array<i32>} : memref<8x128xf32, #tpu.memory_space<vmem>>, vector<8x128xf32>,
    %250 = arith.truncf %247 : vector<8x128xf32> to vector<8x128xbf16>
    %251 = arith.index_cast %c5_i32 : i32 to index
    %c0_106 = arith.constant 0 : index
    %c0_107 = arith.constant 0 : index
    %252 = vector.load %arg5[%251, %c0_106, %c0_107] : memref<8x8x128xbf16, #tpu.memory_space<vmem>>, vector<1x8x128xbf16>
    %253 = vector.shape_cast %252 : vector<1x8x128xbf16> to vector<8x128xbf16>
    %254 = vector.shape_cast %250 : vector<8x128xbf16> to vector<1x8x128xbf16>
    tpu.vector_store %arg5[%251, %c0_106, %c0_107], %254 {strides = array<i32>} : memref<8x8x128xbf16, #tpu.memory_space<vmem>>, vector<1x8x128xbf16>,
    %c6_i32 = arith.constant 6 : i32
    %255 = arith.index_cast %c6_i32 : i32 to index
    %c0_108 = arith.constant 0 : index
    %c0_109 = arith.constant 0 : index
    %256 = vector.load %arg1[%255, %c0_108, %c0_109] : memref<8x8x512xbf16, #tpu.memory_space<vmem>>, vector<1x8x512xbf16>
    %257 = vector.shape_cast %256 : vector<1x8x512xbf16> to vector<8x512xbf16>
    %258 = arith.extf %257 : vector<8x512xbf16> to vector<8x512xf32>
    %c0_110 = arith.constant 0 : index
    %c0_111 = arith.constant 0 : index
    %259 = vector.load %arg6[%c0_110, %c0_111] : memref<8x128xf32, #tpu.memory_space<vmem>>, vector<8x128xf32>
    %260 = arith.truncf %259 : vector<8x128xf32> to vector<8x128xbf16>
    %c0_112 = arith.constant 0 : index
    %c0_113 = arith.constant 0 : index
    %261 = vector.load %arg2[%c0_112, %c0_113] : memref<128x512xbf16, #tpu.memory_space<vmem>>, vector<128x512xbf16>
    %cst_114 = arith.constant dense<0.000000e+00> : vector<8x512xf32>
    %262 = tpu.matmul %260, %261, %cst_114 {dimension_numbers = #tpu.dot_dimension_numbers<[1], [0], [0], [1], [0, 0, 1, 1], [], []>} : vector<8x128xbf16>, vector<128x512xbf16>, vector<8x512xf32> -> vector<8x512xf32>
    %263 = arith.addf %258, %262 : vector<8x512xf32>
    %c0_115 = arith.constant 0 : index
    %c0_116 = arith.constant 0 : index
    %264 = vector.load %arg7[%c0_115, %c0_116] : memref<8x128xf32, #tpu.memory_space<vmem>>, vector<8x128xf32>
    %265 = vector.extract_strided_slice %263 {offsets = [0, 0], sizes = [8, 128], strides = [1, 1]} : vector<8x512xf32> to vector<8x128xf32>
    %266 = arith.negf %265 : vector<8x128xf32>
    %267 = math.exp %266 : vector<8x128xf32>
    %cst_117 = arith.constant 1.000000e+00 : f32
    %268 = vector.broadcast %cst_117 : f32 to vector<8x128xf32>
    %269 = arith.addf %268, %267 : vector<8x128xf32>
    %270 = arith.divf %268, %269 : vector<8x128xf32>
    %271 = vector.extract_strided_slice %263 {offsets = [0, 128], sizes = [8, 128], strides = [1, 1]} : vector<8x512xf32> to vector<8x128xf32>
    %272 = arith.negf %271 : vector<8x128xf32>
    %273 = math.exp %272 : vector<8x128xf32>
    %cst_118 = arith.constant 1.000000e+00 : f32
    %274 = vector.broadcast %cst_118 : f32 to vector<8x128xf32>
    %275 = arith.addf %274, %273 : vector<8x128xf32>
    %276 = arith.divf %274, %275 : vector<8x128xf32>
    %277 = vector.extract_strided_slice %263 {offsets = [0, 256], sizes = [8, 128], strides = [1, 1]} : vector<8x512xf32> to vector<8x128xf32>
    %278 = math.tanh %277 : vector<8x128xf32>
    %279 = vector.extract_strided_slice %263 {offsets = [0, 384], sizes = [8, 128], strides = [1, 1]} : vector<8x512xf32> to vector<8x128xf32>
    %280 = arith.negf %279 : vector<8x128xf32>
    %281 = math.exp %280 : vector<8x128xf32>
    %cst_119 = arith.constant 1.000000e+00 : f32
    %282 = vector.broadcast %cst_119 : f32 to vector<8x128xf32>
    %283 = arith.addf %282, %281 : vector<8x128xf32>
    %284 = arith.divf %282, %283 : vector<8x128xf32>
    %285 = arith.mulf %276, %264 : vector<8x128xf32>
    %286 = arith.mulf %270, %278 : vector<8x128xf32>
    %287 = arith.addf %285, %286 : vector<8x128xf32>
    %288 = math.tanh %287 : vector<8x128xf32>
    %289 = arith.mulf %284, %288 : vector<8x128xf32>
    %c0_120 = arith.constant 0 : index
    %c0_121 = arith.constant 0 : index
    %290 = vector.load %arg6[%c0_120, %c0_121] : memref<8x128xf32, #tpu.memory_space<vmem>>, vector<8x128xf32>
    tpu.vector_store %arg6[%c0_120, %c0_121], %289 {strides = array<i32>} : memref<8x128xf32, #tpu.memory_space<vmem>>, vector<8x128xf32>,
    %c0_122 = arith.constant 0 : index
    %c0_123 = arith.constant 0 : index
    %291 = vector.load %arg7[%c0_122, %c0_123] : memref<8x128xf32, #tpu.memory_space<vmem>>, vector<8x128xf32>
    tpu.vector_store %arg7[%c0_122, %c0_123], %287 {strides = array<i32>} : memref<8x128xf32, #tpu.memory_space<vmem>>, vector<8x128xf32>,
    %292 = arith.truncf %289 : vector<8x128xf32> to vector<8x128xbf16>
    %293 = arith.index_cast %c6_i32 : i32 to index
    %c0_124 = arith.constant 0 : index
    %c0_125 = arith.constant 0 : index
    %294 = vector.load %arg5[%293, %c0_124, %c0_125] : memref<8x8x128xbf16, #tpu.memory_space<vmem>>, vector<1x8x128xbf16>
    %295 = vector.shape_cast %294 : vector<1x8x128xbf16> to vector<8x128xbf16>
    %296 = vector.shape_cast %292 : vector<8x128xbf16> to vector<1x8x128xbf16>
    tpu.vector_store %arg5[%293, %c0_124, %c0_125], %296 {strides = array<i32>} : memref<8x8x128xbf16, #tpu.memory_space<vmem>>, vector<1x8x128xbf16>,
    %c7_i32 = arith.constant 7 : i32
    %297 = arith.index_cast %c7_i32 : i32 to index
    %c0_126 = arith.constant 0 : index
    %c0_127 = arith.constant 0 : index
    %298 = vector.load %arg1[%297, %c0_126, %c0_127] : memref<8x8x512xbf16, #tpu.memory_space<vmem>>, vector<1x8x512xbf16>
    %299 = vector.shape_cast %298 : vector<1x8x512xbf16> to vector<8x512xbf16>
    %300 = arith.extf %299 : vector<8x512xbf16> to vector<8x512xf32>
    %c0_128 = arith.constant 0 : index
    %c0_129 = arith.constant 0 : index
    %301 = vector.load %arg6[%c0_128, %c0_129] : memref<8x128xf32, #tpu.memory_space<vmem>>, vector<8x128xf32>
    %302 = arith.truncf %301 : vector<8x128xf32> to vector<8x128xbf16>
    %c0_130 = arith.constant 0 : index
    %c0_131 = arith.constant 0 : index
    %303 = vector.load %arg2[%c0_130, %c0_131] : memref<128x512xbf16, #tpu.memory_space<vmem>>, vector<128x512xbf16>
    %cst_132 = arith.constant dense<0.000000e+00> : vector<8x512xf32>
    %304 = tpu.matmul %302, %303, %cst_132 {dimension_numbers = #tpu.dot_dimension_numbers<[1], [0], [0], [1], [0, 0, 1, 1], [], []>} : vector<8x128xbf16>, vector<128x512xbf16>, vector<8x512xf32> -> vector<8x512xf32>
    %305 = arith.addf %300, %304 : vector<8x512xf32>
    %c0_133 = arith.constant 0 : index
    %c0_134 = arith.constant 0 : index
    %306 = vector.load %arg7[%c0_133, %c0_134] : memref<8x128xf32, #tpu.memory_space<vmem>>, vector<8x128xf32>
    %307 = vector.extract_strided_slice %305 {offsets = [0, 0], sizes = [8, 128], strides = [1, 1]} : vector<8x512xf32> to vector<8x128xf32>
    %308 = arith.negf %307 : vector<8x128xf32>
    %309 = math.exp %308 : vector<8x128xf32>
    %cst_135 = arith.constant 1.000000e+00 : f32
    %310 = vector.broadcast %cst_135 : f32 to vector<8x128xf32>
    %311 = arith.addf %310, %309 : vector<8x128xf32>
    %312 = arith.divf %310, %311 : vector<8x128xf32>
    %313 = vector.extract_strided_slice %305 {offsets = [0, 128], sizes = [8, 128], strides = [1, 1]} : vector<8x512xf32> to vector<8x128xf32>
    %314 = arith.negf %313 : vector<8x128xf32>
    %315 = math.exp %314 : vector<8x128xf32>
    %cst_136 = arith.constant 1.000000e+00 : f32
    %316 = vector.broadcast %cst_136 : f32 to vector<8x128xf32>
    %317 = arith.addf %316, %315 : vector<8x128xf32>
    %318 = arith.divf %316, %317 : vector<8x128xf32>
    %319 = vector.extract_strided_slice %305 {offsets = [0, 256], sizes = [8, 128], strides = [1, 1]} : vector<8x512xf32> to vector<8x128xf32>
    %320 = math.tanh %319 : vector<8x128xf32>
    %321 = vector.extract_strided_slice %305 {offsets = [0, 384], sizes = [8, 128], strides = [1, 1]} : vector<8x512xf32> to vector<8x128xf32>
    %322 = arith.negf %321 : vector<8x128xf32>
    %323 = math.exp %322 : vector<8x128xf32>
    %cst_137 = arith.constant 1.000000e+00 : f32
    %324 = vector.broadcast %cst_137 : f32 to vector<8x128xf32>
    %325 = arith.addf %324, %323 : vector<8x128xf32>
    %326 = arith.divf %324, %325 : vector<8x128xf32>
    %327 = arith.mulf %318, %306 : vector<8x128xf32>
    %328 = arith.mulf %312, %320 : vector<8x128xf32>
    %329 = arith.addf %327, %328 : vector<8x128xf32>
    %330 = math.tanh %329 : vector<8x128xf32>
    %331 = arith.mulf %326, %330 : vector<8x128xf32>
    %c0_138 = arith.constant 0 : index
    %c0_139 = arith.constant 0 : index
    %332 = vector.load %arg6[%c0_138, %c0_139] : memref<8x128xf32, #tpu.memory_space<vmem>>, vector<8x128xf32>
    tpu.vector_store %arg6[%c0_138, %c0_139], %331 {strides = array<i32>} : memref<8x128xf32, #tpu.memory_space<vmem>>, vector<8x128xf32>,
    %c0_140 = arith.constant 0 : index
    %c0_141 = arith.constant 0 : index
    %333 = vector.load %arg7[%c0_140, %c0_141] : memref<8x128xf32, #tpu.memory_space<vmem>>, vector<8x128xf32>
    tpu.vector_store %arg7[%c0_140, %c0_141], %329 {strides = array<i32>} : memref<8x128xf32, #tpu.memory_space<vmem>>, vector<8x128xf32>,
    %334 = arith.truncf %331 : vector<8x128xf32> to vector<8x128xbf16>
    %335 = arith.index_cast %c7_i32 : i32 to index
    %c0_142 = arith.constant 0 : index
    %c0_143 = arith.constant 0 : index
    %336 = vector.load %arg5[%335, %c0_142, %c0_143] : memref<8x8x128xbf16, #tpu.memory_space<vmem>>, vector<1x8x128xbf16>
    %337 = vector.shape_cast %336 : vector<1x8x128xbf16> to vector<8x128xbf16>
    %338 = vector.shape_cast %334 : vector<8x128xbf16> to vector<1x8x128xbf16>
    tpu.vector_store %arg5[%335, %c0_142, %c0_143], %338 {strides = array<i32>} : memref<8x8x128xbf16, #tpu.memory_space<vmem>>, vector<1x8x128xbf16>,
    %c8_i32 = arith.constant 8 : i32
    return
  }
  func.func @transform_0(%arg0: i32) -> (i32, i32, i32) {
    %c0_i32 = arith.constant 0 : i32
    %c0_i32_0 = arith.constant 0 : i32
    %c0_i32_1 = arith.constant 0 : i32
    return %arg0, %c0_i32, %c0_i32_0 : i32, i32, i32
  }
  func.func @transform_1(%arg0: i32) -> (i32, i32) {
    %c0_i32 = arith.constant 0 : i32
    %c0_i32_0 = arith.constant 0 : i32
    %c0_i32_1 = arith.constant 0 : i32
    return %c0_i32, %c0_i32_0 : i32, i32
  }
  func.func @transform_2(%arg0: i32) -> (i32, i32) {
    %c0_i32 = arith.constant 0 : i32
    %c0_i32_0 = arith.constant 0 : i32
    %c0_i32_1 = arith.constant 0 : i32
    return %c0_i32, %c0_i32_0 : i32, i32
  }
  func.func @transform_3(%arg0: i32) -> (i32, i32) {
    %c0_i32 = arith.constant 0 : i32
    %c0_i32_0 = arith.constant 0 : i32
    %c0_i32_1 = arith.constant 0 : i32
    return %c0_i32, %c0_i32_0 : i32, i32
  }
  func.func @transform_4(%arg0: i32) -> (i32, i32, i32) {
    %c0_i32 = arith.constant 0 : i32
    %c0_i32_0 = arith.constant 0 : i32
    %c0_i32_1 = arith.constant 0 : i32
    return %arg0, %c0_i32, %c0_i32_0 : i32, i32, i32
  }
}

</mosaic_0001>

<llo_original>
// kernel: encode_to_decode_forward.9
$region0: #{encode_to_decode_forward.9}
  #allocation0 [shape = 'u32[]', space=smem, size = 0x4, offset = 0x4, fixed_abs, tag = 'smem constant byte address 0x4 - core index']
  #allocation1 [shape = 'u32[72,128]{1,0:T(1,128)}', space=vmem, size = 0x9000, scoped, tag = 'internal scratch']
  %s0 = inlined_call_operand.vmem [shape: bf16[64,128], index: 0, kind: input, shape index: {}]
  %s1 = inlined_call_operand.vmem [shape: bf16[128,128], index: 1, kind: input, shape index: {}]
  %s2 = inlined_call_operand.vmem [shape: f32[1,128], index: 2, kind: input, shape index: {}]
  %s3 = inlined_call_operand.vmem [shape: f32[64,128], index: 3, kind: output, shape index: {}]
  %s4 = sld [smem:[#allocation0]]
  $region22: #{encode_to_decode_forward.9} parent=0
    _
  %s6 = ssub.s32 1, %s4
  %s7 = scalar_select 0, %s6, %s4
  // Predicated region
  $region2: #{encode_to_decode_forward.9} parent=0 // pred_check
    _
  $region3: #{encode_to_decode_forward.9} parent=0 // pred_check_branch
    %9 = sbr.rel (0) target = $region5
  $region4: #{encode_to_decode_forward.9} parent=0 // pred_region
    _
  $region5: #{encode_to_decode_forward.9} parent=0 // pred_fallthru
    _
  // Predicated region
  $region6: #{encode_to_decode_forward.9} parent=0 // pred_check
    _
  $region7: #{encode_to_decode_forward.9} parent=0 // pred_check_branch
    %11 = sbr.rel (0) target = $region9
  $region8: #{encode_to_decode_forward.9} parent=0 // pred_region
    _
  $region9: #{encode_to_decode_forward.9} parent=0 // pred_fallthru
    _
  // Predicated region
  $region10: #{encode_to_decode_forward.9} parent=0 // pred_check
    _
  $region11: #{encode_to_decode_forward.9} parent=0 // pred_check_branch
    %13 = sbr.rel (0) target = $region13
  $region12: #{encode_to_decode_forward.9} parent=0 // pred_region
    _
  $region13: #{encode_to_decode_forward.9} parent=0 // pred_fallthru
    _
  %v14 = vld [vmem:[%s0] sm:$0xf]
  %v15 = vld [vmem:[%s0 + $0x4] sm:$0xf]
  %v16 = vld [vmem:[%s0 + $0x8] sm:$0xf]
  %v17 = vld [vmem:[%s0 + $0xc] sm:$0xf]
  %v18 = vld [vmem:[%s0 + $0x10] sm:$0xf]
  %v19 = vld [vmem:[%s0 + $0x14] sm:$0xf]
  %v20 = vld [vmem:[%s0 + $0x18] sm:$0xf]
  %v21 = vld [vmem:[%s0 + $0x1c] sm:$0xf]
  %v22 = vld [vmem:[%s1] sm:$0xf]
  %v23 = vld [vmem:[%s1 + $0x4] sm:$0xf]
  %v24 = vld [vmem:[%s1 + $0x8] sm:$0xf]
  %v25 = vld [vmem:[%s1 + $0xc] sm:$0xf]
  %v26 = vld [vmem:[%s1 + $0x10] sm:$0xf]
  %v27 = vld [vmem:[%s1 + $0x14] sm:$0xf]
  %v28 = vld [vmem:[%s1 + $0x18] sm:$0xf]
  %v29 = vld [vmem:[%s1 + $0x1c] sm:$0xf]
  %v30 = vld [vmem:[%s1 + $0x20] sm:$0xf]
  %v31 = vld [vmem:[%s1 + $0x24] sm:$0xf]
  %v32 = vld [vmem:[%s1 + $0x28] sm:$0xf]
  %v33 = vld [vmem:[%s1 + $0x2c] sm:$0xf]
  %v34 = vld [vmem:[%s1 + $0x30] sm:$0xf]
  %v35 = vld [vmem:[%s1 + $0x34] sm:$0xf]
  %v36 = vld [vmem:[%s1 + $0x38] sm:$0xf]
  %v37 = vld [vmem:[%s1 + $0x3c] sm:$0xf]
  %v38 = vld [vmem:[%s2] sm:$0x1]
  %v40 = vperm.slane %v38, 0
  %v50 = vunpack.c.l.b16 %v14
  %v51 = vunpack.c.l.b16 %v15
  %v52 = vunpack.c.l.b16 %v16
  %v53 = vunpack.c.l.b16 %v17
  %v54 = vunpack.c.l.b16 %v18
  %v55 = vunpack.c.l.b16 %v19
  %v56 = vunpack.c.l.b16 %v20
  %v57 = vunpack.c.l.b16 %v21
  %v58 = vpack.c.b16 %v51, %v50
  %v59 = vpack.c.b16 %v53, %v52
  %v60 = vpack.c.b16 %v55, %v54
  %v61 = vpack.c.b16 %v57, %v56
  %v82 = vunpack.c.l.b16 %v22
  %v83 = vunpack.c.l.b16 %v23
  %v84 = vunpack.c.l.b16 %v24
  %v85 = vunpack.c.l.b16 %v25
  %v86 = vunpack.c.l.b16 %v26
  %v87 = vunpack.c.l.b16 %v27
  %v88 = vunpack.c.l.b16 %v28
  %v89 = vunpack.c.l.b16 %v29
  %v90 = vunpack.c.l.b16 %v30
  %v91 = vunpack.c.l.b16 %v31
  %v92 = vunpack.c.l.b16 %v32
  %v93 = vunpack.c.l.b16 %v33
  %v94 = vunpack.c.l.b16 %v34
  %v95 = vunpack.c.l.b16 %v35
  %v96 = vunpack.c.l.b16 %v36
  %v97 = vunpack.c.l.b16 %v37
  %v98 = vpack.c.b16 %v83, %v82
  %v99 = vpack.c.b16 %v85, %v84
  %v100 = vpack.c.b16 %v87, %v86
  %v101 = vpack.c.b16 %v89, %v88
  %v102 = vpack.c.b16 %v91, %v90
  %v103 = vpack.c.b16 %v93, %v92
  %v104 = vpack.c.b16 %v95, %v94
  %v105 = vpack.c.b16 %v97, %v96
  %114 = vmatpush.bf16.msra.mxu0 %v105
  %115 = vmatpush.bf16.msra.mxu0 %v104
  %116 = vmatpush.bf16.msra.mxu0 %v103
  %117 = vmatpush.bf16.msra.mxu0 %v102
  %118 = vmatpush.bf16.msra.mxu0 %v101
  %119 = vmatpush.bf16.msra.mxu0 %v100
  %120 = vmatpush.bf16.msra.mxu0 %v99
  %121 = vmatpush.bf16.msra.mxu0 %v98
  %122 = vmatmul.bf16.gmra.mxu0 %v58
  %v123 = vpop.f32.mrf.mxu0
  %v124 = vadd.f32 %v40, %v123
  %v125 = vpop.f32.mrf.mxu0
  %v126 = vadd.f32 %v40, %v125
  %127 = vmatmul.bf16.gmra.mxu0 %v59
  %v128 = vpop.f32.mrf.mxu0
  %v129 = vadd.f32 %v40, %v128
  %v130 = vpop.f32.mrf.mxu0
  %v131 = vadd.f32 %v40, %v130
  %132 = vmatmul.bf16.gmra.mxu0 %v60
  %v133 = vpop.f32.mrf.mxu0
  %v134 = vadd.f32 %v40, %v133
  %v135 = vpop.f32.mrf.mxu0
  %v136 = vadd.f32 %v40, %v135
  %137 = vmatmul.bf16.gmra.mxu0 %v61
  %v138 = vpop.f32.mrf.mxu0
  %v139 = vadd.f32 %v40, %v138
  %v140 = vpop.f32.mrf.mxu0
  %v141 = vadd.f32 %v40, %v140
  %142 = vdwg.mxu0
  %143 = vst [vmem:[%s3] sm:$0xff] %v124
  %144 = vst [vmem:[%s3 + $0x8] sm:$0xff] %v126
  %145 = vst [vmem:[%s3 + $0x10] sm:$0xff] %v129
  %146 = vst [vmem:[%s3 + $0x18] sm:$0xff] %v131
  %147 = vst [vmem:[%s3 + $0x20] sm:$0xff] %v134
  %148 = vst [vmem:[%s3 + $0x28] sm:$0xff] %v136
  %149 = vst [vmem:[%s3 + $0x30] sm:$0xff] %v139
  %150 = vst [vmem:[%s3 + $0x38] sm:$0xff] %v141
  // Predicated region
  $region14: #{encode_to_decode_forward.9} parent=0 // pred_check
    _
  $region15: #{encode_to_decode_forward.9} parent=0 // pred_check_branch
    %152 = sbr.rel (0) target = $region17
  $region16: #{encode_to_decode_forward.9} parent=0 // pred_region
    _
  $region17: #{encode_to_decode_forward.9} parent=0 // pred_fallthru
    _
  // Predicated region
  $region18: #{encode_to_decode_forward.9} parent=0 // pred_check
    _
  $region19: #{encode_to_decode_forward.9} parent=0 // pred_check_branch
    %154 = sbr.rel (0) target = $region21
  $region20: #{encode_to_decode_forward.9} parent=0 // pred_region
    _
  $region21: #{encode_to_decode_forward.9} parent=0 // pred_fallthru
    _

// kernel: encode_to_decode_forward.5
$region0: #{encode_to_decode_forward.5}
  #allocation0 [shape = 'u32[]', space=smem, size = 0x4, offset = 0x4, fixed_abs, tag = 'smem constant byte address 0x4 - core index']
  #allocation1 [shape = 'u32[72,128]{1,0:T(1,128)}', space=vmem, size = 0x9000, scoped, tag = 'internal scratch']
  %s0 = inlined_call_operand.vmem [shape: bf16[64,128], index: 0, kind: input, shape index: {}]
  %s1 = inlined_call_operand.vmem [shape: bf16[128,512], index: 1, kind: input, shape index: {}]
  %s2 = inlined_call_operand.vmem [shape: f32[1,512], index: 2, kind: input, shape index: {}]
  %s3 = inlined_call_operand.vmem [shape: bf16[64,512], index: 3, kind: output, shape index: {}]
  %s4 = sld [smem:[#allocation0]]
  $region22: #{encode_to_decode_forward.5} parent=0
    _
  %s6 = ssub.s32 1, %s4
  %s7 = scalar_select 0, %s6, %s4
  // Predicated region
  $region2: #{encode_to_decode_forward.5} parent=0 // pred_check
    _
  $region3: #{encode_to_decode_forward.5} parent=0 // pred_check_branch
    %9 = sbr.rel (0) target = $region5
  $region4: #{encode_to_decode_forward.5} parent=0 // pred_region
    _
  $region5: #{encode_to_decode_forward.5} parent=0 // pred_fallthru
    _
  // Predicated region
  $region6: #{encode_to_decode_forward.5} parent=0 // pred_check
    _
  $region7: #{encode_to_decode_forward.5} parent=0 // pred_check_branch
    %11 = sbr.rel (0) target = $region9
  $region8: #{encode_to_decode_forward.5} parent=0 // pred_region
    _
  $region9: #{encode_to_decode_forward.5} parent=0 // pred_fallthru
    _
  // Predicated region
  $region10: #{encode_to_decode_forward.5} parent=0 // pred_check
    _
  $region11: #{encode_to_decode_forward.5} parent=0 // pred_check_branch
    %13 = sbr.rel (0) target = $region13
  $region12: #{encode_to_decode_forward.5} parent=0 // pred_region
    _
  $region13: #{encode_to_decode_forward.5} parent=0 // pred_fallthru
    _
  %v14 = vld [vmem:[%s0] sm:$0xf]
  %v15 = vld [vmem:[%s0 + $0x4] sm:$0xf]
  %v16 = vld [vmem:[%s0 + $0x8] sm:$0xf]
  %v17 = vld [vmem:[%s0 + $0xc] sm:$0xf]
  %v18 = vld [vmem:[%s0 + $0x10] sm:$0xf]
  %v19 = vld [vmem:[%s0 + $0x14] sm:$0xf]
  %v20 = vld [vmem:[%s0 + $0x18] sm:$0xf]
  %v21 = vld [vmem:[%s0 + $0x1c] sm:$0xf]
  %v22 = vld [vmem:[%s1] sm:$0xff]
  %v23 = vld [vmem:[%s1 + $0x8] sm:$0xff]
  %v24 = vld [vmem:[%s1 + $0x10] sm:$0xff]
  %v25 = vld [vmem:[%s1 + $0x18] sm:$0xff]
  %v26 = vld [vmem:[%s1 + $0x20] sm:$0xff]
  %v27 = vld [vmem:[%s1 + $0x28] sm:$0xff]
  %v28 = vld [vmem:[%s1 + $0x30] sm:$0xff]
  %v29 = vld [vmem:[%s1 + $0x38] sm:$0xff]
  %v30 = vld [vmem:[%s1 + $0x40] sm:$0xff]
  %v31 = vld [vmem:[%s1 + $0x48] sm:$0xff]
  %v32 = vld [vmem:[%s1 + $0x50] sm:$0xff]
  %v33 = vld [vmem:[%s1 + $0x58] sm:$0xff]
  %v34 = vld [vmem:[%s1 + $0x60] sm:$0xff]
  %v35 = vld [vmem:[%s1 + $0x68] sm:$0xff]
  %v36 = vld [vmem:[%s1 + $0x70] sm:$0xff]
  %v37 = vld [vmem:[%s1 + $0x78] sm:$0xff]
  %v38 = vld [vmem:[%s1 + $0x80] sm:$0xff]
  %v39 = vld [vmem:[%s1 + $0x88] sm:$0xff]
  %v40 = vld [vmem:[%s1 + $0x90] sm:$0xff]
  %v41 = vld [vmem:[%s1 + $0x98] sm:$0xff]
  %v42 = vld [vmem:[%s1 + $0xa0] sm:$0xff]
  %v43 = vld [vmem:[%s1 + $0xa8] sm:$0xff]
  %v44 = vld [vmem:[%s1 + $0xb0] sm:$0xff]
  %v45 = vld [vmem:[%s1 + $0xb8] sm:$0xff]
  %v46 = vld [vmem:[%s1 + $0xc0] sm:$0xff]
  %v47 = vld [vmem:[%s1 + $0xc8] sm:$0xff]
  %v48 = vld [vmem:[%s1 + $0xd0] sm:$0xff]
  %v49 = vld [vmem:[%s1 + $0xd8] sm:$0xff]
  %v50 = vld [vmem:[%s1 + $0xe0] sm:$0xff]
  %v51 = vld [vmem:[%s1 + $0xe8] sm:$0xff]
  %v52 = vld [vmem:[%s1 + $0xf0] sm:$0xff]
  %v53 = vld [vmem:[%s1 + $0xf8] sm:$0xff]
  %v54 = vld [vmem:[%s2] sm:$0xf]
  %v56 = vperm.slane %v54, 0
  %v57 = vperm.slane %v54, 1
  %v58 = vperm.slane %v54, 2
  %v59 = vperm.slane %v54, 3
  %v72 = vunpack.c.l.b16 %v14
  %v73 = vunpack.c.l.b16 %v15
  %v74 = vunpack.c.l.b16 %v16
  %v75 = vunpack.c.l.b16 %v17
  %v76 = vunpack.c.l.b16 %v18
  %v77 = vunpack.c.l.b16 %v19
  %v78 = vunpack.c.l.b16 %v20
  %v79 = vunpack.c.l.b16 %v21
  %v80 = vpack.c.b16 %v73, %v72
  %v81 = vpack.c.b16 %v75, %v74
  %v82 = vpack.c.b16 %v77, %v76
  %v83 = vpack.c.b16 %v79, %v78
  %v120 = vunpack.c.l.b16 %v22
  %v121 = vunpack.c.h.b16 %v22
  %v122 = vunpack.c.l.b16 %v23
  %v123 = vunpack.c.h.b16 %v23
  %v124 = vunpack.c.l.b16 %v24
  %v125 = vunpack.c.h.b16 %v24
  %v126 = vunpack.c.l.b16 %v25
  %v127 = vunpack.c.h.b16 %v25
  %v128 = vunpack.c.l.b16 %v26
  %v129 = vunpack.c.h.b16 %v26
  %v130 = vunpack.c.l.b16 %v27
  %v131 = vunpack.c.h.b16 %v27
  %v132 = vunpack.c.l.b16 %v28
  %v133 = vunpack.c.h.b16 %v28
  %v134 = vunpack.c.l.b16 %v29
  %v135 = vunpack.c.h.b16 %v29
  %v136 = vunpack.c.l.b16 %v30
  %v137 = vunpack.c.h.b16 %v30
  %v138 = vunpack.c.l.b16 %v31
  %v139 = vunpack.c.h.b16 %v31
  %v140 = vunpack.c.l.b16 %v32
  %v141 = vunpack.c.h.b16 %v32
  %v142 = vunpack.c.l.b16 %v33
  %v143 = vunpack.c.h.b16 %v33
  %v144 = vunpack.c.l.b16 %v34
  %v145 = vunpack.c.h.b16 %v34
  %v146 = vunpack.c.l.b16 %v35
  %v147 = vunpack.c.h.b16 %v35
  %v148 = vunpack.c.l.b16 %v36
  %v149 = vunpack.c.h.b16 %v36
  %v150 = vunpack.c.l.b16 %v37
  %v151 = vunpack.c.h.b16 %v37
  %v152 = vunpack.c.l.b16 %v38
  %v153 = vunpack.c.h.b16 %v38
  %v154 = vunpack.c.l.b16 %v39
  %v155 = vunpack.c.h.b16 %v39
  %v156 = vunpack.c.l.b16 %v40
  %v157 = vunpack.c.h.b16 %v40
  %v158 = vunpack.c.l.b16 %v41
  %v159 = vunpack.c.h.b16 %v41
  %v160 = vunpack.c.l.b16 %v42
  %v161 = vunpack.c.h.b16 %v42
  %v162 = vunpack.c.l.b16 %v43
  %v163 = vunpack.c.h.b16 %v43
  %v164 = vunpack.c.l.b16 %v44
  %v165 = vunpack.c.h.b16 %v44
  %v166 = vunpack.c.l.b16 %v45
  %v167 = vunpack.c.h.b16 %v45
  %v168 = vunpack.c.l.b16 %v46
  %v169 = vunpack.c.h.b16 %v46
  %v170 = vunpack.c.l.b16 %v47
  %v171 = vunpack.c.h.b16 %v47
  %v172 = vunpack.c.l.b16 %v48
  %v173 = vunpack.c.h.b16 %v48
  %v174 = vunpack.c.l.b16 %v49
  %v175 = vunpack.c.h.b16 %v49
  %v176 = vunpack.c.l.b16 %v50
  %v177 = vunpack.c.h.b16 %v50
  %v178 = vunpack.c.l.b16 %v51
  %v179 = vunpack.c.h.b16 %v51
  %v180 = vunpack.c.l.b16 %v52
  %v181 = vunpack.c.h.b16 %v52
  %v182 = vunpack.c.l.b16 %v53
  %v183 = vunpack.c.h.b16 %v53
  %v184 = vpack.c.b16 %v124, %v120
  %v185 = vpack.c.b16 %v125, %v121
  %v186 = vpack.c.b16 %v126, %v122
  %v187 = vpack.c.b16 %v127, %v123
  %v188 = vpack.c.b16 %v132, %v128
  %v189 = vpack.c.b16 %v133, %v129
  %v190 = vpack.c.b16 %v134, %v130
  %v191 = vpack.c.b16 %v135, %v131
  %v192 = vpack.c.b16 %v140, %v136
  %v193 = vpack.c.b16 %v141, %v137
  %v194 = vpack.c.b16 %v142, %v138
  %v195 = vpack.c.b16 %v143, %v139
  %v196 = vpack.c.b16 %v148, %v144
  %v197 = vpack.c.b16 %v149, %v145
  %v198 = vpack.c.b16 %v150, %v146
  %v199 = vpack.c.b16 %v151, %v147
  %v200 = vpack.c.b16 %v156, %v152
  %v201 = vpack.c.b16 %v157, %v153
  %v202 = vpack.c.b16 %v158, %v154
  %v203 = vpack.c.b16 %v159, %v155
  %v204 = vpack.c.b16 %v164, %v160
  %v205 = vpack.c.b16 %v165, %v161
  %v206 = vpack.c.b16 %v166, %v162
  %v207 = vpack.c.b16 %v167, %v163
  %v208 = vpack.c.b16 %v172, %v168
  %v209 = vpack.c.b16 %v173, %v169
  %v210 = vpack.c.b16 %v174, %v170
  %v211 = vpack.c.b16 %v175, %v171
  %v212 = vpack.c.b16 %v180, %v176
  %v213 = vpack.c.b16 %v181, %v177
  %v214 = vpack.c.b16 %v182, %v178
  %v215 = vpack.c.b16 %v183, %v179
  %248 = vmatpush.bf16.msra.mxu0 %v212
  %249 = vmatpush.bf16.msra.mxu0 %v208
  %250 = vmatpush.bf16.msra.mxu0 %v204
  %251 = vmatpush.bf16.msra.mxu0 %v200
  %252 = vmatpush.bf16.msra.mxu0 %v196
  %253 = vmatpush.bf16.msra.mxu0 %v192
  %254 = vmatpush.bf16.msra.mxu0 %v188
  %255 = vmatpush.bf16.msra.mxu0 %v184
  %256 = vmatmul.bf16.gmra.mxu0 %v80
  %v257 = vpop.f32.mrf.mxu0
  %v258 = vadd.f32 %v56, %v257
  %v259 = vpop.f32.mrf.mxu0
  %v260 = vadd.f32 %v56, %v259
  %261 = vmatmul.bf16.gmra.mxu0 %v81
  %v262 = vpop.f32.mrf.mxu0
  %v263 = vadd.f32 %v56, %v262
  %v264 = vpop.f32.mrf.mxu0
  %v265 = vadd.f32 %v56, %v264
  %266 = vmatmul.bf16.gmra.mxu0 %v82
  %v267 = vpop.f32.mrf.mxu0
  %v268 = vadd.f32 %v56, %v267
  %v269 = vpop.f32.mrf.mxu0
  %v270 = vadd.f32 %v56, %v269
  %271 = vmatmul.bf16.gmra.mxu0 %v83
  %v272 = vpop.f32.mrf.mxu0
  %v273 = vadd.f32 %v56, %v272
  %v274 = vpop.f32.mrf.mxu0
  %v275 = vadd.f32 %v56, %v274
  %276 = vdwg.mxu0
  %277 = vmatpush.bf16.msra.mxu0 %v213
  %278 = vmatpush.bf16.msra.mxu0 %v209
  %279 = vmatpush.bf16.msra.mxu0 %v205
  %280 = vmatpush.bf16.msra.mxu0 %v201
  %281 = vmatpush.bf16.msra.mxu0 %v197
  %282 = vmatpush.bf16.msra.mxu0 %v193
  %283 = vmatpush.bf16.msra.mxu0 %v189
  %284 = vmatpush.bf16.msra.mxu0 %v185
  %285 = vmatmul.bf16.gmra.mxu0 %v80
  %v286 = vpop.f32.mrf.mxu0
  %v287 = vadd.f32 %v57, %v286
  %v288 = vpop.f32.mrf.mxu0
  %v289 = vadd.f32 %v57, %v288
  %290 = vmatmul.bf16.gmra.mxu0 %v81
  %v291 = vpop.f32.mrf.mxu0
  %v292 = vadd.f32 %v57, %v291
  %v293 = vpop.f32.mrf.mxu0
  %v294 = vadd.f32 %v57, %v293
  %295 = vmatmul.bf16.gmra.mxu0 %v82
  %v296 = vpop.f32.mrf.mxu0
  %v297 = vadd.f32 %v57, %v296
  %v298 = vpop.f32.mrf.mxu0
  %v299 = vadd.f32 %v57, %v298
  %300 = vmatmul.bf16.gmra.mxu0 %v83
  %v301 = vpop.f32.mrf.mxu0
  %v302 = vadd.f32 %v57, %v301
  %v303 = vpop.f32.mrf.mxu0
  %v304 = vadd.f32 %v57, %v303
  %305 = vdwg.mxu0
  %306 = vmatpush.bf16.msra.mxu0 %v214
  %307 = vmatpush.bf16.msra.mxu0 %v210
  %308 = vmatpush.bf16.msra.mxu0 %v206
  %309 = vmatpush.bf16.msra.mxu0 %v202
  %310 = vmatpush.bf16.msra.mxu0 %v198
  %311 = vmatpush.bf16.msra.mxu0 %v194
  %312 = vmatpush.bf16.msra.mxu0 %v190
  %313 = vmatpush.bf16.msra.mxu0 %v186
  %314 = vmatmul.bf16.gmra.mxu0 %v80
  %v315 = vpop.f32.mrf.mxu0
  %v316 = vadd.f32 %v58, %v315
  %v317 = vpop.f32.mrf.mxu0
  %v318 = vadd.f32 %v58, %v317
  %319 = vmatmul.bf16.gmra.mxu0 %v81
  %v320 = vpop.f32.mrf.mxu0
  %v321 = vadd.f32 %v58, %v320
  %v322 = vpop.f32.mrf.mxu0
  %v323 = vadd.f32 %v58, %v322
  %324 = vmatmul.bf16.gmra.mxu0 %v82
  %v325 = vpop.f32.mrf.mxu0
  %v326 = vadd.f32 %v58, %v325
  %v327 = vpop.f32.mrf.mxu0
  %v328 = vadd.f32 %v58, %v327
  %329 = vmatmul.bf16.gmra.mxu0 %v83
  %v330 = vpop.f32.mrf.mxu0
  %v331 = vadd.f32 %v58, %v330
  %v332 = vpop.f32.mrf.mxu0
  %v333 = vadd.f32 %v58, %v332
  %334 = vdwg.mxu0
  %335 = vmatpush.bf16.msra.mxu0 %v215
  %336 = vmatpush.bf16.msra.mxu0 %v211
  %337 = vmatpush.bf16.msra.mxu0 %v207
  %338 = vmatpush.bf16.msra.mxu0 %v203
  %339 = vmatpush.bf16.msra.mxu0 %v199
  %340 = vmatpush.bf16.msra.mxu0 %v195
  %341 = vmatpush.bf16.msra.mxu0 %v191
  %342 = vmatpush.bf16.msra.mxu0 %v187
  %343 = vmatmul.bf16.gmra.mxu0 %v80
  %v344 = vpop.f32.mrf.mxu0
  %v345 = vadd.f32 %v59, %v344
  %v346 = vpop.f32.mrf.mxu0
  %v347 = vadd.f32 %v59, %v346
  %348 = vmatmul.bf16.gmra.mxu0 %v81
  %v349 = vpop.f32.mrf.mxu0
  %v350 = vadd.f32 %v59, %v349
  %v351 = vpop.f32.mrf.mxu0
  %v352 = vadd.f32 %v59, %v351
  %353 = vmatmul.bf16.gmra.mxu0 %v82
  %v354 = vpop.f32.mrf.mxu0
  %v355 = vadd.f32 %v59, %v354
  %v356 = vpop.f32.mrf.mxu0
  %v357 = vadd.f32 %v59, %v356
  %358 = vmatmul.bf16.gmra.mxu0 %v83
  %v359 = vpop.f32.mrf.mxu0
  %v360 = vadd.f32 %v59, %v359
  %v361 = vpop.f32.mrf.mxu0
  %v362 = vadd.f32 %v59, %v361
  %363 = vdwg.mxu0
  %v364 = vpack.c.bf16 %v287, %v258
  %v365 = vpack.c.bf16 %v345, %v316
  %v366 = vpack.c.bf16 %v289, %v260
  %v367 = vpack.c.bf16 %v347, %v318
  %v368 = vpack.c.bf16 %v292, %v263
  %v369 = vpack.c.bf16 %v350, %v321
  %v370 = vpack.c.bf16 %v294, %v265
  %v371 = vpack.c.bf16 %v352, %v323
  %v372 = vpack.c.bf16 %v297, %v268
  %v373 = vpack.c.bf16 %v355, %v326
  %v374 = vpack.c.bf16 %v299, %v270
  %v375 = vpack.c.bf16 %v357, %v328
  %v376 = vpack.c.bf16 %v302, %v273
  %v377 = vpack.c.bf16 %v360, %v331
  %v378 = vpack.c.bf16 %v304, %v275
  %v379 = vpack.c.bf16 %v362, %v333
  %380 = vst [vmem:[%s3] sm:$0xff] %v364
  %381 = vst [vmem:[%s3 + $0x8] sm:$0xff] %v365
  %382 = vst [vmem:[%s3 + $0x10] sm:$0xff] %v366
  %383 = vst [vmem:[%s3 + $0x18] sm:$0xff] %v367
  %384 = vst [vmem:[%s3 + $0x20] sm:$0xff] %v368
  %385 = vst [vmem:[%s3 + $0x28] sm:$0xff] %v369
  %386 = vst [vmem:[%s3 + $0x30] sm:$0xff] %v370
  %387 = vst [vmem:[%s3 + $0x38] sm:$0xff] %v371
  %388 = vst [vmem:[%s3 + $0x40] sm:$0xff] %v372
  %389 = vst [vmem:[%s3 + $0x48] sm:$0xff] %v373
  %390 = vst [vmem:[%s3 + $0x50] sm:$0xff] %v374
  %391 = vst [vmem:[%s3 + $0x58] sm:$0xff] %v375
  %392 = vst [vmem:[%s3 + $0x60] sm:$0xff] %v376
  %393 = vst [vmem:[%s3 + $0x68] sm:$0xff] %v377
  %394 = vst [vmem:[%s3 + $0x70] sm:$0xff] %v378
  %395 = vst [vmem:[%s3 + $0x78] sm:$0xff] %v379
  // Predicated region
  $region14: #{encode_to_decode_forward.5} parent=0 // pred_check
    _
  $region15: #{encode_to_decode_forward.5} parent=0 // pred_check_branch
    %397 = sbr.rel (0) target = $region17
  $region16: #{encode_to_decode_forward.5} parent=0 // pred_region
    _
  $region17: #{encode_to_decode_forward.5} parent=0 // pred_fallthru
    _
  // Predicated region
  $region18: #{encode_to_decode_forward.5} parent=0 // pred_check
    _
  $region19: #{encode_to_decode_forward.5} parent=0 // pred_check_branch
    %399 = sbr.rel (0) target = $region21
  $region20: #{encode_to_decode_forward.5} parent=0 // pred_region
    _
  $region21: #{encode_to_decode_forward.5} parent=0 // pred_fallthru
    _

// kernel: encode_to_decode_forward.8
$region0: #{encode_to_decode_forward.8}
  #allocation0 [shape = 'u32[]', space=smem, size = 0x4, offset = 0x4, fixed_abs, tag = 'smem constant byte address 0x4 - core index']
  #allocation1 [shape = 'u32[72,128]{1,0:T(1,128)}', space=vmem, size = 0x9000, scoped, tag = 'internal scratch']
  #allocation2 [shape = 'f32[8,128]{1,0:T(8,128)}', space=vmem, size = 0x1000, scoped, tag = 'scratch operand']
  #allocation3 [shape = 'f32[8,128]{1,0:T(8,128)}', space=vmem, size = 0x1000, scoped, tag = 'scratch operand']
  %s0 = inlined_call_operand.vmem [shape: bf16[8,8,512], index: 0, kind: input, shape index: {}]
  %s1 = inlined_call_operand.hbm [shape: bf16[128,512], index: 1, kind: input, shape index: {}]
  %s2 = inlined_call_operand.vmem [shape: f32[8,128], index: 2, kind: input, shape index: {}]
  %s3 = inlined_call_operand.vmem [shape: f32[8,128], index: 3, kind: input, shape index: {}]
  %s4 = inlined_call_operand.vmem [shape: bf16[8,8,128], index: 4, kind: output, shape index: {}]
  %s5 = sld [smem:[#allocation0]]
  $region34: #{encode_to_decode_forward.8} parent=0
    _
  %s7 = ssub.s32 1, %s5
  %s8 = scalar_select 0, %s7, %s5
  $region1: #{encode_to_decode_forward.8} parent=0
    #allocation4 [shape = 'u8[131072]{0}', space=vmem, size = 0x20000, scoped, tag = 'input window, operand 1, single buffered']
    #allocation5 [shape = 's32[1]{0}', space=sflag, size = 0x4, scoped, tag = 'scoped memory for encode_to_decode_forward.8']
    %9 = vsyncpa [#allocation5], 0
    // Predicated region
    $region2: #{encode_to_decode_forward.8} parent=1 // pred_check
      _
    $region3: #{encode_to_decode_forward.8} parent=1 // pred_check_branch
      %11 = sbr.rel (0) target = $region5
    $region4: #{encode_to_decode_forward.8} parent=1 // pred_region
      _
    $region5: #{encode_to_decode_forward.8} parent=1 // pred_fallthru
      _
    // Predicated region
    $region6: #{encode_to_decode_forward.8} parent=1 // pred_check
      _
    $region7: #{encode_to_decode_forward.8} parent=1 // pred_check_branch
      %13 = sbr.rel (0) target = $region9
    $region8: #{encode_to_decode_forward.8} parent=1 // pred_region
      %15 = vsyncadd [#allocation5], 0
      %s16 = sshll.u32 %s1, 4
      %s17 = int_to_ptr.hbm [resolvable:$true] %s16
      %s18 = sshll.u32 [#allocation4], 4
      %s19 = int_to_ptr.vmem [resolvable:$true] %s18
      %24 = dma.hbm_to_vmem [thread:$0]  %s17, 4096, %s19, [#allocation5], 256, 256, 16
    $region9: #{encode_to_decode_forward.8} parent=1 // pred_fallthru
      _
    // Predicated region
    $region10: #{encode_to_decode_forward.8} parent=1 // pred_check
      _
    $region11: #{encode_to_decode_forward.8} parent=1 // pred_check_branch
      %26 = sbr.rel (0) target = $region13
    $region12: #{encode_to_decode_forward.8} parent=1 // pred_region
      _
    $region13: #{encode_to_decode_forward.8} parent=1 // pred_fallthru
      _
    // Predicated region
    $region14: #{encode_to_decode_forward.8} parent=1 // pred_check
      _
    $region15: #{encode_to_decode_forward.8} parent=1 // pred_check_branch
      %28 = sbr.rel (0) target = $region17
    $region16: #{encode_to_decode_forward.8} parent=1 // pred_region
      _
    $region17: #{encode_to_decode_forward.8} parent=1 // pred_fallthru
      _
    // Predicated region
    $region18: #{encode_to_decode_forward.8} parent=1 // pred_check
      _
    $region19: #{encode_to_decode_forward.8} parent=1 // pred_check_branch
      %30 = sbr.rel (0) target = $region21
    $region20: #{encode_to_decode_forward.8} parent=1 // pred_region
      %32 = dma.done [#allocation5], 4096
    $region21: #{encode_to_decode_forward.8} parent=1 // pred_fallthru
      _
    %p33 = scmp.eq.s32.totalorder 0, 0
    // Predicated region
    $region22: #{encode_to_decode_forward.8} parent=1 // pred_check
      %p34 = pneg %p33
    $region23: #{encode_to_decode_forward.8} parent=1 // pred_check_branch
      %36 = sbr.rel (%p34) target = $region25
    $region24: #{encode_to_decode_forward.8} parent=1 // pred_region
      %v37 = vld [vmem:[%s2] sm:$0xff]
      %38 = vst [vmem:[#allocation2] sm:$0xff] %v37
      %v39 = vld [vmem:[%s3] sm:$0xff]
      %40 = vst [vmem:[#allocation3] sm:$0xff] %v39
    $region25: #{encode_to_decode_forward.8} parent=1 // pred_fallthru
      _
    %v41 = vld [vmem:[%s0] sm:$0xff]
    %v42 = vld [vmem:[%s0 + $0x8] sm:$0xff]
    %v43 = vunpack.c.l.bf16 %v41
    %v44 = vunpack.c.h.bf16 %v41
    %v45 = vunpack.c.l.bf16 %v42
    %v46 = vunpack.c.h.bf16 %v42
    %v47 = vld [vmem:[#allocation2] sm:$0xff]
    %v48 = vpack.c.bf16 %v47, %v47
    %v49 = vld [vmem:[#allocation4] sm:$0xff]
    %v50 = vld [vmem:[#allocation4 + $0x8] sm:$0xff]
    %v51 = vld [vmem:[#allocation4 + $0x10] sm:$0xff]
    %v52 = vld [vmem:[#allocation4 + $0x18] sm:$0xff]
    %v53 = vld [vmem:[#allocation4 + $0x20] sm:$0xff]
    %v54 = vld [vmem:[#allocation4 + $0x28] sm:$0xff]
    %v55 = vld [vmem:[#allocation4 + $0x30] sm:$0xff]
    %v56 = vld [vmem:[#allocation4 + $0x38] sm:$0xff]
    %v57 = vld [vmem:[#allocation4 + $0x40] sm:$0xff]
    %v58 = vld [vmem:[#allocation4 + $0x48] sm:$0xff]
    %v59 = vld [vmem:[#allocation4 + $0x50] sm:$0xff]
    %v60 = vld [vmem:[#allocation4 + $0x58] sm:$0xff]
    %v61 = vld [vmem:[#allocation4 + $0x60] sm:$0xff]
    %v62 = vld [vmem:[#allocation4 + $0x68] sm:$0xff]
    %v63 = vld [vmem:[#allocation4 + $0x70] sm:$0xff]
    %v64 = vld [vmem:[#allocation4 + $0x78] sm:$0xff]
    %v65 = vld [vmem:[#allocation4 + $0x80] sm:$0xff]
    %v66 = vld [vmem:[#allocation4 + $0x88] sm:$0xff]
    %v67 = vld [vmem:[#allocation4 + $0x90] sm:$0xff]
    %v68 = vld [vmem:[#allocation4 + $0x98] sm:$0xff]
    %v69 = vld [vmem:[#allocation4 + $0xa0] sm:$0xff]
    %v70 = vld [vmem:[#allocation4 + $0xa8] sm:$0xff]
    %v71 = vld [vmem:[#allocation4 + $0xb0] sm:$0xff]
    %v72 = vld [vmem:[#allocation4 + $0xb8] sm:$0xff]
    %v73 = vld [vmem:[#allocation4 + $0xc0] sm:$0xff]
    %v74 = vld [vmem:[#allocation4 + $0xc8] sm:$0xff]
    %v75 = vld [vmem:[#allocation4 + $0xd0] sm:$0xff]
    %v76 = vld [vmem:[#allocation4 + $0xd8] sm:$0xff]
    %v77 = vld [vmem:[#allocation4 + $0xe0] sm:$0xff]
    %v78 = vld [vmem:[#allocation4 + $0xe8] sm:$0xff]
    %v79 = vld [vmem:[#allocation4 + $0xf0] sm:$0xff]
    %v80 = vld [vmem:[#allocation4 + $0xf8] sm:$0xff]
    %v113 = vunpack.c.l.b16 %v49
    %v114 = vunpack.c.h.b16 %v49
    %v115 = vunpack.c.l.b16 %v50
    %v116 = vunpack.c.h.b16 %v50
    %v117 = vunpack.c.l.b16 %v51
    %v118 = vunpack.c.h.b16 %v51
    %v119 = vunpack.c.l.b16 %v52
    %v120 = vunpack.c.h.b16 %v52
    %v121 = vunpack.c.l.b16 %v53
    %v122 = vunpack.c.h.b16 %v53
    %v123 = vunpack.c.l.b16 %v54
    %v124 = vunpack.c.h.b16 %v54
    %v125 = vunpack.c.l.b16 %v55
    %v126 = vunpack.c.h.b16 %v55
    %v127 = vunpack.c.l.b16 %v56
    %v128 = vunpack.c.h.b16 %v56
    %v129 = vunpack.c.l.b16 %v57
    %v130 = vunpack.c.h.b16 %v57
    %v131 = vunpack.c.l.b16 %v58
    %v132 = vunpack.c.h.b16 %v58
    %v133 = vunpack.c.l.b16 %v59
    %v134 = vunpack.c.h.b16 %v59
    %v135 = vunpack.c.l.b16 %v60
    %v136 = vunpack.c.h.b16 %v60
    %v137 = vunpack.c.l.b16 %v61
    %v138 = vunpack.c.h.b16 %v61
    %v139 = vunpack.c.l.b16 %v62
    %v140 = vunpack.c.h.b16 %v62
    %v141 = vunpack.c.l.b16 %v63
    %v142 = vunpack.c.h.b16 %v63
    %v143 = vunpack.c.l.b16 %v64
    %v144 = vunpack.c.h.b16 %v64
    %v145 = vunpack.c.l.b16 %v65
    %v146 = vunpack.c.h.b16 %v65
    %v147 = vunpack.c.l.b16 %v66
    %v148 = vunpack.c.h.b16 %v66
    %v149 = vunpack.c.l.b16 %v67
    %v150 = vunpack.c.h.b16 %v67
    %v151 = vunpack.c.l.b16 %v68
    %v152 = vunpack.c.h.b16 %v68
    %v153 = vunpack.c.l.b16 %v69
    %v154 = vunpack.c.h.b16 %v69
    %v155 = vunpack.c.l.b16 %v70
    %v156 = vunpack.c.h.b16 %v70
    %v157 = vunpack.c.l.b16 %v71
    %v158 = vunpack.c.h.b16 %v71
    %v159 = vunpack.c.l.b16 %v72
    %v160 = vunpack.c.h.b16 %v72
    %v161 = vunpack.c.l.b16 %v73
    %v162 = vunpack.c.h.b16 %v73
    %v163 = vunpack.c.l.b16 %v74
    %v164 = vunpack.c.h.b16 %v74
    %v165 = vunpack.c.l.b16 %v75
    %v166 = vunpack.c.h.b16 %v75
    %v167 = vunpack.c.l.b16 %v76
    %v168 = vunpack.c.h.b16 %v76
    %v169 = vunpack.c.l.b16 %v77
    %v170 = vunpack.c.h.b16 %v77
    %v171 = vunpack.c.l.b16 %v78
    %v172 = vunpack.c.h.b16 %v78
    %v173 = vunpack.c.l.b16 %v79
    %v174 = vunpack.c.h.b16 %v79
    %v175 = vunpack.c.l.b16 %v80
    %v176 = vunpack.c.h.b16 %v80
    %v177 = vpack.c.b16 %v117, %v113
    %v178 = vpack.c.b16 %v118, %v114
    %v179 = vpack.c.b16 %v119, %v115
    %v180 = vpack.c.b16 %v120, %v116
    %v181 = vpack.c.b16 %v125, %v121
    %v182 = vpack.c.b16 %v126, %v122
    %v183 = vpack.c.b16 %v127, %v123
    %v184 = vpack.c.b16 %v128, %v124
    %v185 = vpack.c.b16 %v133, %v129
    %v186 = vpack.c.b16 %v134, %v130
    %v187 = vpack.c.b16 %v135, %v131
    %v188 = vpack.c.b16 %v136, %v132
    %v189 = vpack.c.b16 %v141, %v137
    %v190 = vpack.c.b16 %v142, %v138
    %v191 = vpack.c.b16 %v143, %v139
    %v192 = vpack.c.b16 %v144, %v140
    %v193 = vpack.c.b16 %v149, %v145
    %v194 = vpack.c.b16 %v150, %v146
    %v195 = vpack.c.b16 %v151, %v147
    %v196 = vpack.c.b16 %v152, %v148
    %v197 = vpack.c.b16 %v157, %v153
    %v198 = vpack.c.b16 %v158, %v154
    %v199 = vpack.c.b16 %v159, %v155
    %v200 = vpack.c.b16 %v160, %v156
    %v201 = vpack.c.b16 %v165, %v161
    %v202 = vpack.c.b16 %v166, %v162
    %v203 = vpack.c.b16 %v167, %v163
    %v204 = vpack.c.b16 %v168, %v164
    %v205 = vpack.c.b16 %v173, %v169
    %v206 = vpack.c.b16 %v174, %v170
    %v207 = vpack.c.b16 %v175, %v171
    %v208 = vpack.c.b16 %v176, %v172
    %241 = vmatpush.bf16.msra.mxu0 %v205
    %242 = vmatpush.bf16.msra.mxu0 %v201
    %243 = vmatpush.bf16.msra.mxu0 %v197
    %244 = vmatpush.bf16.msra.mxu0 %v193
    %245 = vmatpush.bf16.msra.mxu0 %v189
    %246 = vmatpush.bf16.msra.mxu0 %v185
    %247 = vmatpush.bf16.msra.mxu0 %v181
    %248 = vmatpush.bf16.msra.mxu0 %v177
    %249 = vmatmul.bf16.gmra.mxu0 %v48
    %v250 = vpop.f32.mrf.mxu0
    %v251 = vadd.f32 0.0, %v250
    %v252 = vpop.f32.mrf.mxu0
    %253 = vdwg.mxu0
    %254 = vmatpush.bf16.msra.mxu0 %v206
    %255 = vmatpush.bf16.msra.mxu0 %v202
    %256 = vmatpush.bf16.msra.mxu0 %v198
    %257 = vmatpush.bf16.msra.mxu0 %v194
    %258 = vmatpush.bf16.msra.mxu0 %v190
    %259 = vmatpush.bf16.msra.mxu0 %v186
    %260 = vmatpush.bf16.msra.mxu0 %v182
    %261 = vmatpush.bf16.msra.mxu0 %v178
    %262 = vmatmul.bf16.gmra.mxu0 %v48
    %v263 = vpop.f32.mrf.mxu0
    %v264 = vadd.f32 0.0, %v263
    %v265 = vpop.f32.mrf.mxu0
    %266 = vdwg.mxu0
    %267 = vmatpush.bf16.msra.mxu0 %v207
    %268 = vmatpush.bf16.msra.mxu0 %v203
    %269 = vmatpush.bf16.msra.mxu0 %v199
    %270 = vmatpush.bf16.msra.mxu0 %v195
    %271 = vmatpush.bf16.msra.mxu0 %v191
    %272 = vmatpush.bf16.msra.mxu0 %v187
    %273 = vmatpush.bf16.msra.mxu0 %v183
    %274 = vmatpush.bf16.msra.mxu0 %v179
    %275 = vmatmul.bf16.gmra.mxu0 %v48
    %v276 = vpop.f32.mrf.mxu0
    %v277 = vadd.f32 0.0, %v276
    %v278 = vpop.f32.mrf.mxu0
    %279 = vdwg.mxu0
    %280 = vmatpush.bf16.msra.mxu0 %v208
    %281 = vmatpush.bf16.msra.mxu0 %v204
    %282 = vmatpush.bf16.msra.mxu0 %v200
    %283 = vmatpush.bf16.msra.mxu0 %v196
    %284 = vmatpush.bf16.msra.mxu0 %v192
    %285 = vmatpush.bf16.msra.mxu0 %v188
    %286 = vmatpush.bf16.msra.mxu0 %v184
    %287 = vmatpush.bf16.msra.mxu0 %v180
    %288 = vmatmul.bf16.gmra.mxu0 %v48
    %v289 = vpop.f32.mrf.mxu0
    %v290 = vadd.f32 0.0, %v289
    %v291 = vpop.f32.mrf.mxu0
    %292 = vdwg.mxu0
    %v293 = vadd.f32 %v43, %v251
    %v294 = vadd.f32 %v44, %v264
    %v295 = vadd.f32 %v45, %v277
    %v296 = vadd.f32 %v46, %v290
    %v297 = vld [vmem:[#allocation3] sm:$0xff]
    %v298 = vxor.u32 %v293, 2147483648
    %v299 = vmul.f32 %v298, 1.442695
    %v300 = vpow.pop %v299
    %v301 = vadd.f32 %v300, 1.0
    %v302 = vrcp.pop %v301
    %v303 = vmul.f32 %v301, %v302
    %v304 = vsub.f32 1.0, %v303
    %v305 = vmul.f32 %v302, %v304
    %v306 = vadd.f32 %v302, %v305
    %vm307 = vweird.f32 %v301
    %vm308 = vweird.f32 %v302
    %vm309 = vmor %vm307, %vm308
    %v310 = vsel %vm309, %v302, %v306
    %v311 = vand.u32 2147483647, %v301
    %vm312 = vcmp.eq.f32.partialorder %v311, 8.507059e+37
    %v313 = vand.u32 %v301, 2147483648
    %v314 = vor.u32 1.1754944e-38, %v313
    %v315 = vsel %vm312, %v314, %v310
    %v316 = vmul.f32 1.0, %v315
    %v317 = vxor.u32 %v294, 2147483648
    %v318 = vmul.f32 %v317, 1.442695
    %v319 = vpow.pop %v318
    %v320 = vadd.f32 %v319, 1.0
    %v321 = vrcp.pop %v320
    %v322 = vmul.f32 %v320, %v321
    %v323 = vsub.f32 1.0, %v322
    %v324 = vmul.f32 %v321, %v323
    %v325 = vadd.f32 %v321, %v324
    %vm326 = vweird.f32 %v320
    %vm327 = vweird.f32 %v321
    %vm328 = vmor %vm326, %vm327
    %v329 = vsel %vm328, %v321, %v325
    %v330 = vand.u32 2147483647, %v320
    %vm331 = vcmp.eq.f32.partialorder %v330, 8.507059e+37
    %v332 = vand.u32 %v320, 2147483648
    %v333 = vor.u32 1.1754944e-38, %v332
    %v334 = vsel %vm331, %v333, %v329
    %v335 = vmul.f32 1.0, %v334
    %v336 = vtanh.pop %v295
    %v337 = vxor.u32 %v296, 2147483648
    %v338 = vmul.f32 %v337, 1.442695
    %v339 = vpow.pop %v338
    %v340 = vadd.f32 %v339, 1.0
    %v341 = vrcp.pop %v340
    %v342 = vmul.f32 %v340, %v341
    %v343 = vsub.f32 1.0, %v342
    %v344 = vmul.f32 %v341, %v343
    %v345 = vadd.f32 %v341, %v344
    %vm346 = vweird.f32 %v340
    %vm347 = vweird.f32 %v341
    %vm348 = vmor %vm346, %vm347
    %v349 = vsel %vm348, %v341, %v345
    %v350 = vand.u32 2147483647, %v340
    %vm351 = vcmp.eq.f32.partialorder %v350, 8.507059e+37
    %v352 = vand.u32 %v340, 2147483648
    %v353 = vor.u32 1.1754944e-38, %v352
    %v354 = vsel %vm351, %v353, %v349
    %v355 = vmul.f32 1.0, %v354
    %v356 = vmul.f32 %v335, %v297
    %v357 = vmul.f32 %v316, %v336
    %v358 = vadd.f32 %v356, %v357
    %v359 = vtanh.pop %v358
    %v360 = vmul.f32 %v355, %v359
    %361 = vst [vmem:[#allocation2] sm:$0xff] %v360
    %362 = vst [vmem:[#allocation3] sm:$0xff] %v358
    %v363 = vpack.c.bf16 %v360, %v360
    %364 = vst [vmem:[%s4] sm:$0xf] %v363
    %s365 = scalar_lea.vmem %s0, 16
    %v366 = vld [vmem:[%s365] sm:$0xff]
    %v367 = vld [vmem:[%s365 + $0x8] sm:$0xff]
    %v368 = vunpack.c.l.bf16 %v366
    %v369 = vunpack.c.h.bf16 %v366
    %v370 = vunpack.c.l.bf16 %v367
    %v371 = vunpack.c.h.bf16 %v367
    %v372 = vld [vmem:[#allocation2] sm:$0xff]
    %v373 = vpack.c.bf16 %v372, %v372
    %v374 = vld [vmem:[#allocation4] sm:$0xff]
    %v375 = vld [vmem:[#allocation4 + $0x8] sm:$0xff]
    %v376 = vld [vmem:[#allocation4 + $0x10] sm:$0xff]
    %v377 = vld [vmem:[#allocation4 + $0x18] sm:$0xff]
    %v378 = vld [vmem:[#allocation4 + $0x20] sm:$0xff]
    %v379 = vld [vmem:[#allocation4 + $0x28] sm:$0xff]
    %v380 = vld [vmem:[#allocation4 + $0x30] sm:$0xff]
    %v381 = vld [vmem:[#allocation4 + $0x38] sm:$0xff]
    %v382 = vld [vmem:[#allocation4 + $0x40] sm:$0xff]
    %v383 = vld [vmem:[#allocation4 + $0x48] sm:$0xff]
    %v384 = vld [vmem:[#allocation4 + $0x50] sm:$0xff]
    %v385 = vld [vmem:[#allocation4 + $0x58] sm:$0xff]
    %v386 = vld [vmem:[#allocation4 + $0x60] sm:$0xff]
    %v387 = vld [vmem:[#allocation4 + $0x68] sm:$0xff]
    %v388 = vld [vmem:[#allocation4 + $0x70] sm:$0xff]
    %v389 = vld [vmem:[#allocation4 + $0x78] sm:$0xff]
    %v390 = vld [vmem:[#allocation4 + $0x80] sm:$0xff]
    %v391 = vld [vmem:[#allocation4 + $0x88] sm:$0xff]
    %v392 = vld [vmem:[#allocation4 + $0x90] sm:$0xff]
    %v393 = vld [vmem:[#allocation4 + $0x98] sm:$0xff]
    %v394 = vld [vmem:[#allocation4 + $0xa0] sm:$0xff]
    %v395 = vld [vmem:[#allocation4 + $0xa8] sm:$0xff]
    %v396 = vld [vmem:[#allocation4 + $0xb0] sm:$0xff]
    %v397 = vld [vmem:[#allocation4 + $0xb8] sm:$0xff]
    %v398 = vld [vmem:[#allocation4 + $0xc0] sm:$0xff]
    %v399 = vld [vmem:[#allocation4 + $0xc8] sm:$0xff]
    %v400 = vld [vmem:[#allocation4 + $0xd0] sm:$0xff]
    %v401 = vld [vmem:[#allocation4 + $0xd8] sm:$0xff]
    %v402 = vld [vmem:[#allocation4 + $0xe0] sm:$0xff]
    %v403 = vld [vmem:[#allocation4 + $0xe8] sm:$0xff]
    %v404 = vld [vmem:[#allocation4 + $0xf0] sm:$0xff]
    %v405 = vld [vmem:[#allocation4 + $0xf8] sm:$0xff]
    %v438 = vunpack.c.l.b16 %v374
    %v439 = vunpack.c.h.b16 %v374
    %v440 = vunpack.c.l.b16 %v375
    %v441 = vunpack.c.h.b16 %v375
    %v442 = vunpack.c.l.b16 %v376
    %v443 = vunpack.c.h.b16 %v376
    %v444 = vunpack.c.l.b16 %v377
    %v445 = vunpack.c.h.b16 %v377
    %v446 = vunpack.c.l.b16 %v378
    %v447 = vunpack.c.h.b16 %v378
    %v448 = vunpack.c.l.b16 %v379
    %v449 = vunpack.c.h.b16 %v379
    %v450 = vunpack.c.l.b16 %v380
    %v451 = vunpack.c.h.b16 %v380
    %v452 = vunpack.c.l.b16 %v381
    %v453 = vunpack.c.h.b16 %v381
    %v454 = vunpack.c.l.b16 %v382
    %v455 = vunpack.c.h.b16 %v382
    %v456 = vunpack.c.l.b16 %v383
    %v457 = vunpack.c.h.b16 %v383
    %v458 = vunpack.c.l.b16 %v384
    %v459 = vunpack.c.h.b16 %v384
    %v460 = vunpack.c.l.b16 %v385
    %v461 = vunpack.c.h.b16 %v385
    %v462 = vunpack.c.l.b16 %v386
    %v463 = vunpack.c.h.b16 %v386
    %v464 = vunpack.c.l.b16 %v387
    %v465 = vunpack.c.h.b16 %v387
    %v466 = vunpack.c.l.b16 %v388
    %v467 = vunpack.c.h.b16 %v388
    %v468 = vunpack.c.l.b16 %v389
    %v469 = vunpack.c.h.b16 %v389
    %v470 = vunpack.c.l.b16 %v390
    %v471 = vunpack.c.h.b16 %v390
    %v472 = vunpack.c.l.b16 %v391
    %v473 = vunpack.c.h.b16 %v391
    %v474 = vunpack.c.l.b16 %v392
    %v475 = vunpack.c.h.b16 %v392
    %v476 = vunpack.c.l.b16 %v393
    %v477 = vunpack.c.h.b16 %v393
    %v478 = vunpack.c.l.b16 %v394
    %v479 = vunpack.c.h.b16 %v394
    %v480 = vunpack.c.l.b16 %v395
    %v481 = vunpack.c.h.b16 %v395
    %v482 = vunpack.c.l.b16 %v396
    %v483 = vunpack.c.h.b16 %v396
    %v484 = vunpack.c.l.b16 %v397
    %v485 = vunpack.c.h.b16 %v397
    %v486 = vunpack.c.l.b16 %v398
    %v487 = vunpack.c.h.b16 %v398
    %v488 = vunpack.c.l.b16 %v399
    %v489 = vunpack.c.h.b16 %v399
    %v490 = vunpack.c.l.b16 %v400
    %v491 = vunpack.c.h.b16 %v400
    %v492 = vunpack.c.l.b16 %v401
    %v493 = vunpack.c.h.b16 %v401
    %v494 = vunpack.c.l.b16 %v402
    %v495 = vunpack.c.h.b16 %v402
    %v496 = vunpack.c.l.b16 %v403
    %v497 = vunpack.c.h.b16 %v403
    %v498 = vunpack.c.l.b16 %v404
    %v499 = vunpack.c.h.b16 %v404
    %v500 = vunpack.c.l.b16 %v405
    %v501 = vunpack.c.h.b16 %v405
    %v502 = vpack.c.b16 %v442, %v438
    %v503 = vpack.c.b16 %v443, %v439
    %v504 = vpack.c.b16 %v444, %v440
    %v505 = vpack.c.b16 %v445, %v441
    %v506 = vpack.c.b16 %v450, %v446
    %v507 = vpack.c.b16 %v451, %v447
    %v508 = vpack.c.b16 %v452, %v448
    %v509 = vpack.c.b16 %v453, %v449
    %v510 = vpack.c.b16 %v458, %v454
    %v511 = vpack.c.b16 %v459, %v455
    %v512 = vpack.c.b16 %v460, %v456
    %v513 = vpack.c.b16 %v461, %v457
    %v514 = vpack.c.b16 %v466, %v462
    %v515 = vpack.c.b16 %v467, %v463
    %v516 = vpack.c.b16 %v468, %v464
    %v517 = vpack.c.b16 %v469, %v465
    %v518 = vpack.c.b16 %v474, %v470
    %v519 = vpack.c.b16 %v475, %v471
    %v520 = vpack.c.b16 %v476, %v472
    %v521 = vpack.c.b16 %v477, %v473
    %v522 = vpack.c.b16 %v482, %v478
    %v523 = vpack.c.b16 %v483, %v479
    %v524 = vpack.c.b16 %v484, %v480
    %v525 = vpack.c.b16 %v485, %v481
    %v526 = vpack.c.b16 %v490, %v486
    %v527 = vpack.c.b16 %v491, %v487
    %v528 = vpack.c.b16 %v492, %v488
    %v529 = vpack.c.b16 %v493, %v489
    %v530 = vpack.c.b16 %v498, %v494
    %v531 = vpack.c.b16 %v499, %v495
    %v532 = vpack.c.b16 %v500, %v496
    %v533 = vpack.c.b16 %v501, %v497
    %566 = vmatpush.bf16.msra.mxu0 %v530
    %567 = vmatpush.bf16.msra.mxu0 %v526
    %568 = vmatpush.bf16.msra.mxu0 %v522
    %569 = vmatpush.bf16.msra.mxu0 %v518
    %570 = vmatpush.bf16.msra.mxu0 %v514
    %571 = vmatpush.bf16.msra.mxu0 %v510
    %572 = vmatpush.bf16.msra.mxu0 %v506
    %573 = vmatpush.bf16.msra.mxu0 %v502
    %574 = vmatmul.bf16.gmra.mxu0 %v373
    %v575 = vpop.f32.mrf.mxu0
    %v576 = vadd.f32 0.0, %v575
    %v577 = vpop.f32.mrf.mxu0
    %578 = vdwg.mxu0
    %579 = vmatpush.bf16.msra.mxu0 %v531
    %580 = vmatpush.bf16.msra.mxu0 %v527
    %581 = vmatpush.bf16.msra.mxu0 %v523
    %582 = vmatpush.bf16.msra.mxu0 %v519
    %583 = vmatpush.bf16.msra.mxu0 %v515
    %584 = vmatpush.bf16.msra.mxu0 %v511
    %585 = vmatpush.bf16.msra.mxu0 %v507
    %586 = vmatpush.bf16.msra.mxu0 %v503
    %587 = vmatmul.bf16.gmra.mxu0 %v373
    %v588 = vpop.f32.mrf.mxu0
    %v589 = vadd.f32 0.0, %v588
    %v590 = vpop.f32.mrf.mxu0
    %591 = vdwg.mxu0
    %592 = vmatpush.bf16.msra.mxu0 %v532
    %593 = vmatpush.bf16.msra.mxu0 %v528
    %594 = vmatpush.bf16.msra.mxu0 %v524
    %595 = vmatpush.bf16.msra.mxu0 %v520
    %596 = vmatpush.bf16.msra.mxu0 %v516
    %597 = vmatpush.bf16.msra.mxu0 %v512
    %598 = vmatpush.bf16.msra.mxu0 %v508
    %599 = vmatpush.bf16.msra.mxu0 %v504
    %600 = vmatmul.bf16.gmra.mxu0 %v373
    %v601 = vpop.f32.mrf.mxu0
    %v602 = vadd.f32 0.0, %v601
    %v603 = vpop.f32.mrf.mxu0
    %604 = vdwg.mxu0
    %605 = vmatpush.bf16.msra.mxu0 %v533
    %606 = vmatpush.bf16.msra.mxu0 %v529
    %607 = vmatpush.bf16.msra.mxu0 %v525
    %608 = vmatpush.bf16.msra.mxu0 %v521
    %609 = vmatpush.bf16.msra.mxu0 %v517
    %610 = vmatpush.bf16.msra.mxu0 %v513
    %611 = vmatpush.bf16.msra.mxu0 %v509
    %612 = vmatpush.bf16.msra.mxu0 %v505
    %613 = vmatmul.bf16.gmra.mxu0 %v373
    %v614 = vpop.f32.mrf.mxu0
    %v615 = vadd.f32 0.0, %v614
    %v616 = vpop.f32.mrf.mxu0
    %617 = vdwg.mxu0
    %v618 = vadd.f32 %v368, %v576
    %v619 = vadd.f32 %v369, %v589
    %v620 = vadd.f32 %v370, %v602
    %v621 = vadd.f32 %v371, %v615
    %v622 = vld [vmem:[#allocation3] sm:$0xff]
    %v623 = vxor.u32 %v618, 2147483648
    %v624 = vmul.f32 %v623, 1.442695
    %v625 = vpow.pop %v624
    %v626 = vadd.f32 %v625, 1.0
    %v627 = vrcp.pop %v626
    %v628 = vmul.f32 %v626, %v627
    %v629 = vsub.f32 1.0, %v628
    %v630 = vmul.f32 %v627, %v629
    %v631 = vadd.f32 %v627, %v630
    %vm632 = vweird.f32 %v626
    %vm633 = vweird.f32 %v627
    %vm634 = vmor %vm632, %vm633
    %v635 = vsel %vm634, %v627, %v631
    %v636 = vand.u32 2147483647, %v626
    %vm637 = vcmp.eq.f32.partialorder %v636, 8.507059e+37
    %v638 = vand.u32 %v626, 2147483648
    %v639 = vor.u32 1.1754944e-38, %v638
    %v640 = vsel %vm637, %v639, %v635
    %v641 = vmul.f32 1.0, %v640
    %v642 = vxor.u32 %v619, 2147483648
    %v643 = vmul.f32 %v642, 1.442695
    %v644 = vpow.pop %v643
    %v645 = vadd.f32 %v644, 1.0
    %v646 = vrcp.pop %v645
    %v647 = vmul.f32 %v645, %v646
    %v648 = vsub.f32 1.0, %v647
    %v649 = vmul.f32 %v646, %v648
    %v650 = vadd.f32 %v646, %v649
    %vm651 = vweird.f32 %v645
    %vm652 = vweird.f32 %v646
    %vm653 = vmor %vm651, %vm652
    %v654 = vsel %vm653, %v646, %v650
    %v655 = vand.u32 2147483647, %v645
    %vm656 = vcmp.eq.f32.partialorder %v655, 8.507059e+37
    %v657 = vand.u32 %v645, 2147483648
    %v658 = vor.u32 1.1754944e-38, %v657
    %v659 = vsel %vm656, %v658, %v654
    %v660 = vmul.f32 1.0, %v659
    %v661 = vtanh.pop %v620
    %v662 = vxor.u32 %v621, 2147483648
    %v663 = vmul.f32 %v662, 1.442695
    %v664 = vpow.pop %v663
    %v665 = vadd.f32 %v664, 1.0
    %v666 = vrcp.pop %v665
    %v667 = vmul.f32 %v665, %v666
    %v668 = vsub.f32 1.0, %v667
    %v669 = vmul.f32 %v666, %v668
    %v670 = vadd.f32 %v666, %v669
    %vm671 = vweird.f32 %v665
    %vm672 = vweird.f32 %v666
    %vm673 = vmor %vm671, %vm672
    %v674 = vsel %vm673, %v666, %v670
    %v675 = vand.u32 2147483647, %v665
    %vm676 = vcmp.eq.f32.partialorder %v675, 8.507059e+37
    %v677 = vand.u32 %v665, 2147483648
    %v678 = vor.u32 1.1754944e-38, %v677
    %v679 = vsel %vm676, %v678, %v674
    %v680 = vmul.f32 1.0, %v679
    %v681 = vmul.f32 %v660, %v622
    %v682 = vmul.f32 %v641, %v661
    %v683 = vadd.f32 %v681, %v682
    %v684 = vtanh.pop %v683
    %v685 = vmul.f32 %v680, %v684
    %686 = vst [vmem:[#allocation2] sm:$0xff] %v685
    %687 = vst [vmem:[#allocation3] sm:$0xff] %v683
    %v688 = vpack.c.bf16 %v685, %v685
    %s689 = scalar_lea.vmem %s4, 4
    %690 = vst [vmem:[%s689] sm:$0xf] %v688
    %s691 = scalar_lea.vmem %s0, 32
    %v692 = vld [vmem:[%s691] sm:$0xff]
    %v693 = vld [vmem:[%s691 + $0x8] sm:$0xff]
    %v694 = vunpack.c.l.bf16 %v692
    %v695 = vunpack.c.h.bf16 %v692
    %v696 = vunpack.c.l.bf16 %v693
    %v697 = vunpack.c.h.bf16 %v693
    %v698 = vld [vmem:[#allocation2] sm:$0xff]
    %v699 = vpack.c.bf16 %v698, %v698
    %v700 = vld [vmem:[#allocation4] sm:$0xff]
    %v701 = vld [vmem:[#allocation4 + $0x8] sm:$0xff]
    %v702 = vld [vmem:[#allocation4 + $0x10] sm:$0xff]
    %v703 = vld [vmem:[#allocation4 + $0x18] sm:$0xff]
    %v704 = vld [vmem:[#allocation4 + $0x20] sm:$0xff]
    %v705 = vld [vmem:[#allocation4 + $0x28] sm:$0xff]
    %v706 = vld [vmem:[#allocation4 + $0x30] sm:$0xff]
    %v707 = vld [vmem:[#allocation4 + $0x38] sm:$0xff]
    %v708 = vld [vmem:[#allocation4 + $0x40] sm:$0xff]
    %v709 = vld [vmem:[#allocation4 + $0x48] sm:$0xff]
    %v710 = vld [vmem:[#allocation4 + $0x50] sm:$0xff]
    %v711 = vld [vmem:[#allocation4 + $0x58] sm:$0xff]
    %v712 = vld [vmem:[#allocation4 + $0x60] sm:$0xff]
    %v713 = vld [vmem:[#allocation4 + $0x68] sm:$0xff]
    %v714 = vld [vmem:[#allocation4 + $0x70] sm:$0xff]
    %v715 = vld [vmem:[#allocation4 + $0x78] sm:$0xff]
    %v716 = vld [vmem:[#allocation4 + $0x80] sm:$0xff]
    %v717 = vld [vmem:[#allocation4 + $0x88] sm:$0xff]
    %v718 = vld [vmem:[#allocation4 + $0x90] sm:$0xff]
    %v719 = vld [vmem:[#allocation4 + $0x98] sm:$0xff]
    %v720 = vld [vmem:[#allocation4 + $0xa0] sm:$0xff]
    %v721 = vld [vmem:[#allocation4 + $0xa8] sm:$0xff]
    %v722 = vld [vmem:[#allocation4 + $0xb0] sm:$0xff]
    %v723 = vld [vmem:[#allocation4 + $0xb8] sm:$0xff]
    %v724 = vld [vmem:[#allocation4 + $0xc0] sm:$0xff]
    %v725 = vld [vmem:[#allocation4 + $0xc8] sm:$0xff]
    %v726 = vld [vmem:[#allocation4 + $0xd0] sm:$0xff]
    %v727 = vld [vmem:[#allocation4 + $0xd8] sm:$0xff]
    %v728 = vld [vmem:[#allocation4 + $0xe0] sm:$0xff]
    %v729 = vld [vmem:[#allocation4 + $0xe8] sm:$0xff]
    %v730 = vld [vmem:[#allocation4 + $0xf0] sm:$0xff]
    %v731 = vld [vmem:[#allocation4 + $0xf8] sm:$0xff]
    %v764 = vunpack.c.l.b16 %v700
    %v765 = vunpack.c.h.b16 %v700
    %v766 = vunpack.c.l.b16 %v701
    %v767 = vunpack.c.h.b16 %v701
    %v768 = vunpack.c.l.b16 %v702
    %v769 = vunpack.c.h.b16 %v702
    %v770 = vunpack.c.l.b16 %v703
    %v771 = vunpack.c.h.b16 %v703
    %v772 = vunpack.c.l.b16 %v704
    %v773 = vunpack.c.h.b16 %v704
    %v774 = vunpack.c.l.b16 %v705
    %v775 = vunpack.c.h.b16 %v705
    %v776 = vunpack.c.l.b16 %v706
    %v777 = vunpack.c.h.b16 %v706
    %v778 = vunpack.c.l.b16 %v707
    %v779 = vunpack.c.h.b16 %v707
    %v780 = vunpack.c.l.b16 %v708
    %v781 = vunpack.c.h.b16 %v708
    %v782 = vunpack.c.l.b16 %v709
    %v783 = vunpack.c.h.b16 %v709
    %v784 = vunpack.c.l.b16 %v710
    %v785 = vunpack.c.h.b16 %v710
    %v786 = vunpack.c.l.b16 %v711
    %v787 = vunpack.c.h.b16 %v711
    %v788 = vunpack.c.l.b16 %v712
    %v789 = vunpack.c.h.b16 %v712
    %v790 = vunpack.c.l.b16 %v713
    %v791 = vunpack.c.h.b16 %v713
    %v792 = vunpack.c.l.b16 %v714
    %v793 = vunpack.c.h.b16 %v714
    %v794 = vunpack.c.l.b16 %v715
    %v795 = vunpack.c.h.b16 %v715
    %v796 = vunpack.c.l.b16 %v716
    %v797 = vunpack.c.h.b16 %v716
    %v798 = vunpack.c.l.b16 %v717
    %v799 = vunpack.c.h.b16 %v717
    %v800 = vunpack.c.l.b16 %v718
    %v801 = vunpack.c.h.b16 %v718
    %v802 = vunpack.c.l.b16 %v719
    %v803 = vunpack.c.h.b16 %v719
    %v804 = vunpack.c.l.b16 %v720
    %v805 = vunpack.c.h.b16 %v720
    %v806 = vunpack.c.l.b16 %v721
    %v807 = vunpack.c.h.b16 %v721
    %v808 = vunpack.c.l.b16 %v722
    %v809 = vunpack.c.h.b16 %v722
    %v810 = vunpack.c.l.b16 %v723
    %v811 = vunpack.c.h.b16 %v723
    %v812 = vunpack.c.l.b16 %v724
    %v813 = vunpack.c.h.b16 %v724
    %v814 = vunpack.c.l.b16 %v725
    %v815 = vunpack.c.h.b16 %v725
    %v816 = vunpack.c.l.b16 %v726
    %v817 = vunpack.c.h.b16 %v726
    %v818 = vunpack.c.l.b16 %v727
    %v819 = vunpack.c.h.b16 %v727
    %v820 = vunpack.c.l.b16 %v728
    %v821 = vunpack.c.h.b16 %v728
    %v822 = vunpack.c.l.b16 %v729
    %v823 = vunpack.c.h.b16 %v729
    %v824 = vunpack.c.l.b16 %v730
    %v825 = vunpack.c.h.b16 %v730
    %v826 = vunpack.c.l.b16 %v731
    %v827 = vunpack.c.h.b16 %v731
    %v828 = vpack.c.b16 %v768, %v764
    %v829 = vpack.c.b16 %v769, %v765
    %v830 = vpack.c.b16 %v770, %v766
    %v831 = vpack.c.b16 %v771, %v767
    %v832 = vpack.c.b16 %v776, %v772
    %v833 = vpack.c.b16 %v777, %v773
    %v834 = vpack.c.b16 %v778, %v774
    %v835 = vpack.c.b16 %v779, %v775
    %v836 = vpack.c.b16 %v784, %v780
    %v837 = vpack.c.b16 %v785, %v781
    %v838 = vpack.c.b16 %v786, %v782
    %v839 = vpack.c.b16 %v787, %v783
    %v840 = vpack.c.b16 %v792, %v788
    %v841 = vpack.c.b16 %v793, %v789
    %v842 = vpack.c.b16 %v794, %v790
    %v843 = vpack.c.b16 %v795, %v791
    %v844 = vpack.c.b16 %v800, %v796
    %v845 = vpack.c.b16 %v801, %v797
    %v846 = vpack.c.b16 %v802, %v798
    %v847 = vpack.c.b16 %v803, %v799
    %v848 = vpack.c.b16 %v808, %v804
    %v849 = vpack.c.b16 %v809, %v805
    %v850 = vpack.c.b16 %v810, %v806
    %v851 = vpack.c.b16 %v811, %v807
    %v852 = vpack.c.b16 %v816, %v812
    %v853 = vpack.c.b16 %v817, %v813
    %v854 = vpack.c.b16 %v818, %v814
    %v855 = vpack.c.b16 %v819, %v815
    %v856 = vpack.c.b16 %v824, %v820
    %v857 = vpack.c.b16 %v825, %v821
    %v858 = vpack.c.b16 %v826, %v822
    %v859 = vpack.c.b16 %v827, %v823
    %892 = vmatpush.bf16.msra.mxu0 %v856
    %893 = vmatpush.bf16.msra.mxu0 %v852
    %894 = vmatpush.bf16.msra.mxu0 %v848
    %895 = vmatpush.bf16.msra.mxu0 %v844
    %896 = vmatpush.bf16.msra.mxu0 %v840
    %897 = vmatpush.bf16.msra.mxu0 %v836
    %898 = vmatpush.bf16.msra.mxu0 %v832
    %899 = vmatpush.bf16.msra.mxu0 %v828
    %900 = vmatmul.bf16.gmra.mxu0 %v699
    %v901 = vpop.f32.mrf.mxu0
    %v902 = vadd.f32 0.0, %v901
    %v903 = vpop.f32.mrf.mxu0
    %904 = vdwg.mxu0
    %905 = vmatpush.bf16.msra.mxu0 %v857
    %906 = vmatpush.bf16.msra.mxu0 %v853
    %907 = vmatpush.bf16.msra.mxu0 %v849
    %908 = vmatpush.bf16.msra.mxu0 %v845
    %909 = vmatpush.bf16.msra.mxu0 %v841
    %910 = vmatpush.bf16.msra.mxu0 %v837
    %911 = vmatpush.bf16.msra.mxu0 %v833
    %912 = vmatpush.bf16.msra.mxu0 %v829
    %913 = vmatmul.bf16.gmra.mxu0 %v699
    %v914 = vpop.f32.mrf.mxu0
    %v915 = vadd.f32 0.0, %v914
    %v916 = vpop.f32.mrf.mxu0
    %917 = vdwg.mxu0
    %918 = vmatpush.bf16.msra.mxu0 %v858
    %919 = vmatpush.bf16.msra.mxu0 %v854
    %920 = vmatpush.bf16.msra.mxu0 %v850
    %921 = vmatpush.bf16.msra.mxu0 %v846
    %922 = vmatpush.bf16.msra.mxu0 %v842
    %923 = vmatpush.bf16.msra.mxu0 %v838
    %924 = vmatpush.bf16.msra.mxu0 %v834
    %925 = vmatpush.bf16.msra.mxu0 %v830
    %926 = vmatmul.bf16.gmra.mxu0 %v699
    %v927 = vpop.f32.mrf.mxu0
    %v928 = vadd.f32 0.0, %v927
    %v929 = vpop.f32.mrf.mxu0
    %930 = vdwg.mxu0
    %931 = vmatpush.bf16.msra.mxu0 %v859
    %932 = vmatpush.bf16.msra.mxu0 %v855
    %933 = vmatpush.bf16.msra.mxu0 %v851
    %934 = vmatpush.bf16.msra.mxu0 %v847
    %935 = vmatpush.bf16.msra.mxu0 %v843
    %936 = vmatpush.bf16.msra.mxu0 %v839
    %937 = vmatpush.bf16.msra.mxu0 %v835
    %938 = vmatpush.bf16.msra.mxu0 %v831
    %939 = vmatmul.bf16.gmra.mxu0 %v699
    %v940 = vpop.f32.mrf.mxu0
    %v941 = vadd.f32 0.0, %v940
    %v942 = vpop.f32.mrf.mxu0
    %943 = vdwg.mxu0
    %v944 = vadd.f32 %v694, %v902
    %v945 = vadd.f32 %v695, %v915
    %v946 = vadd.f32 %v696, %v928
    %v947 = vadd.f32 %v697, %v941
    %v948 = vld [vmem:[#allocation3] sm:$0xff]
    %v949 = vxor.u32 %v944, 2147483648
    %v950 = vmul.f32 %v949, 1.442695
    %v951 = vpow.pop %v950
    %v952 = vadd.f32 %v951, 1.0
    %v953 = vrcp.pop %v952
    %v954 = vmul.f32 %v952, %v953
    %v955 = vsub.f32 1.0, %v954
    %v956 = vmul.f32 %v953, %v955
    %v957 = vadd.f32 %v953, %v956
    %vm958 = vweird.f32 %v952
    %vm959 = vweird.f32 %v953
    %vm960 = vmor %vm958, %vm959
    %v961 = vsel %vm960, %v953, %v957
    %v962 = vand.u32 2147483647, %v952
    %vm963 = vcmp.eq.f32.partialorder %v962, 8.507059e+37
    %v964 = vand.u32 %v952, 2147483648
    %v965 = vor.u32 1.1754944e-38, %v964
    %v966 = vsel %vm963, %v965, %v961
    %v967 = vmul.f32 1.0, %v966
    %v968 = vxor.u32 %v945, 2147483648
    %v969 = vmul.f32 %v968, 1.442695
    %v970 = vpow.pop %v969
    %v971 = vadd.f32 %v970, 1.0
    %v972 = vrcp.pop %v971
    %v973 = vmul.f32 %v971, %v972
    %v974 = vsub.f32 1.0, %v973
    %v975 = vmul.f32 %v972, %v974
    %v976 = vadd.f32 %v972, %v975
    %vm977 = vweird.f32 %v971
    %vm978 = vweird.f32 %v972
    %vm979 = vmor %vm977, %vm978
    %v980 = vsel %vm979, %v972, %v976
    %v981 = vand.u32 2147483647, %v971
    %vm982 = vcmp.eq.f32.partialorder %v981, 8.507059e+37
    %v983 = vand.u32 %v971, 2147483648
    %v984 = vor.u32 1.1754944e-38, %v983
    %v985 = vsel %vm982, %v984, %v980
    %v986 = vmul.f32 1.0, %v985
    %v987 = vtanh.pop %v946
    %v988 = vxor.u32 %v947, 2147483648
    %v989 = vmul.f32 %v988, 1.442695
    %v990 = vpow.pop %v989
    %v991 = vadd.f32 %v990, 1.0
    %v992 = vrcp.pop %v991
    %v993 = vmul.f32 %v991, %v992
    %v994 = vsub.f32 1.0, %v993
    %v995 = vmul.f32 %v992, %v994
    %v996 = vadd.f32 %v992, %v995
    %vm997 = vweird.f32 %v991
    %vm998 = vweird.f32 %v992
    %vm999 = vmor %vm997, %vm998
    %v1000 = vsel %vm999, %v992, %v996
    %v1001 = vand.u32 2147483647, %v991
    %vm1002 = vcmp.eq.f32.partialorder %v1001, 8.507059e+37
    %v1003 = vand.u32 %v991, 2147483648
    %v1004 = vor.u32 1.1754944e-38, %v1003
    %v1005 = vsel %vm1002, %v1004, %v1000
    %v1006 = vmul.f32 1.0, %v1005
    %v1007 = vmul.f32 %v986, %v948
    %v1008 = vmul.f32 %v967, %v987
    %v1009 = vadd.f32 %v1007, %v1008
    %v1010 = vtanh.pop %v1009
    %v1011 = vmul.f32 %v1006, %v1010
    %1012 = vst [vmem:[#allocation2] sm:$0xff] %v1011
    %1013 = vst [vmem:[#allocation3] sm:$0xff] %v1009
    %v1014 = vpack.c.bf16 %v1011, %v1011
    %s1015 = scalar_lea.vmem %s4, 8
    %1016 = vst [vmem:[%s1015] sm:$0xf] %v1014
    %s1017 = scalar_lea.vmem %s0, 48
    %v1018 = vld [vmem:[%s1017] sm:$0xff]
    %v1019 = vld [vmem:[%s1017 + $0x8] sm:$0xff]
    %v1020 = vunpack.c.l.bf16 %v1018
    %v1021 = vunpack.c.h.bf16 %v1018
    %v1022 = vunpack.c.l.bf16 %v1019
    %v1023 = vunpack.c.h.bf16 %v1019
    %v1024 = vld [vmem:[#allocation2] sm:$0xff]
    %v1025 = vpack.c.bf16 %v1024, %v1024
    %v1026 = vld [vmem:[#allocation4] sm:$0xff]
    %v1027 = vld [vmem:[#allocation4 + $0x8] sm:$0xff]
    %v1028 = vld [vmem:[#allocation4 + $0x10] sm:$0xff]
    %v1029 = vld [vmem:[#allocation4 + $0x18] sm:$0xff]
    %v1030 = vld [vmem:[#allocation4 + $0x20] sm:$0xff]
    %v1031 = vld [vmem:[#allocation4 + $0x28] sm:$0xff]
    %v1032 = vld [vmem:[#allocation4 + $0x30] sm:$0xff]
    %v1033 = vld [vmem:[#allocation4 + $0x38] sm:$0xff]
    %v1034 = vld [vmem:[#allocation4 + $0x40] sm:$0xff]
    %v1035 = vld [vmem:[#allocation4 + $0x48] sm:$0xff]
    %v1036 = vld [vmem:[#allocation4 + $0x50] sm:$0xff]
    %v1037 = vld [vmem:[#allocation4 + $0x58] sm:$0xff]
    %v1038 = vld [vmem:[#allocation4 + $0x60] sm:$0xff]
    %v1039 = vld [vmem:[#allocation4 + $0x68] sm:$0xff]
    %v1040 = vld [vmem:[#allocation4 + $0x70] sm:$0xff]
    %v1041 = vld [vmem:[#allocation4 + $0x78] sm:$0xff]
    %v1042 = vld [vmem:[#allocation4 + $0x80] sm:$0xff]
    %v1043 = vld [vmem:[#allocation4 + $0x88] sm:$0xff]
    %v1044 = vld [vmem:[#allocation4 + $0x90] sm:$0xff]
    %v1045 = vld [vmem:[#allocation4 + $0x98] sm:$0xff]
    %v1046 = vld [vmem:[#allocation4 + $0xa0] sm:$0xff]
    %v1047 = vld [vmem:[#allocation4 + $0xa8] sm:$0xff]
    %v1048 = vld [vmem:[#allocation4 + $0xb0] sm:$0xff]
    %v1049 = vld [vmem:[#allocation4 + $0xb8] sm:$0xff]
    %v1050 = vld [vmem:[#allocation4 + $0xc0] sm:$0xff]
    %v1051 = vld [vmem:[#allocation4 + $0xc8] sm:$0xff]
    %v1052 = vld [vmem:[#allocation4 + $0xd0] sm:$0xff]
    %v1053 = vld [vmem:[#allocation4 + $0xd8] sm:$0xff]
    %v1054 = vld [vmem:[#allocation4 + $0xe0] sm:$0xff]
    %v1055 = vld [vmem:[#allocation4 + $0xe8] sm:$0xff]
    %v1056 = vld [vmem:[#allocation4 + $0xf0] sm:$0xff]
    %v1057 = vld [vmem:[#allocation4 + $0xf8] sm:$0xff]
    %v1090 = vunpack.c.l.b16 %v1026
    %v1091 = vunpack.c.h.b16 %v1026
    %v1092 = vunpack.c.l.b16 %v1027
    %v1093 = vunpack.c.h.b16 %v1027
    %v1094 = vunpack.c.l.b16 %v1028
    %v1095 = vunpack.c.h.b16 %v1028
    %v1096 = vunpack.c.l.b16 %v1029
    %v1097 = vunpack.c.h.b16 %v1029
    %v1098 = vunpack.c.l.b16 %v1030
    %v1099 = vunpack.c.h.b16 %v1030
    %v1100 = vunpack.c.l.b16 %v1031
    %v1101 = vunpack.c.h.b16 %v1031
    %v1102 = vunpack.c.l.b16 %v1032
    %v1103 = vunpack.c.h.b16 %v1032
    %v1104 = vunpack.c.l.b16 %v1033
    %v1105 = vunpack.c.h.b16 %v1033
    %v1106 = vunpack.c.l.b16 %v1034
    %v1107 = vunpack.c.h.b16 %v1034
    %v1108 = vunpack.c.l.b16 %v1035
    %v1109 = vunpack.c.h.b16 %v1035
    %v1110 = vunpack.c.l.b16 %v1036
    %v1111 = vunpack.c.h.b16 %v1036
    %v1112 = vunpack.c.l.b16 %v1037
    %v1113 = vunpack.c.h.b16 %v1037
    %v1114 = vunpack.c.l.b16 %v1038
    %v1115 = vunpack.c.h.b16 %v1038
    %v1116 = vunpack.c.l.b16 %v1039
    %v1117 = vunpack.c.h.b16 %v1039
    %v1118 = vunpack.c.l.b16 %v1040
    %v1119 = vunpack.c.h.b16 %v1040
    %v1120 = vunpack.c.l.b16 %v1041
    %v1121 = vunpack.c.h.b16 %v1041
    %v1122 = vunpack.c.l.b16 %v1042
    %v1123 = vunpack.c.h.b16 %v1042
    %v1124 = vunpack.c.l.b16 %v1043
    %v1125 = vunpack.c.h.b16 %v1043
    %v1126 = vunpack.c.l.b16 %v1044
    %v1127 = vunpack.c.h.b16 %v1044
    %v1128 = vunpack.c.l.b16 %v1045
    %v1129 = vunpack.c.h.b16 %v1045
    %v1130 = vunpack.c.l.b16 %v1046
    %v1131 = vunpack.c.h.b16 %v1046
    %v1132 = vunpack.c.l.b16 %v1047
    %v1133 = vunpack.c.h.b16 %v1047
    %v1134 = vunpack.c.l.b16 %v1048
    %v1135 = vunpack.c.h.b16 %v1048
    %v1136 = vunpack.c.l.b16 %v1049
    %v1137 = vunpack.c.h.b16 %v1049
    %v1138 = vunpack.c.l.b16 %v1050
    %v1139 = vunpack.c.h.b16 %v1050
    %v1140 = vunpack.c.l.b16 %v1051
    %v1141 = vunpack.c.h.b16 %v1051
    %v1142 = vunpack.c.l.b16 %v1052
    %v1143 = vunpack.c.h.b16 %v1052
    %v1144 = vunpack.c.l.b16 %v1053
    %v1145 = vunpack.c.h.b16 %v1053
    %v1146 = vunpack.c.l.b16 %v1054
    %v1147 = vunpack.c.h.b16 %v1054
    %v1148 = vunpack.c.l.b16 %v1055
    %v1149 = vunpack.c.h.b16 %v1055
    %v1150 = vunpack.c.l.b16 %v1056
    %v1151 = vunpack.c.h.b16 %v1056
    %v1152 = vunpack.c.l.b16 %v1057
    %v1153 = vunpack.c.h.b16 %v1057
    %v1154 = vpack.c.b16 %v1094, %v1090
    %v1155 = vpack.c.b16 %v1095, %v1091
    %v1156 = vpack.c.b16 %v1096, %v1092
    %v1157 = vpack.c.b16 %v1097, %v1093
    %v1158 = vpack.c.b16 %v1102, %v1098
    %v1159 = vpack.c.b16 %v1103, %v1099
    %v1160 = vpack.c.b16 %v1104, %v1100
    %v1161 = vpack.c.b16 %v1105, %v1101
    %v1162 = vpack.c.b16 %v1110, %v1106
    %v1163 = vpack.c.b16 %v1111, %v1107
    %v1164 = vpack.c.b16 %v1112, %v1108
    %v1165 = vpack.c.b16 %v1113, %v1109
    %v1166 = vpack.c.b16 %v1118, %v1114
    %v1167 = vpack.c.b16 %v1119, %v1115
    %v1168 = vpack.c.b16 %v1120, %v1116
    %v1169 = vpack.c.b16 %v1121, %v1117
    %v1170 = vpack.c.b16 %v1126, %v1122
    %v1171 = vpack.c.b16 %v1127, %v1123
    %v1172 = vpack.c.b16 %v1128, %v1124
    %v1173 = vpack.c.b16 %v1129, %v1125
    %v1174 = vpack.c.b16 %v1134, %v1130
    %v1175 = vpack.c.b16 %v1135, %v1131
    %v1176 = vpack.c.b16 %v1136, %v1132
    %v1177 = vpack.c.b16 %v1137, %v1133
    %v1178 = vpack.c.b16 %v1142, %v1138
    %v1179 = vpack.c.b16 %v1143, %v1139
    %v1180 = vpack.c.b16 %v1144, %v1140
    %v1181 = vpack.c.b16 %v1145, %v1141
    %v1182 = vpack.c.b16 %v1150, %v1146
    %v1183 = vpack.c.b16 %v1151, %v1147
    %v1184 = vpack.c.b16 %v1152, %v1148
    %v1185 = vpack.c.b16 %v1153, %v1149
    %1218 = vmatpush.bf16.msra.mxu0 %v1182
    %1219 = vmatpush.bf16.msra.mxu0 %v1178
    %1220 = vmatpush.bf16.msra.mxu0 %v1174
    %1221 = vmatpush.bf16.msra.mxu0 %v1170
    %1222 = vmatpush.bf16.msra.mxu0 %v1166
    %1223 = vmatpush.bf16.msra.mxu0 %v1162
    %1224 = vmatpush.bf16.msra.mxu0 %v1158
    %1225 = vmatpush.bf16.msra.mxu0 %v1154
    %1226 = vmatmul.bf16.gmra.mxu0 %v1025
    %v1227 = vpop.f32.mrf.mxu0
    %v1228 = vadd.f32 0.0, %v1227
    %v1229 = vpop.f32.mrf.mxu0
    %1230 = vdwg.mxu0
    %1231 = vmatpush.bf16.msra.mxu0 %v1183
    %1232 = vmatpush.bf16.msra.mxu0 %v1179
    %1233 = vmatpush.bf16.msra.mxu0 %v1175
    %1234 = vmatpush.bf16.msra.mxu0 %v1171
    %1235 = vmatpush.bf16.msra.mxu0 %v1167
    %1236 = vmatpush.bf16.msra.mxu0 %v1163
    %1237 = vmatpush.bf16.msra.mxu0 %v1159
    %1238 = vmatpush.bf16.msra.mxu0 %v1155
    %1239 = vmatmul.bf16.gmra.mxu0 %v1025
    %v1240 = vpop.f32.mrf.mxu0
    %v1241 = vadd.f32 0.0, %v1240
    %v1242 = vpop.f32.mrf.mxu0
    %1243 = vdwg.mxu0
    %1244 = vmatpush.bf16.msra.mxu0 %v1184
    %1245 = vmatpush.bf16.msra.mxu0 %v1180
    %1246 = vmatpush.bf16.msra.mxu0 %v1176
    %1247 = vmatpush.bf16.msra.mxu0 %v1172
    %1248 = vmatpush.bf16.msra.mxu0 %v1168
    %1249 = vmatpush.bf16.msra.mxu0 %v1164
    %1250 = vmatpush.bf16.msra.mxu0 %v1160
    %1251 = vmatpush.bf16.msra.mxu0 %v1156
    %1252 = vmatmul.bf16.gmra.mxu0 %v1025
    %v1253 = vpop.f32.mrf.mxu0
    %v1254 = vadd.f32 0.0, %v1253
    %v1255 = vpop.f32.mrf.mxu0
    %1256 = vdwg.mxu0
    %1257 = vmatpush.bf16.msra.mxu0 %v1185
    %1258 = vmatpush.bf16.msra.mxu0 %v1181
    %1259 = vmatpush.bf16.msra.mxu0 %v1177
    %1260 = vmatpush.bf16.msra.mxu0 %v1173
    %1261 = vmatpush.bf16.msra.mxu0 %v1169
    %1262 = vmatpush.bf16.msra.mxu0 %v1165
    %1263 = vmatpush.bf16.msra.mxu0 %v1161
    %1264 = vmatpush.bf16.msra.mxu0 %v1157
    %1265 = vmatmul.bf16.gmra.mxu0 %v1025
    %v1266 = vpop.f32.mrf.mxu0
    %v1267 = vadd.f32 0.0, %v1266
    %v1268 = vpop.f32.mrf.mxu0
    %1269 = vdwg.mxu0
    %v1270 = vadd.f32 %v1020, %v1228
    %v1271 = vadd.f32 %v1021, %v1241
    %v1272 = vadd.f32 %v1022, %v1254
    %v1273 = vadd.f32 %v1023, %v1267
    %v1274 = vld [vmem:[#allocation3] sm:$0xff]
    %v1275 = vxor.u32 %v1270, 2147483648
    %v1276 = vmul.f32 %v1275, 1.442695
    %v1277 = vpow.pop %v1276
    %v1278 = vadd.f32 %v1277, 1.0
    %v1279 = vrcp.pop %v1278
    %v1280 = vmul.f32 %v1278, %v1279
    %v1281 = vsub.f32 1.0, %v1280
    %v1282 = vmul.f32 %v1279, %v1281
    %v1283 = vadd.f32 %v1279, %v1282
    %vm1284 = vweird.f32 %v1278
    %vm1285 = vweird.f32 %v1279
    %vm1286 = vmor %vm1284, %vm1285
    %v1287 = vsel %vm1286, %v1279, %v1283
    %v1288 = vand.u32 2147483647, %v1278
    %vm1289 = vcmp.eq.f32.partialorder %v1288, 8.507059e+37
    %v1290 = vand.u32 %v1278, 2147483648
    %v1291 = vor.u32 1.1754944e-38, %v1290
    %v1292 = vsel %vm1289, %v1291, %v1287
    %v1293 = vmul.f32 1.0, %v1292
    %v1294 = vxor.u32 %v1271, 2147483648
    %v1295 = vmul.f32 %v1294, 1.442695
    %v1296 = vpow.pop %v1295
    %v1297 = vadd.f32 %v1296, 1.0
    %v1298 = vrcp.pop %v1297
    %v1299 = vmul.f32 %v1297, %v1298
    %v1300 = vsub.f32 1.0, %v1299
    %v1301 = vmul.f32 %v1298, %v1300
    %v1302 = vadd.f32 %v1298, %v1301
    %vm1303 = vweird.f32 %v1297
    %vm1304 = vweird.f32 %v1298
    %vm1305 = vmor %vm1303, %vm1304
    %v1306 = vsel %vm1305, %v1298, %v1302
    %v1307 = vand.u32 2147483647, %v1297
    %vm1308 = vcmp.eq.f32.partialorder %v1307, 8.507059e+37
    %v1309 = vand.u32 %v1297, 2147483648
    %v1310 = vor.u32 1.1754944e-38, %v1309
    %v1311 = vsel %vm1308, %v1310, %v1306
    %v1312 = vmul.f32 1.0, %v1311
    %v1313 = vtanh.pop %v1272
    %v1314 = vxor.u32 %v1273, 2147483648
    %v1315 = vmul.f32 %v1314, 1.442695
    %v1316 = vpow.pop %v1315
    %v1317 = vadd.f32 %v1316, 1.0
    %v1318 = vrcp.pop %v1317
    %v1319 = vmul.f32 %v1317, %v1318
    %v1320 = vsub.f32 1.0, %v1319
    %v1321 = vmul.f32 %v1318, %v1320
    %v1322 = vadd.f32 %v1318, %v1321
    %vm1323 = vweird.f32 %v1317
    %vm1324 = vweird.f32 %v1318
    %vm1325 = vmor %vm1323, %vm1324
    %v1326 = vsel %vm1325, %v1318, %v1322
    %v1327 = vand.u32 2147483647, %v1317
    %vm1328 = vcmp.eq.f32.partialorder %v1327, 8.507059e+37
    %v1329 = vand.u32 %v1317, 2147483648
    %v1330 = vor.u32 1.1754944e-38, %v1329
    %v1331 = vsel %vm1328, %v1330, %v1326
    %v1332 = vmul.f32 1.0, %v1331
    %v1333 = vmul.f32 %v1312, %v1274
    %v1334 = vmul.f32 %v1293, %v1313
    %v1335 = vadd.f32 %v1333, %v1334
    %v1336 = vtanh.pop %v1335
    %v1337 = vmul.f32 %v1332, %v1336
    %1338 = vst [vmem:[#allocation2] sm:$0xff] %v1337
    %1339 = vst [vmem:[#allocation3] sm:$0xff] %v1335
    %v1340 = vpack.c.bf16 %v1337, %v1337
    %s1341 = scalar_lea.vmem %s4, 12
    %1342 = vst [vmem:[%s1341] sm:$0xf] %v1340
    %s1343 = scalar_lea.vmem %s0, 64
    %v1344 = vld [vmem:[%s1343] sm:$0xff]
    %v1345 = vld [vmem:[%s1343 + $0x8] sm:$0xff]
    %v1346 = vunpack.c.l.bf16 %v1344
    %v1347 = vunpack.c.h.bf16 %v1344
    %v1348 = vunpack.c.l.bf16 %v1345
    %v1349 = vunpack.c.h.bf16 %v1345
    %v1350 = vld [vmem:[#allocation2] sm:$0xff]
    %v1351 = vpack.c.bf16 %v1350, %v1350
    %v1352 = vld [vmem:[#allocation4] sm:$0xff]
    %v1353 = vld [vmem:[#allocation4 + $0x8] sm:$0xff]
    %v1354 = vld [vmem:[#allocation4 + $0x10] sm:$0xff]
    %v1355 = vld [vmem:[#allocation4 + $0x18] sm:$0xff]
    %v1356 = vld [vmem:[#allocation4 + $0x20] sm:$0xff]
    %v1357 = vld [vmem:[#allocation4 + $0x28] sm:$0xff]
    %v1358 = vld [vmem:[#allocation4 + $0x30] sm:$0xff]
    %v1359 = vld [vmem:[#allocation4 + $0x38] sm:$0xff]
    %v1360 = vld [vmem:[#allocation4 + $0x40] sm:$0xff]
    %v1361 = vld [vmem:[#allocation4 + $0x48] sm:$0xff]
    %v1362 = vld [vmem:[#allocation4 + $0x50] sm:$0xff]
    %v1363 = vld [vmem:[#allocation4 + $0x58] sm:$0xff]
    %v1364 = vld [vmem:[#allocation4 + $0x60] sm:$0xff]
    %v1365 = vld [vmem:[#allocation4 + $0x68] sm:$0xff]
    %v1366 = vld [vmem:[#allocation4 + $0x70] sm:$0xff]
    %v1367 = vld [vmem:[#allocation4 + $0x78] sm:$0xff]
    %v1368 = vld [vmem:[#allocation4 + $0x80] sm:$0xff]
    %v1369 = vld [vmem:[#allocation4 + $0x88] sm:$0xff]
    %v1370 = vld [vmem:[#allocation4 + $0x90] sm:$0xff]
    %v1371 = vld [vmem:[#allocation4 + $0x98] sm:$0xff]
    %v1372 = vld [vmem:[#allocation4 + $0xa0] sm:$0xff]
    %v1373 = vld [vmem:[#allocation4 + $0xa8] sm:$0xff]
    %v1374 = vld [vmem:[#allocation4 + $0xb0] sm:$0xff]
    %v1375 = vld [vmem:[#allocation4 + $0xb8] sm:$0xff]
    %v1376 = vld [vmem:[#allocation4 + $0xc0] sm:$0xff]
    %v1377 = vld [vmem:[#allocation4 + $0xc8] sm:$0xff]
    %v1378 = vld [vmem:[#allocation4 + $0xd0] sm:$0xff]
    %v1379 = vld [vmem:[#allocation4 + $0xd8] sm:$0xff]
    %v1380 = vld [vmem:[#allocation4 + $0xe0] sm:$0xff]
    %v1381 = vld [vmem:[#allocation4 + $0xe8] sm:$0xff]
    %v1382 = vld [vmem:[#allocation4 + $0xf0] sm:$0xff]
    %v1383 = vld [vmem:[#allocation4 + $0xf8] sm:$0xff]
    %v1416 = vunpack.c.l.b16 %v1352
    %v1417 = vunpack.c.h.b16 %v1352
    %v1418 = vunpack.c.l.b16 %v1353
    %v1419 = vunpack.c.h.b16 %v1353
    %v1420 = vunpack.c.l.b16 %v1354
    %v1421 = vunpack.c.h.b16 %v1354
    %v1422 = vunpack.c.l.b16 %v1355
    %v1423 = vunpack.c.h.b16 %v1355
    %v1424 = vunpack.c.l.b16 %v1356
    %v1425 = vunpack.c.h.b16 %v1356
    %v1426 = vunpack.c.l.b16 %v1357
    %v1427 = vunpack.c.h.b16 %v1357
    %v1428 = vunpack.c.l.b16 %v1358
    %v1429 = vunpack.c.h.b16 %v1358
    %v1430 = vunpack.c.l.b16 %v1359
    %v1431 = vunpack.c.h.b16 %v1359
    %v1432 = vunpack.c.l.b16 %v1360
    %v1433 = vunpack.c.h.b16 %v1360
    %v1434 = vunpack.c.l.b16 %v1361
    %v1435 = vunpack.c.h.b16 %v1361
    %v1436 = vunpack.c.l.b16 %v1362
    %v1437 = vunpack.c.h.b16 %v1362
    %v1438 = vunpack.c.l.b16 %v1363
    %v1439 = vunpack.c.h.b16 %v1363
    %v1440 = vunpack.c.l.b16 %v1364
    %v1441 = vunpack.c.h.b16 %v1364
    %v1442 = vunpack.c.l.b16 %v1365
    %v1443 = vunpack.c.h.b16 %v1365
    %v1444 = vunpack.c.l.b16 %v1366
    %v1445 = vunpack.c.h.b16 %v1366
    %v1446 = vunpack.c.l.b16 %v1367
    %v1447 = vunpack.c.h.b16 %v1367
    %v1448 = vunpack.c.l.b16 %v1368
    %v1449 = vunpack.c.h.b16 %v1368
    %v1450 = vunpack.c.l.b16 %v1369
    %v1451 = vunpack.c.h.b16 %v1369
    %v1452 = vunpack.c.l.b16 %v1370
    %v1453 = vunpack.c.h.b16 %v1370
    %v1454 = vunpack.c.l.b16 %v1371
    %v1455 = vunpack.c.h.b16 %v1371
    %v1456 = vunpack.c.l.b16 %v1372
    %v1457 = vunpack.c.h.b16 %v1372
    %v1458 = vunpack.c.l.b16 %v1373
    %v1459 = vunpack.c.h.b16 %v1373
    %v1460 = vunpack.c.l.b16 %v1374
    %v1461 = vunpack.c.h.b16 %v1374
    %v1462 = vunpack.c.l.b16 %v1375
    %v1463 = vunpack.c.h.b16 %v1375
    %v1464 = vunpack.c.l.b16 %v1376
    %v1465 = vunpack.c.h.b16 %v1376
    %v1466 = vunpack.c.l.b16 %v1377
    %v1467 = vunpack.c.h.b16 %v1377
    %v1468 = vunpack.c.l.b16 %v1378
    %v1469 = vunpack.c.h.b16 %v1378
    %v1470 = vunpack.c.l.b16 %v1379
    %v1471 = vunpack.c.h.b16 %v1379
    %v1472 = vunpack.c.l.b16 %v1380
    %v1473 = vunpack.c.h.b16 %v1380
    %v1474 = vunpack.c.l.b16 %v1381
    %v1475 = vunpack.c.h.b16 %v1381
    %v1476 = vunpack.c.l.b16 %v1382
    %v1477 = vunpack.c.h.b16 %v1382
    %v1478 = vunpack.c.l.b16 %v1383
    %v1479 = vunpack.c.h.b16 %v1383
    %v1480 = vpack.c.b16 %v1420, %v1416
    %v1481 = vpack.c.b16 %v1421, %v1417
    %v1482 = vpack.c.b16 %v1422, %v1418
    %v1483 = vpack.c.b16 %v1423, %v1419
    %v1484 = vpack.c.b16 %v1428, %v1424
    %v1485 = vpack.c.b16 %v1429, %v1425
    %v1486 = vpack.c.b16 %v1430, %v1426
    %v1487 = vpack.c.b16 %v1431, %v1427
    %v1488 = vpack.c.b16 %v1436, %v1432
    %v1489 = vpack.c.b16 %v1437, %v1433
    %v1490 = vpack.c.b16 %v1438, %v1434
    %v1491 = vpack.c.b16 %v1439, %v1435
    %v1492 = vpack.c.b16 %v1444, %v1440
    %v1493 = vpack.c.b16 %v1445, %v1441
    %v1494 = vpack.c.b16 %v1446, %v1442
    %v1495 = vpack.c.b16 %v1447, %v1443
    %v1496 = vpack.c.b16 %v1452, %v1448
    %v1497 = vpack.c.b16 %v1453, %v1449
    %v1498 = vpack.c.b16 %v1454, %v1450
    %v1499 = vpack.c.b16 %v1455, %v1451
    %v1500 = vpack.c.b16 %v1460, %v1456
    %v1501 = vpack.c.b16 %v1461, %v1457
    %v1502 = vpack.c.b16 %v1462, %v1458
    %v1503 = vpack.c.b16 %v1463, %v1459
    %v1504 = vpack.c.b16 %v1468, %v1464
    %v1505 = vpack.c.b16 %v1469, %v1465
    %v1506 = vpack.c.b16 %v1470, %v1466
    %v1507 = vpack.c.b16 %v1471, %v1467
    %v1508 = vpack.c.b16 %v1476, %v1472
    %v1509 = vpack.c.b16 %v1477, %v1473
    %v1510 = vpack.c.b16 %v1478, %v1474
    %v1511 = vpack.c.b16 %v1479, %v1475
    %1544 = vmatpush.bf16.msra.mxu0 %v1508
    %1545 = vmatpush.bf16.msra.mxu0 %v1504
    %1546 = vmatpush.bf16.msra.mxu0 %v1500
    %1547 = vmatpush.bf16.msra.mxu0 %v1496
    %1548 = vmatpush.bf16.msra.mxu0 %v1492
    %1549 = vmatpush.bf16.msra.mxu0 %v1488
    %1550 = vmatpush.bf16.msra.mxu0 %v1484
    %1551 = vmatpush.bf16.msra.mxu0 %v1480
    %1552 = vmatmul.bf16.gmra.mxu0 %v1351
    %v1553 = vpop.f32.mrf.mxu0
    %v1554 = vadd.f32 0.0, %v1553
    %v1555 = vpop.f32.mrf.mxu0
    %1556 = vdwg.mxu0
    %1557 = vmatpush.bf16.msra.mxu0 %v1509
    %1558 = vmatpush.bf16.msra.mxu0 %v1505
    %1559 = vmatpush.bf16.msra.mxu0 %v1501
    %1560 = vmatpush.bf16.msra.mxu0 %v1497
    %1561 = vmatpush.bf16.msra.mxu0 %v1493
    %1562 = vmatpush.bf16.msra.mxu0 %v1489
    %1563 = vmatpush.bf16.msra.mxu0 %v1485
    %1564 = vmatpush.bf16.msra.mxu0 %v1481
    %1565 = vmatmul.bf16.gmra.mxu0 %v1351
    %v1566 = vpop.f32.mrf.mxu0
    %v1567 = vadd.f32 0.0, %v1566
    %v1568 = vpop.f32.mrf.mxu0
    %1569 = vdwg.mxu0
    %1570 = vmatpush.bf16.msra.mxu0 %v1510
    %1571 = vmatpush.bf16.msra.mxu0 %v1506
    %1572 = vmatpush.bf16.msra.mxu0 %v1502
    %1573 = vmatpush.bf16.msra.mxu0 %v1498
    %1574 = vmatpush.bf16.msra.mxu0 %v1494
    %1575 = vmatpush.bf16.msra.mxu0 %v1490
    %1576 = vmatpush.bf16.msra.mxu0 %v1486
    %1577 = vmatpush.bf16.msra.mxu0 %v1482
    %1578 = vmatmul.bf16.gmra.mxu0 %v1351
    %v1579 = vpop.f32.mrf.mxu0
    %v1580 = vadd.f32 0.0, %v1579
    %v1581 = vpop.f32.mrf.mxu0
    %1582 = vdwg.mxu0
    %1583 = vmatpush.bf16.msra.mxu0 %v1511
    %1584 = vmatpush.bf16.msra.mxu0 %v1507
    %1585 = vmatpush.bf16.msra.mxu0 %v1503
    %1586 = vmatpush.bf16.msra.mxu0 %v1499
    %1587 = vmatpush.bf16.msra.mxu0 %v1495
    %1588 = vmatpush.bf16.msra.mxu0 %v1491
    %1589 = vmatpush.bf16.msra.mxu0 %v1487
    %1590 = vmatpush.bf16.msra.mxu0 %v1483
    %1591 = vmatmul.bf16.gmra.mxu0 %v1351
    %v1592 = vpop.f32.mrf.mxu0
    %v1593 = vadd.f32 0.0, %v1592
    %v1594 = vpop.f32.mrf.mxu0
    %1595 = vdwg.mxu0
    %v1596 = vadd.f32 %v1346, %v1554
    %v1597 = vadd.f32 %v1347, %v1567
    %v1598 = vadd.f32 %v1348, %v1580
    %v1599 = vadd.f32 %v1349, %v1593
    %v1600 = vld [vmem:[#allocation3] sm:$0xff]
    %v1601 = vxor.u32 %v1596, 2147483648
    %v1602 = vmul.f32 %v1601, 1.442695
    %v1603 = vpow.pop %v1602
    %v1604 = vadd.f32 %v1603, 1.0
    %v1605 = vrcp.pop %v1604
    %v1606 = vmul.f32 %v1604, %v1605
    %v1607 = vsub.f32 1.0, %v1606
    %v1608 = vmul.f32 %v1605, %v1607
    %v1609 = vadd.f32 %v1605, %v1608
    %vm1610 = vweird.f32 %v1604
    %vm1611 = vweird.f32 %v1605
    %vm1612 = vmor %vm1610, %vm1611
    %v1613 = vsel %vm1612, %v1605, %v1609
    %v1614 = vand.u32 2147483647, %v1604
    %vm1615 = vcmp.eq.f32.partialorder %v1614, 8.507059e+37
    %v1616 = vand.u32 %v1604, 2147483648
    %v1617 = vor.u32 1.1754944e-38, %v1616
    %v1618 = vsel %vm1615, %v1617, %v1613
    %v1619 = vmul.f32 1.0, %v1618
    %v1620 = vxor.u32 %v1597, 2147483648
    %v1621 = vmul.f32 %v1620, 1.442695
    %v1622 = vpow.pop %v1621
    %v1623 = vadd.f32 %v1622, 1.0
    %v1624 = vrcp.pop %v1623
    %v1625 = vmul.f32 %v1623, %v1624
    %v1626 = vsub.f32 1.0, %v1625
    %v1627 = vmul.f32 %v1624, %v1626
    %v1628 = vadd.f32 %v1624, %v1627
    %vm1629 = vweird.f32 %v1623
    %vm1630 = vweird.f32 %v1624
    %vm1631 = vmor %vm1629, %vm1630
    %v1632 = vsel %vm1631, %v1624, %v1628
    %v1633 = vand.u32 2147483647, %v1623
    %vm1634 = vcmp.eq.f32.partialorder %v1633, 8.507059e+37
    %v1635 = vand.u32 %v1623, 2147483648
    %v1636 = vor.u32 1.1754944e-38, %v1635
    %v1637 = vsel %vm1634, %v1636, %v1632
    %v1638 = vmul.f32 1.0, %v1637
    %v1639 = vtanh.pop %v1598
    %v1640 = vxor.u32 %v1599, 2147483648
    %v1641 = vmul.f32 %v1640, 1.442695
    %v1642 = vpow.pop %v1641
    %v1643 = vadd.f32 %v1642, 1.0
    %v1644 = vrcp.pop %v1643
    %v1645 = vmul.f32 %v1643, %v1644
    %v1646 = vsub.f32 1.0, %v1645
    %v1647 = vmul.f32 %v1644, %v1646
    %v1648 = vadd.f32 %v1644, %v1647
    %vm1649 = vweird.f32 %v1643
    %vm1650 = vweird.f32 %v1644
    %vm1651 = vmor %vm1649, %vm1650
    %v1652 = vsel %vm1651, %v1644, %v1648
    %v1653 = vand.u32 2147483647, %v1643
    %vm1654 = vcmp.eq.f32.partialorder %v1653, 8.507059e+37
    %v1655 = vand.u32 %v1643, 2147483648
    %v1656 = vor.u32 1.1754944e-38, %v1655
    %v1657 = vsel %vm1654, %v1656, %v1652
    %v1658 = vmul.f32 1.0, %v1657
    %v1659 = vmul.f32 %v1638, %v1600
    %v1660 = vmul.f32 %v1619, %v1639
    %v1661 = vadd.f32 %v1659, %v1660
    %v1662 = vtanh.pop %v1661
    %v1663 = vmul.f32 %v1658, %v1662
    %1664 = vst [vmem:[#allocation2] sm:$0xff] %v1663
    %1665 = vst [vmem:[#allocation3] sm:$0xff] %v1661
    %v1666 = vpack.c.bf16 %v1663, %v1663
    %s1667 = scalar_lea.vmem %s4, 16
    %1668 = vst [vmem:[%s1667] sm:$0xf] %v1666
    %s1669 = scalar_lea.vmem %s0, 80
    %v1670 = vld [vmem:[%s1669] sm:$0xff]
    %v1671 = vld [vmem:[%s1669 + $0x8] sm:$0xff]
    %v1672 = vunpack.c.l.bf16 %v1670
    %v1673 = vunpack.c.h.bf16 %v1670
    %v1674 = vunpack.c.l.bf16 %v1671
    %v1675 = vunpack.c.h.bf16 %v1671
    %v1676 = vld [vmem:[#allocation2] sm:$0xff]
    %v1677 = vpack.c.bf16 %v1676, %v1676
    %v1678 = vld [vmem:[#allocation4] sm:$0xff]
    %v1679 = vld [vmem:[#allocation4 + $0x8] sm:$0xff]
    %v1680 = vld [vmem:[#allocation4 + $0x10] sm:$0xff]
    %v1681 = vld [vmem:[#allocation4 + $0x18] sm:$0xff]
    %v1682 = vld [vmem:[#allocation4 + $0x20] sm:$0xff]
    %v1683 = vld [vmem:[#allocation4 + $0x28] sm:$0xff]
    %v1684 = vld [vmem:[#allocation4 + $0x30] sm:$0xff]
    %v1685 = vld [vmem:[#allocation4 + $0x38] sm:$0xff]
    %v1686 = vld [vmem:[#allocation4 + $0x40] sm:$0xff]
    %v1687 = vld [vmem:[#allocation4 + $0x48] sm:$0xff]
    %v1688 = vld [vmem:[#allocation4 + $0x50] sm:$0xff]
    %v1689 = vld [vmem:[#allocation4 + $0x58] sm:$0xff]
    %v1690 = vld [vmem:[#allocation4 + $0x60] sm:$0xff]
    %v1691 = vld [vmem:[#allocation4 + $0x68] sm:$0xff]
    %v1692 = vld [vmem:[#allocation4 + $0x70] sm:$0xff]
    %v1693 = vld [vmem:[#allocation4 + $0x78] sm:$0xff]
    %v1694 = vld [vmem:[#allocation4 + $0x80] sm:$0xff]
    %v1695 = vld [vmem:[#allocation4 + $0x88] sm:$0xff]
    %v1696 = vld [vmem:[#allocation4 + $0x90] sm:$0xff]
    %v1697 = vld [vmem:[#allocation4 + $0x98] sm:$0xff]
    %v1698 = vld [vmem:[#allocation4 + $0xa0] sm:$0xff]
    %v1699 = vld [vmem:[#allocation4 + $0xa8] sm:$0xff]
    %v1700 = vld [vmem:[#allocation4 + $0xb0] sm:$0xff]
    %v1701 = vld [vmem:[#allocation4 + $0xb8] sm:$0xff]
    %v1702 = vld [vmem:[#allocation4 + $0xc0] sm:$0xff]
    %v1703 = vld [vmem:[#allocation4 + $0xc8] sm:$0xff]
    %v1704 = vld [vmem:[#allocation4 + $0xd0] sm:$0xff]
    %v1705 = vld [vmem:[#allocation4 + $0xd8] sm:$0xff]
    %v1706 = vld [vmem:[#allocation4 + $0xe0] sm:$0xff]
    %v1707 = vld [vmem:[#allocation4 + $0xe8] sm:$0xff]
    %v1708 = vld [vmem:[#allocation4 + $0xf0] sm:$0xff]
    %v1709 = vld [vmem:[#allocation4 + $0xf8] sm:$0xff]
    %v1742 = vunpack.c.l.b16 %v1678
    %v1743 = vunpack.c.h.b16 %v1678
    %v1744 = vunpack.c.l.b16 %v1679
    %v1745 = vunpack.c.h.b16 %v1679
    %v1746 = vunpack.c.l.b16 %v1680
    %v1747 = vunpack.c.h.b16 %v1680
    %v1748 = vunpack.c.l.b16 %v1681
    %v1749 = vunpack.c.h.b16 %v1681
    %v1750 = vunpack.c.l.b16 %v1682
    %v1751 = vunpack.c.h.b16 %v1682
    %v1752 = vunpack.c.l.b16 %v1683
    %v1753 = vunpack.c.h.b16 %v1683
    %v1754 = vunpack.c.l.b16 %v1684
    %v1755 = vunpack.c.h.b16 %v1684
    %v1756 = vunpack.c.l.b16 %v1685
    %v1757 = vunpack.c.h.b16 %v1685
    %v1758 = vunpack.c.l.b16 %v1686
    %v1759 = vunpack.c.h.b16 %v1686
    %v1760 = vunpack.c.l.b16 %v1687
    %v1761 = vunpack.c.h.b16 %v1687
    %v1762 = vunpack.c.l.b16 %v1688
    %v1763 = vunpack.c.h.b16 %v1688
    %v1764 = vunpack.c.l.b16 %v1689
    %v1765 = vunpack.c.h.b16 %v1689
    %v1766 = vunpack.c.l.b16 %v1690
    %v1767 = vunpack.c.h.b16 %v1690
    %v1768 = vunpack.c.l.b16 %v1691
    %v1769 = vunpack.c.h.b16 %v1691
    %v1770 = vunpack.c.l.b16 %v1692
    %v1771 = vunpack.c.h.b16 %v1692
    %v1772 = vunpack.c.l.b16 %v1693
    %v1773 = vunpack.c.h.b16 %v1693
    %v1774 = vunpack.c.l.b16 %v1694
    %v1775 = vunpack.c.h.b16 %v1694
    %v1776 = vunpack.c.l.b16 %v1695
    %v1777 = vunpack.c.h.b16 %v1695
    %v1778 = vunpack.c.l.b16 %v1696
    %v1779 = vunpack.c.h.b16 %v1696
    %v1780 = vunpack.c.l.b16 %v1697
    %v1781 = vunpack.c.h.b16 %v1697
    %v1782 = vunpack.c.l.b16 %v1698
    %v1783 = vunpack.c.h.b16 %v1698
    %v1784 = vunpack.c.l.b16 %v1699
    %v1785 = vunpack.c.h.b16 %v1699
    %v1786 = vunpack.c.l.b16 %v1700
    %v1787 = vunpack.c.h.b16 %v1700
    %v1788 = vunpack.c.l.b16 %v1701
    %v1789 = vunpack.c.h.b16 %v1701
    %v1790 = vunpack.c.l.b16 %v1702
    %v1791 = vunpack.c.h.b16 %v1702
    %v1792 = vunpack.c.l.b16 %v1703
    %v1793 = vunpack.c.h.b16 %v1703
    %v1794 = vunpack.c.l.b16 %v1704
    %v1795 = vunpack.c.h.b16 %v1704
    %v1796 = vunpack.c.l.b16 %v1705
    %v1797 = vunpack.c.h.b16 %v1705
    %v1798 = vunpack.c.l.b16 %v1706
    %v1799 = vunpack.c.h.b16 %v1706
    %v1800 = vunpack.c.l.b16 %v1707
    %v1801 = vunpack.c.h.b16 %v1707
    %v1802 = vunpack.c.l.b16 %v1708
    %v1803 = vunpack.c.h.b16 %v1708
    %v1804 = vunpack.c.l.b16 %v1709
    %v1805 = vunpack.c.h.b16 %v1709
    %v1806 = vpack.c.b16 %v1746, %v1742
    %v1807 = vpack.c.b16 %v1747, %v1743
    %v1808 = vpack.c.b16 %v1748, %v1744
    %v1809 = vpack.c.b16 %v1749, %v1745
    %v1810 = vpack.c.b16 %v1754, %v1750
    %v1811 = vpack.c.b16 %v1755, %v1751
    %v1812 = vpack.c.b16 %v1756, %v1752
    %v1813 = vpack.c.b16 %v1757, %v1753
    %v1814 = vpack.c.b16 %v1762, %v1758
    %v1815 = vpack.c.b16 %v1763, %v1759
    %v1816 = vpack.c.b16 %v1764, %v1760
    %v1817 = vpack.c.b16 %v1765, %v1761
    %v1818 = vpack.c.b16 %v1770, %v1766
    %v1819 = vpack.c.b16 %v1771, %v1767
    %v1820 = vpack.c.b16 %v1772, %v1768
    %v1821 = vpack.c.b16 %v1773, %v1769
    %v1822 = vpack.c.b16 %v1778, %v1774
    %v1823 = vpack.c.b16 %v1779, %v1775
    %v1824 = vpack.c.b16 %v1780, %v1776
    %v1825 = vpack.c.b16 %v1781, %v1777
    %v1826 = vpack.c.b16 %v1786, %v1782
    %v1827 = vpack.c.b16 %v1787, %v1783
    %v1828 = vpack.c.b16 %v1788, %v1784
    %v1829 = vpack.c.b16 %v1789, %v1785
    %v1830 = vpack.c.b16 %v1794, %v1790
    %v1831 = vpack.c.b16 %v1795, %v1791
    %v1832 = vpack.c.b16 %v1796, %v1792
    %v1833 = vpack.c.b16 %v1797, %v1793
    %v1834 = vpack.c.b16 %v1802, %v1798
    %v1835 = vpack.c.b16 %v1803, %v1799
    %v1836 = vpack.c.b16 %v1804, %v1800
    %v1837 = vpack.c.b16 %v1805, %v1801
    %1870 = vmatpush.bf16.msra.mxu0 %v1834
    %1871 = vmatpush.bf16.msra.mxu0 %v1830
    %1872 = vmatpush.bf16.msra.mxu0 %v1826
    %1873 = vmatpush.bf16.msra.mxu0 %v1822
    %1874 = vmatpush.bf16.msra.mxu0 %v1818
    %1875 = vmatpush.bf16.msra.mxu0 %v1814
    %1876 = vmatpush.bf16.msra.mxu0 %v1810
    %1877 = vmatpush.bf16.msra.mxu0 %v1806
    %1878 = vmatmul.bf16.gmra.mxu0 %v1677
    %v1879 = vpop.f32.mrf.mxu0
    %v1880 = vadd.f32 0.0, %v1879
    %v1881 = vpop.f32.mrf.mxu0
    %1882 = vdwg.mxu0
    %1883 = vmatpush.bf16.msra.mxu0 %v1835
    %1884 = vmatpush.bf16.msra.mxu0 %v1831
    %1885 = vmatpush.bf16.msra.mxu0 %v1827
    %1886 = vmatpush.bf16.msra.mxu0 %v1823
    %1887 = vmatpush.bf16.msra.mxu0 %v1819
    %1888 = vmatpush.bf16.msra.mxu0 %v1815
    %1889 = vmatpush.bf16.msra.mxu0 %v1811
    %1890 = vmatpush.bf16.msra.mxu0 %v1807
    %1891 = vmatmul.bf16.gmra.mxu0 %v1677
    %v1892 = vpop.f32.mrf.mxu0
    %v1893 = vadd.f32 0.0, %v1892
    %v1894 = vpop.f32.mrf.mxu0
    %1895 = vdwg.mxu0
    %1896 = vmatpush.bf16.msra.mxu0 %v1836
    %1897 = vmatpush.bf16.msra.mxu0 %v1832
    %1898 = vmatpush.bf16.msra.mxu0 %v1828
    %1899 = vmatpush.bf16.msra.mxu0 %v1824
    %1900 = vmatpush.bf16.msra.mxu0 %v1820
    %1901 = vmatpush.bf16.msra.mxu0 %v1816
    %1902 = vmatpush.bf16.msra.mxu0 %v1812
    %1903 = vmatpush.bf16.msra.mxu0 %v1808
    %1904 = vmatmul.bf16.gmra.mxu0 %v1677
    %v1905 = vpop.f32.mrf.mxu0
    %v1906 = vadd.f32 0.0, %v1905
    %v1907 = vpop.f32.mrf.mxu0
    %1908 = vdwg.mxu0
    %1909 = vmatpush.bf16.msra.mxu0 %v1837
    %1910 = vmatpush.bf16.msra.mxu0 %v1833
    %1911 = vmatpush.bf16.msra.mxu0 %v1829
    %1912 = vmatpush.bf16.msra.mxu0 %v1825
    %1913 = vmatpush.bf16.msra.mxu0 %v1821
    %1914 = vmatpush.bf16.msra.mxu0 %v1817
    %1915 = vmatpush.bf16.msra.mxu0 %v1813
    %1916 = vmatpush.bf16.msra.mxu0 %v1809
    %1917 = vmatmul.bf16.gmra.mxu0 %v1677
    %v1918 = vpop.f32.mrf.mxu0
    %v1919 = vadd.f32 0.0, %v1918
    %v1920 = vpop.f32.mrf.mxu0
    %1921 = vdwg.mxu0
    %v1922 = vadd.f32 %v1672, %v1880
    %v1923 = vadd.f32 %v1673, %v1893
    %v1924 = vadd.f32 %v1674, %v1906
    %v1925 = vadd.f32 %v1675, %v1919
    %v1926 = vld [vmem:[#allocation3] sm:$0xff]
    %v1927 = vxor.u32 %v1922, 2147483648
    %v1928 = vmul.f32 %v1927, 1.442695
    %v1929 = vpow.pop %v1928
    %v1930 = vadd.f32 %v1929, 1.0
    %v1931 = vrcp.pop %v1930
    %v1932 = vmul.f32 %v1930, %v1931
    %v1933 = vsub.f32 1.0, %v1932
    %v1934 = vmul.f32 %v1931, %v1933
    %v1935 = vadd.f32 %v1931, %v1934
    %vm1936 = vweird.f32 %v1930
    %vm1937 = vweird.f32 %v1931
    %vm1938 = vmor %vm1936, %vm1937
    %v1939 = vsel %vm1938, %v1931, %v1935
    %v1940 = vand.u32 2147483647, %v1930
    %vm1941 = vcmp.eq.f32.partialorder %v1940, 8.507059e+37
    %v1942 = vand.u32 %v1930, 2147483648
    %v1943 = vor.u32 1.1754944e-38, %v1942
    %v1944 = vsel %vm1941, %v1943, %v1939
    %v1945 = vmul.f32 1.0, %v1944
    %v1946 = vxor.u32 %v1923, 2147483648
    %v1947 = vmul.f32 %v1946, 1.442695
    %v1948 = vpow.pop %v1947
    %v1949 = vadd.f32 %v1948, 1.0
    %v1950 = vrcp.pop %v1949
    %v1951 = vmul.f32 %v1949, %v1950
    %v1952 = vsub.f32 1.0, %v1951
    %v1953 = vmul.f32 %v1950, %v1952
    %v1954 = vadd.f32 %v1950, %v1953
    %vm1955 = vweird.f32 %v1949
    %vm1956 = vweird.f32 %v1950
    %vm1957 = vmor %vm1955, %vm1956
    %v1958 = vsel %vm1957, %v1950, %v1954
    %v1959 = vand.u32 2147483647, %v1949
    %vm1960 = vcmp.eq.f32.partialorder %v1959, 8.507059e+37
    %v1961 = vand.u32 %v1949, 2147483648
    %v1962 = vor.u32 1.1754944e-38, %v1961
    %v1963 = vsel %vm1960, %v1962, %v1958
    %v1964 = vmul.f32 1.0, %v1963
    %v1965 = vtanh.pop %v1924
    %v1966 = vxor.u32 %v1925, 2147483648
    %v1967 = vmul.f32 %v1966, 1.442695
    %v1968 = vpow.pop %v1967
    %v1969 = vadd.f32 %v1968, 1.0
    %v1970 = vrcp.pop %v1969
    %v1971 = vmul.f32 %v1969, %v1970
    %v1972 = vsub.f32 1.0, %v1971
    %v1973 = vmul.f32 %v1970, %v1972
    %v1974 = vadd.f32 %v1970, %v1973
    %vm1975 = vweird.f32 %v1969
    %vm1976 = vweird.f32 %v1970
    %vm1977 = vmor %vm1975, %vm1976
    %v1978 = vsel %vm1977, %v1970, %v1974
    %v1979 = vand.u32 2147483647, %v1969
    %vm1980 = vcmp.eq.f32.partialorder %v1979, 8.507059e+37
    %v1981 = vand.u32 %v1969, 2147483648
    %v1982 = vor.u32 1.1754944e-38, %v1981
    %v1983 = vsel %vm1980, %v1982, %v1978
    %v1984 = vmul.f32 1.0, %v1983
    %v1985 = vmul.f32 %v1964, %v1926
    %v1986 = vmul.f32 %v1945, %v1965
    %v1987 = vadd.f32 %v1985, %v1986
    %v1988 = vtanh.pop %v1987
    %v1989 = vmul.f32 %v1984, %v1988
    %1990 = vst [vmem:[#allocation2] sm:$0xff] %v1989
    %1991 = vst [vmem:[#allocation3] sm:$0xff] %v1987
    %v1992 = vpack.c.bf16 %v1989, %v1989
    %s1993 = scalar_lea.vmem %s4, 20
    %1994 = vst [vmem:[%s1993] sm:$0xf] %v1992
    %s1995 = scalar_lea.vmem %s0, 96
    %v1996 = vld [vmem:[%s1995] sm:$0xff]
    %v1997 = vld [vmem:[%s1995 + $0x8] sm:$0xff]
    %v1998 = vunpack.c.l.bf16 %v1996
    %v1999 = vunpack.c.h.bf16 %v1996
    %v2000 = vunpack.c.l.bf16 %v1997
    %v2001 = vunpack.c.h.bf16 %v1997
    %v2002 = vld [vmem:[#allocation2] sm:$0xff]
    %v2003 = vpack.c.bf16 %v2002, %v2002
    %v2004 = vld [vmem:[#allocation4] sm:$0xff]
    %v2005 = vld [vmem:[#allocation4 + $0x8] sm:$0xff]
    %v2006 = vld [vmem:[#allocation4 + $0x10] sm:$0xff]
    %v2007 = vld [vmem:[#allocation4 + $0x18] sm:$0xff]
    %v2008 = vld [vmem:[#allocation4 + $0x20] sm:$0xff]
    %v2009 = vld [vmem:[#allocation4 + $0x28] sm:$0xff]
    %v2010 = vld [vmem:[#allocation4 + $0x30] sm:$0xff]
    %v2011 = vld [vmem:[#allocation4 + $0x38] sm:$0xff]
    %v2012 = vld [vmem:[#allocation4 + $0x40] sm:$0xff]
    %v2013 = vld [vmem:[#allocation4 + $0x48] sm:$0xff]
    %v2014 = vld [vmem:[#allocation4 + $0x50] sm:$0xff]
    %v2015 = vld [vmem:[#allocation4 + $0x58] sm:$0xff]
    %v2016 = vld [vmem:[#allocation4 + $0x60] sm:$0xff]
    %v2017 = vld [vmem:[#allocation4 + $0x68] sm:$0xff]
    %v2018 = vld [vmem:[#allocation4 + $0x70] sm:$0xff]
    %v2019 = vld [vmem:[#allocation4 + $0x78] sm:$0xff]
    %v2020 = vld [vmem:[#allocation4 + $0x80] sm:$0xff]
    %v2021 = vld [vmem:[#allocation4 + $0x88] sm:$0xff]
    %v2022 = vld [vmem:[#allocation4 + $0x90] sm:$0xff]
    %v2023 = vld [vmem:[#allocation4 + $0x98] sm:$0xff]
    %v2024 = vld [vmem:[#allocation4 + $0xa0] sm:$0xff]
    %v2025 = vld [vmem:[#allocation4 + $0xa8] sm:$0xff]
    %v2026 = vld [vmem:[#allocation4 + $0xb0] sm:$0xff]
    %v2027 = vld [vmem:[#allocation4 + $0xb8] sm:$0xff]
    %v2028 = vld [vmem:[#allocation4 + $0xc0] sm:$0xff]
    %v2029 = vld [vmem:[#allocation4 + $0xc8] sm:$0xff]
    %v2030 = vld [vmem:[#allocation4 + $0xd0] sm:$0xff]
    %v2031 = vld [vmem:[#allocation4 + $0xd8] sm:$0xff]
    %v2032 = vld [vmem:[#allocation4 + $0xe0] sm:$0xff]
    %v2033 = vld [vmem:[#allocation4 + $0xe8] sm:$0xff]
    %v2034 = vld [vmem:[#allocation4 + $0xf0] sm:$0xff]
    %v2035 = vld [vmem:[#allocation4 + $0xf8] sm:$0xff]
    %v2068 = vunpack.c.l.b16 %v2004
    %v2069 = vunpack.c.h.b16 %v2004
    %v2070 = vunpack.c.l.b16 %v2005
    %v2071 = vunpack.c.h.b16 %v2005
    %v2072 = vunpack.c.l.b16 %v2006
    %v2073 = vunpack.c.h.b16 %v2006
    %v2074 = vunpack.c.l.b16 %v2007
    %v2075 = vunpack.c.h.b16 %v2007
    %v2076 = vunpack.c.l.b16 %v2008
    %v2077 = vunpack.c.h.b16 %v2008
    %v2078 = vunpack.c.l.b16 %v2009
    %v2079 = vunpack.c.h.b16 %v2009
    %v2080 = vunpack.c.l.b16 %v2010
    %v2081 = vunpack.c.h.b16 %v2010
    %v2082 = vunpack.c.l.b16 %v2011
    %v2083 = vunpack.c.h.b16 %v2011
    %v2084 = vunpack.c.l.b16 %v2012
    %v2085 = vunpack.c.h.b16 %v2012
    %v2086 = vunpack.c.l.b16 %v2013
    %v2087 = vunpack.c.h.b16 %v2013
    %v2088 = vunpack.c.l.b16 %v2014
    %v2089 = vunpack.c.h.b16 %v2014
    %v2090 = vunpack.c.l.b16 %v2015
    %v2091 = vunpack.c.h.b16 %v2015
    %v2092 = vunpack.c.l.b16 %v2016
    %v2093 = vunpack.c.h.b16 %v2016
    %v2094 = vunpack.c.l.b16 %v2017
    %v2095 = vunpack.c.h.b16 %v2017
    %v2096 = vunpack.c.l.b16 %v2018
    %v2097 = vunpack.c.h.b16 %v2018
    %v2098 = vunpack.c.l.b16 %v2019
    %v2099 = vunpack.c.h.b16 %v2019
    %v2100 = vunpack.c.l.b16 %v2020
    %v2101 = vunpack.c.h.b16 %v2020
    %v2102 = vunpack.c.l.b16 %v2021
    %v2103 = vunpack.c.h.b16 %v2021
    %v2104 = vunpack.c.l.b16 %v2022
    %v2105 = vunpack.c.h.b16 %v2022
    %v2106 = vunpack.c.l.b16 %v2023
    %v2107 = vunpack.c.h.b16 %v2023
    %v2108 = vunpack.c.l.b16 %v2024
    %v2109 = vunpack.c.h.b16 %v2024
    %v2110 = vunpack.c.l.b16 %v2025
    %v2111 = vunpack.c.h.b16 %v2025
    %v2112 = vunpack.c.l.b16 %v2026
    %v2113 = vunpack.c.h.b16 %v2026
    %v2114 = vunpack.c.l.b16 %v2027
    %v2115 = vunpack.c.h.b16 %v2027
    %v2116 = vunpack.c.l.b16 %v2028
    %v2117 = vunpack.c.h.b16 %v2028
    %v2118 = vunpack.c.l.b16 %v2029
    %v2119 = vunpack.c.h.b16 %v2029
    %v2120 = vunpack.c.l.b16 %v2030
    %v2121 = vunpack.c.h.b16 %v2030
    %v2122 = vunpack.c.l.b16 %v2031
    %v2123 = vunpack.c.h.b16 %v2031
    %v2124 = vunpack.c.l.b16 %v2032
    %v2125 = vunpack.c.h.b16 %v2032
    %v2126 = vunpack.c.l.b16 %v2033
    %v2127 = vunpack.c.h.b16 %v2033
    %v2128 = vunpack.c.l.b16 %v2034
    %v2129 = vunpack.c.h.b16 %v2034
    %v2130 = vunpack.c.l.b16 %v2035
    %v2131 = vunpack.c.h.b16 %v2035
    %v2132 = vpack.c.b16 %v2072, %v2068
    %v2133 = vpack.c.b16 %v2073, %v2069
    %v2134 = vpack.c.b16 %v2074, %v2070
    %v2135 = vpack.c.b16 %v2075, %v2071
    %v2136 = vpack.c.b16 %v2080, %v2076
    %v2137 = vpack.c.b16 %v2081, %v2077
    %v2138 = vpack.c.b16 %v2082, %v2078
    %v2139 = vpack.c.b16 %v2083, %v2079
    %v2140 = vpack.c.b16 %v2088, %v2084
    %v2141 = vpack.c.b16 %v2089, %v2085
    %v2142 = vpack.c.b16 %v2090, %v2086
    %v2143 = vpack.c.b16 %v2091, %v2087
    %v2144 = vpack.c.b16 %v2096, %v2092
    %v2145 = vpack.c.b16 %v2097, %v2093
    %v2146 = vpack.c.b16 %v2098, %v2094
    %v2147 = vpack.c.b16 %v2099, %v2095
    %v2148 = vpack.c.b16 %v2104, %v2100
    %v2149 = vpack.c.b16 %v2105, %v2101
    %v2150 = vpack.c.b16 %v2106, %v2102
    %v2151 = vpack.c.b16 %v2107, %v2103
    %v2152 = vpack.c.b16 %v2112, %v2108
    %v2153 = vpack.c.b16 %v2113, %v2109
    %v2154 = vpack.c.b16 %v2114, %v2110
    %v2155 = vpack.c.b16 %v2115, %v2111
    %v2156 = vpack.c.b16 %v2120, %v2116
    %v2157 = vpack.c.b16 %v2121, %v2117
    %v2158 = vpack.c.b16 %v2122, %v2118
    %v2159 = vpack.c.b16 %v2123, %v2119
    %v2160 = vpack.c.b16 %v2128, %v2124
    %v2161 = vpack.c.b16 %v2129, %v2125
    %v2162 = vpack.c.b16 %v2130, %v2126
    %v2163 = vpack.c.b16 %v2131, %v2127
    %2196 = vmatpush.bf16.msra.mxu0 %v2160
    %2197 = vmatpush.bf16.msra.mxu0 %v2156
    %2198 = vmatpush.bf16.msra.mxu0 %v2152
    %2199 = vmatpush.bf16.msra.mxu0 %v2148
    %2200 = vmatpush.bf16.msra.mxu0 %v2144
    %2201 = vmatpush.bf16.msra.mxu0 %v2140
    %2202 = vmatpush.bf16.msra.mxu0 %v2136
    %2203 = vmatpush.bf16.msra.mxu0 %v2132
    %2204 = vmatmul.bf16.gmra.mxu0 %v2003
    %v2205 = vpop.f32.mrf.mxu0
    %v2206 = vadd.f32 0.0, %v2205
    %v2207 = vpop.f32.mrf.mxu0
    %2208 = vdwg.mxu0
    %2209 = vmatpush.bf16.msra.mxu0 %v2161
    %2210 = vmatpush.bf16.msra.mxu0 %v2157
    %2211 = vmatpush.bf16.msra.mxu0 %v2153
    %2212 = vmatpush.bf16.msra.mxu0 %v2149
    %2213 = vmatpush.bf16.msra.mxu0 %v2145
    %2214 = vmatpush.bf16.msra.mxu0 %v2141
    %2215 = vmatpush.bf16.msra.mxu0 %v2137
    %2216 = vmatpush.bf16.msra.mxu0 %v2133
    %2217 = vmatmul.bf16.gmra.mxu0 %v2003
    %v2218 = vpop.f32.mrf.mxu0
    %v2219 = vadd.f32 0.0, %v2218
    %v2220 = vpop.f32.mrf.mxu0
    %2221 = vdwg.mxu0
    %2222 = vmatpush.bf16.msra.mxu0 %v2162
    %2223 = vmatpush.bf16.msra.mxu0 %v2158
    %2224 = vmatpush.bf16.msra.mxu0 %v2154
    %2225 = vmatpush.bf16.msra.mxu0 %v2150
    %2226 = vmatpush.bf16.msra.mxu0 %v2146
    %2227 = vmatpush.bf16.msra.mxu0 %v2142
    %2228 = vmatpush.bf16.msra.mxu0 %v2138
    %2229 = vmatpush.bf16.msra.mxu0 %v2134
    %2230 = vmatmul.bf16.gmra.mxu0 %v2003
    %v2231 = vpop.f32.mrf.mxu0
    %v2232 = vadd.f32 0.0, %v2231
    %v2233 = vpop.f32.mrf.mxu0
    %2234 = vdwg.mxu0
    %2235 = vmatpush.bf16.msra.mxu0 %v2163
    %2236 = vmatpush.bf16.msra.mxu0 %v2159
    %2237 = vmatpush.bf16.msra.mxu0 %v2155
    %2238 = vmatpush.bf16.msra.mxu0 %v2151
    %2239 = vmatpush.bf16.msra.mxu0 %v2147
    %2240 = vmatpush.bf16.msra.mxu0 %v2143
    %2241 = vmatpush.bf16.msra.mxu0 %v2139
    %2242 = vmatpush.bf16.msra.mxu0 %v2135
    %2243 = vmatmul.bf16.gmra.mxu0 %v2003
    %v2244 = vpop.f32.mrf.mxu0
    %v2245 = vadd.f32 0.0, %v2244
    %v2246 = vpop.f32.mrf.mxu0
    %2247 = vdwg.mxu0
    %v2248 = vadd.f32 %v1998, %v2206
    %v2249 = vadd.f32 %v1999, %v2219
    %v2250 = vadd.f32 %v2000, %v2232
    %v2251 = vadd.f32 %v2001, %v2245
    %v2252 = vld [vmem:[#allocation3] sm:$0xff]
    %v2253 = vxor.u32 %v2248, 2147483648
    %v2254 = vmul.f32 %v2253, 1.442695
    %v2255 = vpow.pop %v2254
    %v2256 = vadd.f32 %v2255, 1.0
    %v2257 = vrcp.pop %v2256
    %v2258 = vmul.f32 %v2256, %v2257
    %v2259 = vsub.f32 1.0, %v2258
    %v2260 = vmul.f32 %v2257, %v2259
    %v2261 = vadd.f32 %v2257, %v2260
    %vm2262 = vweird.f32 %v2256
    %vm2263 = vweird.f32 %v2257
    %vm2264 = vmor %vm2262, %vm2263
    %v2265 = vsel %vm2264, %v2257, %v2261
    %v2266 = vand.u32 2147483647, %v2256
    %vm2267 = vcmp.eq.f32.partialorder %v2266, 8.507059e+37
    %v2268 = vand.u32 %v2256, 2147483648
    %v2269 = vor.u32 1.1754944e-38, %v2268
    %v2270 = vsel %vm2267, %v2269, %v2265
    %v2271 = vmul.f32 1.0, %v2270
    %v2272 = vxor.u32 %v2249, 2147483648
    %v2273 = vmul.f32 %v2272, 1.442695
    %v2274 = vpow.pop %v2273
    %v2275 = vadd.f32 %v2274, 1.0
    %v2276 = vrcp.pop %v2275
    %v2277 = vmul.f32 %v2275, %v2276
    %v2278 = vsub.f32 1.0, %v2277
    %v2279 = vmul.f32 %v2276, %v2278
    %v2280 = vadd.f32 %v2276, %v2279
    %vm2281 = vweird.f32 %v2275
    %vm2282 = vweird.f32 %v2276
    %vm2283 = vmor %vm2281, %vm2282
    %v2284 = vsel %vm2283, %v2276, %v2280
    %v2285 = vand.u32 2147483647, %v2275
    %vm2286 = vcmp.eq.f32.partialorder %v2285, 8.507059e+37
    %v2287 = vand.u32 %v2275, 2147483648
    %v2288 = vor.u32 1.1754944e-38, %v2287
    %v2289 = vsel %vm2286, %v2288, %v2284
    %v2290 = vmul.f32 1.0, %v2289
    %v2291 = vtanh.pop %v2250
    %v2292 = vxor.u32 %v2251, 2147483648
    %v2293 = vmul.f32 %v2292, 1.442695
    %v2294 = vpow.pop %v2293
    %v2295 = vadd.f32 %v2294, 1.0
    %v2296 = vrcp.pop %v2295
    %v2297 = vmul.f32 %v2295, %v2296
    %v2298 = vsub.f32 1.0, %v2297
    %v2299 = vmul.f32 %v2296, %v2298
    %v2300 = vadd.f32 %v2296, %v2299
    %vm2301 = vweird.f32 %v2295
    %vm2302 = vweird.f32 %v2296
    %vm2303 = vmor %vm2301, %vm2302
    %v2304 = vsel %vm2303, %v2296, %v2300
    %v2305 = vand.u32 2147483647, %v2295
    %vm2306 = vcmp.eq.f32.partialorder %v2305, 8.507059e+37
    %v2307 = vand.u32 %v2295, 2147483648
    %v2308 = vor.u32 1.1754944e-38, %v2307
    %v2309 = vsel %vm2306, %v2308, %v2304
    %v2310 = vmul.f32 1.0, %v2309
    %v2311 = vmul.f32 %v2290, %v2252
    %v2312 = vmul.f32 %v2271, %v2291
    %v2313 = vadd.f32 %v2311, %v2312
    %v2314 = vtanh.pop %v2313
    %v2315 = vmul.f32 %v2310, %v2314
    %2316 = vst [vmem:[#allocation2] sm:$0xff] %v2315
    %2317 = vst [vmem:[#allocation3] sm:$0xff] %v2313
    %v2318 = vpack.c.bf16 %v2315, %v2315
    %s2319 = scalar_lea.vmem %s4, 24
    %2320 = vst [vmem:[%s2319] sm:$0xf] %v2318
    %s2321 = scalar_lea.vmem %s0, 112
    %v2322 = vld [vmem:[%s2321] sm:$0xff]
    %v2323 = vld [vmem:[%s2321 + $0x8] sm:$0xff]
    %v2324 = vunpack.c.l.bf16 %v2322
    %v2325 = vunpack.c.h.bf16 %v2322
    %v2326 = vunpack.c.l.bf16 %v2323
    %v2327 = vunpack.c.h.bf16 %v2323
    %v2328 = vld [vmem:[#allocation2] sm:$0xff]
    %v2329 = vpack.c.bf16 %v2328, %v2328
    %v2330 = vld [vmem:[#allocation4] sm:$0xff]
    %v2331 = vld [vmem:[#allocation4 + $0x8] sm:$0xff]
    %v2332 = vld [vmem:[#allocation4 + $0x10] sm:$0xff]
    %v2333 = vld [vmem:[#allocation4 + $0x18] sm:$0xff]
    %v2334 = vld [vmem:[#allocation4 + $0x20] sm:$0xff]
    %v2335 = vld [vmem:[#allocation4 + $0x28] sm:$0xff]
    %v2336 = vld [vmem:[#allocation4 + $0x30] sm:$0xff]
    %v2337 = vld [vmem:[#allocation4 + $0x38] sm:$0xff]
    %v2338 = vld [vmem:[#allocation4 + $0x40] sm:$0xff]
    %v2339 = vld [vmem:[#allocation4 + $0x48] sm:$0xff]
    %v2340 = vld [vmem:[#allocation4 + $0x50] sm:$0xff]
    %v2341 = vld [vmem:[#allocation4 + $0x58] sm:$0xff]
    %v2342 = vld [vmem:[#allocation4 + $0x60] sm:$0xff]
    %v2343 = vld [vmem:[#allocation4 + $0x68] sm:$0xff]
    %v2344 = vld [vmem:[#allocation4 + $0x70] sm:$0xff]
    %v2345 = vld [vmem:[#allocation4 + $0x78] sm:$0xff]
    %v2346 = vld [vmem:[#allocation4 + $0x80] sm:$0xff]
    %v2347 = vld [vmem:[#allocation4 + $0x88] sm:$0xff]
    %v2348 = vld [vmem:[#allocation4 + $0x90] sm:$0xff]
    %v2349 = vld [vmem:[#allocation4 + $0x98] sm:$0xff]
    %v2350 = vld [vmem:[#allocation4 + $0xa0] sm:$0xff]
    %v2351 = vld [vmem:[#allocation4 + $0xa8] sm:$0xff]
    %v2352 = vld [vmem:[#allocation4 + $0xb0] sm:$0xff]
    %v2353 = vld [vmem:[#allocation4 + $0xb8] sm:$0xff]
    %v2354 = vld [vmem:[#allocation4 + $0xc0] sm:$0xff]
    %v2355 = vld [vmem:[#allocation4 + $0xc8] sm:$0xff]
    %v2356 = vld [vmem:[#allocation4 + $0xd0] sm:$0xff]
    %v2357 = vld [vmem:[#allocation4 + $0xd8] sm:$0xff]
    %v2358 = vld [vmem:[#allocation4 + $0xe0] sm:$0xff]
    %v2359 = vld [vmem:[#allocation4 + $0xe8] sm:$0xff]
    %v2360 = vld [vmem:[#allocation4 + $0xf0] sm:$0xff]
    %v2361 = vld [vmem:[#allocation4 + $0xf8] sm:$0xff]
    %v2394 = vunpack.c.l.b16 %v2330
    %v2395 = vunpack.c.h.b16 %v2330
    %v2396 = vunpack.c.l.b16 %v2331
    %v2397 = vunpack.c.h.b16 %v2331
    %v2398 = vunpack.c.l.b16 %v2332
    %v2399 = vunpack.c.h.b16 %v2332
    %v2400 = vunpack.c.l.b16 %v2333
    %v2401 = vunpack.c.h.b16 %v2333
    %v2402 = vunpack.c.l.b16 %v2334
    %v2403 = vunpack.c.h.b16 %v2334
    %v2404 = vunpack.c.l.b16 %v2335
    %v2405 = vunpack.c.h.b16 %v2335
    %v2406 = vunpack.c.l.b16 %v2336
    %v2407 = vunpack.c.h.b16 %v2336
    %v2408 = vunpack.c.l.b16 %v2337
    %v2409 = vunpack.c.h.b16 %v2337
    %v2410 = vunpack.c.l.b16 %v2338
    %v2411 = vunpack.c.h.b16 %v2338
    %v2412 = vunpack.c.l.b16 %v2339
    %v2413 = vunpack.c.h.b16 %v2339
    %v2414 = vunpack.c.l.b16 %v2340
    %v2415 = vunpack.c.h.b16 %v2340
    %v2416 = vunpack.c.l.b16 %v2341
    %v2417 = vunpack.c.h.b16 %v2341
    %v2418 = vunpack.c.l.b16 %v2342
    %v2419 = vunpack.c.h.b16 %v2342
    %v2420 = vunpack.c.l.b16 %v2343
    %v2421 = vunpack.c.h.b16 %v2343
    %v2422 = vunpack.c.l.b16 %v2344
    %v2423 = vunpack.c.h.b16 %v2344
    %v2424 = vunpack.c.l.b16 %v2345
    %v2425 = vunpack.c.h.b16 %v2345
    %v2426 = vunpack.c.l.b16 %v2346
    %v2427 = vunpack.c.h.b16 %v2346
    %v2428 = vunpack.c.l.b16 %v2347
    %v2429 = vunpack.c.h.b16 %v2347
    %v2430 = vunpack.c.l.b16 %v2348
    %v2431 = vunpack.c.h.b16 %v2348
    %v2432 = vunpack.c.l.b16 %v2349
    %v2433 = vunpack.c.h.b16 %v2349
    %v2434 = vunpack.c.l.b16 %v2350
    %v2435 = vunpack.c.h.b16 %v2350
    %v2436 = vunpack.c.l.b16 %v2351
    %v2437 = vunpack.c.h.b16 %v2351
    %v2438 = vunpack.c.l.b16 %v2352
    %v2439 = vunpack.c.h.b16 %v2352
    %v2440 = vunpack.c.l.b16 %v2353
    %v2441 = vunpack.c.h.b16 %v2353
    %v2442 = vunpack.c.l.b16 %v2354
    %v2443 = vunpack.c.h.b16 %v2354
    %v2444 = vunpack.c.l.b16 %v2355
    %v2445 = vunpack.c.h.b16 %v2355
    %v2446 = vunpack.c.l.b16 %v2356
    %v2447 = vunpack.c.h.b16 %v2356
    %v2448 = vunpack.c.l.b16 %v2357
    %v2449 = vunpack.c.h.b16 %v2357
    %v2450 = vunpack.c.l.b16 %v2358
    %v2451 = vunpack.c.h.b16 %v2358
    %v2452 = vunpack.c.l.b16 %v2359
    %v2453 = vunpack.c.h.b16 %v2359
    %v2454 = vunpack.c.l.b16 %v2360
    %v2455 = vunpack.c.h.b16 %v2360
    %v2456 = vunpack.c.l.b16 %v2361
    %v2457 = vunpack.c.h.b16 %v2361
    %v2458 = vpack.c.b16 %v2398, %v2394
    %v2459 = vpack.c.b16 %v2399, %v2395
    %v2460 = vpack.c.b16 %v2400, %v2396
    %v2461 = vpack.c.b16 %v2401, %v2397
    %v2462 = vpack.c.b16 %v2406, %v2402
    %v2463 = vpack.c.b16 %v2407, %v2403
    %v2464 = vpack.c.b16 %v2408, %v2404
    %v2465 = vpack.c.b16 %v2409, %v2405
    %v2466 = vpack.c.b16 %v2414, %v2410
    %v2467 = vpack.c.b16 %v2415, %v2411
    %v2468 = vpack.c.b16 %v2416, %v2412
    %v2469 = vpack.c.b16 %v2417, %v2413
    %v2470 = vpack.c.b16 %v2422, %v2418
    %v2471 = vpack.c.b16 %v2423, %v2419
    %v2472 = vpack.c.b16 %v2424, %v2420
    %v2473 = vpack.c.b16 %v2425, %v2421
    %v2474 = vpack.c.b16 %v2430, %v2426
    %v2475 = vpack.c.b16 %v2431, %v2427
    %v2476 = vpack.c.b16 %v2432, %v2428
    %v2477 = vpack.c.b16 %v2433, %v2429
    %v2478 = vpack.c.b16 %v2438, %v2434
    %v2479 = vpack.c.b16 %v2439, %v2435
    %v2480 = vpack.c.b16 %v2440, %v2436
    %v2481 = vpack.c.b16 %v2441, %v2437
    %v2482 = vpack.c.b16 %v2446, %v2442
    %v2483 = vpack.c.b16 %v2447, %v2443
    %v2484 = vpack.c.b16 %v2448, %v2444
    %v2485 = vpack.c.b16 %v2449, %v2445
    %v2486 = vpack.c.b16 %v2454, %v2450
    %v2487 = vpack.c.b16 %v2455, %v2451
    %v2488 = vpack.c.b16 %v2456, %v2452
    %v2489 = vpack.c.b16 %v2457, %v2453
    %2522 = vmatpush.bf16.msra.mxu0 %v2486
    %2523 = vmatpush.bf16.msra.mxu0 %v2482
    %2524 = vmatpush.bf16.msra.mxu0 %v2478
    %2525 = vmatpush.bf16.msra.mxu0 %v2474
    %2526 = vmatpush.bf16.msra.mxu0 %v2470
    %2527 = vmatpush.bf16.msra.mxu0 %v2466
    %2528 = vmatpush.bf16.msra.mxu0 %v2462
    %2529 = vmatpush.bf16.msra.mxu0 %v2458
    %2530 = vmatmul.bf16.gmra.mxu0 %v2329
    %v2531 = vpop.f32.mrf.mxu0
    %v2532 = vadd.f32 0.0, %v2531
    %v2533 = vpop.f32.mrf.mxu0
    %2534 = vdwg.mxu0
    %2535 = vmatpush.bf16.msra.mxu0 %v2487
    %2536 = vmatpush.bf16.msra.mxu0 %v2483
    %2537 = vmatpush.bf16.msra.mxu0 %v2479
    %2538 = vmatpush.bf16.msra.mxu0 %v2475
    %2539 = vmatpush.bf16.msra.mxu0 %v2471
    %2540 = vmatpush.bf16.msra.mxu0 %v2467
    %2541 = vmatpush.bf16.msra.mxu0 %v2463
    %2542 = vmatpush.bf16.msra.mxu0 %v2459
    %2543 = vmatmul.bf16.gmra.mxu0 %v2329
    %v2544 = vpop.f32.mrf.mxu0
    %v2545 = vadd.f32 0.0, %v2544
    %v2546 = vpop.f32.mrf.mxu0
    %2547 = vdwg.mxu0
    %2548 = vmatpush.bf16.msra.mxu0 %v2488
    %2549 = vmatpush.bf16.msra.mxu0 %v2484
    %2550 = vmatpush.bf16.msra.mxu0 %v2480
    %2551 = vmatpush.bf16.msra.mxu0 %v2476
    %2552 = vmatpush.bf16.msra.mxu0 %v2472
    %2553 = vmatpush.bf16.msra.mxu0 %v2468
    %2554 = vmatpush.bf16.msra.mxu0 %v2464
    %2555 = vmatpush.bf16.msra.mxu0 %v2460
    %2556 = vmatmul.bf16.gmra.mxu0 %v2329
    %v2557 = vpop.f32.mrf.mxu0
    %v2558 = vadd.f32 0.0, %v2557
    %v2559 = vpop.f32.mrf.mxu0
    %2560 = vdwg.mxu0
    %2561 = vmatpush.bf16.msra.mxu0 %v2489
    %2562 = vmatpush.bf16.msra.mxu0 %v2485
    %2563 = vmatpush.bf16.msra.mxu0 %v2481
    %2564 = vmatpush.bf16.msra.mxu0 %v2477
    %2565 = vmatpush.bf16.msra.mxu0 %v2473
    %2566 = vmatpush.bf16.msra.mxu0 %v2469
    %2567 = vmatpush.bf16.msra.mxu0 %v2465
    %2568 = vmatpush.bf16.msra.mxu0 %v2461
    %2569 = vmatmul.bf16.gmra.mxu0 %v2329
    %v2570 = vpop.f32.mrf.mxu0
    %v2571 = vadd.f32 0.0, %v2570
    %v2572 = vpop.f32.mrf.mxu0
    %2573 = vdwg.mxu0
    %v2574 = vadd.f32 %v2324, %v2532
    %v2575 = vadd.f32 %v2325, %v2545
    %v2576 = vadd.f32 %v2326, %v2558
    %v2577 = vadd.f32 %v2327, %v2571
    %v2578 = vld [vmem:[#allocation3] sm:$0xff]
    %v2579 = vxor.u32 %v2574, 2147483648
    %v2580 = vmul.f32 %v2579, 1.442695
    %v2581 = vpow.pop %v2580
    %v2582 = vadd.f32 %v2581, 1.0
    %v2583 = vrcp.pop %v2582
    %v2584 = vmul.f32 %v2582, %v2583
    %v2585 = vsub.f32 1.0, %v2584
    %v2586 = vmul.f32 %v2583, %v2585
    %v2587 = vadd.f32 %v2583, %v2586
    %vm2588 = vweird.f32 %v2582
    %vm2589 = vweird.f32 %v2583
    %vm2590 = vmor %vm2588, %vm2589
    %v2591 = vsel %vm2590, %v2583, %v2587
    %v2592 = vand.u32 2147483647, %v2582
    %vm2593 = vcmp.eq.f32.partialorder %v2592, 8.507059e+37
    %v2594 = vand.u32 %v2582, 2147483648
    %v2595 = vor.u32 1.1754944e-38, %v2594
    %v2596 = vsel %vm2593, %v2595, %v2591
    %v2597 = vmul.f32 1.0, %v2596
    %v2598 = vxor.u32 %v2575, 2147483648
    %v2599 = vmul.f32 %v2598, 1.442695
    %v2600 = vpow.pop %v2599
    %v2601 = vadd.f32 %v2600, 1.0
    %v2602 = vrcp.pop %v2601
    %v2603 = vmul.f32 %v2601, %v2602
    %v2604 = vsub.f32 1.0, %v2603
    %v2605 = vmul.f32 %v2602, %v2604
    %v2606 = vadd.f32 %v2602, %v2605
    %vm2607 = vweird.f32 %v2601
    %vm2608 = vweird.f32 %v2602
    %vm2609 = vmor %vm2607, %vm2608
    %v2610 = vsel %vm2609, %v2602, %v2606
    %v2611 = vand.u32 2147483647, %v2601
    %vm2612 = vcmp.eq.f32.partialorder %v2611, 8.507059e+37
    %v2613 = vand.u32 %v2601, 2147483648
    %v2614 = vor.u32 1.1754944e-38, %v2613
    %v2615 = vsel %vm2612, %v2614, %v2610
    %v2616 = vmul.f32 1.0, %v2615
    %v2617 = vtanh.pop %v2576
    %v2618 = vxor.u32 %v2577, 2147483648
    %v2619 = vmul.f32 %v2618, 1.442695
    %v2620 = vpow.pop %v2619
    %v2621 = vadd.f32 %v2620, 1.0
    %v2622 = vrcp.pop %v2621
    %v2623 = vmul.f32 %v2621, %v2622
    %v2624 = vsub.f32 1.0, %v2623
    %v2625 = vmul.f32 %v2622, %v2624
    %v2626 = vadd.f32 %v2622, %v2625
    %vm2627 = vweird.f32 %v2621
    %vm2628 = vweird.f32 %v2622
    %vm2629 = vmor %vm2627, %vm2628
    %v2630 = vsel %vm2629, %v2622, %v2626
    %v2631 = vand.u32 2147483647, %v2621
    %vm2632 = vcmp.eq.f32.partialorder %v2631, 8.507059e+37
    %v2633 = vand.u32 %v2621, 2147483648
    %v2634 = vor.u32 1.1754944e-38, %v2633
    %v2635 = vsel %vm2632, %v2634, %v2630
    %v2636 = vmul.f32 1.0, %v2635
    %v2637 = vmul.f32 %v2616, %v2578
    %v2638 = vmul.f32 %v2597, %v2617
    %v2639 = vadd.f32 %v2637, %v2638
    %v2640 = vtanh.pop %v2639
    %v2641 = vmul.f32 %v2636, %v2640
    %2642 = vst [vmem:[#allocation2] sm:$0xff] %v2641
    %2643 = vst [vmem:[#allocation3] sm:$0xff] %v2639
    %v2644 = vpack.c.bf16 %v2641, %v2641
    %s2645 = scalar_lea.vmem %s4, 28
    %2646 = vst [vmem:[%s2645] sm:$0xf] %v2644
    // Predicated region
    $region26: #{encode_to_decode_forward.8} parent=1 // pred_check
      _
    $region27: #{encode_to_decode_forward.8} parent=1 // pred_check_branch
      %2648 = sbr.rel (0) target = $region29
    $region28: #{encode_to_decode_forward.8} parent=1 // pred_region
      _
    $region29: #{encode_to_decode_forward.8} parent=1 // pred_fallthru
      _
    // Predicated region
    $region30: #{encode_to_decode_forward.8} parent=1 // pred_check
      _
    $region31: #{encode_to_decode_forward.8} parent=1 // pred_check_branch
      %2650 = sbr.rel (0) target = $region33
    $region32: #{encode_to_decode_forward.8} parent=1 // pred_region
      _
    $region33: #{encode_to_decode_forward.8} parent=1 // pred_fallthru
      _
    %2651 = vsyncpa [#allocation5], 1

// kernel: encode_to_decode_forward.6
$region0: #{encode_to_decode_forward.6}
  #allocation0 [shape = 'u32[]', space=smem, size = 0x4, offset = 0x4, fixed_abs, tag = 'smem constant byte address 0x4 - core index']
  #allocation1 [shape = 'u32[72,128]{1,0:T(1,128)}', space=vmem, size = 0x9000, scoped, tag = 'internal scratch']
  #allocation2 [shape = 'f32[8,128]{1,0:T(8,128)}', space=vmem, size = 0x1000, scoped, tag = 'scratch operand']
  #allocation3 [shape = 'f32[8,128]{1,0:T(8,128)}', space=vmem, size = 0x1000, scoped, tag = 'scratch operand']
  %s0 = inlined_call_operand.vmem [shape: bf16[8,8,512], index: 0, kind: input, shape index: {}]
  %s1 = inlined_call_operand.hbm [shape: bf16[128,512], index: 1, kind: input, shape index: {}]
  %s2 = inlined_call_operand.vmem [shape: f32[8,128], index: 2, kind: output, shape index: {0}]
  %s3 = inlined_call_operand.vmem [shape: f32[8,128], index: 3, kind: output, shape index: {1}]
  %4 = xla_tuple %s2, %s3
  %s5 = sld [smem:[#allocation0]]
  $region38: #{encode_to_decode_forward.6} parent=0
    _
  %s7 = ssub.s32 1, %s5
  %s8 = scalar_select 0, %s7, %s5
  $region1: #{encode_to_decode_forward.6} parent=0
    #allocation4 [shape = 'u8[131072]{0}', space=vmem, size = 0x20000, scoped, tag = 'input window, operand 1, single buffered']
    #allocation5 [shape = 's32[1]{0}', space=sflag, size = 0x4, scoped, tag = 'scoped memory for encode_to_decode_forward.6']
    %9 = vsyncpa [#allocation5], 0
    // Predicated region
    $region2: #{encode_to_decode_forward.6} parent=1 // pred_check
      _
    $region3: #{encode_to_decode_forward.6} parent=1 // pred_check_branch
      %11 = sbr.rel (0) target = $region5
    $region4: #{encode_to_decode_forward.6} parent=1 // pred_region
      _
    $region5: #{encode_to_decode_forward.6} parent=1 // pred_fallthru
      _
    // Predicated region
    $region6: #{encode_to_decode_forward.6} parent=1 // pred_check
      _
    $region7: #{encode_to_decode_forward.6} parent=1 // pred_check_branch
      %13 = sbr.rel (0) target = $region9
    $region8: #{encode_to_decode_forward.6} parent=1 // pred_region
      %15 = vsyncadd [#allocation5], 0
      %s16 = sshll.u32 %s1, 4
      %s17 = int_to_ptr.hbm [resolvable:$true] %s16
      %s18 = sshll.u32 [#allocation4], 4
      %s19 = int_to_ptr.vmem [resolvable:$true] %s18
      %24 = dma.hbm_to_vmem [thread:$0]  %s17, 4096, %s19, [#allocation5], 256, 256, 16
    $region9: #{encode_to_decode_forward.6} parent=1 // pred_fallthru
      _
    // Predicated region
    $region10: #{encode_to_decode_forward.6} parent=1 // pred_check
      _
    $region11: #{encode_to_decode_forward.6} parent=1 // pred_check_branch
      %26 = sbr.rel (0) target = $region13
    $region12: #{encode_to_decode_forward.6} parent=1 // pred_region
      %28 = dma.done [#allocation5], 4096
    $region13: #{encode_to_decode_forward.6} parent=1 // pred_fallthru
      _
    %p29 = scmp.eq.s32.totalorder 0, 0
    // Predicated region
    $region14: #{encode_to_decode_forward.6} parent=1 // pred_check
      %p30 = pneg %p29
    $region15: #{encode_to_decode_forward.6} parent=1 // pred_check_branch
      %32 = sbr.rel (%p30) target = $region17
    $region16: #{encode_to_decode_forward.6} parent=1 // pred_region
      %33 = vst [vmem:[#allocation2] sm:$0xff] 0.0
      %34 = vst [vmem:[#allocation3] sm:$0xff] 0.0
    $region17: #{encode_to_decode_forward.6} parent=1 // pred_fallthru
      _
    %v35 = vld [vmem:[#allocation2] sm:$0xff]
    %v36 = vld [vmem:[#allocation3] sm:$0xff]
    %v37 = vld [vmem:[%s0] sm:$0xff]
    %v38 = vld [vmem:[%s0 + $0x8] sm:$0xff]
    %v39 = vunpack.c.l.bf16 %v37
    %v40 = vunpack.c.h.bf16 %v37
    %v41 = vunpack.c.l.bf16 %v38
    %v42 = vunpack.c.h.bf16 %v38
    %v43 = vpack.c.bf16 %v35, %v35
    %v44 = vld [vmem:[#allocation4] sm:$0xff]
    %v45 = vld [vmem:[#allocation4 + $0x8] sm:$0xff]
    %v46 = vld [vmem:[#allocation4 + $0x10] sm:$0xff]
    %v47 = vld [vmem:[#allocation4 + $0x18] sm:$0xff]
    %v48 = vld [vmem:[#allocation4 + $0x20] sm:$0xff]
    %v49 = vld [vmem:[#allocation4 + $0x28] sm:$0xff]
    %v50 = vld [vmem:[#allocation4 + $0x30] sm:$0xff]
    %v51 = vld [vmem:[#allocation4 + $0x38] sm:$0xff]
    %v52 = vld [vmem:[#allocation4 + $0x40] sm:$0xff]
    %v53 = vld [vmem:[#allocation4 + $0x48] sm:$0xff]
    %v54 = vld [vmem:[#allocation4 + $0x50] sm:$0xff]
    %v55 = vld [vmem:[#allocation4 + $0x58] sm:$0xff]
    %v56 = vld [vmem:[#allocation4 + $0x60] sm:$0xff]
    %v57 = vld [vmem:[#allocation4 + $0x68] sm:$0xff]
    %v58 = vld [vmem:[#allocation4 + $0x70] sm:$0xff]
    %v59 = vld [vmem:[#allocation4 + $0x78] sm:$0xff]
    %v60 = vld [vmem:[#allocation4 + $0x80] sm:$0xff]
    %v61 = vld [vmem:[#allocation4 + $0x88] sm:$0xff]
    %v62 = vld [vmem:[#allocation4 + $0x90] sm:$0xff]
    %v63 = vld [vmem:[#allocation4 + $0x98] sm:$0xff]
    %v64 = vld [vmem:[#allocation4 + $0xa0] sm:$0xff]
    %v65 = vld [vmem:[#allocation4 + $0xa8] sm:$0xff]
    %v66 = vld [vmem:[#allocation4 + $0xb0] sm:$0xff]
    %v67 = vld [vmem:[#allocation4 + $0xb8] sm:$0xff]
    %v68 = vld [vmem:[#allocation4 + $0xc0] sm:$0xff]
    %v69 = vld [vmem:[#allocation4 + $0xc8] sm:$0xff]
    %v70 = vld [vmem:[#allocation4 + $0xd0] sm:$0xff]
    %v71 = vld [vmem:[#allocation4 + $0xd8] sm:$0xff]
    %v72 = vld [vmem:[#allocation4 + $0xe0] sm:$0xff]
    %v73 = vld [vmem:[#allocation4 + $0xe8] sm:$0xff]
    %v74 = vld [vmem:[#allocation4 + $0xf0] sm:$0xff]
    %v75 = vld [vmem:[#allocation4 + $0xf8] sm:$0xff]
    %v108 = vunpack.c.l.b16 %v44
    %v109 = vunpack.c.h.b16 %v44
    %v110 = vunpack.c.l.b16 %v45
    %v111 = vunpack.c.h.b16 %v45
    %v112 = vunpack.c.l.b16 %v46
    %v113 = vunpack.c.h.b16 %v46
    %v114 = vunpack.c.l.b16 %v47
    %v115 = vunpack.c.h.b16 %v47
    %v116 = vunpack.c.l.b16 %v48
    %v117 = vunpack.c.h.b16 %v48
    %v118 = vunpack.c.l.b16 %v49
    %v119 = vunpack.c.h.b16 %v49
    %v120 = vunpack.c.l.b16 %v50
    %v121 = vunpack.c.h.b16 %v50
    %v122 = vunpack.c.l.b16 %v51
    %v123 = vunpack.c.h.b16 %v51
    %v124 = vunpack.c.l.b16 %v52
    %v125 = vunpack.c.h.b16 %v52
    %v126 = vunpack.c.l.b16 %v53
    %v127 = vunpack.c.h.b16 %v53
    %v128 = vunpack.c.l.b16 %v54
    %v129 = vunpack.c.h.b16 %v54
    %v130 = vunpack.c.l.b16 %v55
    %v131 = vunpack.c.h.b16 %v55
    %v132 = vunpack.c.l.b16 %v56
    %v133 = vunpack.c.h.b16 %v56
    %v134 = vunpack.c.l.b16 %v57
    %v135 = vunpack.c.h.b16 %v57
    %v136 = vunpack.c.l.b16 %v58
    %v137 = vunpack.c.h.b16 %v58
    %v138 = vunpack.c.l.b16 %v59
    %v139 = vunpack.c.h.b16 %v59
    %v140 = vunpack.c.l.b16 %v60
    %v141 = vunpack.c.h.b16 %v60
    %v142 = vunpack.c.l.b16 %v61
    %v143 = vunpack.c.h.b16 %v61
    %v144 = vunpack.c.l.b16 %v62
    %v145 = vunpack.c.h.b16 %v62
    %v146 = vunpack.c.l.b16 %v63
    %v147 = vunpack.c.h.b16 %v63
    %v148 = vunpack.c.l.b16 %v64
    %v149 = vunpack.c.h.b16 %v64
    %v150 = vunpack.c.l.b16 %v65
    %v151 = vunpack.c.h.b16 %v65
    %v152 = vunpack.c.l.b16 %v66
    %v153 = vunpack.c.h.b16 %v66
    %v154 = vunpack.c.l.b16 %v67
    %v155 = vunpack.c.h.b16 %v67
    %v156 = vunpack.c.l.b16 %v68
    %v157 = vunpack.c.h.b16 %v68
    %v158 = vunpack.c.l.b16 %v69
    %v159 = vunpack.c.h.b16 %v69
    %v160 = vunpack.c.l.b16 %v70
    %v161 = vunpack.c.h.b16 %v70
    %v162 = vunpack.c.l.b16 %v71
    %v163 = vunpack.c.h.b16 %v71
    %v164 = vunpack.c.l.b16 %v72
    %v165 = vunpack.c.h.b16 %v72
    %v166 = vunpack.c.l.b16 %v73
    %v167 = vunpack.c.h.b16 %v73
    %v168 = vunpack.c.l.b16 %v74
    %v169 = vunpack.c.h.b16 %v74
    %v170 = vunpack.c.l.b16 %v75
    %v171 = vunpack.c.h.b16 %v75
    %v172 = vpack.c.b16 %v112, %v108
    %v173 = vpack.c.b16 %v113, %v109
    %v174 = vpack.c.b16 %v114, %v110
    %v175 = vpack.c.b16 %v115, %v111
    %v176 = vpack.c.b16 %v120, %v116
    %v177 = vpack.c.b16 %v121, %v117
    %v178 = vpack.c.b16 %v122, %v118
    %v179 = vpack.c.b16 %v123, %v119
    %v180 = vpack.c.b16 %v128, %v124
    %v181 = vpack.c.b16 %v129, %v125
    %v182 = vpack.c.b16 %v130, %v126
    %v183 = vpack.c.b16 %v131, %v127
    %v184 = vpack.c.b16 %v136, %v132
    %v185 = vpack.c.b16 %v137, %v133
    %v186 = vpack.c.b16 %v138, %v134
    %v187 = vpack.c.b16 %v139, %v135
    %v188 = vpack.c.b16 %v144, %v140
    %v189 = vpack.c.b16 %v145, %v141
    %v190 = vpack.c.b16 %v146, %v142
    %v191 = vpack.c.b16 %v147, %v143
    %v192 = vpack.c.b16 %v152, %v148
    %v193 = vpack.c.b16 %v153, %v149
    %v194 = vpack.c.b16 %v154, %v150
    %v195 = vpack.c.b16 %v155, %v151
    %v196 = vpack.c.b16 %v160, %v156
    %v197 = vpack.c.b16 %v161, %v157
    %v198 = vpack.c.b16 %v162, %v158
    %v199 = vpack.c.b16 %v163, %v159
    %v200 = vpack.c.b16 %v168, %v164
    %v201 = vpack.c.b16 %v169, %v165
    %v202 = vpack.c.b16 %v170, %v166
    %v203 = vpack.c.b16 %v171, %v167
    %236 = vmatpush.bf16.msra.mxu0 %v200
    %237 = vmatpush.bf16.msra.mxu0 %v196
    %238 = vmatpush.bf16.msra.mxu0 %v192
    %239 = vmatpush.bf16.msra.mxu0 %v188
    %240 = vmatpush.bf16.msra.mxu0 %v184
    %241 = vmatpush.bf16.msra.mxu0 %v180
    %242 = vmatpush.bf16.msra.mxu0 %v176
    %243 = vmatpush.bf16.msra.mxu0 %v172
    %244 = vmatmul.bf16.gmra.mxu0 %v43
    %v245 = vpop.f32.mrf.mxu0
    %v246 = vadd.f32 0.0, %v245
    %v247 = vpop.f32.mrf.mxu0
    %248 = vdwg.mxu0
    %249 = vmatpush.bf16.msra.mxu0 %v201
    %250 = vmatpush.bf16.msra.mxu0 %v197
    %251 = vmatpush.bf16.msra.mxu0 %v193
    %252 = vmatpush.bf16.msra.mxu0 %v189
    %253 = vmatpush.bf16.msra.mxu0 %v185
    %254 = vmatpush.bf16.msra.mxu0 %v181
    %255 = vmatpush.bf16.msra.mxu0 %v177
    %256 = vmatpush.bf16.msra.mxu0 %v173
    %257 = vmatmul.bf16.gmra.mxu0 %v43
    %v258 = vpop.f32.mrf.mxu0
    %v259 = vadd.f32 0.0, %v258
    %v260 = vpop.f32.mrf.mxu0
    %261 = vdwg.mxu0
    %262 = vmatpush.bf16.msra.mxu0 %v202
    %263 = vmatpush.bf16.msra.mxu0 %v198
    %264 = vmatpush.bf16.msra.mxu0 %v194
    %265 = vmatpush.bf16.msra.mxu0 %v190
    %266 = vmatpush.bf16.msra.mxu0 %v186
    %267 = vmatpush.bf16.msra.mxu0 %v182
    %268 = vmatpush.bf16.msra.mxu0 %v178
    %269 = vmatpush.bf16.msra.mxu0 %v174
    %270 = vmatmul.bf16.gmra.mxu0 %v43
    %v271 = vpop.f32.mrf.mxu0
    %v272 = vadd.f32 0.0, %v271
    %v273 = vpop.f32.mrf.mxu0
    %274 = vdwg.mxu0
    %275 = vmatpush.bf16.msra.mxu0 %v203
    %276 = vmatpush.bf16.msra.mxu0 %v199
    %277 = vmatpush.bf16.msra.mxu0 %v195
    %278 = vmatpush.bf16.msra.mxu0 %v191
    %279 = vmatpush.bf16.msra.mxu0 %v187
    %280 = vmatpush.bf16.msra.mxu0 %v183
    %281 = vmatpush.bf16.msra.mxu0 %v179
    %282 = vmatpush.bf16.msra.mxu0 %v175
    %283 = vmatmul.bf16.gmra.mxu0 %v43
    %v284 = vpop.f32.mrf.mxu0
    %v285 = vadd.f32 0.0, %v284
    %v286 = vpop.f32.mrf.mxu0
    %287 = vdwg.mxu0
    %v288 = vadd.f32 %v39, %v246
    %v289 = vadd.f32 %v40, %v259
    %v290 = vadd.f32 %v41, %v272
    %v291 = vadd.f32 %v42, %v285
    %v292 = vxor.u32 %v288, 2147483648
    %v293 = vmul.f32 %v292, 1.442695
    %v294 = vpow.pop %v293
    %v295 = vadd.f32 %v294, 1.0
    %v296 = vrcp.pop %v295
    %v297 = vmul.f32 %v295, %v296
    %v298 = vsub.f32 1.0, %v297
    %v299 = vmul.f32 %v296, %v298
    %v300 = vadd.f32 %v296, %v299
    %vm301 = vweird.f32 %v295
    %vm302 = vweird.f32 %v296
    %vm303 = vmor %vm301, %vm302
    %v304 = vsel %vm303, %v296, %v300
    %v305 = vand.u32 2147483647, %v295
    %vm306 = vcmp.eq.f32.partialorder %v305, 8.507059e+37
    %v307 = vand.u32 %v295, 2147483648
    %v308 = vor.u32 1.1754944e-38, %v307
    %v309 = vsel %vm306, %v308, %v304
    %v310 = vmul.f32 1.0, %v309
    %v311 = vxor.u32 %v289, 2147483648
    %v312 = vmul.f32 %v311, 1.442695
    %v313 = vpow.pop %v312
    %v314 = vadd.f32 %v313, 1.0
    %v315 = vrcp.pop %v314
    %v316 = vmul.f32 %v314, %v315
    %v317 = vsub.f32 1.0, %v316
    %v318 = vmul.f32 %v315, %v317
    %v319 = vadd.f32 %v315, %v318
    %vm320 = vweird.f32 %v314
    %vm321 = vweird.f32 %v315
    %vm322 = vmor %vm320, %vm321
    %v323 = vsel %vm322, %v315, %v319
    %v324 = vand.u32 2147483647, %v314
    %vm325 = vcmp.eq.f32.partialorder %v324, 8.507059e+37
    %v326 = vand.u32 %v314, 2147483648
    %v327 = vor.u32 1.1754944e-38, %v326
    %v328 = vsel %vm325, %v327, %v323
    %v329 = vmul.f32 1.0, %v328
    %v330 = vtanh.pop %v290
    %v331 = vxor.u32 %v291, 2147483648
    %v332 = vmul.f32 %v331, 1.442695
    %v333 = vpow.pop %v332
    %v334 = vadd.f32 %v333, 1.0
    %v335 = vrcp.pop %v334
    %v336 = vmul.f32 %v334, %v335
    %v337 = vsub.f32 1.0, %v336
    %v338 = vmul.f32 %v335, %v337
    %v339 = vadd.f32 %v335, %v338
    %vm340 = vweird.f32 %v334
    %vm341 = vweird.f32 %v335
    %vm342 = vmor %vm340, %vm341
    %v343 = vsel %vm342, %v335, %v339
    %v344 = vand.u32 2147483647, %v334
    %vm345 = vcmp.eq.f32.partialorder %v344, 8.507059e+37
    %v346 = vand.u32 %v334, 2147483648
    %v347 = vor.u32 1.1754944e-38, %v346
    %v348 = vsel %vm345, %v347, %v343
    %v349 = vmul.f32 1.0, %v348
    %v350 = vmul.f32 %v329, %v36
    %v351 = vmul.f32 %v310, %v330
    %v352 = vadd.f32 %v350, %v351
    %v353 = vtanh.pop %v352
    %v354 = vmul.f32 %v349, %v353
    %355 = vst [vmem:[#allocation2] sm:$0xff] %v354
    %356 = vst [vmem:[#allocation3] sm:$0xff] %v352
    %v357 = vld [vmem:[#allocation2] sm:$0xff]
    %v358 = vld [vmem:[#allocation3] sm:$0xff]
    %s359 = scalar_lea.vmem %s0, 16
    %v360 = vld [vmem:[%s359] sm:$0xff]
    %v361 = vld [vmem:[%s359 + $0x8] sm:$0xff]
    %v362 = vunpack.c.l.bf16 %v360
    %v363 = vunpack.c.h.bf16 %v360
    %v364 = vunpack.c.l.bf16 %v361
    %v365 = vunpack.c.h.bf16 %v361
    %v366 = vpack.c.bf16 %v357, %v357
    %v367 = vld [vmem:[#allocation4] sm:$0xff]
    %v368 = vld [vmem:[#allocation4 + $0x8] sm:$0xff]
    %v369 = vld [vmem:[#allocation4 + $0x10] sm:$0xff]
    %v370 = vld [vmem:[#allocation4 + $0x18] sm:$0xff]
    %v371 = vld [vmem:[#allocation4 + $0x20] sm:$0xff]
    %v372 = vld [vmem:[#allocation4 + $0x28] sm:$0xff]
    %v373 = vld [vmem:[#allocation4 + $0x30] sm:$0xff]
    %v374 = vld [vmem:[#allocation4 + $0x38] sm:$0xff]
    %v375 = vld [vmem:[#allocation4 + $0x40] sm:$0xff]
    %v376 = vld [vmem:[#allocation4 + $0x48] sm:$0xff]
    %v377 = vld [vmem:[#allocation4 + $0x50] sm:$0xff]
    %v378 = vld [vmem:[#allocation4 + $0x58] sm:$0xff]
    %v379 = vld [vmem:[#allocation4 + $0x60] sm:$0xff]
    %v380 = vld [vmem:[#allocation4 + $0x68] sm:$0xff]
    %v381 = vld [vmem:[#allocation4 + $0x70] sm:$0xff]
    %v382 = vld [vmem:[#allocation4 + $0x78] sm:$0xff]
    %v383 = vld [vmem:[#allocation4 + $0x80] sm:$0xff]
    %v384 = vld [vmem:[#allocation4 + $0x88] sm:$0xff]
    %v385 = vld [vmem:[#allocation4 + $0x90] sm:$0xff]
    %v386 = vld [vmem:[#allocation4 + $0x98] sm:$0xff]
    %v387 = vld [vmem:[#allocation4 + $0xa0] sm:$0xff]
    %v388 = vld [vmem:[#allocation4 + $0xa8] sm:$0xff]
    %v389 = vld [vmem:[#allocation4 + $0xb0] sm:$0xff]
    %v390 = vld [vmem:[#allocation4 + $0xb8] sm:$0xff]
    %v391 = vld [vmem:[#allocation4 + $0xc0] sm:$0xff]
    %v392 = vld [vmem:[#allocation4 + $0xc8] sm:$0xff]
    %v393 = vld [vmem:[#allocation4 + $0xd0] sm:$0xff]
    %v394 = vld [vmem:[#allocation4 + $0xd8] sm:$0xff]
    %v395 = vld [vmem:[#allocation4 + $0xe0] sm:$0xff]
    %v396 = vld [vmem:[#allocation4 + $0xe8] sm:$0xff]
    %v397 = vld [vmem:[#allocation4 + $0xf0] sm:$0xff]
    %v398 = vld [vmem:[#allocation4 + $0xf8] sm:$0xff]
    %v431 = vunpack.c.l.b16 %v367
    %v432 = vunpack.c.h.b16 %v367
    %v433 = vunpack.c.l.b16 %v368
    %v434 = vunpack.c.h.b16 %v368
    %v435 = vunpack.c.l.b16 %v369
    %v436 = vunpack.c.h.b16 %v369
    %v437 = vunpack.c.l.b16 %v370
    %v438 = vunpack.c.h.b16 %v370
    %v439 = vunpack.c.l.b16 %v371
    %v440 = vunpack.c.h.b16 %v371
    %v441 = vunpack.c.l.b16 %v372
    %v442 = vunpack.c.h.b16 %v372
    %v443 = vunpack.c.l.b16 %v373
    %v444 = vunpack.c.h.b16 %v373
    %v445 = vunpack.c.l.b16 %v374
    %v446 = vunpack.c.h.b16 %v374
    %v447 = vunpack.c.l.b16 %v375
    %v448 = vunpack.c.h.b16 %v375
    %v449 = vunpack.c.l.b16 %v376
    %v450 = vunpack.c.h.b16 %v376
    %v451 = vunpack.c.l.b16 %v377
    %v452 = vunpack.c.h.b16 %v377
    %v453 = vunpack.c.l.b16 %v378
    %v454 = vunpack.c.h.b16 %v378
    %v455 = vunpack.c.l.b16 %v379
    %v456 = vunpack.c.h.b16 %v379
    %v457 = vunpack.c.l.b16 %v380
    %v458 = vunpack.c.h.b16 %v380
    %v459 = vunpack.c.l.b16 %v381
    %v460 = vunpack.c.h.b16 %v381
    %v461 = vunpack.c.l.b16 %v382
    %v462 = vunpack.c.h.b16 %v382
    %v463 = vunpack.c.l.b16 %v383
    %v464 = vunpack.c.h.b16 %v383
    %v465 = vunpack.c.l.b16 %v384
    %v466 = vunpack.c.h.b16 %v384
    %v467 = vunpack.c.l.b16 %v385
    %v468 = vunpack.c.h.b16 %v385
    %v469 = vunpack.c.l.b16 %v386
    %v470 = vunpack.c.h.b16 %v386
    %v471 = vunpack.c.l.b16 %v387
    %v472 = vunpack.c.h.b16 %v387
    %v473 = vunpack.c.l.b16 %v388
    %v474 = vunpack.c.h.b16 %v388
    %v475 = vunpack.c.l.b16 %v389
    %v476 = vunpack.c.h.b16 %v389
    %v477 = vunpack.c.l.b16 %v390
    %v478 = vunpack.c.h.b16 %v390
    %v479 = vunpack.c.l.b16 %v391
    %v480 = vunpack.c.h.b16 %v391
    %v481 = vunpack.c.l.b16 %v392
    %v482 = vunpack.c.h.b16 %v392
    %v483 = vunpack.c.l.b16 %v393
    %v484 = vunpack.c.h.b16 %v393
    %v485 = vunpack.c.l.b16 %v394
    %v486 = vunpack.c.h.b16 %v394
    %v487 = vunpack.c.l.b16 %v395
    %v488 = vunpack.c.h.b16 %v395
    %v489 = vunpack.c.l.b16 %v396
    %v490 = vunpack.c.h.b16 %v396
    %v491 = vunpack.c.l.b16 %v397
    %v492 = vunpack.c.h.b16 %v397
    %v493 = vunpack.c.l.b16 %v398
    %v494 = vunpack.c.h.b16 %v398
    %v495 = vpack.c.b16 %v435, %v431
    %v496 = vpack.c.b16 %v436, %v432
    %v497 = vpack.c.b16 %v437, %v433
    %v498 = vpack.c.b16 %v438, %v434
    %v499 = vpack.c.b16 %v443, %v439
    %v500 = vpack.c.b16 %v444, %v440
    %v501 = vpack.c.b16 %v445, %v441
    %v502 = vpack.c.b16 %v446, %v442
    %v503 = vpack.c.b16 %v451, %v447
    %v504 = vpack.c.b16 %v452, %v448
    %v505 = vpack.c.b16 %v453, %v449
    %v506 = vpack.c.b16 %v454, %v450
    %v507 = vpack.c.b16 %v459, %v455
    %v508 = vpack.c.b16 %v460, %v456
    %v509 = vpack.c.b16 %v461, %v457
    %v510 = vpack.c.b16 %v462, %v458
    %v511 = vpack.c.b16 %v467, %v463
    %v512 = vpack.c.b16 %v468, %v464
    %v513 = vpack.c.b16 %v469, %v465
    %v514 = vpack.c.b16 %v470, %v466
    %v515 = vpack.c.b16 %v475, %v471
    %v516 = vpack.c.b16 %v476, %v472
    %v517 = vpack.c.b16 %v477, %v473
    %v518 = vpack.c.b16 %v478, %v474
    %v519 = vpack.c.b16 %v483, %v479
    %v520 = vpack.c.b16 %v484, %v480
    %v521 = vpack.c.b16 %v485, %v481
    %v522 = vpack.c.b16 %v486, %v482
    %v523 = vpack.c.b16 %v491, %v487
    %v524 = vpack.c.b16 %v492, %v488
    %v525 = vpack.c.b16 %v493, %v489
    %v526 = vpack.c.b16 %v494, %v490
    %559 = vmatpush.bf16.msra.mxu0 %v523
    %560 = vmatpush.bf16.msra.mxu0 %v519
    %561 = vmatpush.bf16.msra.mxu0 %v515
    %562 = vmatpush.bf16.msra.mxu0 %v511
    %563 = vmatpush.bf16.msra.mxu0 %v507
    %564 = vmatpush.bf16.msra.mxu0 %v503
    %565 = vmatpush.bf16.msra.mxu0 %v499
    %566 = vmatpush.bf16.msra.mxu0 %v495
    %567 = vmatmul.bf16.gmra.mxu0 %v366
    %v568 = vpop.f32.mrf.mxu0
    %v569 = vadd.f32 0.0, %v568
    %v570 = vpop.f32.mrf.mxu0
    %571 = vdwg.mxu0
    %572 = vmatpush.bf16.msra.mxu0 %v524
    %573 = vmatpush.bf16.msra.mxu0 %v520
    %574 = vmatpush.bf16.msra.mxu0 %v516
    %575 = vmatpush.bf16.msra.mxu0 %v512
    %576 = vmatpush.bf16.msra.mxu0 %v508
    %577 = vmatpush.bf16.msra.mxu0 %v504
    %578 = vmatpush.bf16.msra.mxu0 %v500
    %579 = vmatpush.bf16.msra.mxu0 %v496
    %580 = vmatmul.bf16.gmra.mxu0 %v366
    %v581 = vpop.f32.mrf.mxu0
    %v582 = vadd.f32 0.0, %v581
    %v583 = vpop.f32.mrf.mxu0
    %584 = vdwg.mxu0
    %585 = vmatpush.bf16.msra.mxu0 %v525
    %586 = vmatpush.bf16.msra.mxu0 %v521
    %587 = vmatpush.bf16.msra.mxu0 %v517
    %588 = vmatpush.bf16.msra.mxu0 %v513
    %589 = vmatpush.bf16.msra.mxu0 %v509
    %590 = vmatpush.bf16.msra.mxu0 %v505
    %591 = vmatpush.bf16.msra.mxu0 %v501
    %592 = vmatpush.bf16.msra.mxu0 %v497
    %593 = vmatmul.bf16.gmra.mxu0 %v366
    %v594 = vpop.f32.mrf.mxu0
    %v595 = vadd.f32 0.0, %v594
    %v596 = vpop.f32.mrf.mxu0
    %597 = vdwg.mxu0
    %598 = vmatpush.bf16.msra.mxu0 %v526
    %599 = vmatpush.bf16.msra.mxu0 %v522
    %600 = vmatpush.bf16.msra.mxu0 %v518
    %601 = vmatpush.bf16.msra.mxu0 %v514
    %602 = vmatpush.bf16.msra.mxu0 %v510
    %603 = vmatpush.bf16.msra.mxu0 %v506
    %604 = vmatpush.bf16.msra.mxu0 %v502
    %605 = vmatpush.bf16.msra.mxu0 %v498
    %606 = vmatmul.bf16.gmra.mxu0 %v366
    %v607 = vpop.f32.mrf.mxu0
    %v608 = vadd.f32 0.0, %v607
    %v609 = vpop.f32.mrf.mxu0
    %610 = vdwg.mxu0
    %v611 = vadd.f32 %v362, %v569
    %v612 = vadd.f32 %v363, %v582
    %v613 = vadd.f32 %v364, %v595
    %v614 = vadd.f32 %v365, %v608
    %v615 = vxor.u32 %v611, 2147483648
    %v616 = vmul.f32 %v615, 1.442695
    %v617 = vpow.pop %v616
    %v618 = vadd.f32 %v617, 1.0
    %v619 = vrcp.pop %v618
    %v620 = vmul.f32 %v618, %v619
    %v621 = vsub.f32 1.0, %v620
    %v622 = vmul.f32 %v619, %v621
    %v623 = vadd.f32 %v619, %v622
    %vm624 = vweird.f32 %v618
    %vm625 = vweird.f32 %v619
    %vm626 = vmor %vm624, %vm625
    %v627 = vsel %vm626, %v619, %v623
    %v628 = vand.u32 2147483647, %v618
    %vm629 = vcmp.eq.f32.partialorder %v628, 8.507059e+37
    %v630 = vand.u32 %v618, 2147483648
    %v631 = vor.u32 1.1754944e-38, %v630
    %v632 = vsel %vm629, %v631, %v627
    %v633 = vmul.f32 1.0, %v632
    %v634 = vxor.u32 %v612, 2147483648
    %v635 = vmul.f32 %v634, 1.442695
    %v636 = vpow.pop %v635
    %v637 = vadd.f32 %v636, 1.0
    %v638 = vrcp.pop %v637
    %v639 = vmul.f32 %v637, %v638
    %v640 = vsub.f32 1.0, %v639
    %v641 = vmul.f32 %v638, %v640
    %v642 = vadd.f32 %v638, %v641
    %vm643 = vweird.f32 %v637
    %vm644 = vweird.f32 %v638
    %vm645 = vmor %vm643, %vm644
    %v646 = vsel %vm645, %v638, %v642
    %v647 = vand.u32 2147483647, %v637
    %vm648 = vcmp.eq.f32.partialorder %v647, 8.507059e+37
    %v649 = vand.u32 %v637, 2147483648
    %v650 = vor.u32 1.1754944e-38, %v649
    %v651 = vsel %vm648, %v650, %v646
    %v652 = vmul.f32 1.0, %v651
    %v653 = vtanh.pop %v613
    %v654 = vxor.u32 %v614, 2147483648
    %v655 = vmul.f32 %v654, 1.442695
    %v656 = vpow.pop %v655
    %v657 = vadd.f32 %v656, 1.0
    %v658 = vrcp.pop %v657
    %v659 = vmul.f32 %v657, %v658
    %v660 = vsub.f32 1.0, %v659
    %v661 = vmul.f32 %v658, %v660
    %v662 = vadd.f32 %v658, %v661
    %vm663 = vweird.f32 %v657
    %vm664 = vweird.f32 %v658
    %vm665 = vmor %vm663, %vm664
    %v666 = vsel %vm665, %v658, %v662
    %v667 = vand.u32 2147483647, %v657
    %vm668 = vcmp.eq.f32.partialorder %v667, 8.507059e+37
    %v669 = vand.u32 %v657, 2147483648
    %v670 = vor.u32 1.1754944e-38, %v669
    %v671 = vsel %vm668, %v670, %v666
    %v672 = vmul.f32 1.0, %v671
    %v673 = vmul.f32 %v652, %v358
    %v674 = vmul.f32 %v633, %v653
    %v675 = vadd.f32 %v673, %v674
    %v676 = vtanh.pop %v675
    %v677 = vmul.f32 %v672, %v676
    %678 = vst [vmem:[#allocation2] sm:$0xff] %v677
    %679 = vst [vmem:[#allocation3] sm:$0xff] %v675
    %v680 = vld [vmem:[#allocation2] sm:$0xff]
    %v681 = vld [vmem:[#allocation3] sm:$0xff]
    %s682 = scalar_lea.vmem %s0, 32
    %v683 = vld [vmem:[%s682] sm:$0xff]
    %v684 = vld [vmem:[%s682 + $0x8] sm:$0xff]
    %v685 = vunpack.c.l.bf16 %v683
    %v686 = vunpack.c.h.bf16 %v683
    %v687 = vunpack.c.l.bf16 %v684
    %v688 = vunpack.c.h.bf16 %v684
    %v689 = vpack.c.bf16 %v680, %v680
    %v690 = vld [vmem:[#allocation4] sm:$0xff]
    %v691 = vld [vmem:[#allocation4 + $0x8] sm:$0xff]
    %v692 = vld [vmem:[#allocation4 + $0x10] sm:$0xff]
    %v693 = vld [vmem:[#allocation4 + $0x18] sm:$0xff]
    %v694 = vld [vmem:[#allocation4 + $0x20] sm:$0xff]
    %v695 = vld [vmem:[#allocation4 + $0x28] sm:$0xff]
    %v696 = vld [vmem:[#allocation4 + $0x30] sm:$0xff]
    %v697 = vld [vmem:[#allocation4 + $0x38] sm:$0xff]
    %v698 = vld [vmem:[#allocation4 + $0x40] sm:$0xff]
    %v699 = vld [vmem:[#allocation4 + $0x48] sm:$0xff]
    %v700 = vld [vmem:[#allocation4 + $0x50] sm:$0xff]
    %v701 = vld [vmem:[#allocation4 + $0x58] sm:$0xff]
    %v702 = vld [vmem:[#allocation4 + $0x60] sm:$0xff]
    %v703 = vld [vmem:[#allocation4 + $0x68] sm:$0xff]
    %v704 = vld [vmem:[#allocation4 + $0x70] sm:$0xff]
    %v705 = vld [vmem:[#allocation4 + $0x78] sm:$0xff]
    %v706 = vld [vmem:[#allocation4 + $0x80] sm:$0xff]
    %v707 = vld [vmem:[#allocation4 + $0x88] sm:$0xff]
    %v708 = vld [vmem:[#allocation4 + $0x90] sm:$0xff]
    %v709 = vld [vmem:[#allocation4 + $0x98] sm:$0xff]
    %v710 = vld [vmem:[#allocation4 + $0xa0] sm:$0xff]
    %v711 = vld [vmem:[#allocation4 + $0xa8] sm:$0xff]
    %v712 = vld [vmem:[#allocation4 + $0xb0] sm:$0xff]
    %v713 = vld [vmem:[#allocation4 + $0xb8] sm:$0xff]
    %v714 = vld [vmem:[#allocation4 + $0xc0] sm:$0xff]
    %v715 = vld [vmem:[#allocation4 + $0xc8] sm:$0xff]
    %v716 = vld [vmem:[#allocation4 + $0xd0] sm:$0xff]
    %v717 = vld [vmem:[#allocation4 + $0xd8] sm:$0xff]
    %v718 = vld [vmem:[#allocation4 + $0xe0] sm:$0xff]
    %v719 = vld [vmem:[#allocation4 + $0xe8] sm:$0xff]
    %v720 = vld [vmem:[#allocation4 + $0xf0] sm:$0xff]
    %v721 = vld [vmem:[#allocation4 + $0xf8] sm:$0xff]
    %v754 = vunpack.c.l.b16 %v690
    %v755 = vunpack.c.h.b16 %v690
    %v756 = vunpack.c.l.b16 %v691
    %v757 = vunpack.c.h.b16 %v691
    %v758 = vunpack.c.l.b16 %v692
    %v759 = vunpack.c.h.b16 %v692
    %v760 = vunpack.c.l.b16 %v693
    %v761 = vunpack.c.h.b16 %v693
    %v762 = vunpack.c.l.b16 %v694
    %v763 = vunpack.c.h.b16 %v694
    %v764 = vunpack.c.l.b16 %v695
    %v765 = vunpack.c.h.b16 %v695
    %v766 = vunpack.c.l.b16 %v696
    %v767 = vunpack.c.h.b16 %v696
    %v768 = vunpack.c.l.b16 %v697
    %v769 = vunpack.c.h.b16 %v697
    %v770 = vunpack.c.l.b16 %v698
    %v771 = vunpack.c.h.b16 %v698
    %v772 = vunpack.c.l.b16 %v699
    %v773 = vunpack.c.h.b16 %v699
    %v774 = vunpack.c.l.b16 %v700
    %v775 = vunpack.c.h.b16 %v700
    %v776 = vunpack.c.l.b16 %v701
    %v777 = vunpack.c.h.b16 %v701
    %v778 = vunpack.c.l.b16 %v702
    %v779 = vunpack.c.h.b16 %v702
    %v780 = vunpack.c.l.b16 %v703
    %v781 = vunpack.c.h.b16 %v703
    %v782 = vunpack.c.l.b16 %v704
    %v783 = vunpack.c.h.b16 %v704
    %v784 = vunpack.c.l.b16 %v705
    %v785 = vunpack.c.h.b16 %v705
    %v786 = vunpack.c.l.b16 %v706
    %v787 = vunpack.c.h.b16 %v706
    %v788 = vunpack.c.l.b16 %v707
    %v789 = vunpack.c.h.b16 %v707
    %v790 = vunpack.c.l.b16 %v708
    %v791 = vunpack.c.h.b16 %v708
    %v792 = vunpack.c.l.b16 %v709
    %v793 = vunpack.c.h.b16 %v709
    %v794 = vunpack.c.l.b16 %v710
    %v795 = vunpack.c.h.b16 %v710
    %v796 = vunpack.c.l.b16 %v711
    %v797 = vunpack.c.h.b16 %v711
    %v798 = vunpack.c.l.b16 %v712
    %v799 = vunpack.c.h.b16 %v712
    %v800 = vunpack.c.l.b16 %v713
    %v801 = vunpack.c.h.b16 %v713
    %v802 = vunpack.c.l.b16 %v714
    %v803 = vunpack.c.h.b16 %v714
    %v804 = vunpack.c.l.b16 %v715
    %v805 = vunpack.c.h.b16 %v715
    %v806 = vunpack.c.l.b16 %v716
    %v807 = vunpack.c.h.b16 %v716
    %v808 = vunpack.c.l.b16 %v717
    %v809 = vunpack.c.h.b16 %v717
    %v810 = vunpack.c.l.b16 %v718
    %v811 = vunpack.c.h.b16 %v718
    %v812 = vunpack.c.l.b16 %v719
    %v813 = vunpack.c.h.b16 %v719
    %v814 = vunpack.c.l.b16 %v720
    %v815 = vunpack.c.h.b16 %v720
    %v816 = vunpack.c.l.b16 %v721
    %v817 = vunpack.c.h.b16 %v721
    %v818 = vpack.c.b16 %v758, %v754
    %v819 = vpack.c.b16 %v759, %v755
    %v820 = vpack.c.b16 %v760, %v756
    %v821 = vpack.c.b16 %v761, %v757
    %v822 = vpack.c.b16 %v766, %v762
    %v823 = vpack.c.b16 %v767, %v763
    %v824 = vpack.c.b16 %v768, %v764
    %v825 = vpack.c.b16 %v769, %v765
    %v826 = vpack.c.b16 %v774, %v770
    %v827 = vpack.c.b16 %v775, %v771
    %v828 = vpack.c.b16 %v776, %v772
    %v829 = vpack.c.b16 %v777, %v773
    %v830 = vpack.c.b16 %v782, %v778
    %v831 = vpack.c.b16 %v783, %v779
    %v832 = vpack.c.b16 %v784, %v780
    %v833 = vpack.c.b16 %v785, %v781
    %v834 = vpack.c.b16 %v790, %v786
    %v835 = vpack.c.b16 %v791, %v787
    %v836 = vpack.c.b16 %v792, %v788
    %v837 = vpack.c.b16 %v793, %v789
    %v838 = vpack.c.b16 %v798, %v794
    %v839 = vpack.c.b16 %v799, %v795
    %v840 = vpack.c.b16 %v800, %v796
    %v841 = vpack.c.b16 %v801, %v797
    %v842 = vpack.c.b16 %v806, %v802
    %v843 = vpack.c.b16 %v807, %v803
    %v844 = vpack.c.b16 %v808, %v804
    %v845 = vpack.c.b16 %v809, %v805
    %v846 = vpack.c.b16 %v814, %v810
    %v847 = vpack.c.b16 %v815, %v811
    %v848 = vpack.c.b16 %v816, %v812
    %v849 = vpack.c.b16 %v817, %v813
    %882 = vmatpush.bf16.msra.mxu0 %v846
    %883 = vmatpush.bf16.msra.mxu0 %v842
    %884 = vmatpush.bf16.msra.mxu0 %v838
    %885 = vmatpush.bf16.msra.mxu0 %v834
    %886 = vmatpush.bf16.msra.mxu0 %v830
    %887 = vmatpush.bf16.msra.mxu0 %v826
    %888 = vmatpush.bf16.msra.mxu0 %v822
    %889 = vmatpush.bf16.msra.mxu0 %v818
    %890 = vmatmul.bf16.gmra.mxu0 %v689
    %v891 = vpop.f32.mrf.mxu0
    %v892 = vadd.f32 0.0, %v891
    %v893 = vpop.f32.mrf.mxu0
    %894 = vdwg.mxu0
    %895 = vmatpush.bf16.msra.mxu0 %v847
    %896 = vmatpush.bf16.msra.mxu0 %v843
    %897 = vmatpush.bf16.msra.mxu0 %v839
    %898 = vmatpush.bf16.msra.mxu0 %v835
    %899 = vmatpush.bf16.msra.mxu0 %v831
    %900 = vmatpush.bf16.msra.mxu0 %v827
    %901 = vmatpush.bf16.msra.mxu0 %v823
    %902 = vmatpush.bf16.msra.mxu0 %v819
    %903 = vmatmul.bf16.gmra.mxu0 %v689
    %v904 = vpop.f32.mrf.mxu0
    %v905 = vadd.f32 0.0, %v904
    %v906 = vpop.f32.mrf.mxu0
    %907 = vdwg.mxu0
    %908 = vmatpush.bf16.msra.mxu0 %v848
    %909 = vmatpush.bf16.msra.mxu0 %v844
    %910 = vmatpush.bf16.msra.mxu0 %v840
    %911 = vmatpush.bf16.msra.mxu0 %v836
    %912 = vmatpush.bf16.msra.mxu0 %v832
    %913 = vmatpush.bf16.msra.mxu0 %v828
    %914 = vmatpush.bf16.msra.mxu0 %v824
    %915 = vmatpush.bf16.msra.mxu0 %v820
    %916 = vmatmul.bf16.gmra.mxu0 %v689
    %v917 = vpop.f32.mrf.mxu0
    %v918 = vadd.f32 0.0, %v917
    %v919 = vpop.f32.mrf.mxu0
    %920 = vdwg.mxu0
    %921 = vmatpush.bf16.msra.mxu0 %v849
    %922 = vmatpush.bf16.msra.mxu0 %v845
    %923 = vmatpush.bf16.msra.mxu0 %v841
    %924 = vmatpush.bf16.msra.mxu0 %v837
    %925 = vmatpush.bf16.msra.mxu0 %v833
    %926 = vmatpush.bf16.msra.mxu0 %v829
    %927 = vmatpush.bf16.msra.mxu0 %v825
    %928 = vmatpush.bf16.msra.mxu0 %v821
    %929 = vmatmul.bf16.gmra.mxu0 %v689
    %v930 = vpop.f32.mrf.mxu0
    %v931 = vadd.f32 0.0, %v930
    %v932 = vpop.f32.mrf.mxu0
    %933 = vdwg.mxu0
    %v934 = vadd.f32 %v685, %v892
    %v935 = vadd.f32 %v686, %v905
    %v936 = vadd.f32 %v687, %v918
    %v937 = vadd.f32 %v688, %v931
    %v938 = vxor.u32 %v934, 2147483648
    %v939 = vmul.f32 %v938, 1.442695
    %v940 = vpow.pop %v939
    %v941 = vadd.f32 %v940, 1.0
    %v942 = vrcp.pop %v941
    %v943 = vmul.f32 %v941, %v942
    %v944 = vsub.f32 1.0, %v943
    %v945 = vmul.f32 %v942, %v944
    %v946 = vadd.f32 %v942, %v945
    %vm947 = vweird.f32 %v941
    %vm948 = vweird.f32 %v942
    %vm949 = vmor %vm947, %vm948
    %v950 = vsel %vm949, %v942, %v946
    %v951 = vand.u32 2147483647, %v941
    %vm952 = vcmp.eq.f32.partialorder %v951, 8.507059e+37
    %v953 = vand.u32 %v941, 2147483648
    %v954 = vor.u32 1.1754944e-38, %v953
    %v955 = vsel %vm952, %v954, %v950
    %v956 = vmul.f32 1.0, %v955
    %v957 = vxor.u32 %v935, 2147483648
    %v958 = vmul.f32 %v957, 1.442695
    %v959 = vpow.pop %v958
    %v960 = vadd.f32 %v959, 1.0
    %v961 = vrcp.pop %v960
    %v962 = vmul.f32 %v960, %v961
    %v963 = vsub.f32 1.0, %v962
    %v964 = vmul.f32 %v961, %v963
    %v965 = vadd.f32 %v961, %v964
    %vm966 = vweird.f32 %v960
    %vm967 = vweird.f32 %v961
    %vm968 = vmor %vm966, %vm967
    %v969 = vsel %vm968, %v961, %v965
    %v970 = vand.u32 2147483647, %v960
    %vm971 = vcmp.eq.f32.partialorder %v970, 8.507059e+37
    %v972 = vand.u32 %v960, 2147483648
    %v973 = vor.u32 1.1754944e-38, %v972
    %v974 = vsel %vm971, %v973, %v969
    %v975 = vmul.f32 1.0, %v974
    %v976 = vtanh.pop %v936
    %v977 = vxor.u32 %v937, 2147483648
    %v978 = vmul.f32 %v977, 1.442695
    %v979 = vpow.pop %v978
    %v980 = vadd.f32 %v979, 1.0
    %v981 = vrcp.pop %v980
    %v982 = vmul.f32 %v980, %v981
    %v983 = vsub.f32 1.0, %v982
    %v984 = vmul.f32 %v981, %v983
    %v985 = vadd.f32 %v981, %v984
    %vm986 = vweird.f32 %v980
    %vm987 = vweird.f32 %v981
    %vm988 = vmor %vm986, %vm987
    %v989 = vsel %vm988, %v981, %v985
    %v990 = vand.u32 2147483647, %v980
    %vm991 = vcmp.eq.f32.partialorder %v990, 8.507059e+37
    %v992 = vand.u32 %v980, 2147483648
    %v993 = vor.u32 1.1754944e-38, %v992
    %v994 = vsel %vm991, %v993, %v989
    %v995 = vmul.f32 1.0, %v994
    %v996 = vmul.f32 %v975, %v681
    %v997 = vmul.f32 %v956, %v976
    %v998 = vadd.f32 %v996, %v997
    %v999 = vtanh.pop %v998
    %v1000 = vmul.f32 %v995, %v999
    %1001 = vst [vmem:[#allocation2] sm:$0xff] %v1000
    %1002 = vst [vmem:[#allocation3] sm:$0xff] %v998
    %v1003 = vld [vmem:[#allocation2] sm:$0xff]
    %v1004 = vld [vmem:[#allocation3] sm:$0xff]
    %s1005 = scalar_lea.vmem %s0, 48
    %v1006 = vld [vmem:[%s1005] sm:$0xff]
    %v1007 = vld [vmem:[%s1005 + $0x8] sm:$0xff]
    %v1008 = vunpack.c.l.bf16 %v1006
    %v1009 = vunpack.c.h.bf16 %v1006
    %v1010 = vunpack.c.l.bf16 %v1007
    %v1011 = vunpack.c.h.bf16 %v1007
    %v1012 = vpack.c.bf16 %v1003, %v1003
    %v1013 = vld [vmem:[#allocation4] sm:$0xff]
    %v1014 = vld [vmem:[#allocation4 + $0x8] sm:$0xff]
    %v1015 = vld [vmem:[#allocation4 + $0x10] sm:$0xff]
    %v1016 = vld [vmem:[#allocation4 + $0x18] sm:$0xff]
    %v1017 = vld [vmem:[#allocation4 + $0x20] sm:$0xff]
    %v1018 = vld [vmem:[#allocation4 + $0x28] sm:$0xff]
    %v1019 = vld [vmem:[#allocation4 + $0x30] sm:$0xff]
    %v1020 = vld [vmem:[#allocation4 + $0x38] sm:$0xff]
    %v1021 = vld [vmem:[#allocation4 + $0x40] sm:$0xff]
    %v1022 = vld [vmem:[#allocation4 + $0x48] sm:$0xff]
    %v1023 = vld [vmem:[#allocation4 + $0x50] sm:$0xff]
    %v1024 = vld [vmem:[#allocation4 + $0x58] sm:$0xff]
    %v1025 = vld [vmem:[#allocation4 + $0x60] sm:$0xff]
    %v1026 = vld [vmem:[#allocation4 + $0x68] sm:$0xff]
    %v1027 = vld [vmem:[#allocation4 + $0x70] sm:$0xff]
    %v1028 = vld [vmem:[#allocation4 + $0x78] sm:$0xff]
    %v1029 = vld [vmem:[#allocation4 + $0x80] sm:$0xff]
    %v1030 = vld [vmem:[#allocation4 + $0x88] sm:$0xff]
    %v1031 = vld [vmem:[#allocation4 + $0x90] sm:$0xff]
    %v1032 = vld [vmem:[#allocation4 + $0x98] sm:$0xff]
    %v1033 = vld [vmem:[#allocation4 + $0xa0] sm:$0xff]
    %v1034 = vld [vmem:[#allocation4 + $0xa8] sm:$0xff]
    %v1035 = vld [vmem:[#allocation4 + $0xb0] sm:$0xff]
    %v1036 = vld [vmem:[#allocation4 + $0xb8] sm:$0xff]
    %v1037 = vld [vmem:[#allocation4 + $0xc0] sm:$0xff]
    %v1038 = vld [vmem:[#allocation4 + $0xc8] sm:$0xff]
    %v1039 = vld [vmem:[#allocation4 + $0xd0] sm:$0xff]
    %v1040 = vld [vmem:[#allocation4 + $0xd8] sm:$0xff]
    %v1041 = vld [vmem:[#allocation4 + $0xe0] sm:$0xff]
    %v1042 = vld [vmem:[#allocation4 + $0xe8] sm:$0xff]
    %v1043 = vld [vmem:[#allocation4 + $0xf0] sm:$0xff]
    %v1044 = vld [vmem:[#allocation4 + $0xf8] sm:$0xff]
    %v1077 = vunpack.c.l.b16 %v1013
    %v1078 = vunpack.c.h.b16 %v1013
    %v1079 = vunpack.c.l.b16 %v1014
    %v1080 = vunpack.c.h.b16 %v1014
    %v1081 = vunpack.c.l.b16 %v1015
    %v1082 = vunpack.c.h.b16 %v1015
    %v1083 = vunpack.c.l.b16 %v1016
    %v1084 = vunpack.c.h.b16 %v1016
    %v1085 = vunpack.c.l.b16 %v1017
    %v1086 = vunpack.c.h.b16 %v1017
    %v1087 = vunpack.c.l.b16 %v1018
    %v1088 = vunpack.c.h.b16 %v1018
    %v1089 = vunpack.c.l.b16 %v1019
    %v1090 = vunpack.c.h.b16 %v1019
    %v1091 = vunpack.c.l.b16 %v1020
    %v1092 = vunpack.c.h.b16 %v1020
    %v1093 = vunpack.c.l.b16 %v1021
    %v1094 = vunpack.c.h.b16 %v1021
    %v1095 = vunpack.c.l.b16 %v1022
    %v1096 = vunpack.c.h.b16 %v1022
    %v1097 = vunpack.c.l.b16 %v1023
    %v1098 = vunpack.c.h.b16 %v1023
    %v1099 = vunpack.c.l.b16 %v1024
    %v1100 = vunpack.c.h.b16 %v1024
    %v1101 = vunpack.c.l.b16 %v1025
    %v1102 = vunpack.c.h.b16 %v1025
    %v1103 = vunpack.c.l.b16 %v1026
    %v1104 = vunpack.c.h.b16 %v1026
    %v1105 = vunpack.c.l.b16 %v1027
    %v1106 = vunpack.c.h.b16 %v1027
    %v1107 = vunpack.c.l.b16 %v1028
    %v1108 = vunpack.c.h.b16 %v1028
    %v1109 = vunpack.c.l.b16 %v1029
    %v1110 = vunpack.c.h.b16 %v1029
    %v1111 = vunpack.c.l.b16 %v1030
    %v1112 = vunpack.c.h.b16 %v1030
    %v1113 = vunpack.c.l.b16 %v1031
    %v1114 = vunpack.c.h.b16 %v1031
    %v1115 = vunpack.c.l.b16 %v1032
    %v1116 = vunpack.c.h.b16 %v1032
    %v1117 = vunpack.c.l.b16 %v1033
    %v1118 = vunpack.c.h.b16 %v1033
    %v1119 = vunpack.c.l.b16 %v1034
    %v1120 = vunpack.c.h.b16 %v1034
    %v1121 = vunpack.c.l.b16 %v1035
    %v1122 = vunpack.c.h.b16 %v1035
    %v1123 = vunpack.c.l.b16 %v1036
    %v1124 = vunpack.c.h.b16 %v1036
    %v1125 = vunpack.c.l.b16 %v1037
    %v1126 = vunpack.c.h.b16 %v1037
    %v1127 = vunpack.c.l.b16 %v1038
    %v1128 = vunpack.c.h.b16 %v1038
    %v1129 = vunpack.c.l.b16 %v1039
    %v1130 = vunpack.c.h.b16 %v1039
    %v1131 = vunpack.c.l.b16 %v1040
    %v1132 = vunpack.c.h.b16 %v1040
    %v1133 = vunpack.c.l.b16 %v1041
    %v1134 = vunpack.c.h.b16 %v1041
    %v1135 = vunpack.c.l.b16 %v1042
    %v1136 = vunpack.c.h.b16 %v1042
    %v1137 = vunpack.c.l.b16 %v1043
    %v1138 = vunpack.c.h.b16 %v1043
    %v1139 = vunpack.c.l.b16 %v1044
    %v1140 = vunpack.c.h.b16 %v1044
    %v1141 = vpack.c.b16 %v1081, %v1077
    %v1142 = vpack.c.b16 %v1082, %v1078
    %v1143 = vpack.c.b16 %v1083, %v1079
    %v1144 = vpack.c.b16 %v1084, %v1080
    %v1145 = vpack.c.b16 %v1089, %v1085
    %v1146 = vpack.c.b16 %v1090, %v1086
    %v1147 = vpack.c.b16 %v1091, %v1087
    %v1148 = vpack.c.b16 %v1092, %v1088
    %v1149 = vpack.c.b16 %v1097, %v1093
    %v1150 = vpack.c.b16 %v1098, %v1094
    %v1151 = vpack.c.b16 %v1099, %v1095
    %v1152 = vpack.c.b16 %v1100, %v1096
    %v1153 = vpack.c.b16 %v1105, %v1101
    %v1154 = vpack.c.b16 %v1106, %v1102
    %v1155 = vpack.c.b16 %v1107, %v1103
    %v1156 = vpack.c.b16 %v1108, %v1104
    %v1157 = vpack.c.b16 %v1113, %v1109
    %v1158 = vpack.c.b16 %v1114, %v1110
    %v1159 = vpack.c.b16 %v1115, %v1111
    %v1160 = vpack.c.b16 %v1116, %v1112
    %v1161 = vpack.c.b16 %v1121, %v1117
    %v1162 = vpack.c.b16 %v1122, %v1118
    %v1163 = vpack.c.b16 %v1123, %v1119
    %v1164 = vpack.c.b16 %v1124, %v1120
    %v1165 = vpack.c.b16 %v1129, %v1125
    %v1166 = vpack.c.b16 %v1130, %v1126
    %v1167 = vpack.c.b16 %v1131, %v1127
    %v1168 = vpack.c.b16 %v1132, %v1128
    %v1169 = vpack.c.b16 %v1137, %v1133
    %v1170 = vpack.c.b16 %v1138, %v1134
    %v1171 = vpack.c.b16 %v1139, %v1135
    %v1172 = vpack.c.b16 %v1140, %v1136
    %1205 = vmatpush.bf16.msra.mxu0 %v1169
    %1206 = vmatpush.bf16.msra.mxu0 %v1165
    %1207 = vmatpush.bf16.msra.mxu0 %v1161
    %1208 = vmatpush.bf16.msra.mxu0 %v1157
    %1209 = vmatpush.bf16.msra.mxu0 %v1153
    %1210 = vmatpush.bf16.msra.mxu0 %v1149
    %1211 = vmatpush.bf16.msra.mxu0 %v1145
    %1212 = vmatpush.bf16.msra.mxu0 %v1141
    %1213 = vmatmul.bf16.gmra.mxu0 %v1012
    %v1214 = vpop.f32.mrf.mxu0
    %v1215 = vadd.f32 0.0, %v1214
    %v1216 = vpop.f32.mrf.mxu0
    %1217 = vdwg.mxu0
    %1218 = vmatpush.bf16.msra.mxu0 %v1170
    %1219 = vmatpush.bf16.msra.mxu0 %v1166
    %1220 = vmatpush.bf16.msra.mxu0 %v1162
    %1221 = vmatpush.bf16.msra.mxu0 %v1158
    %1222 = vmatpush.bf16.msra.mxu0 %v1154
    %1223 = vmatpush.bf16.msra.mxu0 %v1150
    %1224 = vmatpush.bf16.msra.mxu0 %v1146
    %1225 = vmatpush.bf16.msra.mxu0 %v1142
    %1226 = vmatmul.bf16.gmra.mxu0 %v1012
    %v1227 = vpop.f32.mrf.mxu0
    %v1228 = vadd.f32 0.0, %v1227
    %v1229 = vpop.f32.mrf.mxu0
    %1230 = vdwg.mxu0
    %1231 = vmatpush.bf16.msra.mxu0 %v1171
    %1232 = vmatpush.bf16.msra.mxu0 %v1167
    %1233 = vmatpush.bf16.msra.mxu0 %v1163
    %1234 = vmatpush.bf16.msra.mxu0 %v1159
    %1235 = vmatpush.bf16.msra.mxu0 %v1155
    %1236 = vmatpush.bf16.msra.mxu0 %v1151
    %1237 = vmatpush.bf16.msra.mxu0 %v1147
    %1238 = vmatpush.bf16.msra.mxu0 %v1143
    %1239 = vmatmul.bf16.gmra.mxu0 %v1012
    %v1240 = vpop.f32.mrf.mxu0
    %v1241 = vadd.f32 0.0, %v1240
    %v1242 = vpop.f32.mrf.mxu0
    %1243 = vdwg.mxu0
    %1244 = vmatpush.bf16.msra.mxu0 %v1172
    %1245 = vmatpush.bf16.msra.mxu0 %v1168
    %1246 = vmatpush.bf16.msra.mxu0 %v1164
    %1247 = vmatpush.bf16.msra.mxu0 %v1160
    %1248 = vmatpush.bf16.msra.mxu0 %v1156
    %1249 = vmatpush.bf16.msra.mxu0 %v1152
    %1250 = vmatpush.bf16.msra.mxu0 %v1148
    %1251 = vmatpush.bf16.msra.mxu0 %v1144
    %1252 = vmatmul.bf16.gmra.mxu0 %v1012
    %v1253 = vpop.f32.mrf.mxu0
    %v1254 = vadd.f32 0.0, %v1253
    %v1255 = vpop.f32.mrf.mxu0
    %1256 = vdwg.mxu0
    %v1257 = vadd.f32 %v1008, %v1215
    %v1258 = vadd.f32 %v1009, %v1228
    %v1259 = vadd.f32 %v1010, %v1241
    %v1260 = vadd.f32 %v1011, %v1254
    %v1261 = vxor.u32 %v1257, 2147483648
    %v1262 = vmul.f32 %v1261, 1.442695
    %v1263 = vpow.pop %v1262
    %v1264 = vadd.f32 %v1263, 1.0
    %v1265 = vrcp.pop %v1264
    %v1266 = vmul.f32 %v1264, %v1265
    %v1267 = vsub.f32 1.0, %v1266
    %v1268 = vmul.f32 %v1265, %v1267
    %v1269 = vadd.f32 %v1265, %v1268
    %vm1270 = vweird.f32 %v1264
    %vm1271 = vweird.f32 %v1265
    %vm1272 = vmor %vm1270, %vm1271
    %v1273 = vsel %vm1272, %v1265, %v1269
    %v1274 = vand.u32 2147483647, %v1264
    %vm1275 = vcmp.eq.f32.partialorder %v1274, 8.507059e+37
    %v1276 = vand.u32 %v1264, 2147483648
    %v1277 = vor.u32 1.1754944e-38, %v1276
    %v1278 = vsel %vm1275, %v1277, %v1273
    %v1279 = vmul.f32 1.0, %v1278
    %v1280 = vxor.u32 %v1258, 2147483648
    %v1281 = vmul.f32 %v1280, 1.442695
    %v1282 = vpow.pop %v1281
    %v1283 = vadd.f32 %v1282, 1.0
    %v1284 = vrcp.pop %v1283
    %v1285 = vmul.f32 %v1283, %v1284
    %v1286 = vsub.f32 1.0, %v1285
    %v1287 = vmul.f32 %v1284, %v1286
    %v1288 = vadd.f32 %v1284, %v1287
    %vm1289 = vweird.f32 %v1283
    %vm1290 = vweird.f32 %v1284
    %vm1291 = vmor %vm1289, %vm1290
    %v1292 = vsel %vm1291, %v1284, %v1288
    %v1293 = vand.u32 2147483647, %v1283
    %vm1294 = vcmp.eq.f32.partialorder %v1293, 8.507059e+37
    %v1295 = vand.u32 %v1283, 2147483648
    %v1296 = vor.u32 1.1754944e-38, %v1295
    %v1297 = vsel %vm1294, %v1296, %v1292
    %v1298 = vmul.f32 1.0, %v1297
    %v1299 = vtanh.pop %v1259
    %v1300 = vxor.u32 %v1260, 2147483648
    %v1301 = vmul.f32 %v1300, 1.442695
    %v1302 = vpow.pop %v1301
    %v1303 = vadd.f32 %v1302, 1.0
    %v1304 = vrcp.pop %v1303
    %v1305 = vmul.f32 %v1303, %v1304
    %v1306 = vsub.f32 1.0, %v1305
    %v1307 = vmul.f32 %v1304, %v1306
    %v1308 = vadd.f32 %v1304, %v1307
    %vm1309 = vweird.f32 %v1303
    %vm1310 = vweird.f32 %v1304
    %vm1311 = vmor %vm1309, %vm1310
    %v1312 = vsel %vm1311, %v1304, %v1308
    %v1313 = vand.u32 2147483647, %v1303
    %vm1314 = vcmp.eq.f32.partialorder %v1313, 8.507059e+37
    %v1315 = vand.u32 %v1303, 2147483648
    %v1316 = vor.u32 1.1754944e-38, %v1315
    %v1317 = vsel %vm1314, %v1316, %v1312
    %v1318 = vmul.f32 1.0, %v1317
    %v1319 = vmul.f32 %v1298, %v1004
    %v1320 = vmul.f32 %v1279, %v1299
    %v1321 = vadd.f32 %v1319, %v1320
    %v1322 = vtanh.pop %v1321
    %v1323 = vmul.f32 %v1318, %v1322
    %1324 = vst [vmem:[#allocation2] sm:$0xff] %v1323
    %1325 = vst [vmem:[#allocation3] sm:$0xff] %v1321
    %v1326 = vld [vmem:[#allocation2] sm:$0xff]
    %v1327 = vld [vmem:[#allocation3] sm:$0xff]
    %s1328 = scalar_lea.vmem %s0, 64
    %v1329 = vld [vmem:[%s1328] sm:$0xff]
    %v1330 = vld [vmem:[%s1328 + $0x8] sm:$0xff]
    %v1331 = vunpack.c.l.bf16 %v1329
    %v1332 = vunpack.c.h.bf16 %v1329
    %v1333 = vunpack.c.l.bf16 %v1330
    %v1334 = vunpack.c.h.bf16 %v1330
    %v1335 = vpack.c.bf16 %v1326, %v1326
    %v1336 = vld [vmem:[#allocation4] sm:$0xff]
    %v1337 = vld [vmem:[#allocation4 + $0x8] sm:$0xff]
    %v1338 = vld [vmem:[#allocation4 + $0x10] sm:$0xff]
    %v1339 = vld [vmem:[#allocation4 + $0x18] sm:$0xff]
    %v1340 = vld [vmem:[#allocation4 + $0x20] sm:$0xff]
    %v1341 = vld [vmem:[#allocation4 + $0x28] sm:$0xff]
    %v1342 = vld [vmem:[#allocation4 + $0x30] sm:$0xff]
    %v1343 = vld [vmem:[#allocation4 + $0x38] sm:$0xff]
    %v1344 = vld [vmem:[#allocation4 + $0x40] sm:$0xff]
    %v1345 = vld [vmem:[#allocation4 + $0x48] sm:$0xff]
    %v1346 = vld [vmem:[#allocation4 + $0x50] sm:$0xff]
    %v1347 = vld [vmem:[#allocation4 + $0x58] sm:$0xff]
    %v1348 = vld [vmem:[#allocation4 + $0x60] sm:$0xff]
    %v1349 = vld [vmem:[#allocation4 + $0x68] sm:$0xff]
    %v1350 = vld [vmem:[#allocation4 + $0x70] sm:$0xff]
    %v1351 = vld [vmem:[#allocation4 + $0x78] sm:$0xff]
    %v1352 = vld [vmem:[#allocation4 + $0x80] sm:$0xff]
    %v1353 = vld [vmem:[#allocation4 + $0x88] sm:$0xff]
    %v1354 = vld [vmem:[#allocation4 + $0x90] sm:$0xff]
    %v1355 = vld [vmem:[#allocation4 + $0x98] sm:$0xff]
    %v1356 = vld [vmem:[#allocation4 + $0xa0] sm:$0xff]
    %v1357 = vld [vmem:[#allocation4 + $0xa8] sm:$0xff]
    %v1358 = vld [vmem:[#allocation4 + $0xb0] sm:$0xff]
    %v1359 = vld [vmem:[#allocation4 + $0xb8] sm:$0xff]
    %v1360 = vld [vmem:[#allocation4 + $0xc0] sm:$0xff]
    %v1361 = vld [vmem:[#allocation4 + $0xc8] sm:$0xff]
    %v1362 = vld [vmem:[#allocation4 + $0xd0] sm:$0xff]
    %v1363 = vld [vmem:[#allocation4 + $0xd8] sm:$0xff]
    %v1364 = vld [vmem:[#allocation4 + $0xe0] sm:$0xff]
    %v1365 = vld [vmem:[#allocation4 + $0xe8] sm:$0xff]
    %v1366 = vld [vmem:[#allocation4 + $0xf0] sm:$0xff]
    %v1367 = vld [vmem:[#allocation4 + $0xf8] sm:$0xff]
    %v1400 = vunpack.c.l.b16 %v1336
    %v1401 = vunpack.c.h.b16 %v1336
    %v1402 = vunpack.c.l.b16 %v1337
    %v1403 = vunpack.c.h.b16 %v1337
    %v1404 = vunpack.c.l.b16 %v1338
    %v1405 = vunpack.c.h.b16 %v1338
    %v1406 = vunpack.c.l.b16 %v1339
    %v1407 = vunpack.c.h.b16 %v1339
    %v1408 = vunpack.c.l.b16 %v1340
    %v1409 = vunpack.c.h.b16 %v1340
    %v1410 = vunpack.c.l.b16 %v1341
    %v1411 = vunpack.c.h.b16 %v1341
    %v1412 = vunpack.c.l.b16 %v1342
    %v1413 = vunpack.c.h.b16 %v1342
    %v1414 = vunpack.c.l.b16 %v1343
    %v1415 = vunpack.c.h.b16 %v1343
    %v1416 = vunpack.c.l.b16 %v1344
    %v1417 = vunpack.c.h.b16 %v1344
    %v1418 = vunpack.c.l.b16 %v1345
    %v1419 = vunpack.c.h.b16 %v1345
    %v1420 = vunpack.c.l.b16 %v1346
    %v1421 = vunpack.c.h.b16 %v1346
    %v1422 = vunpack.c.l.b16 %v1347
    %v1423 = vunpack.c.h.b16 %v1347
    %v1424 = vunpack.c.l.b16 %v1348
    %v1425 = vunpack.c.h.b16 %v1348
    %v1426 = vunpack.c.l.b16 %v1349
    %v1427 = vunpack.c.h.b16 %v1349
    %v1428 = vunpack.c.l.b16 %v1350
    %v1429 = vunpack.c.h.b16 %v1350
    %v1430 = vunpack.c.l.b16 %v1351
    %v1431 = vunpack.c.h.b16 %v1351
    %v1432 = vunpack.c.l.b16 %v1352
    %v1433 = vunpack.c.h.b16 %v1352
    %v1434 = vunpack.c.l.b16 %v1353
    %v1435 = vunpack.c.h.b16 %v1353
    %v1436 = vunpack.c.l.b16 %v1354
    %v1437 = vunpack.c.h.b16 %v1354
    %v1438 = vunpack.c.l.b16 %v1355
    %v1439 = vunpack.c.h.b16 %v1355
    %v1440 = vunpack.c.l.b16 %v1356
    %v1441 = vunpack.c.h.b16 %v1356
    %v1442 = vunpack.c.l.b16 %v1357
    %v1443 = vunpack.c.h.b16 %v1357
    %v1444 = vunpack.c.l.b16 %v1358
    %v1445 = vunpack.c.h.b16 %v1358
    %v1446 = vunpack.c.l.b16 %v1359
    %v1447 = vunpack.c.h.b16 %v1359
    %v1448 = vunpack.c.l.b16 %v1360
    %v1449 = vunpack.c.h.b16 %v1360
    %v1450 = vunpack.c.l.b16 %v1361
    %v1451 = vunpack.c.h.b16 %v1361
    %v1452 = vunpack.c.l.b16 %v1362
    %v1453 = vunpack.c.h.b16 %v1362
    %v1454 = vunpack.c.l.b16 %v1363
    %v1455 = vunpack.c.h.b16 %v1363
    %v1456 = vunpack.c.l.b16 %v1364
    %v1457 = vunpack.c.h.b16 %v1364
    %v1458 = vunpack.c.l.b16 %v1365
    %v1459 = vunpack.c.h.b16 %v1365
    %v1460 = vunpack.c.l.b16 %v1366
    %v1461 = vunpack.c.h.b16 %v1366
    %v1462 = vunpack.c.l.b16 %v1367
    %v1463 = vunpack.c.h.b16 %v1367
    %v1464 = vpack.c.b16 %v1404, %v1400
    %v1465 = vpack.c.b16 %v1405, %v1401
    %v1466 = vpack.c.b16 %v1406, %v1402
    %v1467 = vpack.c.b16 %v1407, %v1403
    %v1468 = vpack.c.b16 %v1412, %v1408
    %v1469 = vpack.c.b16 %v1413, %v1409
    %v1470 = vpack.c.b16 %v1414, %v1410
    %v1471 = vpack.c.b16 %v1415, %v1411
    %v1472 = vpack.c.b16 %v1420, %v1416
    %v1473 = vpack.c.b16 %v1421, %v1417
    %v1474 = vpack.c.b16 %v1422, %v1418
    %v1475 = vpack.c.b16 %v1423, %v1419
    %v1476 = vpack.c.b16 %v1428, %v1424
    %v1477 = vpack.c.b16 %v1429, %v1425
    %v1478 = vpack.c.b16 %v1430, %v1426
    %v1479 = vpack.c.b16 %v1431, %v1427
    %v1480 = vpack.c.b16 %v1436, %v1432
    %v1481 = vpack.c.b16 %v1437, %v1433
    %v1482 = vpack.c.b16 %v1438, %v1434
    %v1483 = vpack.c.b16 %v1439, %v1435
    %v1484 = vpack.c.b16 %v1444, %v1440
    %v1485 = vpack.c.b16 %v1445, %v1441
    %v1486 = vpack.c.b16 %v1446, %v1442
    %v1487 = vpack.c.b16 %v1447, %v1443
    %v1488 = vpack.c.b16 %v1452, %v1448
    %v1489 = vpack.c.b16 %v1453, %v1449
    %v1490 = vpack.c.b16 %v1454, %v1450
    %v1491 = vpack.c.b16 %v1455, %v1451
    %v1492 = vpack.c.b16 %v1460, %v1456
    %v1493 = vpack.c.b16 %v1461, %v1457
    %v1494 = vpack.c.b16 %v1462, %v1458
    %v1495 = vpack.c.b16 %v1463, %v1459
    %1528 = vmatpush.bf16.msra.mxu0 %v1492
    %1529 = vmatpush.bf16.msra.mxu0 %v1488
    %1530 = vmatpush.bf16.msra.mxu0 %v1484
    %1531 = vmatpush.bf16.msra.mxu0 %v1480
    %1532 = vmatpush.bf16.msra.mxu0 %v1476
    %1533 = vmatpush.bf16.msra.mxu0 %v1472
    %1534 = vmatpush.bf16.msra.mxu0 %v1468
    %1535 = vmatpush.bf16.msra.mxu0 %v1464
    %1536 = vmatmul.bf16.gmra.mxu0 %v1335
    %v1537 = vpop.f32.mrf.mxu0
    %v1538 = vadd.f32 0.0, %v1537
    %v1539 = vpop.f32.mrf.mxu0
    %1540 = vdwg.mxu0
    %1541 = vmatpush.bf16.msra.mxu0 %v1493
    %1542 = vmatpush.bf16.msra.mxu0 %v1489
    %1543 = vmatpush.bf16.msra.mxu0 %v1485
    %1544 = vmatpush.bf16.msra.mxu0 %v1481
    %1545 = vmatpush.bf16.msra.mxu0 %v1477
    %1546 = vmatpush.bf16.msra.mxu0 %v1473
    %1547 = vmatpush.bf16.msra.mxu0 %v1469
    %1548 = vmatpush.bf16.msra.mxu0 %v1465
    %1549 = vmatmul.bf16.gmra.mxu0 %v1335
    %v1550 = vpop.f32.mrf.mxu0
    %v1551 = vadd.f32 0.0, %v1550
    %v1552 = vpop.f32.mrf.mxu0
    %1553 = vdwg.mxu0
    %1554 = vmatpush.bf16.msra.mxu0 %v1494
    %1555 = vmatpush.bf16.msra.mxu0 %v1490
    %1556 = vmatpush.bf16.msra.mxu0 %v1486
    %1557 = vmatpush.bf16.msra.mxu0 %v1482
    %1558 = vmatpush.bf16.msra.mxu0 %v1478
    %1559 = vmatpush.bf16.msra.mxu0 %v1474
    %1560 = vmatpush.bf16.msra.mxu0 %v1470
    %1561 = vmatpush.bf16.msra.mxu0 %v1466
    %1562 = vmatmul.bf16.gmra.mxu0 %v1335
    %v1563 = vpop.f32.mrf.mxu0
    %v1564 = vadd.f32 0.0, %v1563
    %v1565 = vpop.f32.mrf.mxu0
    %1566 = vdwg.mxu0
    %1567 = vmatpush.bf16.msra.mxu0 %v1495
    %1568 = vmatpush.bf16.msra.mxu0 %v1491
    %1569 = vmatpush.bf16.msra.mxu0 %v1487
    %1570 = vmatpush.bf16.msra.mxu0 %v1483
    %1571 = vmatpush.bf16.msra.mxu0 %v1479
    %1572 = vmatpush.bf16.msra.mxu0 %v1475
    %1573 = vmatpush.bf16.msra.mxu0 %v1471
    %1574 = vmatpush.bf16.msra.mxu0 %v1467
    %1575 = vmatmul.bf16.gmra.mxu0 %v1335
    %v1576 = vpop.f32.mrf.mxu0
    %v1577 = vadd.f32 0.0, %v1576
    %v1578 = vpop.f32.mrf.mxu0
    %1579 = vdwg.mxu0
    %v1580 = vadd.f32 %v1331, %v1538
    %v1581 = vadd.f32 %v1332, %v1551
    %v1582 = vadd.f32 %v1333, %v1564
    %v1583 = vadd.f32 %v1334, %v1577
    %v1584 = vxor.u32 %v1580, 2147483648
    %v1585 = vmul.f32 %v1584, 1.442695
    %v1586 = vpow.pop %v1585
    %v1587 = vadd.f32 %v1586, 1.0
    %v1588 = vrcp.pop %v1587
    %v1589 = vmul.f32 %v1587, %v1588
    %v1590 = vsub.f32 1.0, %v1589
    %v1591 = vmul.f32 %v1588, %v1590
    %v1592 = vadd.f32 %v1588, %v1591
    %vm1593 = vweird.f32 %v1587
    %vm1594 = vweird.f32 %v1588
    %vm1595 = vmor %vm1593, %vm1594
    %v1596 = vsel %vm1595, %v1588, %v1592
    %v1597 = vand.u32 2147483647, %v1587
    %vm1598 = vcmp.eq.f32.partialorder %v1597, 8.507059e+37
    %v1599 = vand.u32 %v1587, 2147483648
    %v1600 = vor.u32 1.1754944e-38, %v1599
    %v1601 = vsel %vm1598, %v1600, %v1596
    %v1602 = vmul.f32 1.0, %v1601
    %v1603 = vxor.u32 %v1581, 2147483648
    %v1604 = vmul.f32 %v1603, 1.442695
    %v1605 = vpow.pop %v1604
    %v1606 = vadd.f32 %v1605, 1.0
    %v1607 = vrcp.pop %v1606
    %v1608 = vmul.f32 %v1606, %v1607
    %v1609 = vsub.f32 1.0, %v1608
    %v1610 = vmul.f32 %v1607, %v1609
    %v1611 = vadd.f32 %v1607, %v1610
    %vm1612 = vweird.f32 %v1606
    %vm1613 = vweird.f32 %v1607
    %vm1614 = vmor %vm1612, %vm1613
    %v1615 = vsel %vm1614, %v1607, %v1611
    %v1616 = vand.u32 2147483647, %v1606
    %vm1617 = vcmp.eq.f32.partialorder %v1616, 8.507059e+37
    %v1618 = vand.u32 %v1606, 2147483648
    %v1619 = vor.u32 1.1754944e-38, %v1618
    %v1620 = vsel %vm1617, %v1619, %v1615
    %v1621 = vmul.f32 1.0, %v1620
    %v1622 = vtanh.pop %v1582
    %v1623 = vxor.u32 %v1583, 2147483648
    %v1624 = vmul.f32 %v1623, 1.442695
    %v1625 = vpow.pop %v1624
    %v1626 = vadd.f32 %v1625, 1.0
    %v1627 = vrcp.pop %v1626
    %v1628 = vmul.f32 %v1626, %v1627
    %v1629 = vsub.f32 1.0, %v1628
    %v1630 = vmul.f32 %v1627, %v1629
    %v1631 = vadd.f32 %v1627, %v1630
    %vm1632 = vweird.f32 %v1626
    %vm1633 = vweird.f32 %v1627
    %vm1634 = vmor %vm1632, %vm1633
    %v1635 = vsel %vm1634, %v1627, %v1631
    %v1636 = vand.u32 2147483647, %v1626
    %vm1637 = vcmp.eq.f32.partialorder %v1636, 8.507059e+37
    %v1638 = vand.u32 %v1626, 2147483648
    %v1639 = vor.u32 1.1754944e-38, %v1638
    %v1640 = vsel %vm1637, %v1639, %v1635
    %v1641 = vmul.f32 1.0, %v1640
    %v1642 = vmul.f32 %v1621, %v1327
    %v1643 = vmul.f32 %v1602, %v1622
    %v1644 = vadd.f32 %v1642, %v1643
    %v1645 = vtanh.pop %v1644
    %v1646 = vmul.f32 %v1641, %v1645
    %1647 = vst [vmem:[#allocation2] sm:$0xff] %v1646
    %1648 = vst [vmem:[#allocation3] sm:$0xff] %v1644
    %v1649 = vld [vmem:[#allocation2] sm:$0xff]
    %v1650 = vld [vmem:[#allocation3] sm:$0xff]
    %s1651 = scalar_lea.vmem %s0, 80
    %v1652 = vld [vmem:[%s1651] sm:$0xff]
    %v1653 = vld [vmem:[%s1651 + $0x8] sm:$0xff]
    %v1654 = vunpack.c.l.bf16 %v1652
    %v1655 = vunpack.c.h.bf16 %v1652
    %v1656 = vunpack.c.l.bf16 %v1653
    %v1657 = vunpack.c.h.bf16 %v1653
    %v1658 = vpack.c.bf16 %v1649, %v1649
    %v1659 = vld [vmem:[#allocation4] sm:$0xff]
    %v1660 = vld [vmem:[#allocation4 + $0x8] sm:$0xff]
    %v1661 = vld [vmem:[#allocation4 + $0x10] sm:$0xff]
    %v1662 = vld [vmem:[#allocation4 + $0x18] sm:$0xff]
    %v1663 = vld [vmem:[#allocation4 + $0x20] sm:$0xff]
    %v1664 = vld [vmem:[#allocation4 + $0x28] sm:$0xff]
    %v1665 = vld [vmem:[#allocation4 + $0x30] sm:$0xff]
    %v1666 = vld [vmem:[#allocation4 + $0x38] sm:$0xff]
    %v1667 = vld [vmem:[#allocation4 + $0x40] sm:$0xff]
    %v1668 = vld [vmem:[#allocation4 + $0x48] sm:$0xff]
    %v1669 = vld [vmem:[#allocation4 + $0x50] sm:$0xff]
    %v1670 = vld [vmem:[#allocation4 + $0x58] sm:$0xff]
    %v1671 = vld [vmem:[#allocation4 + $0x60] sm:$0xff]
    %v1672 = vld [vmem:[#allocation4 + $0x68] sm:$0xff]
    %v1673 = vld [vmem:[#allocation4 + $0x70] sm:$0xff]
    %v1674 = vld [vmem:[#allocation4 + $0x78] sm:$0xff]
    %v1675 = vld [vmem:[#allocation4 + $0x80] sm:$0xff]
    %v1676 = vld [vmem:[#allocation4 + $0x88] sm:$0xff]
    %v1677 = vld [vmem:[#allocation4 + $0x90] sm:$0xff]
    %v1678 = vld [vmem:[#allocation4 + $0x98] sm:$0xff]
    %v1679 = vld [vmem:[#allocation4 + $0xa0] sm:$0xff]
    %v1680 = vld [vmem:[#allocation4 + $0xa8] sm:$0xff]
    %v1681 = vld [vmem:[#allocation4 + $0xb0] sm:$0xff]
    %v1682 = vld [vmem:[#allocation4 + $0xb8] sm:$0xff]
    %v1683 = vld [vmem:[#allocation4 + $0xc0] sm:$0xff]
    %v1684 = vld [vmem:[#allocation4 + $0xc8] sm:$0xff]
    %v1685 = vld [vmem:[#allocation4 + $0xd0] sm:$0xff]
    %v1686 = vld [vmem:[#allocation4 + $0xd8] sm:$0xff]
    %v1687 = vld [vmem:[#allocation4 + $0xe0] sm:$0xff]
    %v1688 = vld [vmem:[#allocation4 + $0xe8] sm:$0xff]
    %v1689 = vld [vmem:[#allocation4 + $0xf0] sm:$0xff]
    %v1690 = vld [vmem:[#allocation4 + $0xf8] sm:$0xff]
    %v1723 = vunpack.c.l.b16 %v1659
    %v1724 = vunpack.c.h.b16 %v1659
    %v1725 = vunpack.c.l.b16 %v1660
    %v1726 = vunpack.c.h.b16 %v1660
    %v1727 = vunpack.c.l.b16 %v1661
    %v1728 = vunpack.c.h.b16 %v1661
    %v1729 = vunpack.c.l.b16 %v1662
    %v1730 = vunpack.c.h.b16 %v1662
    %v1731 = vunpack.c.l.b16 %v1663
    %v1732 = vunpack.c.h.b16 %v1663
    %v1733 = vunpack.c.l.b16 %v1664
    %v1734 = vunpack.c.h.b16 %v1664
    %v1735 = vunpack.c.l.b16 %v1665
    %v1736 = vunpack.c.h.b16 %v1665
    %v1737 = vunpack.c.l.b16 %v1666
    %v1738 = vunpack.c.h.b16 %v1666
    %v1739 = vunpack.c.l.b16 %v1667
    %v1740 = vunpack.c.h.b16 %v1667
    %v1741 = vunpack.c.l.b16 %v1668
    %v1742 = vunpack.c.h.b16 %v1668
    %v1743 = vunpack.c.l.b16 %v1669
    %v1744 = vunpack.c.h.b16 %v1669
    %v1745 = vunpack.c.l.b16 %v1670
    %v1746 = vunpack.c.h.b16 %v1670
    %v1747 = vunpack.c.l.b16 %v1671
    %v1748 = vunpack.c.h.b16 %v1671
    %v1749 = vunpack.c.l.b16 %v1672
    %v1750 = vunpack.c.h.b16 %v1672
    %v1751 = vunpack.c.l.b16 %v1673
    %v1752 = vunpack.c.h.b16 %v1673
    %v1753 = vunpack.c.l.b16 %v1674
    %v1754 = vunpack.c.h.b16 %v1674
    %v1755 = vunpack.c.l.b16 %v1675
    %v1756 = vunpack.c.h.b16 %v1675
    %v1757 = vunpack.c.l.b16 %v1676
    %v1758 = vunpack.c.h.b16 %v1676
    %v1759 = vunpack.c.l.b16 %v1677
    %v1760 = vunpack.c.h.b16 %v1677
    %v1761 = vunpack.c.l.b16 %v1678
    %v1762 = vunpack.c.h.b16 %v1678
    %v1763 = vunpack.c.l.b16 %v1679
    %v1764 = vunpack.c.h.b16 %v1679
    %v1765 = vunpack.c.l.b16 %v1680
    %v1766 = vunpack.c.h.b16 %v1680
    %v1767 = vunpack.c.l.b16 %v1681
    %v1768 = vunpack.c.h.b16 %v1681
    %v1769 = vunpack.c.l.b16 %v1682
    %v1770 = vunpack.c.h.b16 %v1682
    %v1771 = vunpack.c.l.b16 %v1683
    %v1772 = vunpack.c.h.b16 %v1683
    %v1773 = vunpack.c.l.b16 %v1684
    %v1774 = vunpack.c.h.b16 %v1684
    %v1775 = vunpack.c.l.b16 %v1685
    %v1776 = vunpack.c.h.b16 %v1685
    %v1777 = vunpack.c.l.b16 %v1686
    %v1778 = vunpack.c.h.b16 %v1686
    %v1779 = vunpack.c.l.b16 %v1687
    %v1780 = vunpack.c.h.b16 %v1687
    %v1781 = vunpack.c.l.b16 %v1688
    %v1782 = vunpack.c.h.b16 %v1688
    %v1783 = vunpack.c.l.b16 %v1689
    %v1784 = vunpack.c.h.b16 %v1689
    %v1785 = vunpack.c.l.b16 %v1690
    %v1786 = vunpack.c.h.b16 %v1690
    %v1787 = vpack.c.b16 %v1727, %v1723
    %v1788 = vpack.c.b16 %v1728, %v1724
    %v1789 = vpack.c.b16 %v1729, %v1725
    %v1790 = vpack.c.b16 %v1730, %v1726
    %v1791 = vpack.c.b16 %v1735, %v1731
    %v1792 = vpack.c.b16 %v1736, %v1732
    %v1793 = vpack.c.b16 %v1737, %v1733
    %v1794 = vpack.c.b16 %v1738, %v1734
    %v1795 = vpack.c.b16 %v1743, %v1739
    %v1796 = vpack.c.b16 %v1744, %v1740
    %v1797 = vpack.c.b16 %v1745, %v1741
    %v1798 = vpack.c.b16 %v1746, %v1742
    %v1799 = vpack.c.b16 %v1751, %v1747
    %v1800 = vpack.c.b16 %v1752, %v1748
    %v1801 = vpack.c.b16 %v1753, %v1749
    %v1802 = vpack.c.b16 %v1754, %v1750
    %v1803 = vpack.c.b16 %v1759, %v1755
    %v1804 = vpack.c.b16 %v1760, %v1756
    %v1805 = vpack.c.b16 %v1761, %v1757
    %v1806 = vpack.c.b16 %v1762, %v1758
    %v1807 = vpack.c.b16 %v1767, %v1763
    %v1808 = vpack.c.b16 %v1768, %v1764
    %v1809 = vpack.c.b16 %v1769, %v1765
    %v1810 = vpack.c.b16 %v1770, %v1766
    %v1811 = vpack.c.b16 %v1775, %v1771
    %v1812 = vpack.c.b16 %v1776, %v1772
    %v1813 = vpack.c.b16 %v1777, %v1773
    %v1814 = vpack.c.b16 %v1778, %v1774
    %v1815 = vpack.c.b16 %v1783, %v1779
    %v1816 = vpack.c.b16 %v1784, %v1780
    %v1817 = vpack.c.b16 %v1785, %v1781
    %v1818 = vpack.c.b16 %v1786, %v1782
    %1851 = vmatpush.bf16.msra.mxu0 %v1815
    %1852 = vmatpush.bf16.msra.mxu0 %v1811
    %1853 = vmatpush.bf16.msra.mxu0 %v1807
    %1854 = vmatpush.bf16.msra.mxu0 %v1803
    %1855 = vmatpush.bf16.msra.mxu0 %v1799
    %1856 = vmatpush.bf16.msra.mxu0 %v1795
    %1857 = vmatpush.bf16.msra.mxu0 %v1791
    %1858 = vmatpush.bf16.msra.mxu0 %v1787
    %1859 = vmatmul.bf16.gmra.mxu0 %v1658
    %v1860 = vpop.f32.mrf.mxu0
    %v1861 = vadd.f32 0.0, %v1860
    %v1862 = vpop.f32.mrf.mxu0
    %1863 = vdwg.mxu0
    %1864 = vmatpush.bf16.msra.mxu0 %v1816
    %1865 = vmatpush.bf16.msra.mxu0 %v1812
    %1866 = vmatpush.bf16.msra.mxu0 %v1808
    %1867 = vmatpush.bf16.msra.mxu0 %v1804
    %1868 = vmatpush.bf16.msra.mxu0 %v1800
    %1869 = vmatpush.bf16.msra.mxu0 %v1796
    %1870 = vmatpush.bf16.msra.mxu0 %v1792
    %1871 = vmatpush.bf16.msra.mxu0 %v1788
    %1872 = vmatmul.bf16.gmra.mxu0 %v1658
    %v1873 = vpop.f32.mrf.mxu0
    %v1874 = vadd.f32 0.0, %v1873
    %v1875 = vpop.f32.mrf.mxu0
    %1876 = vdwg.mxu0
    %1877 = vmatpush.bf16.msra.mxu0 %v1817
    %1878 = vmatpush.bf16.msra.mxu0 %v1813
    %1879 = vmatpush.bf16.msra.mxu0 %v1809
    %1880 = vmatpush.bf16.msra.mxu0 %v1805
    %1881 = vmatpush.bf16.msra.mxu0 %v1801
    %1882 = vmatpush.bf16.msra.mxu0 %v1797
    %1883 = vmatpush.bf16.msra.mxu0 %v1793
    %1884 = vmatpush.bf16.msra.mxu0 %v1789
    %1885 = vmatmul.bf16.gmra.mxu0 %v1658
    %v1886 = vpop.f32.mrf.mxu0
    %v1887 = vadd.f32 0.0, %v1886
    %v1888 = vpop.f32.mrf.mxu0
    %1889 = vdwg.mxu0
    %1890 = vmatpush.bf16.msra.mxu0 %v1818
    %1891 = vmatpush.bf16.msra.mxu0 %v1814
    %1892 = vmatpush.bf16.msra.mxu0 %v1810
    %1893 = vmatpush.bf16.msra.mxu0 %v1806
    %1894 = vmatpush.bf16.msra.mxu0 %v1802
    %1895 = vmatpush.bf16.msra.mxu0 %v1798
    %1896 = vmatpush.bf16.msra.mxu0 %v1794
    %1897 = vmatpush.bf16.msra.mxu0 %v1790
    %1898 = vmatmul.bf16.gmra.mxu0 %v1658
    %v1899 = vpop.f32.mrf.mxu0
    %v1900 = vadd.f32 0.0, %v1899
    %v1901 = vpop.f32.mrf.mxu0
    %1902 = vdwg.mxu0
    %v1903 = vadd.f32 %v1654, %v1861
    %v1904 = vadd.f32 %v1655, %v1874
    %v1905 = vadd.f32 %v1656, %v1887
    %v1906 = vadd.f32 %v1657, %v1900
    %v1907 = vxor.u32 %v1903, 2147483648
    %v1908 = vmul.f32 %v1907, 1.442695
    %v1909 = vpow.pop %v1908
    %v1910 = vadd.f32 %v1909, 1.0
    %v1911 = vrcp.pop %v1910
    %v1912 = vmul.f32 %v1910, %v1911
    %v1913 = vsub.f32 1.0, %v1912
    %v1914 = vmul.f32 %v1911, %v1913
    %v1915 = vadd.f32 %v1911, %v1914
    %vm1916 = vweird.f32 %v1910
    %vm1917 = vweird.f32 %v1911
    %vm1918 = vmor %vm1916, %vm1917
    %v1919 = vsel %vm1918, %v1911, %v1915
    %v1920 = vand.u32 2147483647, %v1910
    %vm1921 = vcmp.eq.f32.partialorder %v1920, 8.507059e+37
    %v1922 = vand.u32 %v1910, 2147483648
    %v1923 = vor.u32 1.1754944e-38, %v1922
    %v1924 = vsel %vm1921, %v1923, %v1919
    %v1925 = vmul.f32 1.0, %v1924
    %v1926 = vxor.u32 %v1904, 2147483648
    %v1927 = vmul.f32 %v1926, 1.442695
    %v1928 = vpow.pop %v1927
    %v1929 = vadd.f32 %v1928, 1.0
    %v1930 = vrcp.pop %v1929
    %v1931 = vmul.f32 %v1929, %v1930
    %v1932 = vsub.f32 1.0, %v1931
    %v1933 = vmul.f32 %v1930, %v1932
    %v1934 = vadd.f32 %v1930, %v1933
    %vm1935 = vweird.f32 %v1929
    %vm1936 = vweird.f32 %v1930
    %vm1937 = vmor %vm1935, %vm1936
    %v1938 = vsel %vm1937, %v1930, %v1934
    %v1939 = vand.u32 2147483647, %v1929
    %vm1940 = vcmp.eq.f32.partialorder %v1939, 8.507059e+37
    %v1941 = vand.u32 %v1929, 2147483648
    %v1942 = vor.u32 1.1754944e-38, %v1941
    %v1943 = vsel %vm1940, %v1942, %v1938
    %v1944 = vmul.f32 1.0, %v1943
    %v1945 = vtanh.pop %v1905
    %v1946 = vxor.u32 %v1906, 2147483648
    %v1947 = vmul.f32 %v1946, 1.442695
    %v1948 = vpow.pop %v1947
    %v1949 = vadd.f32 %v1948, 1.0
    %v1950 = vrcp.pop %v1949
    %v1951 = vmul.f32 %v1949, %v1950
    %v1952 = vsub.f32 1.0, %v1951
    %v1953 = vmul.f32 %v1950, %v1952
    %v1954 = vadd.f32 %v1950, %v1953
    %vm1955 = vweird.f32 %v1949
    %vm1956 = vweird.f32 %v1950
    %vm1957 = vmor %vm1955, %vm1956
    %v1958 = vsel %vm1957, %v1950, %v1954
    %v1959 = vand.u32 2147483647, %v1949
    %vm1960 = vcmp.eq.f32.partialorder %v1959, 8.507059e+37
    %v1961 = vand.u32 %v1949, 2147483648
    %v1962 = vor.u32 1.1754944e-38, %v1961
    %v1963 = vsel %vm1960, %v1962, %v1958
    %v1964 = vmul.f32 1.0, %v1963
    %v1965 = vmul.f32 %v1944, %v1650
    %v1966 = vmul.f32 %v1925, %v1945
    %v1967 = vadd.f32 %v1965, %v1966
    %v1968 = vtanh.pop %v1967
    %v1969 = vmul.f32 %v1964, %v1968
    %1970 = vst [vmem:[#allocation2] sm:$0xff] %v1969
    %1971 = vst [vmem:[#allocation3] sm:$0xff] %v1967
    %v1972 = vld [vmem:[#allocation2] sm:$0xff]
    %v1973 = vld [vmem:[#allocation3] sm:$0xff]
    %s1974 = scalar_lea.vmem %s0, 96
    %v1975 = vld [vmem:[%s1974] sm:$0xff]
    %v1976 = vld [vmem:[%s1974 + $0x8] sm:$0xff]
    %v1977 = vunpack.c.l.bf16 %v1975
    %v1978 = vunpack.c.h.bf16 %v1975
    %v1979 = vunpack.c.l.bf16 %v1976
    %v1980 = vunpack.c.h.bf16 %v1976
    %v1981 = vpack.c.bf16 %v1972, %v1972
    %v1982 = vld [vmem:[#allocation4] sm:$0xff]
    %v1983 = vld [vmem:[#allocation4 + $0x8] sm:$0xff]
    %v1984 = vld [vmem:[#allocation4 + $0x10] sm:$0xff]
    %v1985 = vld [vmem:[#allocation4 + $0x18] sm:$0xff]
    %v1986 = vld [vmem:[#allocation4 + $0x20] sm:$0xff]
    %v1987 = vld [vmem:[#allocation4 + $0x28] sm:$0xff]
    %v1988 = vld [vmem:[#allocation4 + $0x30] sm:$0xff]
    %v1989 = vld [vmem:[#allocation4 + $0x38] sm:$0xff]
    %v1990 = vld [vmem:[#allocation4 + $0x40] sm:$0xff]
    %v1991 = vld [vmem:[#allocation4 + $0x48] sm:$0xff]
    %v1992 = vld [vmem:[#allocation4 + $0x50] sm:$0xff]
    %v1993 = vld [vmem:[#allocation4 + $0x58] sm:$0xff]
    %v1994 = vld [vmem:[#allocation4 + $0x60] sm:$0xff]
    %v1995 = vld [vmem:[#allocation4 + $0x68] sm:$0xff]
    %v1996 = vld [vmem:[#allocation4 + $0x70] sm:$0xff]
    %v1997 = vld [vmem:[#allocation4 + $0x78] sm:$0xff]
    %v1998 = vld [vmem:[#allocation4 + $0x80] sm:$0xff]
    %v1999 = vld [vmem:[#allocation4 + $0x88] sm:$0xff]
    %v2000 = vld [vmem:[#allocation4 + $0x90] sm:$0xff]
    %v2001 = vld [vmem:[#allocation4 + $0x98] sm:$0xff]
    %v2002 = vld [vmem:[#allocation4 + $0xa0] sm:$0xff]
    %v2003 = vld [vmem:[#allocation4 + $0xa8] sm:$0xff]
    %v2004 = vld [vmem:[#allocation4 + $0xb0] sm:$0xff]
    %v2005 = vld [vmem:[#allocation4 + $0xb8] sm:$0xff]
    %v2006 = vld [vmem:[#allocation4 + $0xc0] sm:$0xff]
    %v2007 = vld [vmem:[#allocation4 + $0xc8] sm:$0xff]
    %v2008 = vld [vmem:[#allocation4 + $0xd0] sm:$0xff]
    %v2009 = vld [vmem:[#allocation4 + $0xd8] sm:$0xff]
    %v2010 = vld [vmem:[#allocation4 + $0xe0] sm:$0xff]
    %v2011 = vld [vmem:[#allocation4 + $0xe8] sm:$0xff]
    %v2012 = vld [vmem:[#allocation4 + $0xf0] sm:$0xff]
    %v2013 = vld [vmem:[#allocation4 + $0xf8] sm:$0xff]
    %v2046 = vunpack.c.l.b16 %v1982
    %v2047 = vunpack.c.h.b16 %v1982
    %v2048 = vunpack.c.l.b16 %v1983
    %v2049 = vunpack.c.h.b16 %v1983
    %v2050 = vunpack.c.l.b16 %v1984
    %v2051 = vunpack.c.h.b16 %v1984
    %v2052 = vunpack.c.l.b16 %v1985
    %v2053 = vunpack.c.h.b16 %v1985
    %v2054 = vunpack.c.l.b16 %v1986
    %v2055 = vunpack.c.h.b16 %v1986
    %v2056 = vunpack.c.l.b16 %v1987
    %v2057 = vunpack.c.h.b16 %v1987
    %v2058 = vunpack.c.l.b16 %v1988
    %v2059 = vunpack.c.h.b16 %v1988
    %v2060 = vunpack.c.l.b16 %v1989
    %v2061 = vunpack.c.h.b16 %v1989
    %v2062 = vunpack.c.l.b16 %v1990
    %v2063 = vunpack.c.h.b16 %v1990
    %v2064 = vunpack.c.l.b16 %v1991
    %v2065 = vunpack.c.h.b16 %v1991
    %v2066 = vunpack.c.l.b16 %v1992
    %v2067 = vunpack.c.h.b16 %v1992
    %v2068 = vunpack.c.l.b16 %v1993
    %v2069 = vunpack.c.h.b16 %v1993
    %v2070 = vunpack.c.l.b16 %v1994
    %v2071 = vunpack.c.h.b16 %v1994
    %v2072 = vunpack.c.l.b16 %v1995
    %v2073 = vunpack.c.h.b16 %v1995
    %v2074 = vunpack.c.l.b16 %v1996
    %v2075 = vunpack.c.h.b16 %v1996
    %v2076 = vunpack.c.l.b16 %v1997
    %v2077 = vunpack.c.h.b16 %v1997
    %v2078 = vunpack.c.l.b16 %v1998
    %v2079 = vunpack.c.h.b16 %v1998
    %v2080 = vunpack.c.l.b16 %v1999
    %v2081 = vunpack.c.h.b16 %v1999
    %v2082 = vunpack.c.l.b16 %v2000
    %v2083 = vunpack.c.h.b16 %v2000
    %v2084 = vunpack.c.l.b16 %v2001
    %v2085 = vunpack.c.h.b16 %v2001
    %v2086 = vunpack.c.l.b16 %v2002
    %v2087 = vunpack.c.h.b16 %v2002
    %v2088 = vunpack.c.l.b16 %v2003
    %v2089 = vunpack.c.h.b16 %v2003
    %v2090 = vunpack.c.l.b16 %v2004
    %v2091 = vunpack.c.h.b16 %v2004
    %v2092 = vunpack.c.l.b16 %v2005
    %v2093 = vunpack.c.h.b16 %v2005
    %v2094 = vunpack.c.l.b16 %v2006
    %v2095 = vunpack.c.h.b16 %v2006
    %v2096 = vunpack.c.l.b16 %v2007
    %v2097 = vunpack.c.h.b16 %v2007
    %v2098 = vunpack.c.l.b16 %v2008
    %v2099 = vunpack.c.h.b16 %v2008
    %v2100 = vunpack.c.l.b16 %v2009
    %v2101 = vunpack.c.h.b16 %v2009
    %v2102 = vunpack.c.l.b16 %v2010
    %v2103 = vunpack.c.h.b16 %v2010
    %v2104 = vunpack.c.l.b16 %v2011
    %v2105 = vunpack.c.h.b16 %v2011
    %v2106 = vunpack.c.l.b16 %v2012
    %v2107 = vunpack.c.h.b16 %v2012
    %v2108 = vunpack.c.l.b16 %v2013
    %v2109 = vunpack.c.h.b16 %v2013
    %v2110 = vpack.c.b16 %v2050, %v2046
    %v2111 = vpack.c.b16 %v2051, %v2047
    %v2112 = vpack.c.b16 %v2052, %v2048
    %v2113 = vpack.c.b16 %v2053, %v2049
    %v2114 = vpack.c.b16 %v2058, %v2054
    %v2115 = vpack.c.b16 %v2059, %v2055
    %v2116 = vpack.c.b16 %v2060, %v2056
    %v2117 = vpack.c.b16 %v2061, %v2057
    %v2118 = vpack.c.b16 %v2066, %v2062
    %v2119 = vpack.c.b16 %v2067, %v2063
    %v2120 = vpack.c.b16 %v2068, %v2064
    %v2121 = vpack.c.b16 %v2069, %v2065
    %v2122 = vpack.c.b16 %v2074, %v2070
    %v2123 = vpack.c.b16 %v2075, %v2071
    %v2124 = vpack.c.b16 %v2076, %v2072
    %v2125 = vpack.c.b16 %v2077, %v2073
    %v2126 = vpack.c.b16 %v2082, %v2078
    %v2127 = vpack.c.b16 %v2083, %v2079
    %v2128 = vpack.c.b16 %v2084, %v2080
    %v2129 = vpack.c.b16 %v2085, %v2081
    %v2130 = vpack.c.b16 %v2090, %v2086
    %v2131 = vpack.c.b16 %v2091, %v2087
    %v2132 = vpack.c.b16 %v2092, %v2088
    %v2133 = vpack.c.b16 %v2093, %v2089
    %v2134 = vpack.c.b16 %v2098, %v2094
    %v2135 = vpack.c.b16 %v2099, %v2095
    %v2136 = vpack.c.b16 %v2100, %v2096
    %v2137 = vpack.c.b16 %v2101, %v2097
    %v2138 = vpack.c.b16 %v2106, %v2102
    %v2139 = vpack.c.b16 %v2107, %v2103
    %v2140 = vpack.c.b16 %v2108, %v2104
    %v2141 = vpack.c.b16 %v2109, %v2105
    %2174 = vmatpush.bf16.msra.mxu0 %v2138
    %2175 = vmatpush.bf16.msra.mxu0 %v2134
    %2176 = vmatpush.bf16.msra.mxu0 %v2130
    %2177 = vmatpush.bf16.msra.mxu0 %v2126
    %2178 = vmatpush.bf16.msra.mxu0 %v2122
    %2179 = vmatpush.bf16.msra.mxu0 %v2118
    %2180 = vmatpush.bf16.msra.mxu0 %v2114
    %2181 = vmatpush.bf16.msra.mxu0 %v2110
    %2182 = vmatmul.bf16.gmra.mxu0 %v1981
    %v2183 = vpop.f32.mrf.mxu0
    %v2184 = vadd.f32 0.0, %v2183
    %v2185 = vpop.f32.mrf.mxu0
    %2186 = vdwg.mxu0
    %2187 = vmatpush.bf16.msra.mxu0 %v2139
    %2188 = vmatpush.bf16.msra.mxu0 %v2135
    %2189 = vmatpush.bf16.msra.mxu0 %v2131
    %2190 = vmatpush.bf16.msra.mxu0 %v2127
    %2191 = vmatpush.bf16.msra.mxu0 %v2123
    %2192 = vmatpush.bf16.msra.mxu0 %v2119
    %2193 = vmatpush.bf16.msra.mxu0 %v2115
    %2194 = vmatpush.bf16.msra.mxu0 %v2111
    %2195 = vmatmul.bf16.gmra.mxu0 %v1981
    %v2196 = vpop.f32.mrf.mxu0
    %v2197 = vadd.f32 0.0, %v2196
    %v2198 = vpop.f32.mrf.mxu0
    %2199 = vdwg.mxu0
    %2200 = vmatpush.bf16.msra.mxu0 %v2140
    %2201 = vmatpush.bf16.msra.mxu0 %v2136
    %2202 = vmatpush.bf16.msra.mxu0 %v2132
    %2203 = vmatpush.bf16.msra.mxu0 %v2128
    %2204 = vmatpush.bf16.msra.mxu0 %v2124
    %2205 = vmatpush.bf16.msra.mxu0 %v2120
    %2206 = vmatpush.bf16.msra.mxu0 %v2116
    %2207 = vmatpush.bf16.msra.mxu0 %v2112
    %2208 = vmatmul.bf16.gmra.mxu0 %v1981
    %v2209 = vpop.f32.mrf.mxu0
    %v2210 = vadd.f32 0.0, %v2209
    %v2211 = vpop.f32.mrf.mxu0
    %2212 = vdwg.mxu0
    %2213 = vmatpush.bf16.msra.mxu0 %v2141
    %2214 = vmatpush.bf16.msra.mxu0 %v2137
    %2215 = vmatpush.bf16.msra.mxu0 %v2133
    %2216 = vmatpush.bf16.msra.mxu0 %v2129
    %2217 = vmatpush.bf16.msra.mxu0 %v2125
    %2218 = vmatpush.bf16.msra.mxu0 %v2121
    %2219 = vmatpush.bf16.msra.mxu0 %v2117
    %2220 = vmatpush.bf16.msra.mxu0 %v2113
    %2221 = vmatmul.bf16.gmra.mxu0 %v1981
    %v2222 = vpop.f32.mrf.mxu0
    %v2223 = vadd.f32 0.0, %v2222
    %v2224 = vpop.f32.mrf.mxu0
    %2225 = vdwg.mxu0
    %v2226 = vadd.f32 %v1977, %v2184
    %v2227 = vadd.f32 %v1978, %v2197
    %v2228 = vadd.f32 %v1979, %v2210
    %v2229 = vadd.f32 %v1980, %v2223
    %v2230 = vxor.u32 %v2226, 2147483648
    %v2231 = vmul.f32 %v2230, 1.442695
    %v2232 = vpow.pop %v2231
    %v2233 = vadd.f32 %v2232, 1.0
    %v2234 = vrcp.pop %v2233
    %v2235 = vmul.f32 %v2233, %v2234
    %v2236 = vsub.f32 1.0, %v2235
    %v2237 = vmul.f32 %v2234, %v2236
    %v2238 = vadd.f32 %v2234, %v2237
    %vm2239 = vweird.f32 %v2233
    %vm2240 = vweird.f32 %v2234
    %vm2241 = vmor %vm2239, %vm2240
    %v2242 = vsel %vm2241, %v2234, %v2238
    %v2243 = vand.u32 2147483647, %v2233
    %vm2244 = vcmp.eq.f32.partialorder %v2243, 8.507059e+37
    %v2245 = vand.u32 %v2233, 2147483648
    %v2246 = vor.u32 1.1754944e-38, %v2245
    %v2247 = vsel %vm2244, %v2246, %v2242
    %v2248 = vmul.f32 1.0, %v2247
    %v2249 = vxor.u32 %v2227, 2147483648
    %v2250 = vmul.f32 %v2249, 1.442695
    %v2251 = vpow.pop %v2250
    %v2252 = vadd.f32 %v2251, 1.0
    %v2253 = vrcp.pop %v2252
    %v2254 = vmul.f32 %v2252, %v2253
    %v2255 = vsub.f32 1.0, %v2254
    %v2256 = vmul.f32 %v2253, %v2255
    %v2257 = vadd.f32 %v2253, %v2256
    %vm2258 = vweird.f32 %v2252
    %vm2259 = vweird.f32 %v2253
    %vm2260 = vmor %vm2258, %vm2259
    %v2261 = vsel %vm2260, %v2253, %v2257
    %v2262 = vand.u32 2147483647, %v2252
    %vm2263 = vcmp.eq.f32.partialorder %v2262, 8.507059e+37
    %v2264 = vand.u32 %v2252, 2147483648
    %v2265 = vor.u32 1.1754944e-38, %v2264
    %v2266 = vsel %vm2263, %v2265, %v2261
    %v2267 = vmul.f32 1.0, %v2266
    %v2268 = vtanh.pop %v2228
    %v2269 = vxor.u32 %v2229, 2147483648
    %v2270 = vmul.f32 %v2269, 1.442695
    %v2271 = vpow.pop %v2270
    %v2272 = vadd.f32 %v2271, 1.0
    %v2273 = vrcp.pop %v2272
    %v2274 = vmul.f32 %v2272, %v2273
    %v2275 = vsub.f32 1.0, %v2274
    %v2276 = vmul.f32 %v2273, %v2275
    %v2277 = vadd.f32 %v2273, %v2276
    %vm2278 = vweird.f32 %v2272
    %vm2279 = vweird.f32 %v2273
    %vm2280 = vmor %vm2278, %vm2279
    %v2281 = vsel %vm2280, %v2273, %v2277
    %v2282 = vand.u32 2147483647, %v2272
    %vm2283 = vcmp.eq.f32.partialorder %v2282, 8.507059e+37
    %v2284 = vand.u32 %v2272, 2147483648
    %v2285 = vor.u32 1.1754944e-38, %v2284
    %v2286 = vsel %vm2283, %v2285, %v2281
    %v2287 = vmul.f32 1.0, %v2286
    %v2288 = vmul.f32 %v2267, %v1973
    %v2289 = vmul.f32 %v2248, %v2268
    %v2290 = vadd.f32 %v2288, %v2289
    %v2291 = vtanh.pop %v2290
    %v2292 = vmul.f32 %v2287, %v2291
    %2293 = vst [vmem:[#allocation2] sm:$0xff] %v2292
    %2294 = vst [vmem:[#allocation3] sm:$0xff] %v2290
    %v2295 = vld [vmem:[#allocation2] sm:$0xff]
    %v2296 = vld [vmem:[#allocation3] sm:$0xff]
    %s2297 = scalar_lea.vmem %s0, 112
    %v2298 = vld [vmem:[%s2297] sm:$0xff]
    %v2299 = vld [vmem:[%s2297 + $0x8] sm:$0xff]
    %v2300 = vunpack.c.l.bf16 %v2298
    %v2301 = vunpack.c.h.bf16 %v2298
    %v2302 = vunpack.c.l.bf16 %v2299
    %v2303 = vunpack.c.h.bf16 %v2299
    %v2304 = vpack.c.bf16 %v2295, %v2295
    %v2305 = vld [vmem:[#allocation4] sm:$0xff]
    %v2306 = vld [vmem:[#allocation4 + $0x8] sm:$0xff]
    %v2307 = vld [vmem:[#allocation4 + $0x10] sm:$0xff]
    %v2308 = vld [vmem:[#allocation4 + $0x18] sm:$0xff]
    %v2309 = vld [vmem:[#allocation4 + $0x20] sm:$0xff]
    %v2310 = vld [vmem:[#allocation4 + $0x28] sm:$0xff]
    %v2311 = vld [vmem:[#allocation4 + $0x30] sm:$0xff]
    %v2312 = vld [vmem:[#allocation4 + $0x38] sm:$0xff]
    %v2313 = vld [vmem:[#allocation4 + $0x40] sm:$0xff]
    %v2314 = vld [vmem:[#allocation4 + $0x48] sm:$0xff]
    %v2315 = vld [vmem:[#allocation4 + $0x50] sm:$0xff]
    %v2316 = vld [vmem:[#allocation4 + $0x58] sm:$0xff]
    %v2317 = vld [vmem:[#allocation4 + $0x60] sm:$0xff]
    %v2318 = vld [vmem:[#allocation4 + $0x68] sm:$0xff]
    %v2319 = vld [vmem:[#allocation4 + $0x70] sm:$0xff]
    %v2320 = vld [vmem:[#allocation4 + $0x78] sm:$0xff]
    %v2321 = vld [vmem:[#allocation4 + $0x80] sm:$0xff]
    %v2322 = vld [vmem:[#allocation4 + $0x88] sm:$0xff]
    %v2323 = vld [vmem:[#allocation4 + $0x90] sm:$0xff]
    %v2324 = vld [vmem:[#allocation4 + $0x98] sm:$0xff]
    %v2325 = vld [vmem:[#allocation4 + $0xa0] sm:$0xff]
    %v2326 = vld [vmem:[#allocation4 + $0xa8] sm:$0xff]
    %v2327 = vld [vmem:[#allocation4 + $0xb0] sm:$0xff]
    %v2328 = vld [vmem:[#allocation4 + $0xb8] sm:$0xff]
    %v2329 = vld [vmem:[#allocation4 + $0xc0] sm:$0xff]
    %v2330 = vld [vmem:[#allocation4 + $0xc8] sm:$0xff]
    %v2331 = vld [vmem:[#allocation4 + $0xd0] sm:$0xff]
    %v2332 = vld [vmem:[#allocation4 + $0xd8] sm:$0xff]
    %v2333 = vld [vmem:[#allocation4 + $0xe0] sm:$0xff]
    %v2334 = vld [vmem:[#allocation4 + $0xe8] sm:$0xff]
    %v2335 = vld [vmem:[#allocation4 + $0xf0] sm:$0xff]
    %v2336 = vld [vmem:[#allocation4 + $0xf8] sm:$0xff]
    %v2369 = vunpack.c.l.b16 %v2305
    %v2370 = vunpack.c.h.b16 %v2305
    %v2371 = vunpack.c.l.b16 %v2306
    %v2372 = vunpack.c.h.b16 %v2306
    %v2373 = vunpack.c.l.b16 %v2307
    %v2374 = vunpack.c.h.b16 %v2307
    %v2375 = vunpack.c.l.b16 %v2308
    %v2376 = vunpack.c.h.b16 %v2308
    %v2377 = vunpack.c.l.b16 %v2309
    %v2378 = vunpack.c.h.b16 %v2309
    %v2379 = vunpack.c.l.b16 %v2310
    %v2380 = vunpack.c.h.b16 %v2310
    %v2381 = vunpack.c.l.b16 %v2311
    %v2382 = vunpack.c.h.b16 %v2311
    %v2383 = vunpack.c.l.b16 %v2312
    %v2384 = vunpack.c.h.b16 %v2312
    %v2385 = vunpack.c.l.b16 %v2313
    %v2386 = vunpack.c.h.b16 %v2313
    %v2387 = vunpack.c.l.b16 %v2314
    %v2388 = vunpack.c.h.b16 %v2314
    %v2389 = vunpack.c.l.b16 %v2315
    %v2390 = vunpack.c.h.b16 %v2315
    %v2391 = vunpack.c.l.b16 %v2316
    %v2392 = vunpack.c.h.b16 %v2316
    %v2393 = vunpack.c.l.b16 %v2317
    %v2394 = vunpack.c.h.b16 %v2317
    %v2395 = vunpack.c.l.b16 %v2318
    %v2396 = vunpack.c.h.b16 %v2318
    %v2397 = vunpack.c.l.b16 %v2319
    %v2398 = vunpack.c.h.b16 %v2319
    %v2399 = vunpack.c.l.b16 %v2320
    %v2400 = vunpack.c.h.b16 %v2320
    %v2401 = vunpack.c.l.b16 %v2321
    %v2402 = vunpack.c.h.b16 %v2321
    %v2403 = vunpack.c.l.b16 %v2322
    %v2404 = vunpack.c.h.b16 %v2322
    %v2405 = vunpack.c.l.b16 %v2323
    %v2406 = vunpack.c.h.b16 %v2323
    %v2407 = vunpack.c.l.b16 %v2324
    %v2408 = vunpack.c.h.b16 %v2324
    %v2409 = vunpack.c.l.b16 %v2325
    %v2410 = vunpack.c.h.b16 %v2325
    %v2411 = vunpack.c.l.b16 %v2326
    %v2412 = vunpack.c.h.b16 %v2326
    %v2413 = vunpack.c.l.b16 %v2327
    %v2414 = vunpack.c.h.b16 %v2327
    %v2415 = vunpack.c.l.b16 %v2328
    %v2416 = vunpack.c.h.b16 %v2328
    %v2417 = vunpack.c.l.b16 %v2329
    %v2418 = vunpack.c.h.b16 %v2329
    %v2419 = vunpack.c.l.b16 %v2330
    %v2420 = vunpack.c.h.b16 %v2330
    %v2421 = vunpack.c.l.b16 %v2331
    %v2422 = vunpack.c.h.b16 %v2331
    %v2423 = vunpack.c.l.b16 %v2332
    %v2424 = vunpack.c.h.b16 %v2332
    %v2425 = vunpack.c.l.b16 %v2333
    %v2426 = vunpack.c.h.b16 %v2333
    %v2427 = vunpack.c.l.b16 %v2334
    %v2428 = vunpack.c.h.b16 %v2334
    %v2429 = vunpack.c.l.b16 %v2335
    %v2430 = vunpack.c.h.b16 %v2335
    %v2431 = vunpack.c.l.b16 %v2336
    %v2432 = vunpack.c.h.b16 %v2336
    %v2433 = vpack.c.b16 %v2373, %v2369
    %v2434 = vpack.c.b16 %v2374, %v2370
    %v2435 = vpack.c.b16 %v2375, %v2371
    %v2436 = vpack.c.b16 %v2376, %v2372
    %v2437 = vpack.c.b16 %v2381, %v2377
    %v2438 = vpack.c.b16 %v2382, %v2378
    %v2439 = vpack.c.b16 %v2383, %v2379
    %v2440 = vpack.c.b16 %v2384, %v2380
    %v2441 = vpack.c.b16 %v2389, %v2385
    %v2442 = vpack.c.b16 %v2390, %v2386
    %v2443 = vpack.c.b16 %v2391, %v2387
    %v2444 = vpack.c.b16 %v2392, %v2388
    %v2445 = vpack.c.b16 %v2397, %v2393
    %v2446 = vpack.c.b16 %v2398, %v2394
    %v2447 = vpack.c.b16 %v2399, %v2395
    %v2448 = vpack.c.b16 %v2400, %v2396
    %v2449 = vpack.c.b16 %v2405, %v2401
    %v2450 = vpack.c.b16 %v2406, %v2402
    %v2451 = vpack.c.b16 %v2407, %v2403
    %v2452 = vpack.c.b16 %v2408, %v2404
    %v2453 = vpack.c.b16 %v2413, %v2409
    %v2454 = vpack.c.b16 %v2414, %v2410
    %v2455 = vpack.c.b16 %v2415, %v2411
    %v2456 = vpack.c.b16 %v2416, %v2412
    %v2457 = vpack.c.b16 %v2421, %v2417
    %v2458 = vpack.c.b16 %v2422, %v2418
    %v2459 = vpack.c.b16 %v2423, %v2419
    %v2460 = vpack.c.b16 %v2424, %v2420
    %v2461 = vpack.c.b16 %v2429, %v2425
    %v2462 = vpack.c.b16 %v2430, %v2426
    %v2463 = vpack.c.b16 %v2431, %v2427
    %v2464 = vpack.c.b16 %v2432, %v2428
    %2497 = vmatpush.bf16.msra.mxu0 %v2461
    %2498 = vmatpush.bf16.msra.mxu0 %v2457
    %2499 = vmatpush.bf16.msra.mxu0 %v2453
    %2500 = vmatpush.bf16.msra.mxu0 %v2449
    %2501 = vmatpush.bf16.msra.mxu0 %v2445
    %2502 = vmatpush.bf16.msra.mxu0 %v2441
    %2503 = vmatpush.bf16.msra.mxu0 %v2437
    %2504 = vmatpush.bf16.msra.mxu0 %v2433
    %2505 = vmatmul.bf16.gmra.mxu0 %v2304
    %v2506 = vpop.f32.mrf.mxu0
    %v2507 = vadd.f32 0.0, %v2506
    %v2508 = vpop.f32.mrf.mxu0
    %2509 = vdwg.mxu0
    %2510 = vmatpush.bf16.msra.mxu0 %v2462
    %2511 = vmatpush.bf16.msra.mxu0 %v2458
    %2512 = vmatpush.bf16.msra.mxu0 %v2454
    %2513 = vmatpush.bf16.msra.mxu0 %v2450
    %2514 = vmatpush.bf16.msra.mxu0 %v2446
    %2515 = vmatpush.bf16.msra.mxu0 %v2442
    %2516 = vmatpush.bf16.msra.mxu0 %v2438
    %2517 = vmatpush.bf16.msra.mxu0 %v2434
    %2518 = vmatmul.bf16.gmra.mxu0 %v2304
    %v2519 = vpop.f32.mrf.mxu0
    %v2520 = vadd.f32 0.0, %v2519
    %v2521 = vpop.f32.mrf.mxu0
    %2522 = vdwg.mxu0
    %2523 = vmatpush.bf16.msra.mxu0 %v2463
    %2524 = vmatpush.bf16.msra.mxu0 %v2459
    %2525 = vmatpush.bf16.msra.mxu0 %v2455
    %2526 = vmatpush.bf16.msra.mxu0 %v2451
    %2527 = vmatpush.bf16.msra.mxu0 %v2447
    %2528 = vmatpush.bf16.msra.mxu0 %v2443
    %2529 = vmatpush.bf16.msra.mxu0 %v2439
    %2530 = vmatpush.bf16.msra.mxu0 %v2435
    %2531 = vmatmul.bf16.gmra.mxu0 %v2304
    %v2532 = vpop.f32.mrf.mxu0
    %v2533 = vadd.f32 0.0, %v2532
    %v2534 = vpop.f32.mrf.mxu0
    %2535 = vdwg.mxu0
    %2536 = vmatpush.bf16.msra.mxu0 %v2464
    %2537 = vmatpush.bf16.msra.mxu0 %v2460
    %2538 = vmatpush.bf16.msra.mxu0 %v2456
    %2539 = vmatpush.bf16.msra.mxu0 %v2452
    %2540 = vmatpush.bf16.msra.mxu0 %v2448
    %2541 = vmatpush.bf16.msra.mxu0 %v2444
    %2542 = vmatpush.bf16.msra.mxu0 %v2440
    %2543 = vmatpush.bf16.msra.mxu0 %v2436
    %2544 = vmatmul.bf16.gmra.mxu0 %v2304
    %v2545 = vpop.f32.mrf.mxu0
    %v2546 = vadd.f32 0.0, %v2545
    %v2547 = vpop.f32.mrf.mxu0
    %2548 = vdwg.mxu0
    %v2549 = vadd.f32 %v2300, %v2507
    %v2550 = vadd.f32 %v2301, %v2520
    %v2551 = vadd.f32 %v2302, %v2533
    %v2552 = vadd.f32 %v2303, %v2546
    %v2553 = vxor.u32 %v2549, 2147483648
    %v2554 = vmul.f32 %v2553, 1.442695
    %v2555 = vpow.pop %v2554
    %v2556 = vadd.f32 %v2555, 1.0
    %v2557 = vrcp.pop %v2556
    %v2558 = vmul.f32 %v2556, %v2557
    %v2559 = vsub.f32 1.0, %v2558
    %v2560 = vmul.f32 %v2557, %v2559
    %v2561 = vadd.f32 %v2557, %v2560
    %vm2562 = vweird.f32 %v2556
    %vm2563 = vweird.f32 %v2557
    %vm2564 = vmor %vm2562, %vm2563
    %v2565 = vsel %vm2564, %v2557, %v2561
    %v2566 = vand.u32 2147483647, %v2556
    %vm2567 = vcmp.eq.f32.partialorder %v2566, 8.507059e+37
    %v2568 = vand.u32 %v2556, 2147483648
    %v2569 = vor.u32 1.1754944e-38, %v2568
    %v2570 = vsel %vm2567, %v2569, %v2565
    %v2571 = vmul.f32 1.0, %v2570
    %v2572 = vxor.u32 %v2550, 2147483648
    %v2573 = vmul.f32 %v2572, 1.442695
    %v2574 = vpow.pop %v2573
    %v2575 = vadd.f32 %v2574, 1.0
    %v2576 = vrcp.pop %v2575
    %v2577 = vmul.f32 %v2575, %v2576
    %v2578 = vsub.f32 1.0, %v2577
    %v2579 = vmul.f32 %v2576, %v2578
    %v2580 = vadd.f32 %v2576, %v2579
    %vm2581 = vweird.f32 %v2575
    %vm2582 = vweird.f32 %v2576
    %vm2583 = vmor %vm2581, %vm2582
    %v2584 = vsel %vm2583, %v2576, %v2580
    %v2585 = vand.u32 2147483647, %v2575
    %vm2586 = vcmp.eq.f32.partialorder %v2585, 8.507059e+37
    %v2587 = vand.u32 %v2575, 2147483648
    %v2588 = vor.u32 1.1754944e-38, %v2587
    %v2589 = vsel %vm2586, %v2588, %v2584
    %v2590 = vmul.f32 1.0, %v2589
    %v2591 = vtanh.pop %v2551
    %v2592 = vxor.u32 %v2552, 2147483648
    %v2593 = vmul.f32 %v2592, 1.442695
    %v2594 = vpow.pop %v2593
    %v2595 = vadd.f32 %v2594, 1.0
    %v2596 = vrcp.pop %v2595
    %v2597 = vmul.f32 %v2595, %v2596
    %v2598 = vsub.f32 1.0, %v2597
    %v2599 = vmul.f32 %v2596, %v2598
    %v2600 = vadd.f32 %v2596, %v2599
    %vm2601 = vweird.f32 %v2595
    %vm2602 = vweird.f32 %v2596
    %vm2603 = vmor %vm2601, %vm2602
    %v2604 = vsel %vm2603, %v2596, %v2600
    %v2605 = vand.u32 2147483647, %v2595
    %vm2606 = vcmp.eq.f32.partialorder %v2605, 8.507059e+37
    %v2607 = vand.u32 %v2595, 2147483648
    %v2608 = vor.u32 1.1754944e-38, %v2607
    %v2609 = vsel %vm2606, %v2608, %v2604
    %v2610 = vmul.f32 1.0, %v2609
    %v2611 = vmul.f32 %v2590, %v2296
    %v2612 = vmul.f32 %v2571, %v2591
    %v2613 = vadd.f32 %v2611, %v2612
    %v2614 = vtanh.pop %v2613
    %v2615 = vmul.f32 %v2610, %v2614
    %2616 = vst [vmem:[#allocation2] sm:$0xff] %v2615
    %2617 = vst [vmem:[#allocation3] sm:$0xff] %v2613
    // Predicated region
    $region18: #{encode_to_decode_forward.6} parent=1 // pred_check
      %p2618 = pneg %p29
    $region19: #{encode_to_decode_forward.6} parent=1 // pred_check_branch
      %2620 = sbr.rel (%p2618) target = $region21
    $region20: #{encode_to_decode_forward.6} parent=1 // pred_region
      %v2621 = vld [vmem:[#allocation2] sm:$0xff]
      %2622 = vst [vmem:[%s2] sm:$0xff] %v2621
      %v2623 = vld [vmem:[#allocation3] sm:$0xff]
      %2624 = vst [vmem:[%s3] sm:$0xff] %v2623
    $region21: #{encode_to_decode_forward.6} parent=1 // pred_fallthru
      _
    // Predicated region
    $region22: #{encode_to_decode_forward.6} parent=1 // pred_check
      _
    $region23: #{encode_to_decode_forward.6} parent=1 // pred_check_branch
      %2626 = sbr.rel (0) target = $region25
    $region24: #{encode_to_decode_forward.6} parent=1 // pred_region
      _
    $region25: #{encode_to_decode_forward.6} parent=1 // pred_fallthru
      _
    // Predicated region
    $region26: #{encode_to_decode_forward.6} parent=1 // pred_check
      _
    $region27: #{encode_to_decode_forward.6} parent=1 // pred_check_branch
      %2628 = sbr.rel (0) target = $region29
    $region28: #{encode_to_decode_forward.6} parent=1 // pred_region
      _
    $region29: #{encode_to_decode_forward.6} parent=1 // pred_fallthru
      _
    // Predicated region
    $region30: #{encode_to_decode_forward.6} parent=1 // pred_check
      _
    $region31: #{encode_to_decode_forward.6} parent=1 // pred_check_branch
      %2630 = sbr.rel (0) target = $region33
    $region32: #{encode_to_decode_forward.6} parent=1 // pred_region
      _
    $region33: #{encode_to_decode_forward.6} parent=1 // pred_fallthru
      _
    // Predicated region
    $region34: #{encode_to_decode_forward.6} parent=1 // pred_check
      _
    $region35: #{encode_to_decode_forward.6} parent=1 // pred_check_branch
      %2632 = sbr.rel (0) target = $region37
    $region36: #{encode_to_decode_forward.6} parent=1 // pred_region
      _
    $region37: #{encode_to_decode_forward.6} parent=1 // pred_fallthru
      _
    %2633 = vsyncpa [#allocation5], 1

</llo_original>
